<compile_context>
chip_gen: v7x
topology: tpu7x:2x2x1
jax: 0.10.0
libtpu: 0.0.40
codegen_flags: <defaults>
</compile_context>

<pallas_src>
import functools

import jax
import jax.numpy as jnp
from jax import lax
from jax.experimental import pallas as pl
from jax.experimental.pallas import tpu as pltpu


def _round_up(x, m):
    return (x + m - 1) // m * m


def _pad_gate_cols(w, H, Hp):
    """w: (..., 4H) -> (..., 4Hp); each of the 4 gate blocks zero-padded to Hp."""
    if H == Hp:
        return w
    pad_width = [(0, 0)] * (w.ndim - 1) + [(0, Hp - H)]
    parts = [jnp.pad(w[..., k * H:(k + 1) * H], pad_width) for k in range(4)]
    return jnp.concatenate(parts, axis=-1)


def _sigmoid_t(x):
    # sigmoid(x) == 0.5 * tanh(0.5 * x) + 0.5  -> one EUP op on the serial path.
    return 0.5 * jnp.tanh(0.5 * x) + 0.5


def _vmem_ceiling_bytes():
    cap = 64 * 1024 * 1024              # conservative default (v7x per-TC VMEM)
    try:
        cap = int(pltpu.get_tpu_info().vmem_capacity_bytes)
    except Exception:
        pass
    headroom = 8 * 1024 * 1024 if cap <= 64 * 1024 * 1024 else 24 * 1024 * 1024
    return max(cap - headroom, 16 * 1024 * 1024)


# ----------------------------- Pallas kernel --------------------------------

def _lstm_chunk_kernel(
    maxlen_ref,   # SMEM (nb,) int32: per-batch-tile max sequence length
    x_ref,        # (Tc, Bt, Ep)  matmul dtype: embeds, time-major
    len_ref,      # (Bt, 1)       int32: per-row sequence lengths
    wih_ref,      # (Ep, 4Hp)     matmul dtype
    bias_ref,     # (1, 4Hp)      f32: b_ih + b_hh (gate-block padded)
    whh_ref,      # (Hp, 4Hp)     matmul dtype
    we2d_ref,     # (Hp, Hp)      matmul dtype
    be2d_ref,     # (1, Hp)       f32
    ctx_ref,      # out f32: (Bt, Tc, Hp) if batch_major else (Tc, Bt, Hp)
    ct_ref,       # out f32: (Bt, Hp) final cell state
    dec_ref,      # out f32: (Bt, Hp) tanh(encoder2decoder(h_T))
    gin_buf,      # (Tc, Bt, 4Hp) f32 scratch: x @ W_ih + bias for this chunk
    ctx_buf,      # (Tc, Bt, Hp)  f32 scratch: time-major ctx for this chunk
    h_scratch,    # (Bt, Hp)      f32 carry across time chunks
    c_scratch,    # (Bt, Hp)      f32 carry across time chunks
    *, unroll, batch_major,
):
    b = pl.program_id(0)
    tc = pl.program_id(1)
    Tc = x_ref.shape[0]
    Hp = h_scratch.shape[-1]
    t0 = tc * Tc

    @pl.when(tc == 0)
    def _():
        h_scratch[...] = jnp.zeros_like(h_scratch)
        c_scratch[...] = jnp.zeros_like(c_scratch)

    # Chunks starting past every sequence in this batch tile do no state
    # updates; ctx there is pure padding (pad_packed_sequence -> zeros).
    active = t0 < maxlen_ref[b]

    @pl.when(jnp.logical_not(active))
    def _():
        ctx_ref[...] = jnp.zeros_like(ctx_ref)

    @pl.when(active)
    def _():
        # ---- fused input projection (off the serial h->h dependence) -------
        wih = wih_ref[...]
        bias = bias_ref[...]
        for s in range(Tc):                      # static 2-D dots, layout-safe
            gin_buf[s] = jnp.dot(
                x_ref[s], wih, preferred_element_type=jnp.float32) + bias

        whh = whh_ref[...]
        rem = len_ref[...] - t0                  # (Bt, 1) int32, hoisted

        def step(s, carry):
            h, c = carry                         # f32 (Bt, Hp)
            gates = gin_buf[s] + jnp.dot(
                h.astype(whh.dtype), whh, preferred_element_type=jnp.float32)

            # Gate slices land on 128-lane boundaries (Hp multiple of 128).
            i_g = _sigmoid_t(gates[:, 0 * Hp:1 * Hp])
            f_g = _sigmoid_t(gates[:, 1 * Hp:2 * Hp])
            g_g = jnp.tanh(gates[:, 2 * Hp:3 * Hp])
            o_g = _sigmoid_t(gates[:, 3 * Hp:4 * Hp])

            c_new = f_g * c + i_g * g_g
            h_new = o_g * jnp.tanh(c_new)

            valid = s < rem                      # (Bt, 1) bool
            # pad_packed_sequence zero-pads past each sequence's length.
            ctx_buf[s] = jnp.where(valid, h_new, 0.0)
            # pack_padded_sequence semantics: state frozen past the length.
            return jnp.where(valid, h_new, h), jnp.where(valid, c_new, c)

        h_fin, c_fin = lax.fori_loop(
            0, Tc, step, (h_scratch[...], c_scratch[...]), unroll=unroll)
        h_scratch[...] = h_fin
        c_scratch[...] = c_fin

        if batch_major:
            # Static sublane-offset stores; last dim stays lane-dense (Hp).
            for s in range(Tc):
                ctx_ref[:, s, :] = ctx_buf[s]
        else:
            ctx_ref[...] = ctx_buf[...]

    @pl.when(tc == pl.num_programs(1) - 1)
    def _():
        ct_ref[...] = c_scratch[...]
        dec_ref[...] = jnp.tanh(
            jnp.dot(h_scratch[...].astype(we2d_ref.dtype), we2d_ref[...],
                    preferred_element_type=jnp.float32) + be2d_ref[...])


# ------------------------------ host wrapper ---------------------------------

def encoder_lstm_oscar_pallas(embeds_btE, lengths, params, *,
                              t_chunk=16, b_tile=None, unroll=8,
                              matmul_dtype=jnp.bfloat16,
                              ctx_layout="batch_major"):
    """embeds_btE: (B, T, E) float32; lengths: (B,) int32.

    Returns (ctx (B,T,H), decoder_init (B,H), c_t (B,H)) matching the PyTorch
    module's eval-mode forward.
    """
    B, T, E = embeds_btE.shape
    H = params["w_hh"].shape[0]
    batch_major = (ctx_layout == "batch_major")

    # Lane/sublane-aligned padded sizes.
    Hp = _round_up(H, 128)
    Ep = _round_up(E, 128)
    Bp = _round_up(B, 8)
    if b_tile is None:
        # MXU-row-sized tile when batch is large; single tile otherwise.
        # (On v7x pass b_tile ~= Bp/2 (>=8) explicitly to use both TCs.)
        b_tile = min(Bp, 256)
    b_tile = max(8, _round_up(int(b_tile), 8))
    Bp = _round_up(Bp, b_tile)
    # Tc multiple of 8 keeps the (Tc, Hp) trailing dims of the batch-major ctx
    # block (8, 128)-aligned.
    Tc = min(_round_up(max(1, int(t_chunk)), 8), _round_up(T, 8))
    Tp = _round_up(T, Tc)
    nb, nt = Bp // b_tile, Tp // Tc
    u = True if int(unroll) >= Tc else max(1, int(unroll))

    # --- weights: gate blocks padded to Hp, rows padded, MXU operands cast ---
    w_ih = _pad_gate_cols(params["w_ih"], H, Hp)
    w_ih = jnp.pad(w_ih, ((0, Ep - E), (0, 0))).astype(matmul_dtype)        # (Ep, 4Hp)
    bias = _pad_gate_cols(
        (params["b_ih"] + params["b_hh"]).reshape(1, 4 * H), H, Hp)         # (1, 4Hp) f32
    w_hh = _pad_gate_cols(params["w_hh"], H, Hp)
    w_hh = jnp.pad(w_hh, ((0, Hp - H), (0, 0))).astype(matmul_dtype)        # (Hp, 4Hp)
    w_e2d = jnp.pad(params["w_e2d"],
                    ((0, Hp - H), (0, Hp - H))).astype(matmul_dtype)        # (Hp, Hp)
    b_e2d = jnp.pad(params["b_e2d"], (0, Hp - H)).reshape(1, Hp)            # (1, Hp) f32

    # Time-major, padded, MXU-dtype embeds (E-wide transpose is cheap; the
    # expensive 4Hp-wide gates_in intermediate no longer exists).
    x = jnp.transpose(embeds_btE, (1, 0, 2)).astype(matmul_dtype)
    x = jnp.pad(x, ((0, Tp - T), (0, Bp - B), (0, Ep - E)))                 # (Tp, Bp, Ep)

    len_col = jnp.pad(lengths.astype(jnp.int32), (0, Bp - B)).reshape(Bp, 1)
    tile_max_len = jnp.max(len_col.reshape(nb, b_tile), axis=1)             # (nb,) int32

    # --- VMEM budget (double-buffered blocks + weights + scratch) ------------
    itm = jnp.dtype(matmul_dtype).itemsize
    vmem_est = (
        2 * Tc * b_tile * Ep * itm               # embeds blocks
        + 2 * Tc * b_tile * Hp * 4               # ctx out blocks
        + 2 * 2 * b_tile * Hp * 4                # c_t / decoder_init out blocks
        + 2 * (Ep + Hp) * 4 * Hp * itm           # W_ih, W_hh (double-buffered)
        + 2 * Hp * Hp * itm                      # W_e2d
        + 2 * (5 * Hp + b_tile * 128) * 4        # biases + lengths (tile-rounded)
        + Tc * b_tile * 4 * Hp * 4               # gates scratch
        + Tc * b_tile * Hp * 4                   # ctx chunk scratch
        + 2 * b_tile * Hp * 4                    # h / c carry scratch
    )
    vmem_limit = int(min(_vmem_ceiling_bytes(),
                         max(32 * 1024 * 1024, 2 * vmem_est)))

    if batch_major:
        ctx_shape = jax.ShapeDtypeStruct((Bp, Tp, Hp), jnp.float32)
        ctx_spec = pl.BlockSpec((b_tile, Tc, Hp), lambda b, t, ml: (b, t, 0))
    else:
        ctx_shape = jax.ShapeDtypeStruct((Tp, Bp, Hp), jnp.float32)
        ctx_spec = pl.BlockSpec((Tc, b_tile, Hp), lambda b, t, ml: (t, b, 0))

    grid_spec = pltpu.PrefetchScalarGridSpec(
        num_scalar_prefetch=1,                   # per-tile max length (SMEM)
        grid=(nb, nt),
        in_specs=[
            pl.BlockSpec((Tc, b_tile, Ep), lambda b, t, ml: (t, b, 0)),  # embeds
            pl.BlockSpec((b_tile, 1), lambda b, t, ml: (b, 0)),          # lengths
            pl.BlockSpec((Ep, 4 * Hp), lambda b, t, ml: (0, 0)),         # W_ih
            pl.BlockSpec((1, 4 * Hp), lambda b, t, ml: (0, 0)),          # bias
            pl.BlockSpec((Hp, 4 * Hp), lambda b, t, ml: (0, 0)),         # W_hh
            pl.BlockSpec((Hp, Hp), lambda b, t, ml: (0, 0)),             # W_e2d
            pl.BlockSpec((1, Hp), lambda b, t, ml: (0, 0)),              # b_e2d
        ],
        out_specs=[
            ctx_spec,                                                    # ctx
            pl.BlockSpec((b_tile, Hp), lambda b, t, ml: (b, 0)),         # c_t
            pl.BlockSpec((b_tile, Hp), lambda b, t, ml: (b, 0)),         # decoder_init
        ],
        scratch_shapes=[
            pltpu.VMEM((Tc, b_tile, 4 * Hp), jnp.float32),
            pltpu.VMEM((Tc, b_tile, Hp), jnp.float32),
            pltpu.VMEM((b_tile, Hp), jnp.float32),
            pltpu.VMEM((b_tile, Hp), jnp.float32),
        ],
    )

    kernel = functools.partial(_lstm_chunk_kernel, unroll=u,
                               batch_major=batch_major)

    ctx_pad, c_t, decoder_init = pl.pallas_call(
        kernel,
        grid_spec=grid_spec,
        out_shape=(
            ctx_shape,
            jax.ShapeDtypeStruct((Bp, Hp), jnp.float32),
            jax.ShapeDtypeStruct((Bp, Hp), jnp.float32),
        ),
        compiler_params=pltpu.CompilerParams(
            dimension_semantics=("parallel", "arbitrary"),
            vmem_limit_bytes=vmem_limit),
    )(tile_max_len, x, len_col, w_ih, bias, w_hh, w_e2d, b_e2d)

    if batch_major:
        ctx = ctx_pad[:B, :T, :H]
    else:
        ctx = jnp.transpose(ctx_pad[:T, :B, :H], (1, 0, 2))
    # Dropout on ctx: eval mode => identity.
    return ctx, decoder_init[:B, :H], c_t[:B, :H]


# ------------------------ plain-JAX glue: embeddings --------------------------

def oscar_embedding(params, inputs, position_ids, token_type_ids):
    """BERT-style embedding: word + position + token_type, then LayerNorm."""
    e = (params["word_emb"][inputs]
         + params["pos_emb"][position_ids]
         + params["type_emb"][token_type_ids])
    mu = jnp.mean(e, axis=-1, keepdims=True)
    var = jnp.var(e, axis=-1, keepdims=True)
    return params["ln_g"] * (e - mu) / jnp.sqrt(var + 1e-12) + params["ln_b"]


# ------------------------------- JAX reference --------------------------------

def _reference(embeds_btE, lengths, params):
    B, T, E = embeds_btE.shape
    H = params["w_hh"].shape[0]
    Wih, Whh = params["w_ih"], params["w_hh"]
    b = (params["b_ih"] + params["b_hh"])[None, :]
    x_tbE = jnp.transpose(embeds_btE, (1, 0, 2))

    def step(carry, inp):
        h, c = carry
        x, t = inp
        gates = x @ Wih + h @ Whh + b
        i = jax.nn.sigmoid(gates[:, :H])
        f = jax.nn.sigmoid(gates[:, H:2 * H])
        g = jnp.tanh(gates[:, 2 * H:3 * H])
        o = jax.nn.sigmoid(gates[:, 3 * H:])
        c_new = f * c + i * g
        h_new = o * jnp.tanh(c_new)
        valid = (t < lengths)[:, None]
        return ((jnp.where(valid, h_new, h), jnp.where(valid, c_new, c)),
                jnp.where(valid, h_new, 0.0))

    init = (jnp.zeros((B, H), jnp.float32), jnp.zeros((B, H), jnp.float32))
    (hT, cT), ctx_tbH = lax.scan(step, init, (x_tbE, jnp.arange(T)))
    dec = jnp.tanh(hT @ params["w_e2d"] + params["b_e2d"][None, :])
    return jnp.transpose(ctx_tbH, (1, 0, 2)), dec, cT


# ----------------------------------- main --------------------------------------

def make_params(key, vocab, max_pos, E, H):
    ks = jax.random.split(key, 10)
    s = 0.1
    return {
        "word_emb": s * jax.random.normal(ks[0], (vocab, E), jnp.float32),
        "pos_emb":  s * jax.random.normal(ks[1], (max_pos, E), jnp.float32),
        "type_emb": s * jax.random.normal(ks[2], (2, E), jnp.float32),
        "ln_g": jnp.ones((E,), jnp.float32),
        "ln_b": jnp.zeros((E,), jnp.float32),
        # LSTM weights, gate order (i, f, g, o), stored as x @ W layout.
        "w_ih": s * jax.random.normal(ks[3], (E, 4 * H), jnp.float32),
        "w_hh": s * jax.random.normal(ks[4], (H, 4 * H), jnp.float32),
        "b_ih": s * jax.random.normal(ks[5], (4 * H,), jnp.float32),
        "b_hh": s * jax.random.normal(ks[6], (4 * H,), jnp.float32),
        # encoder2decoder Linear (H -> H), stored as x @ W layout.
        "w_e2d": s * jax.random.normal(ks[7], (H, H), jnp.float32),
        "b_e2d": s * jax.random.normal(ks[8], (H,), jnp.float32),
    }


if __name__ == "__main__":
    B, T, E, H = 2, 10, 32, 32          # T=10 exercises time-chunk padding
    VOCAB, MAX_POS = 100, 64

    key = jax.random.PRNGKey(0)
    k_params, k_tok = jax.random.split(key)
    params = make_params(k_params, VOCAB, MAX_POS, E, H)

    inputs = jax.random.randint(k_tok, (B, T), 0, VOCAB, jnp.int32)
    position_ids = jnp.broadcast_to(jnp.arange(T, dtype=jnp.int32), (B, T))
    token_type_ids = jnp.zeros((B, T), jnp.int32)
    lengths = jnp.array([10, 6], jnp.int32)        # sorted desc (pack_padded)
    lengths_short = jnp.array([3, 2], jnp.int32)   # exercises dead-chunk skip

    embeds = oscar_embedding(params, inputs, position_ids, token_type_ids)
    ctx_r, dec_r, c_r = _reference(embeds, lengths, params)
    ctx_r2, dec_r2, c_r2 = _reference(embeds, lengths_short, params)

    def build(ctx_layout, matmul_dtype, t_chunk):
        return jax.jit(functools.partial(
            encoder_lstm_oscar_pallas, params=params, t_chunk=t_chunk,
            matmul_dtype=matmul_dtype, ctx_layout=ctx_layout))

    # Preferred path: fused projection + batch-major ctx writeback (no XLA
    # transpose after the kernel).  If this Mosaic build rejects the
    # sublane-offset ctx stores, fall back to the previously validated
    # time-major layout (+ one XLA transpose).
    layout = "batch_major"
    try:
        fwd_f32 = build(layout, jnp.float32, 8)
        out = jax.block_until_ready(fwd_f32(embeds, lengths))
    except Exception:
        layout = "time_major"
        fwd_f32 = build(layout, jnp.float32, 8)
        out = jax.block_until_ready(fwd_f32(embeds, lengths))

    ctx, dec, c_t = out
    assert jnp.allclose(ctx, ctx_r, atol=1e-3), "ctx mismatch (f32)"
    assert jnp.allclose(dec, dec_r, atol=1e-3), "decoder_init mismatch (f32)"
    assert jnp.allclose(c_t, c_r, atol=1e-3), "c_t mismatch (f32)"

    # Dead-chunk-skip path: all time chunks past the tile's max length are
    # skipped in-kernel; final states still come from the carried scratch.
    ctx2, dec2, c2 = jax.block_until_ready(fwd_f32(embeds, lengths_short))
    assert jnp.allclose(ctx2, ctx_r2, atol=1e-3), "ctx mismatch (skip path)"
    assert jnp.allclose(dec2, dec_r2, atol=1e-3), "decoder_init mismatch (skip path)"
    assert jnp.allclose(c2, c_r2, atol=1e-3), "c_t mismatch (skip path)"

    # Default bf16-MXU-operand path (f32 accumulation + f32 gate/state math).
    # Loose tolerance: bf16 recurrent error compounds over T; re-validate at
    # production sequence lengths before relying on this path.
    fwd_bf16 = build(layout, jnp.bfloat16, 16)
    ctx_b, dec_b, c_b = jax.block_until_ready(fwd_bf16(embeds, lengths))
    assert jnp.allclose(ctx_b, ctx_r, atol=1e-1), "ctx mismatch (bf16)"
    assert jnp.allclose(dec_b, dec_r, atol=1e-1), "decoder_init mismatch (bf16)"
    assert jnp.allclose(c_b, c_r, atol=1e-1), "c_t mismatch (bf16)"

    print("KERNEL_OK")
</pallas_src>

<mosaic_0001>
module attributes {stable_mosaic.version = 11 : i64} {
  func.func @_lstm_chunk_kernel(%arg0: i32, %arg1: i32, %arg2: memref<1xi32, #tpu.memory_space<smem>>, %arg3: memref<8x8x128xf32, #tpu.memory_space<vmem>>, %arg4: memref<8x1xi32, #tpu.memory_space<vmem>>, %arg5: memref<128x512xf32, #tpu.memory_space<vmem>>, %arg6: memref<1x512xf32, #tpu.memory_space<vmem>>, %arg7: memref<128x512xf32, #tpu.memory_space<vmem>>, %arg8: memref<128x128xf32, #tpu.memory_space<vmem>>, %arg9: memref<1x128xf32, #tpu.memory_space<vmem>>, %arg10: memref<8x8x128xf32, #tpu.memory_space<vmem>>, %arg11: memref<8x128xf32, #tpu.memory_space<vmem>>, %arg12: memref<8x128xf32, #tpu.memory_space<vmem>>, %arg13: memref<8x8x512xf32, #tpu.memory_space<vmem>>, %arg14: memref<8x8x128xf32, #tpu.memory_space<vmem>>, %arg15: memref<8x128xf32, #tpu.memory_space<vmem>>, %arg16: memref<8x128xf32, #tpu.memory_space<vmem>>) attributes {dimension_semantics = [#tpu.dimension_semantics<parallel>, #tpu.dimension_semantics<arbitrary>], iteration_bounds = array<i64: 1, 2>, scalar_prefetch = 1 : i64, scratch_operands = 4 : i64, tpu.core_type = #tpu.core_type<tc>, window_params = [{transform_indices = @transform_0, window_bounds = array<i64: 8, 8, 128>}, {transform_indices = @transform_1, window_bounds = array<i64: 8, 1>}, {pipeline_mode = #tpu.pipeline_mode<synchronous>, transform_indices = @transform_2, window_bounds = array<i64: 128, 512>}, {pipeline_mode = #tpu.pipeline_mode<synchronous>, transform_indices = @transform_3, window_bounds = array<i64: 1, 512>}, {pipeline_mode = #tpu.pipeline_mode<synchronous>, transform_indices = @transform_4, window_bounds = array<i64: 128, 512>}, {pipeline_mode = #tpu.pipeline_mode<synchronous>, transform_indices = @transform_5, window_bounds = array<i64: 128, 128>}, {pipeline_mode = #tpu.pipeline_mode<synchronous>, transform_indices = @transform_6, window_bounds = array<i64: 1, 128>}, {transform_indices = @transform_7, window_bounds = array<i64: 8, 8, 128>}, {transform_indices = @transform_8, window_bounds = array<i64: 8, 128>}, {transform_indices = @transform_9, window_bounds = array<i64: 8, 128>}]} {
    %c8_i32 = arith.constant 8 : i32
    %0 = arith.muli %arg1, %c8_i32 : i32
    %c0_i32 = arith.constant 0 : i32
    %1 = arith.cmpi eq, %arg1, %c0_i32 : i32
    %2 = arith.extui %1 : i1 to i32
    %c0_i32_0 = arith.constant 0 : i32
    %3 = arith.cmpi ne, %2, %c0_i32_0 : i32
    scf.if %3 {
      %cst = arith.constant 0.000000e+00 : f32
      %15 = vector.broadcast %cst : f32 to vector<8x128xf32>
      %c0 = arith.constant 0 : index
      %c0_4 = arith.constant 0 : index
      %16 = vector.load %arg15[%c0, %c0_4] : memref<8x128xf32, #tpu.memory_space<vmem>>, vector<8x128xf32>
      tpu.vector_store %arg15[%c0, %c0_4], %15 {strides = array<i32>} : memref<8x128xf32, #tpu.memory_space<vmem>>, vector<8x128xf32>,
      %cst_5 = arith.constant 0.000000e+00 : f32
      %17 = vector.broadcast %cst_5 : f32 to vector<8x128xf32>
      %c0_6 = arith.constant 0 : index
      %c0_7 = arith.constant 0 : index
      %18 = vector.load %arg16[%c0_6, %c0_7] : memref<8x128xf32, #tpu.memory_space<vmem>>, vector<8x128xf32>
      tpu.vector_store %arg16[%c0_6, %c0_7], %17 {strides = array<i32>} : memref<8x128xf32, #tpu.memory_space<vmem>>, vector<8x128xf32>,
    } else {
    }
    %4 = arith.index_cast %arg0 : i32 to index
    %5 = memref.load %arg2[%4] : memref<1xi32, #tpu.memory_space<smem>>
    %6 = arith.cmpi slt, %0, %5 : i32
    %true = arith.constant true
    %7 = arith.xori %6, %true : i1
    %8 = arith.extui %7 : i1 to i32
    %c0_i32_1 = arith.constant 0 : i32
    %9 = arith.cmpi ne, %8, %c0_i32_1 : i32
    scf.if %9 {
      %cst = arith.constant 0.000000e+00 : f32
      %15 = vector.broadcast %cst : f32 to vector<8x8x128xf32>
      %c0 = arith.constant 0 : index
      %c0_4 = arith.constant 0 : index
      %c0_5 = arith.constant 0 : index
      %16 = vector.load %arg10[%c0, %c0_4, %c0_5] : memref<8x8x128xf32, #tpu.memory_space<vmem>>, vector<8x8x128xf32>
      tpu.vector_store %arg10[%c0, %c0_4, %c0_5], %15 {strides = array<i32>} : memref<8x8x128xf32, #tpu.memory_space<vmem>>, vector<8x8x128xf32>,
    } else {
    }
    %10 = arith.extui %6 : i1 to i32
    %c0_i32_2 = arith.constant 0 : i32
    %11 = arith.cmpi ne, %10, %c0_i32_2 : i32
    scf.if %11 {
      %c0 = arith.constant 0 : index
      %c0_4 = arith.constant 0 : index
      %15 = vector.load %arg5[%c0, %c0_4] : memref<128x512xf32, #tpu.memory_space<vmem>>, vector<128x512xf32>
      %c0_5 = arith.constant 0 : index
      %c0_6 = arith.constant 0 : index
      %16 = vector.load %arg6[%c0_5, %c0_6] : memref<1x512xf32, #tpu.memory_space<vmem>>, vector<1x512xf32>
      %c0_7 = arith.constant 0 : index
      %c0_8 = arith.constant 0 : index
      %c0_9 = arith.constant 0 : index
      %17 = vector.load %arg3[%c0_7, %c0_8, %c0_9] : memref<8x8x128xf32, #tpu.memory_space<vmem>>, vector<1x8x128xf32>
      %18 = vector.shape_cast %17 : vector<1x8x128xf32> to vector<8x128xf32>
      %cst = arith.constant dense<0.000000e+00> : vector<8x512xf32>
      %19 = tpu.matmul %18, %15, %cst {dimension_numbers = #tpu.dot_dimension_numbers<[1], [0], [0], [1], [0, 0, 1, 1], [], []>} : vector<8x128xf32>, vector<128x512xf32>, vector<8x512xf32> -> vector<8x512xf32>
      %20 = vector.broadcast %16 : vector<1x512xf32> to vector<8x512xf32>
      %21 = arith.addf %19, %20 : vector<8x512xf32>
      %c0_10 = arith.constant 0 : index
      %c0_11 = arith.constant 0 : index
      %c0_12 = arith.constant 0 : index
      %22 = vector.load %arg13[%c0_10, %c0_11, %c0_12] : memref<8x8x512xf32, #tpu.memory_space<vmem>>, vector<1x8x512xf32>
      %23 = vector.shape_cast %22 : vector<1x8x512xf32> to vector<8x512xf32>
      %24 = vector.shape_cast %21 : vector<8x512xf32> to vector<1x8x512xf32>
      tpu.vector_store %arg13[%c0_10, %c0_11, %c0_12], %24 {strides = array<i32>} : memref<8x8x512xf32, #tpu.memory_space<vmem>>, vector<1x8x512xf32>,
      %c1 = arith.constant 1 : index
      %c0_13 = arith.constant 0 : index
      %c0_14 = arith.constant 0 : index
      %25 = vector.load %arg3[%c1, %c0_13, %c0_14] : memref<8x8x128xf32, #tpu.memory_space<vmem>>, vector<1x8x128xf32>
      %26 = vector.shape_cast %25 : vector<1x8x128xf32> to vector<8x128xf32>
      %cst_15 = arith.constant dense<0.000000e+00> : vector<8x512xf32>
      %27 = tpu.matmul %26, %15, %cst_15 {dimension_numbers = #tpu.dot_dimension_numbers<[1], [0], [0], [1], [0, 0, 1, 1], [], []>} : vector<8x128xf32>, vector<128x512xf32>, vector<8x512xf32> -> vector<8x512xf32>
      %28 = vector.broadcast %16 : vector<1x512xf32> to vector<8x512xf32>
      %29 = arith.addf %27, %28 : vector<8x512xf32>
      %c1_16 = arith.constant 1 : index
      %c0_17 = arith.constant 0 : index
      %c0_18 = arith.constant 0 : index
      %30 = vector.load %arg13[%c1_16, %c0_17, %c0_18] : memref<8x8x512xf32, #tpu.memory_space<vmem>>, vector<1x8x512xf32>
      %31 = vector.shape_cast %30 : vector<1x8x512xf32> to vector<8x512xf32>
      %32 = vector.shape_cast %29 : vector<8x512xf32> to vector<1x8x512xf32>
      tpu.vector_store %arg13[%c1_16, %c0_17, %c0_18], %32 {strides = array<i32>} : memref<8x8x512xf32, #tpu.memory_space<vmem>>, vector<1x8x512xf32>,
      %c2 = arith.constant 2 : index
      %c0_19 = arith.constant 0 : index
      %c0_20 = arith.constant 0 : index
      %33 = vector.load %arg3[%c2, %c0_19, %c0_20] : memref<8x8x128xf32, #tpu.memory_space<vmem>>, vector<1x8x128xf32>
      %34 = vector.shape_cast %33 : vector<1x8x128xf32> to vector<8x128xf32>
      %cst_21 = arith.constant dense<0.000000e+00> : vector<8x512xf32>
      %35 = tpu.matmul %34, %15, %cst_21 {dimension_numbers = #tpu.dot_dimension_numbers<[1], [0], [0], [1], [0, 0, 1, 1], [], []>} : vector<8x128xf32>, vector<128x512xf32>, vector<8x512xf32> -> vector<8x512xf32>
      %36 = vector.broadcast %16 : vector<1x512xf32> to vector<8x512xf32>
      %37 = arith.addf %35, %36 : vector<8x512xf32>
      %c2_22 = arith.constant 2 : index
      %c0_23 = arith.constant 0 : index
      %c0_24 = arith.constant 0 : index
      %38 = vector.load %arg13[%c2_22, %c0_23, %c0_24] : memref<8x8x512xf32, #tpu.memory_space<vmem>>, vector<1x8x512xf32>
      %39 = vector.shape_cast %38 : vector<1x8x512xf32> to vector<8x512xf32>
      %40 = vector.shape_cast %37 : vector<8x512xf32> to vector<1x8x512xf32>
      tpu.vector_store %arg13[%c2_22, %c0_23, %c0_24], %40 {strides = array<i32>} : memref<8x8x512xf32, #tpu.memory_space<vmem>>, vector<1x8x512xf32>,
      %c3 = arith.constant 3 : index
      %c0_25 = arith.constant 0 : index
      %c0_26 = arith.constant 0 : index
      %41 = vector.load %arg3[%c3, %c0_25, %c0_26] : memref<8x8x128xf32, #tpu.memory_space<vmem>>, vector<1x8x128xf32>
      %42 = vector.shape_cast %41 : vector<1x8x128xf32> to vector<8x128xf32>
      %cst_27 = arith.constant dense<0.000000e+00> : vector<8x512xf32>
      %43 = tpu.matmul %42, %15, %cst_27 {dimension_numbers = #tpu.dot_dimension_numbers<[1], [0], [0], [1], [0, 0, 1, 1], [], []>} : vector<8x128xf32>, vector<128x512xf32>, vector<8x512xf32> -> vector<8x512xf32>
      %44 = vector.broadcast %16 : vector<1x512xf32> to vector<8x512xf32>
      %45 = arith.addf %43, %44 : vector<8x512xf32>
      %c3_28 = arith.constant 3 : index
      %c0_29 = arith.constant 0 : index
      %c0_30 = arith.constant 0 : index
      %46 = vector.load %arg13[%c3_28, %c0_29, %c0_30] : memref<8x8x512xf32, #tpu.memory_space<vmem>>, vector<1x8x512xf32>
      %47 = vector.shape_cast %46 : vector<1x8x512xf32> to vector<8x512xf32>
      %48 = vector.shape_cast %45 : vector<8x512xf32> to vector<1x8x512xf32>
      tpu.vector_store %arg13[%c3_28, %c0_29, %c0_30], %48 {strides = array<i32>} : memref<8x8x512xf32, #tpu.memory_space<vmem>>, vector<1x8x512xf32>,
      %c4 = arith.constant 4 : index
      %c0_31 = arith.constant 0 : index
      %c0_32 = arith.constant 0 : index
      %49 = vector.load %arg3[%c4, %c0_31, %c0_32] : memref<8x8x128xf32, #tpu.memory_space<vmem>>, vector<1x8x128xf32>
      %50 = vector.shape_cast %49 : vector<1x8x128xf32> to vector<8x128xf32>
      %cst_33 = arith.constant dense<0.000000e+00> : vector<8x512xf32>
      %51 = tpu.matmul %50, %15, %cst_33 {dimension_numbers = #tpu.dot_dimension_numbers<[1], [0], [0], [1], [0, 0, 1, 1], [], []>} : vector<8x128xf32>, vector<128x512xf32>, vector<8x512xf32> -> vector<8x512xf32>
      %52 = vector.broadcast %16 : vector<1x512xf32> to vector<8x512xf32>
      %53 = arith.addf %51, %52 : vector<8x512xf32>
      %c4_34 = arith.constant 4 : index
      %c0_35 = arith.constant 0 : index
      %c0_36 = arith.constant 0 : index
      %54 = vector.load %arg13[%c4_34, %c0_35, %c0_36] : memref<8x8x512xf32, #tpu.memory_space<vmem>>, vector<1x8x512xf32>
      %55 = vector.shape_cast %54 : vector<1x8x512xf32> to vector<8x512xf32>
      %56 = vector.shape_cast %53 : vector<8x512xf32> to vector<1x8x512xf32>
      tpu.vector_store %arg13[%c4_34, %c0_35, %c0_36], %56 {strides = array<i32>} : memref<8x8x512xf32, #tpu.memory_space<vmem>>, vector<1x8x512xf32>,
      %c5 = arith.constant 5 : index
      %c0_37 = arith.constant 0 : index
      %c0_38 = arith.constant 0 : index
      %57 = vector.load %arg3[%c5, %c0_37, %c0_38] : memref<8x8x128xf32, #tpu.memory_space<vmem>>, vector<1x8x128xf32>
      %58 = vector.shape_cast %57 : vector<1x8x128xf32> to vector<8x128xf32>
      %cst_39 = arith.constant dense<0.000000e+00> : vector<8x512xf32>
      %59 = tpu.matmul %58, %15, %cst_39 {dimension_numbers = #tpu.dot_dimension_numbers<[1], [0], [0], [1], [0, 0, 1, 1], [], []>} : vector<8x128xf32>, vector<128x512xf32>, vector<8x512xf32> -> vector<8x512xf32>
      %60 = vector.broadcast %16 : vector<1x512xf32> to vector<8x512xf32>
      %61 = arith.addf %59, %60 : vector<8x512xf32>
      %c5_40 = arith.constant 5 : index
      %c0_41 = arith.constant 0 : index
      %c0_42 = arith.constant 0 : index
      %62 = vector.load %arg13[%c5_40, %c0_41, %c0_42] : memref<8x8x512xf32, #tpu.memory_space<vmem>>, vector<1x8x512xf32>
      %63 = vector.shape_cast %62 : vector<1x8x512xf32> to vector<8x512xf32>
      %64 = vector.shape_cast %61 : vector<8x512xf32> to vector<1x8x512xf32>
      tpu.vector_store %arg13[%c5_40, %c0_41, %c0_42], %64 {strides = array<i32>} : memref<8x8x512xf32, #tpu.memory_space<vmem>>, vector<1x8x512xf32>,
      %c6 = arith.constant 6 : index
      %c0_43 = arith.constant 0 : index
      %c0_44 = arith.constant 0 : index
      %65 = vector.load %arg3[%c6, %c0_43, %c0_44] : memref<8x8x128xf32, #tpu.memory_space<vmem>>, vector<1x8x128xf32>
      %66 = vector.shape_cast %65 : vector<1x8x128xf32> to vector<8x128xf32>
      %cst_45 = arith.constant dense<0.000000e+00> : vector<8x512xf32>
      %67 = tpu.matmul %66, %15, %cst_45 {dimension_numbers = #tpu.dot_dimension_numbers<[1], [0], [0], [1], [0, 0, 1, 1], [], []>} : vector<8x128xf32>, vector<128x512xf32>, vector<8x512xf32> -> vector<8x512xf32>
      %68 = vector.broadcast %16 : vector<1x512xf32> to vector<8x512xf32>
      %69 = arith.addf %67, %68 : vector<8x512xf32>
      %c6_46 = arith.constant 6 : index
      %c0_47 = arith.constant 0 : index
      %c0_48 = arith.constant 0 : index
      %70 = vector.load %arg13[%c6_46, %c0_47, %c0_48] : memref<8x8x512xf32, #tpu.memory_space<vmem>>, vector<1x8x512xf32>
      %71 = vector.shape_cast %70 : vector<1x8x512xf32> to vector<8x512xf32>
      %72 = vector.shape_cast %69 : vector<8x512xf32> to vector<1x8x512xf32>
      tpu.vector_store %arg13[%c6_46, %c0_47, %c0_48], %72 {strides = array<i32>} : memref<8x8x512xf32, #tpu.memory_space<vmem>>, vector<1x8x512xf32>,
      %c7 = arith.constant 7 : index
      %c0_49 = arith.constant 0 : index
      %c0_50 = arith.constant 0 : index
      %73 = vector.load %arg3[%c7, %c0_49, %c0_50] : memref<8x8x128xf32, #tpu.memory_space<vmem>>, vector<1x8x128xf32>
      %74 = vector.shape_cast %73 : vector<1x8x128xf32> to vector<8x128xf32>
      %cst_51 = arith.constant dense<0.000000e+00> : vector<8x512xf32>
      %75 = tpu.matmul %74, %15, %cst_51 {dimension_numbers = #tpu.dot_dimension_numbers<[1], [0], [0], [1], [0, 0, 1, 1], [], []>} : vector<8x128xf32>, vector<128x512xf32>, vector<8x512xf32> -> vector<8x512xf32>
      %76 = vector.broadcast %16 : vector<1x512xf32> to vector<8x512xf32>
      %77 = arith.addf %75, %76 : vector<8x512xf32>
      %c7_52 = arith.constant 7 : index
      %c0_53 = arith.constant 0 : index
      %c0_54 = arith.constant 0 : index
      %78 = vector.load %arg13[%c7_52, %c0_53, %c0_54] : memref<8x8x512xf32, #tpu.memory_space<vmem>>, vector<1x8x512xf32>
      %79 = vector.shape_cast %78 : vector<1x8x512xf32> to vector<8x512xf32>
      %80 = vector.shape_cast %77 : vector<8x512xf32> to vector<1x8x512xf32>
      tpu.vector_store %arg13[%c7_52, %c0_53, %c0_54], %80 {strides = array<i32>} : memref<8x8x512xf32, #tpu.memory_space<vmem>>, vector<1x8x512xf32>,
      %c0_55 = arith.constant 0 : index
      %c0_56 = arith.constant 0 : index
      %81 = vector.load %arg7[%c0_55, %c0_56] : memref<128x512xf32, #tpu.memory_space<vmem>>, vector<128x512xf32>
      %c0_57 = arith.constant 0 : index
      %c0_58 = arith.constant 0 : index
      %82 = vector.load %arg4[%c0_57, %c0_58] : memref<8x1xi32, #tpu.memory_space<vmem>>, vector<8x1xi32>
      %83 = vector.broadcast %0 : i32 to vector<8x1xi32>
      %84 = arith.subi %82, %83 : vector<8x1xi32>
      %c0_59 = arith.constant 0 : index
      %c0_60 = arith.constant 0 : index
      %85 = vector.load %arg15[%c0_59, %c0_60] : memref<8x128xf32, #tpu.memory_space<vmem>>, vector<8x128xf32>
      %c0_61 = arith.constant 0 : index
      %c0_62 = arith.constant 0 : index
      %86 = vector.load %arg16[%c0_61, %c0_62] : memref<8x128xf32, #tpu.memory_space<vmem>>, vector<8x128xf32>
      %c0_i32_63 = arith.constant 0 : i32
      %87 = arith.index_cast %c0_i32_63 : i32 to index
      %c0_64 = arith.constant 0 : index
      %c0_65 = arith.constant 0 : index
      %88 = vector.load %arg13[%87, %c0_64, %c0_65] : memref<8x8x512xf32, #tpu.memory_space<vmem>>, vector<1x8x512xf32>
      %89 = vector.shape_cast %88 : vector<1x8x512xf32> to vector<8x512xf32>
      %cst_66 = arith.constant dense<0.000000e+00> : vector<8x512xf32>
      %90 = tpu.matmul %85, %81, %cst_66 {dimension_numbers = #tpu.dot_dimension_numbers<[1], [0], [0], [1], [0, 0, 1, 1], [], []>} : vector<8x128xf32>, vector<128x512xf32>, vector<8x512xf32> -> vector<8x512xf32>
      %91 = arith.addf %89, %90 : vector<8x512xf32>
      %92 = vector.extract_strided_slice %91 {offsets = [0, 0], sizes = [8, 128], strides = [1, 1]} : vector<8x512xf32> to vector<8x128xf32>
      %cst_67 = arith.constant 5.000000e-01 : f32
      %93 = vector.broadcast %cst_67 : f32 to vector<8x128xf32>
      %94 = arith.mulf %93, %92 : vector<8x128xf32>
      %95 = math.tanh %94 : vector<8x128xf32>
      %cst_68 = arith.constant 5.000000e-01 : f32
      %96 = vector.broadcast %cst_68 : f32 to vector<8x128xf32>
      %97 = arith.mulf %96, %95 : vector<8x128xf32>
      %cst_69 = arith.constant 5.000000e-01 : f32
      %98 = vector.broadcast %cst_69 : f32 to vector<8x128xf32>
      %99 = arith.addf %97, %98 : vector<8x128xf32>
      %100 = vector.extract_strided_slice %91 {offsets = [0, 128], sizes = [8, 128], strides = [1, 1]} : vector<8x512xf32> to vector<8x128xf32>
      %cst_70 = arith.constant 5.000000e-01 : f32
      %101 = vector.broadcast %cst_70 : f32 to vector<8x128xf32>
      %102 = arith.mulf %101, %100 : vector<8x128xf32>
      %103 = math.tanh %102 : vector<8x128xf32>
      %cst_71 = arith.constant 5.000000e-01 : f32
      %104 = vector.broadcast %cst_71 : f32 to vector<8x128xf32>
      %105 = arith.mulf %104, %103 : vector<8x128xf32>
      %cst_72 = arith.constant 5.000000e-01 : f32
      %106 = vector.broadcast %cst_72 : f32 to vector<8x128xf32>
      %107 = arith.addf %105, %106 : vector<8x128xf32>
      %108 = vector.extract_strided_slice %91 {offsets = [0, 256], sizes = [8, 128], strides = [1, 1]} : vector<8x512xf32> to vector<8x128xf32>
      %109 = math.tanh %108 : vector<8x128xf32>
      %110 = vector.extract_strided_slice %91 {offsets = [0, 384], sizes = [8, 128], strides = [1, 1]} : vector<8x512xf32> to vector<8x128xf32>
      %cst_73 = arith.constant 5.000000e-01 : f32
      %111 = vector.broadcast %cst_73 : f32 to vector<8x128xf32>
      %112 = arith.mulf %111, %110 : vector<8x128xf32>
      %113 = math.tanh %112 : vector<8x128xf32>
      %cst_74 = arith.constant 5.000000e-01 : f32
      %114 = vector.broadcast %cst_74 : f32 to vector<8x128xf32>
      %115 = arith.mulf %114, %113 : vector<8x128xf32>
      %cst_75 = arith.constant 5.000000e-01 : f32
      %116 = vector.broadcast %cst_75 : f32 to vector<8x128xf32>
      %117 = arith.addf %115, %116 : vector<8x128xf32>
      %118 = arith.mulf %107, %86 : vector<8x128xf32>
      %119 = arith.mulf %99, %109 : vector<8x128xf32>
      %120 = arith.addf %118, %119 : vector<8x128xf32>
      %121 = math.tanh %120 : vector<8x128xf32>
      %122 = arith.mulf %117, %121 : vector<8x128xf32>
      %123 = vector.broadcast %c0_i32_63 : i32 to vector<8x1xi32>
      %124 = arith.cmpi slt, %123, %84 : vector<8x1xi32>
      %cst_76 = arith.constant 0.000000e+00 : f32
      %125 = vector.shape_cast %124 : vector<8x1xi1> to vector<8x1xi1>
      %126 = vector.broadcast %125 : vector<8x1xi1> to vector<8x128xi1>
      %127 = vector.broadcast %cst_76 : f32 to vector<8x128xf32>
      %128 = arith.select %126, %122, %127 : vector<8x128xi1>, vector<8x128xf32>
      %129 = arith.index_cast %c0_i32_63 : i32 to index
      %c0_77 = arith.constant 0 : index
      %c0_78 = arith.constant 0 : index
      %130 = vector.load %arg14[%129, %c0_77, %c0_78] : memref<8x8x128xf32, #tpu.memory_space<vmem>>, vector<1x8x128xf32>
      %131 = vector.shape_cast %130 : vector<1x8x128xf32> to vector<8x128xf32>
      %132 = vector.shape_cast %128 : vector<8x128xf32> to vector<1x8x128xf32>
      tpu.vector_store %arg14[%129, %c0_77, %c0_78], %132 {strides = array<i32>} : memref<8x8x128xf32, #tpu.memory_space<vmem>>, vector<1x8x128xf32>,
      %133 = vector.shape_cast %124 : vector<8x1xi1> to vector<8x1xi1>
      %134 = vector.broadcast %133 : vector<8x1xi1> to vector<8x128xi1>
      %135 = arith.select %134, %122, %85 : vector<8x128xi1>, vector<8x128xf32>
      %136 = vector.shape_cast %124 : vector<8x1xi1> to vector<8x1xi1>
      %137 = vector.broadcast %136 : vector<8x1xi1> to vector<8x128xi1>
      %138 = arith.select %137, %120, %86 : vector<8x128xi1>, vector<8x128xf32>
      %c1_i32_79 = arith.constant 1 : i32
      %139 = arith.index_cast %c1_i32_79 : i32 to index
      %c0_80 = arith.constant 0 : index
      %c0_81 = arith.constant 0 : index
      %140 = vector.load %arg13[%139, %c0_80, %c0_81] : memref<8x8x512xf32, #tpu.memory_space<vmem>>, vector<1x8x512xf32>
      %141 = vector.shape_cast %140 : vector<1x8x512xf32> to vector<8x512xf32>
      %cst_82 = arith.constant dense<0.000000e+00> : vector<8x512xf32>
      %142 = tpu.matmul %135, %81, %cst_82 {dimension_numbers = #tpu.dot_dimension_numbers<[1], [0], [0], [1], [0, 0, 1, 1], [], []>} : vector<8x128xf32>, vector<128x512xf32>, vector<8x512xf32> -> vector<8x512xf32>
      %143 = arith.addf %141, %142 : vector<8x512xf32>
      %144 = vector.extract_strided_slice %143 {offsets = [0, 0], sizes = [8, 128], strides = [1, 1]} : vector<8x512xf32> to vector<8x128xf32>
      %cst_83 = arith.constant 5.000000e-01 : f32
      %145 = vector.broadcast %cst_83 : f32 to vector<8x128xf32>
      %146 = arith.mulf %145, %144 : vector<8x128xf32>
      %147 = math.tanh %146 : vector<8x128xf32>
      %cst_84 = arith.constant 5.000000e-01 : f32
      %148 = vector.broadcast %cst_84 : f32 to vector<8x128xf32>
      %149 = arith.mulf %148, %147 : vector<8x128xf32>
      %cst_85 = arith.constant 5.000000e-01 : f32
      %150 = vector.broadcast %cst_85 : f32 to vector<8x128xf32>
      %151 = arith.addf %149, %150 : vector<8x128xf32>
      %152 = vector.extract_strided_slice %143 {offsets = [0, 128], sizes = [8, 128], strides = [1, 1]} : vector<8x512xf32> to vector<8x128xf32>
      %cst_86 = arith.constant 5.000000e-01 : f32
      %153 = vector.broadcast %cst_86 : f32 to vector<8x128xf32>
      %154 = arith.mulf %153, %152 : vector<8x128xf32>
      %155 = math.tanh %154 : vector<8x128xf32>
      %cst_87 = arith.constant 5.000000e-01 : f32
      %156 = vector.broadcast %cst_87 : f32 to vector<8x128xf32>
      %157 = arith.mulf %156, %155 : vector<8x128xf32>
      %cst_88 = arith.constant 5.000000e-01 : f32
      %158 = vector.broadcast %cst_88 : f32 to vector<8x128xf32>
      %159 = arith.addf %157, %158 : vector<8x128xf32>
      %160 = vector.extract_strided_slice %143 {offsets = [0, 256], sizes = [8, 128], strides = [1, 1]} : vector<8x512xf32> to vector<8x128xf32>
      %161 = math.tanh %160 : vector<8x128xf32>
      %162 = vector.extract_strided_slice %143 {offsets = [0, 384], sizes = [8, 128], strides = [1, 1]} : vector<8x512xf32> to vector<8x128xf32>
      %cst_89 = arith.constant 5.000000e-01 : f32
      %163 = vector.broadcast %cst_89 : f32 to vector<8x128xf32>
      %164 = arith.mulf %163, %162 : vector<8x128xf32>
      %165 = math.tanh %164 : vector<8x128xf32>
      %cst_90 = arith.constant 5.000000e-01 : f32
      %166 = vector.broadcast %cst_90 : f32 to vector<8x128xf32>
      %167 = arith.mulf %166, %165 : vector<8x128xf32>
      %cst_91 = arith.constant 5.000000e-01 : f32
      %168 = vector.broadcast %cst_91 : f32 to vector<8x128xf32>
      %169 = arith.addf %167, %168 : vector<8x128xf32>
      %170 = arith.mulf %159, %138 : vector<8x128xf32>
      %171 = arith.mulf %151, %161 : vector<8x128xf32>
      %172 = arith.addf %170, %171 : vector<8x128xf32>
      %173 = math.tanh %172 : vector<8x128xf32>
      %174 = arith.mulf %169, %173 : vector<8x128xf32>
      %175 = vector.broadcast %c1_i32_79 : i32 to vector<8x1xi32>
      %176 = arith.cmpi slt, %175, %84 : vector<8x1xi32>
      %cst_92 = arith.constant 0.000000e+00 : f32
      %177 = vector.shape_cast %176 : vector<8x1xi1> to vector<8x1xi1>
      %178 = vector.broadcast %177 : vector<8x1xi1> to vector<8x128xi1>
      %179 = vector.broadcast %cst_92 : f32 to vector<8x128xf32>
      %180 = arith.select %178, %174, %179 : vector<8x128xi1>, vector<8x128xf32>
      %181 = arith.index_cast %c1_i32_79 : i32 to index
      %c0_93 = arith.constant 0 : index
      %c0_94 = arith.constant 0 : index
      %182 = vector.load %arg14[%181, %c0_93, %c0_94] : memref<8x8x128xf32, #tpu.memory_space<vmem>>, vector<1x8x128xf32>
      %183 = vector.shape_cast %182 : vector<1x8x128xf32> to vector<8x128xf32>
      %184 = vector.shape_cast %180 : vector<8x128xf32> to vector<1x8x128xf32>
      tpu.vector_store %arg14[%181, %c0_93, %c0_94], %184 {strides = array<i32>} : memref<8x8x128xf32, #tpu.memory_space<vmem>>, vector<1x8x128xf32>,
      %185 = vector.shape_cast %176 : vector<8x1xi1> to vector<8x1xi1>
      %186 = vector.broadcast %185 : vector<8x1xi1> to vector<8x128xi1>
      %187 = arith.select %186, %174, %135 : vector<8x128xi1>, vector<8x128xf32>
      %188 = vector.shape_cast %176 : vector<8x1xi1> to vector<8x1xi1>
      %189 = vector.broadcast %188 : vector<8x1xi1> to vector<8x128xi1>
      %190 = arith.select %189, %172, %138 : vector<8x128xi1>, vector<8x128xf32>
      %c2_i32 = arith.constant 2 : i32
      %191 = arith.index_cast %c2_i32 : i32 to index
      %c0_95 = arith.constant 0 : index
      %c0_96 = arith.constant 0 : index
      %192 = vector.load %arg13[%191, %c0_95, %c0_96] : memref<8x8x512xf32, #tpu.memory_space<vmem>>, vector<1x8x512xf32>
      %193 = vector.shape_cast %192 : vector<1x8x512xf32> to vector<8x512xf32>
      %cst_97 = arith.constant dense<0.000000e+00> : vector<8x512xf32>
      %194 = tpu.matmul %187, %81, %cst_97 {dimension_numbers = #tpu.dot_dimension_numbers<[1], [0], [0], [1], [0, 0, 1, 1], [], []>} : vector<8x128xf32>, vector<128x512xf32>, vector<8x512xf32> -> vector<8x512xf32>
      %195 = arith.addf %193, %194 : vector<8x512xf32>
      %196 = vector.extract_strided_slice %195 {offsets = [0, 0], sizes = [8, 128], strides = [1, 1]} : vector<8x512xf32> to vector<8x128xf32>
      %cst_98 = arith.constant 5.000000e-01 : f32
      %197 = vector.broadcast %cst_98 : f32 to vector<8x128xf32>
      %198 = arith.mulf %197, %196 : vector<8x128xf32>
      %199 = math.tanh %198 : vector<8x128xf32>
      %cst_99 = arith.constant 5.000000e-01 : f32
      %200 = vector.broadcast %cst_99 : f32 to vector<8x128xf32>
      %201 = arith.mulf %200, %199 : vector<8x128xf32>
      %cst_100 = arith.constant 5.000000e-01 : f32
      %202 = vector.broadcast %cst_100 : f32 to vector<8x128xf32>
      %203 = arith.addf %201, %202 : vector<8x128xf32>
      %204 = vector.extract_strided_slice %195 {offsets = [0, 128], sizes = [8, 128], strides = [1, 1]} : vector<8x512xf32> to vector<8x128xf32>
      %cst_101 = arith.constant 5.000000e-01 : f32
      %205 = vector.broadcast %cst_101 : f32 to vector<8x128xf32>
      %206 = arith.mulf %205, %204 : vector<8x128xf32>
      %207 = math.tanh %206 : vector<8x128xf32>
      %cst_102 = arith.constant 5.000000e-01 : f32
      %208 = vector.broadcast %cst_102 : f32 to vector<8x128xf32>
      %209 = arith.mulf %208, %207 : vector<8x128xf32>
      %cst_103 = arith.constant 5.000000e-01 : f32
      %210 = vector.broadcast %cst_103 : f32 to vector<8x128xf32>
      %211 = arith.addf %209, %210 : vector<8x128xf32>
      %212 = vector.extract_strided_slice %195 {offsets = [0, 256], sizes = [8, 128], strides = [1, 1]} : vector<8x512xf32> to vector<8x128xf32>
      %213 = math.tanh %212 : vector<8x128xf32>
      %214 = vector.extract_strided_slice %195 {offsets = [0, 384], sizes = [8, 128], strides = [1, 1]} : vector<8x512xf32> to vector<8x128xf32>
      %cst_104 = arith.constant 5.000000e-01 : f32
      %215 = vector.broadcast %cst_104 : f32 to vector<8x128xf32>
      %216 = arith.mulf %215, %214 : vector<8x128xf32>
      %217 = math.tanh %216 : vector<8x128xf32>
      %cst_105 = arith.constant 5.000000e-01 : f32
      %218 = vector.broadcast %cst_105 : f32 to vector<8x128xf32>
      %219 = arith.mulf %218, %217 : vector<8x128xf32>
      %cst_106 = arith.constant 5.000000e-01 : f32
      %220 = vector.broadcast %cst_106 : f32 to vector<8x128xf32>
      %221 = arith.addf %219, %220 : vector<8x128xf32>
      %222 = arith.mulf %211, %190 : vector<8x128xf32>
      %223 = arith.mulf %203, %213 : vector<8x128xf32>
      %224 = arith.addf %222, %223 : vector<8x128xf32>
      %225 = math.tanh %224 : vector<8x128xf32>
      %226 = arith.mulf %221, %225 : vector<8x128xf32>
      %227 = vector.broadcast %c2_i32 : i32 to vector<8x1xi32>
      %228 = arith.cmpi slt, %227, %84 : vector<8x1xi32>
      %cst_107 = arith.constant 0.000000e+00 : f32
      %229 = vector.shape_cast %228 : vector<8x1xi1> to vector<8x1xi1>
      %230 = vector.broadcast %229 : vector<8x1xi1> to vector<8x128xi1>
      %231 = vector.broadcast %cst_107 : f32 to vector<8x128xf32>
      %232 = arith.select %230, %226, %231 : vector<8x128xi1>, vector<8x128xf32>
      %233 = arith.index_cast %c2_i32 : i32 to index
      %c0_108 = arith.constant 0 : index
      %c0_109 = arith.constant 0 : index
      %234 = vector.load %arg14[%233, %c0_108, %c0_109] : memref<8x8x128xf32, #tpu.memory_space<vmem>>, vector<1x8x128xf32>
      %235 = vector.shape_cast %234 : vector<1x8x128xf32> to vector<8x128xf32>
      %236 = vector.shape_cast %232 : vector<8x128xf32> to vector<1x8x128xf32>
      tpu.vector_store %arg14[%233, %c0_108, %c0_109], %236 {strides = array<i32>} : memref<8x8x128xf32, #tpu.memory_space<vmem>>, vector<1x8x128xf32>,
      %237 = vector.shape_cast %228 : vector<8x1xi1> to vector<8x1xi1>
      %238 = vector.broadcast %237 : vector<8x1xi1> to vector<8x128xi1>
      %239 = arith.select %238, %226, %187 : vector<8x128xi1>, vector<8x128xf32>
      %240 = vector.shape_cast %228 : vector<8x1xi1> to vector<8x1xi1>
      %241 = vector.broadcast %240 : vector<8x1xi1> to vector<8x128xi1>
      %242 = arith.select %241, %224, %190 : vector<8x128xi1>, vector<8x128xf32>
      %c3_i32 = arith.constant 3 : i32
      %243 = arith.index_cast %c3_i32 : i32 to index
      %c0_110 = arith.constant 0 : index
      %c0_111 = arith.constant 0 : index
      %244 = vector.load %arg13[%243, %c0_110, %c0_111] : memref<8x8x512xf32, #tpu.memory_space<vmem>>, vector<1x8x512xf32>
      %245 = vector.shape_cast %244 : vector<1x8x512xf32> to vector<8x512xf32>
      %cst_112 = arith.constant dense<0.000000e+00> : vector<8x512xf32>
      %246 = tpu.matmul %239, %81, %cst_112 {dimension_numbers = #tpu.dot_dimension_numbers<[1], [0], [0], [1], [0, 0, 1, 1], [], []>} : vector<8x128xf32>, vector<128x512xf32>, vector<8x512xf32> -> vector<8x512xf32>
      %247 = arith.addf %245, %246 : vector<8x512xf32>
      %248 = vector.extract_strided_slice %247 {offsets = [0, 0], sizes = [8, 128], strides = [1, 1]} : vector<8x512xf32> to vector<8x128xf32>
      %cst_113 = arith.constant 5.000000e-01 : f32
      %249 = vector.broadcast %cst_113 : f32 to vector<8x128xf32>
      %250 = arith.mulf %249, %248 : vector<8x128xf32>
      %251 = math.tanh %250 : vector<8x128xf32>
      %cst_114 = arith.constant 5.000000e-01 : f32
      %252 = vector.broadcast %cst_114 : f32 to vector<8x128xf32>
      %253 = arith.mulf %252, %251 : vector<8x128xf32>
      %cst_115 = arith.constant 5.000000e-01 : f32
      %254 = vector.broadcast %cst_115 : f32 to vector<8x128xf32>
      %255 = arith.addf %253, %254 : vector<8x128xf32>
      %256 = vector.extract_strided_slice %247 {offsets = [0, 128], sizes = [8, 128], strides = [1, 1]} : vector<8x512xf32> to vector<8x128xf32>
      %cst_116 = arith.constant 5.000000e-01 : f32
      %257 = vector.broadcast %cst_116 : f32 to vector<8x128xf32>
      %258 = arith.mulf %257, %256 : vector<8x128xf32>
      %259 = math.tanh %258 : vector<8x128xf32>
      %cst_117 = arith.constant 5.000000e-01 : f32
      %260 = vector.broadcast %cst_117 : f32 to vector<8x128xf32>
      %261 = arith.mulf %260, %259 : vector<8x128xf32>
      %cst_118 = arith.constant 5.000000e-01 : f32
      %262 = vector.broadcast %cst_118 : f32 to vector<8x128xf32>
      %263 = arith.addf %261, %262 : vector<8x128xf32>
      %264 = vector.extract_strided_slice %247 {offsets = [0, 256], sizes = [8, 128], strides = [1, 1]} : vector<8x512xf32> to vector<8x128xf32>
      %265 = math.tanh %264 : vector<8x128xf32>
      %266 = vector.extract_strided_slice %247 {offsets = [0, 384], sizes = [8, 128], strides = [1, 1]} : vector<8x512xf32> to vector<8x128xf32>
      %cst_119 = arith.constant 5.000000e-01 : f32
      %267 = vector.broadcast %cst_119 : f32 to vector<8x128xf32>
      %268 = arith.mulf %267, %266 : vector<8x128xf32>
      %269 = math.tanh %268 : vector<8x128xf32>
      %cst_120 = arith.constant 5.000000e-01 : f32
      %270 = vector.broadcast %cst_120 : f32 to vector<8x128xf32>
      %271 = arith.mulf %270, %269 : vector<8x128xf32>
      %cst_121 = arith.constant 5.000000e-01 : f32
      %272 = vector.broadcast %cst_121 : f32 to vector<8x128xf32>
      %273 = arith.addf %271, %272 : vector<8x128xf32>
      %274 = arith.mulf %263, %242 : vector<8x128xf32>
      %275 = arith.mulf %255, %265 : vector<8x128xf32>
      %276 = arith.addf %274, %275 : vector<8x128xf32>
      %277 = math.tanh %276 : vector<8x128xf32>
      %278 = arith.mulf %273, %277 : vector<8x128xf32>
      %279 = vector.broadcast %c3_i32 : i32 to vector<8x1xi32>
      %280 = arith.cmpi slt, %279, %84 : vector<8x1xi32>
      %cst_122 = arith.constant 0.000000e+00 : f32
      %281 = vector.shape_cast %280 : vector<8x1xi1> to vector<8x1xi1>
      %282 = vector.broadcast %281 : vector<8x1xi1> to vector<8x128xi1>
      %283 = vector.broadcast %cst_122 : f32 to vector<8x128xf32>
      %284 = arith.select %282, %278, %283 : vector<8x128xi1>, vector<8x128xf32>
      %285 = arith.index_cast %c3_i32 : i32 to index
      %c0_123 = arith.constant 0 : index
      %c0_124 = arith.constant 0 : index
      %286 = vector.load %arg14[%285, %c0_123, %c0_124] : memref<8x8x128xf32, #tpu.memory_space<vmem>>, vector<1x8x128xf32>
      %287 = vector.shape_cast %286 : vector<1x8x128xf32> to vector<8x128xf32>
      %288 = vector.shape_cast %284 : vector<8x128xf32> to vector<1x8x128xf32>
      tpu.vector_store %arg14[%285, %c0_123, %c0_124], %288 {strides = array<i32>} : memref<8x8x128xf32, #tpu.memory_space<vmem>>, vector<1x8x128xf32>,
      %289 = vector.shape_cast %280 : vector<8x1xi1> to vector<8x1xi1>
      %290 = vector.broadcast %289 : vector<8x1xi1> to vector<8x128xi1>
      %291 = arith.select %290, %278, %239 : vector<8x128xi1>, vector<8x128xf32>
      %292 = vector.shape_cast %280 : vector<8x1xi1> to vector<8x1xi1>
      %293 = vector.broadcast %292 : vector<8x1xi1> to vector<8x128xi1>
      %294 = arith.select %293, %276, %242 : vector<8x128xi1>, vector<8x128xf32>
      %c4_i32 = arith.constant 4 : i32
      %295 = arith.index_cast %c4_i32 : i32 to index
      %c0_125 = arith.constant 0 : index
      %c0_126 = arith.constant 0 : index
      %296 = vector.load %arg13[%295, %c0_125, %c0_126] : memref<8x8x512xf32, #tpu.memory_space<vmem>>, vector<1x8x512xf32>
      %297 = vector.shape_cast %296 : vector<1x8x512xf32> to vector<8x512xf32>
      %cst_127 = arith.constant dense<0.000000e+00> : vector<8x512xf32>
      %298 = tpu.matmul %291, %81, %cst_127 {dimension_numbers = #tpu.dot_dimension_numbers<[1], [0], [0], [1], [0, 0, 1, 1], [], []>} : vector<8x128xf32>, vector<128x512xf32>, vector<8x512xf32> -> vector<8x512xf32>
      %299 = arith.addf %297, %298 : vector<8x512xf32>
      %300 = vector.extract_strided_slice %299 {offsets = [0, 0], sizes = [8, 128], strides = [1, 1]} : vector<8x512xf32> to vector<8x128xf32>
      %cst_128 = arith.constant 5.000000e-01 : f32
      %301 = vector.broadcast %cst_128 : f32 to vector<8x128xf32>
      %302 = arith.mulf %301, %300 : vector<8x128xf32>
      %303 = math.tanh %302 : vector<8x128xf32>
      %cst_129 = arith.constant 5.000000e-01 : f32
      %304 = vector.broadcast %cst_129 : f32 to vector<8x128xf32>
      %305 = arith.mulf %304, %303 : vector<8x128xf32>
      %cst_130 = arith.constant 5.000000e-01 : f32
      %306 = vector.broadcast %cst_130 : f32 to vector<8x128xf32>
      %307 = arith.addf %305, %306 : vector<8x128xf32>
      %308 = vector.extract_strided_slice %299 {offsets = [0, 128], sizes = [8, 128], strides = [1, 1]} : vector<8x512xf32> to vector<8x128xf32>
      %cst_131 = arith.constant 5.000000e-01 : f32
      %309 = vector.broadcast %cst_131 : f32 to vector<8x128xf32>
      %310 = arith.mulf %309, %308 : vector<8x128xf32>
      %311 = math.tanh %310 : vector<8x128xf32>
      %cst_132 = arith.constant 5.000000e-01 : f32
      %312 = vector.broadcast %cst_132 : f32 to vector<8x128xf32>
      %313 = arith.mulf %312, %311 : vector<8x128xf32>
      %cst_133 = arith.constant 5.000000e-01 : f32
      %314 = vector.broadcast %cst_133 : f32 to vector<8x128xf32>
      %315 = arith.addf %313, %314 : vector<8x128xf32>
      %316 = vector.extract_strided_slice %299 {offsets = [0, 256], sizes = [8, 128], strides = [1, 1]} : vector<8x512xf32> to vector<8x128xf32>
      %317 = math.tanh %316 : vector<8x128xf32>
      %318 = vector.extract_strided_slice %299 {offsets = [0, 384], sizes = [8, 128], strides = [1, 1]} : vector<8x512xf32> to vector<8x128xf32>
      %cst_134 = arith.constant 5.000000e-01 : f32
      %319 = vector.broadcast %cst_134 : f32 to vector<8x128xf32>
      %320 = arith.mulf %319, %318 : vector<8x128xf32>
      %321 = math.tanh %320 : vector<8x128xf32>
      %cst_135 = arith.constant 5.000000e-01 : f32
      %322 = vector.broadcast %cst_135 : f32 to vector<8x128xf32>
      %323 = arith.mulf %322, %321 : vector<8x128xf32>
      %cst_136 = arith.constant 5.000000e-01 : f32
      %324 = vector.broadcast %cst_136 : f32 to vector<8x128xf32>
      %325 = arith.addf %323, %324 : vector<8x128xf32>
      %326 = arith.mulf %315, %294 : vector<8x128xf32>
      %327 = arith.mulf %307, %317 : vector<8x128xf32>
      %328 = arith.addf %326, %327 : vector<8x128xf32>
      %329 = math.tanh %328 : vector<8x128xf32>
      %330 = arith.mulf %325, %329 : vector<8x128xf32>
      %331 = vector.broadcast %c4_i32 : i32 to vector<8x1xi32>
      %332 = arith.cmpi slt, %331, %84 : vector<8x1xi32>
      %cst_137 = arith.constant 0.000000e+00 : f32
      %333 = vector.shape_cast %332 : vector<8x1xi1> to vector<8x1xi1>
      %334 = vector.broadcast %333 : vector<8x1xi1> to vector<8x128xi1>
      %335 = vector.broadcast %cst_137 : f32 to vector<8x128xf32>
      %336 = arith.select %334, %330, %335 : vector<8x128xi1>, vector<8x128xf32>
      %337 = arith.index_cast %c4_i32 : i32 to index
      %c0_138 = arith.constant 0 : index
      %c0_139 = arith.constant 0 : index
      %338 = vector.load %arg14[%337, %c0_138, %c0_139] : memref<8x8x128xf32, #tpu.memory_space<vmem>>, vector<1x8x128xf32>
      %339 = vector.shape_cast %338 : vector<1x8x128xf32> to vector<8x128xf32>
      %340 = vector.shape_cast %336 : vector<8x128xf32> to vector<1x8x128xf32>
      tpu.vector_store %arg14[%337, %c0_138, %c0_139], %340 {strides = array<i32>} : memref<8x8x128xf32, #tpu.memory_space<vmem>>, vector<1x8x128xf32>,
      %341 = vector.shape_cast %332 : vector<8x1xi1> to vector<8x1xi1>
      %342 = vector.broadcast %341 : vector<8x1xi1> to vector<8x128xi1>
      %343 = arith.select %342, %330, %291 : vector<8x128xi1>, vector<8x128xf32>
      %344 = vector.shape_cast %332 : vector<8x1xi1> to vector<8x1xi1>
      %345 = vector.broadcast %344 : vector<8x1xi1> to vector<8x128xi1>
      %346 = arith.select %345, %328, %294 : vector<8x128xi1>, vector<8x128xf32>
      %c5_i32 = arith.constant 5 : i32
      %347 = arith.index_cast %c5_i32 : i32 to index
      %c0_140 = arith.constant 0 : index
      %c0_141 = arith.constant 0 : index
      %348 = vector.load %arg13[%347, %c0_140, %c0_141] : memref<8x8x512xf32, #tpu.memory_space<vmem>>, vector<1x8x512xf32>
      %349 = vector.shape_cast %348 : vector<1x8x512xf32> to vector<8x512xf32>
      %cst_142 = arith.constant dense<0.000000e+00> : vector<8x512xf32>
      %350 = tpu.matmul %343, %81, %cst_142 {dimension_numbers = #tpu.dot_dimension_numbers<[1], [0], [0], [1], [0, 0, 1, 1], [], []>} : vector<8x128xf32>, vector<128x512xf32>, vector<8x512xf32> -> vector<8x512xf32>
      %351 = arith.addf %349, %350 : vector<8x512xf32>
      %352 = vector.extract_strided_slice %351 {offsets = [0, 0], sizes = [8, 128], strides = [1, 1]} : vector<8x512xf32> to vector<8x128xf32>
      %cst_143 = arith.constant 5.000000e-01 : f32
      %353 = vector.broadcast %cst_143 : f32 to vector<8x128xf32>
      %354 = arith.mulf %353, %352 : vector<8x128xf32>
      %355 = math.tanh %354 : vector<8x128xf32>
      %cst_144 = arith.constant 5.000000e-01 : f32
      %356 = vector.broadcast %cst_144 : f32 to vector<8x128xf32>
      %357 = arith.mulf %356, %355 : vector<8x128xf32>
      %cst_145 = arith.constant 5.000000e-01 : f32
      %358 = vector.broadcast %cst_145 : f32 to vector<8x128xf32>
      %359 = arith.addf %357, %358 : vector<8x128xf32>
      %360 = vector.extract_strided_slice %351 {offsets = [0, 128], sizes = [8, 128], strides = [1, 1]} : vector<8x512xf32> to vector<8x128xf32>
      %cst_146 = arith.constant 5.000000e-01 : f32
      %361 = vector.broadcast %cst_146 : f32 to vector<8x128xf32>
      %362 = arith.mulf %361, %360 : vector<8x128xf32>
      %363 = math.tanh %362 : vector<8x128xf32>
      %cst_147 = arith.constant 5.000000e-01 : f32
      %364 = vector.broadcast %cst_147 : f32 to vector<8x128xf32>
      %365 = arith.mulf %364, %363 : vector<8x128xf32>
      %cst_148 = arith.constant 5.000000e-01 : f32
      %366 = vector.broadcast %cst_148 : f32 to vector<8x128xf32>
      %367 = arith.addf %365, %366 : vector<8x128xf32>
      %368 = vector.extract_strided_slice %351 {offsets = [0, 256], sizes = [8, 128], strides = [1, 1]} : vector<8x512xf32> to vector<8x128xf32>
      %369 = math.tanh %368 : vector<8x128xf32>
      %370 = vector.extract_strided_slice %351 {offsets = [0, 384], sizes = [8, 128], strides = [1, 1]} : vector<8x512xf32> to vector<8x128xf32>
      %cst_149 = arith.constant 5.000000e-01 : f32
      %371 = vector.broadcast %cst_149 : f32 to vector<8x128xf32>
      %372 = arith.mulf %371, %370 : vector<8x128xf32>
      %373 = math.tanh %372 : vector<8x128xf32>
      %cst_150 = arith.constant 5.000000e-01 : f32
      %374 = vector.broadcast %cst_150 : f32 to vector<8x128xf32>
      %375 = arith.mulf %374, %373 : vector<8x128xf32>
      %cst_151 = arith.constant 5.000000e-01 : f32
      %376 = vector.broadcast %cst_151 : f32 to vector<8x128xf32>
      %377 = arith.addf %375, %376 : vector<8x128xf32>
      %378 = arith.mulf %367, %346 : vector<8x128xf32>
      %379 = arith.mulf %359, %369 : vector<8x128xf32>
      %380 = arith.addf %378, %379 : vector<8x128xf32>
      %381 = math.tanh %380 : vector<8x128xf32>
      %382 = arith.mulf %377, %381 : vector<8x128xf32>
      %383 = vector.broadcast %c5_i32 : i32 to vector<8x1xi32>
      %384 = arith.cmpi slt, %383, %84 : vector<8x1xi32>
      %cst_152 = arith.constant 0.000000e+00 : f32
      %385 = vector.shape_cast %384 : vector<8x1xi1> to vector<8x1xi1>
      %386 = vector.broadcast %385 : vector<8x1xi1> to vector<8x128xi1>
      %387 = vector.broadcast %cst_152 : f32 to vector<8x128xf32>
      %388 = arith.select %386, %382, %387 : vector<8x128xi1>, vector<8x128xf32>
      %389 = arith.index_cast %c5_i32 : i32 to index
      %c0_153 = arith.constant 0 : index
      %c0_154 = arith.constant 0 : index
      %390 = vector.load %arg14[%389, %c0_153, %c0_154] : memref<8x8x128xf32, #tpu.memory_space<vmem>>, vector<1x8x128xf32>
      %391 = vector.shape_cast %390 : vector<1x8x128xf32> to vector<8x128xf32>
      %392 = vector.shape_cast %388 : vector<8x128xf32> to vector<1x8x128xf32>
      tpu.vector_store %arg14[%389, %c0_153, %c0_154], %392 {strides = array<i32>} : memref<8x8x128xf32, #tpu.memory_space<vmem>>, vector<1x8x128xf32>,
      %393 = vector.shape_cast %384 : vector<8x1xi1> to vector<8x1xi1>
      %394 = vector.broadcast %393 : vector<8x1xi1> to vector<8x128xi1>
      %395 = arith.select %394, %382, %343 : vector<8x128xi1>, vector<8x128xf32>
      %396 = vector.shape_cast %384 : vector<8x1xi1> to vector<8x1xi1>
      %397 = vector.broadcast %396 : vector<8x1xi1> to vector<8x128xi1>
      %398 = arith.select %397, %380, %346 : vector<8x128xi1>, vector<8x128xf32>
      %c6_i32 = arith.constant 6 : i32
      %399 = arith.index_cast %c6_i32 : i32 to index
      %c0_155 = arith.constant 0 : index
      %c0_156 = arith.constant 0 : index
      %400 = vector.load %arg13[%399, %c0_155, %c0_156] : memref<8x8x512xf32, #tpu.memory_space<vmem>>, vector<1x8x512xf32>
      %401 = vector.shape_cast %400 : vector<1x8x512xf32> to vector<8x512xf32>
      %cst_157 = arith.constant dense<0.000000e+00> : vector<8x512xf32>
      %402 = tpu.matmul %395, %81, %cst_157 {dimension_numbers = #tpu.dot_dimension_numbers<[1], [0], [0], [1], [0, 0, 1, 1], [], []>} : vector<8x128xf32>, vector<128x512xf32>, vector<8x512xf32> -> vector<8x512xf32>
      %403 = arith.addf %401, %402 : vector<8x512xf32>
      %404 = vector.extract_strided_slice %403 {offsets = [0, 0], sizes = [8, 128], strides = [1, 1]} : vector<8x512xf32> to vector<8x128xf32>
      %cst_158 = arith.constant 5.000000e-01 : f32
      %405 = vector.broadcast %cst_158 : f32 to vector<8x128xf32>
      %406 = arith.mulf %405, %404 : vector<8x128xf32>
      %407 = math.tanh %406 : vector<8x128xf32>
      %cst_159 = arith.constant 5.000000e-01 : f32
      %408 = vector.broadcast %cst_159 : f32 to vector<8x128xf32>
      %409 = arith.mulf %408, %407 : vector<8x128xf32>
      %cst_160 = arith.constant 5.000000e-01 : f32
      %410 = vector.broadcast %cst_160 : f32 to vector<8x128xf32>
      %411 = arith.addf %409, %410 : vector<8x128xf32>
      %412 = vector.extract_strided_slice %403 {offsets = [0, 128], sizes = [8, 128], strides = [1, 1]} : vector<8x512xf32> to vector<8x128xf32>
      %cst_161 = arith.constant 5.000000e-01 : f32
      %413 = vector.broadcast %cst_161 : f32 to vector<8x128xf32>
      %414 = arith.mulf %413, %412 : vector<8x128xf32>
      %415 = math.tanh %414 : vector<8x128xf32>
      %cst_162 = arith.constant 5.000000e-01 : f32
      %416 = vector.broadcast %cst_162 : f32 to vector<8x128xf32>
      %417 = arith.mulf %416, %415 : vector<8x128xf32>
      %cst_163 = arith.constant 5.000000e-01 : f32
      %418 = vector.broadcast %cst_163 : f32 to vector<8x128xf32>
      %419 = arith.addf %417, %418 : vector<8x128xf32>
      %420 = vector.extract_strided_slice %403 {offsets = [0, 256], sizes = [8, 128], strides = [1, 1]} : vector<8x512xf32> to vector<8x128xf32>
      %421 = math.tanh %420 : vector<8x128xf32>
      %422 = vector.extract_strided_slice %403 {offsets = [0, 384], sizes = [8, 128], strides = [1, 1]} : vector<8x512xf32> to vector<8x128xf32>
      %cst_164 = arith.constant 5.000000e-01 : f32
      %423 = vector.broadcast %cst_164 : f32 to vector<8x128xf32>
      %424 = arith.mulf %423, %422 : vector<8x128xf32>
      %425 = math.tanh %424 : vector<8x128xf32>
      %cst_165 = arith.constant 5.000000e-01 : f32
      %426 = vector.broadcast %cst_165 : f32 to vector<8x128xf32>
      %427 = arith.mulf %426, %425 : vector<8x128xf32>
      %cst_166 = arith.constant 5.000000e-01 : f32
      %428 = vector.broadcast %cst_166 : f32 to vector<8x128xf32>
      %429 = arith.addf %427, %428 : vector<8x128xf32>
      %430 = arith.mulf %419, %398 : vector<8x128xf32>
      %431 = arith.mulf %411, %421 : vector<8x128xf32>
      %432 = arith.addf %430, %431 : vector<8x128xf32>
      %433 = math.tanh %432 : vector<8x128xf32>
      %434 = arith.mulf %429, %433 : vector<8x128xf32>
      %435 = vector.broadcast %c6_i32 : i32 to vector<8x1xi32>
      %436 = arith.cmpi slt, %435, %84 : vector<8x1xi32>
      %cst_167 = arith.constant 0.000000e+00 : f32
      %437 = vector.shape_cast %436 : vector<8x1xi1> to vector<8x1xi1>
      %438 = vector.broadcast %437 : vector<8x1xi1> to vector<8x128xi1>
      %439 = vector.broadcast %cst_167 : f32 to vector<8x128xf32>
      %440 = arith.select %438, %434, %439 : vector<8x128xi1>, vector<8x128xf32>
      %441 = arith.index_cast %c6_i32 : i32 to index
      %c0_168 = arith.constant 0 : index
      %c0_169 = arith.constant 0 : index
      %442 = vector.load %arg14[%441, %c0_168, %c0_169] : memref<8x8x128xf32, #tpu.memory_space<vmem>>, vector<1x8x128xf32>
      %443 = vector.shape_cast %442 : vector<1x8x128xf32> to vector<8x128xf32>
      %444 = vector.shape_cast %440 : vector<8x128xf32> to vector<1x8x128xf32>
      tpu.vector_store %arg14[%441, %c0_168, %c0_169], %444 {strides = array<i32>} : memref<8x8x128xf32, #tpu.memory_space<vmem>>, vector<1x8x128xf32>,
      %445 = vector.shape_cast %436 : vector<8x1xi1> to vector<8x1xi1>
      %446 = vector.broadcast %445 : vector<8x1xi1> to vector<8x128xi1>
      %447 = arith.select %446, %434, %395 : vector<8x128xi1>, vector<8x128xf32>
      %448 = vector.shape_cast %436 : vector<8x1xi1> to vector<8x1xi1>
      %449 = vector.broadcast %448 : vector<8x1xi1> to vector<8x128xi1>
      %450 = arith.select %449, %432, %398 : vector<8x128xi1>, vector<8x128xf32>
      %c7_i32 = arith.constant 7 : i32
      %451 = arith.index_cast %c7_i32 : i32 to index
      %c0_170 = arith.constant 0 : index
      %c0_171 = arith.constant 0 : index
      %452 = vector.load %arg13[%451, %c0_170, %c0_171] : memref<8x8x512xf32, #tpu.memory_space<vmem>>, vector<1x8x512xf32>
      %453 = vector.shape_cast %452 : vector<1x8x512xf32> to vector<8x512xf32>
      %cst_172 = arith.constant dense<0.000000e+00> : vector<8x512xf32>
      %454 = tpu.matmul %447, %81, %cst_172 {dimension_numbers = #tpu.dot_dimension_numbers<[1], [0], [0], [1], [0, 0, 1, 1], [], []>} : vector<8x128xf32>, vector<128x512xf32>, vector<8x512xf32> -> vector<8x512xf32>
      %455 = arith.addf %453, %454 : vector<8x512xf32>
      %456 = vector.extract_strided_slice %455 {offsets = [0, 0], sizes = [8, 128], strides = [1, 1]} : vector<8x512xf32> to vector<8x128xf32>
      %cst_173 = arith.constant 5.000000e-01 : f32
      %457 = vector.broadcast %cst_173 : f32 to vector<8x128xf32>
      %458 = arith.mulf %457, %456 : vector<8x128xf32>
      %459 = math.tanh %458 : vector<8x128xf32>
      %cst_174 = arith.constant 5.000000e-01 : f32
      %460 = vector.broadcast %cst_174 : f32 to vector<8x128xf32>
      %461 = arith.mulf %460, %459 : vector<8x128xf32>
      %cst_175 = arith.constant 5.000000e-01 : f32
      %462 = vector.broadcast %cst_175 : f32 to vector<8x128xf32>
      %463 = arith.addf %461, %462 : vector<8x128xf32>
      %464 = vector.extract_strided_slice %455 {offsets = [0, 128], sizes = [8, 128], strides = [1, 1]} : vector<8x512xf32> to vector<8x128xf32>
      %cst_176 = arith.constant 5.000000e-01 : f32
      %465 = vector.broadcast %cst_176 : f32 to vector<8x128xf32>
      %466 = arith.mulf %465, %464 : vector<8x128xf32>
      %467 = math.tanh %466 : vector<8x128xf32>
      %cst_177 = arith.constant 5.000000e-01 : f32
      %468 = vector.broadcast %cst_177 : f32 to vector<8x128xf32>
      %469 = arith.mulf %468, %467 : vector<8x128xf32>
      %cst_178 = arith.constant 5.000000e-01 : f32
      %470 = vector.broadcast %cst_178 : f32 to vector<8x128xf32>
      %471 = arith.addf %469, %470 : vector<8x128xf32>
      %472 = vector.extract_strided_slice %455 {offsets = [0, 256], sizes = [8, 128], strides = [1, 1]} : vector<8x512xf32> to vector<8x128xf32>
      %473 = math.tanh %472 : vector<8x128xf32>
      %474 = vector.extract_strided_slice %455 {offsets = [0, 384], sizes = [8, 128], strides = [1, 1]} : vector<8x512xf32> to vector<8x128xf32>
      %cst_179 = arith.constant 5.000000e-01 : f32
      %475 = vector.broadcast %cst_179 : f32 to vector<8x128xf32>
      %476 = arith.mulf %475, %474 : vector<8x128xf32>
      %477 = math.tanh %476 : vector<8x128xf32>
      %cst_180 = arith.constant 5.000000e-01 : f32
      %478 = vector.broadcast %cst_180 : f32 to vector<8x128xf32>
      %479 = arith.mulf %478, %477 : vector<8x128xf32>
      %cst_181 = arith.constant 5.000000e-01 : f32
      %480 = vector.broadcast %cst_181 : f32 to vector<8x128xf32>
      %481 = arith.addf %479, %480 : vector<8x128xf32>
      %482 = arith.mulf %471, %450 : vector<8x128xf32>
      %483 = arith.mulf %463, %473 : vector<8x128xf32>
      %484 = arith.addf %482, %483 : vector<8x128xf32>
      %485 = math.tanh %484 : vector<8x128xf32>
      %486 = arith.mulf %481, %485 : vector<8x128xf32>
      %487 = vector.broadcast %c7_i32 : i32 to vector<8x1xi32>
      %488 = arith.cmpi slt, %487, %84 : vector<8x1xi32>
      %cst_182 = arith.constant 0.000000e+00 : f32
      %489 = vector.shape_cast %488 : vector<8x1xi1> to vector<8x1xi1>
      %490 = vector.broadcast %489 : vector<8x1xi1> to vector<8x128xi1>
      %491 = vector.broadcast %cst_182 : f32 to vector<8x128xf32>
      %492 = arith.select %490, %486, %491 : vector<8x128xi1>, vector<8x128xf32>
      %493 = arith.index_cast %c7_i32 : i32 to index
      %c0_183 = arith.constant 0 : index
      %c0_184 = arith.constant 0 : index
      %494 = vector.load %arg14[%493, %c0_183, %c0_184] : memref<8x8x128xf32, #tpu.memory_space<vmem>>, vector<1x8x128xf32>
      %495 = vector.shape_cast %494 : vector<1x8x128xf32> to vector<8x128xf32>
      %496 = vector.shape_cast %492 : vector<8x128xf32> to vector<1x8x128xf32>
      tpu.vector_store %arg14[%493, %c0_183, %c0_184], %496 {strides = array<i32>} : memref<8x8x128xf32, #tpu.memory_space<vmem>>, vector<1x8x128xf32>,
      %497 = vector.shape_cast %488 : vector<8x1xi1> to vector<8x1xi1>
      %498 = vector.broadcast %497 : vector<8x1xi1> to vector<8x128xi1>
      %499 = arith.select %498, %486, %447 : vector<8x128xi1>, vector<8x128xf32>
      %500 = vector.shape_cast %488 : vector<8x1xi1> to vector<8x1xi1>
      %501 = vector.broadcast %500 : vector<8x1xi1> to vector<8x128xi1>
      %502 = arith.select %501, %484, %450 : vector<8x128xi1>, vector<8x128xf32>
      %c8_i32_185 = arith.constant 8 : i32
      %c0_186 = arith.constant 0 : index
      %c0_187 = arith.constant 0 : index
      %503 = vector.load %arg15[%c0_186, %c0_187] : memref<8x128xf32, #tpu.memory_space<vmem>>, vector<8x128xf32>
      tpu.vector_store %arg15[%c0_186, %c0_187], %499 {strides = array<i32>} : memref<8x128xf32, #tpu.memory_space<vmem>>, vector<8x128xf32>,
      %c0_188 = arith.constant 0 : index
      %c0_189 = arith.constant 0 : index
      %504 = vector.load %arg16[%c0_188, %c0_189] : memref<8x128xf32, #tpu.memory_space<vmem>>, vector<8x128xf32>
      tpu.vector_store %arg16[%c0_188, %c0_189], %502 {strides = array<i32>} : memref<8x128xf32, #tpu.memory_space<vmem>>, vector<8x128xf32>,
      %c0_190 = arith.constant 0 : index
      %c0_191 = arith.constant 0 : index
      %c0_192 = arith.constant 0 : index
      %505 = vector.load %arg14[%c0_190, %c0_191, %c0_192] : memref<8x8x128xf32, #tpu.memory_space<vmem>>, vector<1x8x128xf32>
      %506 = vector.shape_cast %505 : vector<1x8x128xf32> to vector<8x128xf32>
      %c0_193 = arith.constant 0 : index
      %c0_194 = arith.constant 0 : index
      %c0_195 = arith.constant 0 : index
      %507 = vector.load %arg10[%c0_193, %c0_194, %c0_195] : memref<8x8x128xf32, #tpu.memory_space<vmem>>, vector<8x1x128xf32>
      %508 = vector.shape_cast %507 : vector<8x1x128xf32> to vector<8x128xf32>
      %509 = vector.shape_cast %506 : vector<8x128xf32> to vector<8x1x128xf32>
      tpu.vector_store %arg10[%c0_193, %c0_194, %c0_195], %509 {strides = array<i32>} : memref<8x8x128xf32, #tpu.memory_space<vmem>>, vector<8x1x128xf32>,
      %c1_196 = arith.constant 1 : index
      %c0_197 = arith.constant 0 : index
      %c0_198 = arith.constant 0 : index
      %510 = vector.load %arg14[%c1_196, %c0_197, %c0_198] : memref<8x8x128xf32, #tpu.memory_space<vmem>>, vector<1x8x128xf32>
      %511 = vector.shape_cast %510 : vector<1x8x128xf32> to vector<8x128xf32>
      %c0_199 = arith.constant 0 : index
      %c1_200 = arith.constant 1 : index
      %c0_201 = arith.constant 0 : index
      %512 = vector.load %arg10[%c0_199, %c1_200, %c0_201] : memref<8x8x128xf32, #tpu.memory_space<vmem>>, vector<8x1x128xf32>
      %513 = vector.shape_cast %512 : vector<8x1x128xf32> to vector<8x128xf32>
      %514 = vector.shape_cast %511 : vector<8x128xf32> to vector<8x1x128xf32>
      tpu.vector_store %arg10[%c0_199, %c1_200, %c0_201], %514 {strides = array<i32>} : memref<8x8x128xf32, #tpu.memory_space<vmem>>, vector<8x1x128xf32>,
      %c2_202 = arith.constant 2 : index
      %c0_203 = arith.constant 0 : index
      %c0_204 = arith.constant 0 : index
      %515 = vector.load %arg14[%c2_202, %c0_203, %c0_204] : memref<8x8x128xf32, #tpu.memory_space<vmem>>, vector<1x8x128xf32>
      %516 = vector.shape_cast %515 : vector<1x8x128xf32> to vector<8x128xf32>
      %c0_205 = arith.constant 0 : index
      %c2_206 = arith.constant 2 : index
      %c0_207 = arith.constant 0 : index
      %517 = vector.load %arg10[%c0_205, %c2_206, %c0_207] : memref<8x8x128xf32, #tpu.memory_space<vmem>>, vector<8x1x128xf32>
      %518 = vector.shape_cast %517 : vector<8x1x128xf32> to vector<8x128xf32>
      %519 = vector.shape_cast %516 : vector<8x128xf32> to vector<8x1x128xf32>
      tpu.vector_store %arg10[%c0_205, %c2_206, %c0_207], %519 {strides = array<i32>} : memref<8x8x128xf32, #tpu.memory_space<vmem>>, vector<8x1x128xf32>,
      %c3_208 = arith.constant 3 : index
      %c0_209 = arith.constant 0 : index
      %c0_210 = arith.constant 0 : index
      %520 = vector.load %arg14[%c3_208, %c0_209, %c0_210] : memref<8x8x128xf32, #tpu.memory_space<vmem>>, vector<1x8x128xf32>
      %521 = vector.shape_cast %520 : vector<1x8x128xf32> to vector<8x128xf32>
      %c0_211 = arith.constant 0 : index
      %c3_212 = arith.constant 3 : index
      %c0_213 = arith.constant 0 : index
      %522 = vector.load %arg10[%c0_211, %c3_212, %c0_213] : memref<8x8x128xf32, #tpu.memory_space<vmem>>, vector<8x1x128xf32>
      %523 = vector.shape_cast %522 : vector<8x1x128xf32> to vector<8x128xf32>
      %524 = vector.shape_cast %521 : vector<8x128xf32> to vector<8x1x128xf32>
      tpu.vector_store %arg10[%c0_211, %c3_212, %c0_213], %524 {strides = array<i32>} : memref<8x8x128xf32, #tpu.memory_space<vmem>>, vector<8x1x128xf32>,
      %c4_214 = arith.constant 4 : index
      %c0_215 = arith.constant 0 : index
      %c0_216 = arith.constant 0 : index
      %525 = vector.load %arg14[%c4_214, %c0_215, %c0_216] : memref<8x8x128xf32, #tpu.memory_space<vmem>>, vector<1x8x128xf32>
      %526 = vector.shape_cast %525 : vector<1x8x128xf32> to vector<8x128xf32>
      %c0_217 = arith.constant 0 : index
      %c4_218 = arith.constant 4 : index
      %c0_219 = arith.constant 0 : index
      %527 = vector.load %arg10[%c0_217, %c4_218, %c0_219] : memref<8x8x128xf32, #tpu.memory_space<vmem>>, vector<8x1x128xf32>
      %528 = vector.shape_cast %527 : vector<8x1x128xf32> to vector<8x128xf32>
      %529 = vector.shape_cast %526 : vector<8x128xf32> to vector<8x1x128xf32>
      tpu.vector_store %arg10[%c0_217, %c4_218, %c0_219], %529 {strides = array<i32>} : memref<8x8x128xf32, #tpu.memory_space<vmem>>, vector<8x1x128xf32>,
      %c5_220 = arith.constant 5 : index
      %c0_221 = arith.constant 0 : index
      %c0_222 = arith.constant 0 : index
      %530 = vector.load %arg14[%c5_220, %c0_221, %c0_222] : memref<8x8x128xf32, #tpu.memory_space<vmem>>, vector<1x8x128xf32>
      %531 = vector.shape_cast %530 : vector<1x8x128xf32> to vector<8x128xf32>
      %c0_223 = arith.constant 0 : index
      %c5_224 = arith.constant 5 : index
      %c0_225 = arith.constant 0 : index
      %532 = vector.load %arg10[%c0_223, %c5_224, %c0_225] : memref<8x8x128xf32, #tpu.memory_space<vmem>>, vector<8x1x128xf32>
      %533 = vector.shape_cast %532 : vector<8x1x128xf32> to vector<8x128xf32>
      %534 = vector.shape_cast %531 : vector<8x128xf32> to vector<8x1x128xf32>
      tpu.vector_store %arg10[%c0_223, %c5_224, %c0_225], %534 {strides = array<i32>} : memref<8x8x128xf32, #tpu.memory_space<vmem>>, vector<8x1x128xf32>,
      %c6_226 = arith.constant 6 : index
      %c0_227 = arith.constant 0 : index
      %c0_228 = arith.constant 0 : index
      %535 = vector.load %arg14[%c6_226, %c0_227, %c0_228] : memref<8x8x128xf32, #tpu.memory_space<vmem>>, vector<1x8x128xf32>
      %536 = vector.shape_cast %535 : vector<1x8x128xf32> to vector<8x128xf32>
      %c0_229 = arith.constant 0 : index
      %c6_230 = arith.constant 6 : index
      %c0_231 = arith.constant 0 : index
      %537 = vector.load %arg10[%c0_229, %c6_230, %c0_231] : memref<8x8x128xf32, #tpu.memory_space<vmem>>, vector<8x1x128xf32>
      %538 = vector.shape_cast %537 : vector<8x1x128xf32> to vector<8x128xf32>
      %539 = vector.shape_cast %536 : vector<8x128xf32> to vector<8x1x128xf32>
      tpu.vector_store %arg10[%c0_229, %c6_230, %c0_231], %539 {strides = array<i32>} : memref<8x8x128xf32, #tpu.memory_space<vmem>>, vector<8x1x128xf32>,
      %c7_232 = arith.constant 7 : index
      %c0_233 = arith.constant 0 : index
      %c0_234 = arith.constant 0 : index
      %540 = vector.load %arg14[%c7_232, %c0_233, %c0_234] : memref<8x8x128xf32, #tpu.memory_space<vmem>>, vector<1x8x128xf32>
      %541 = vector.shape_cast %540 : vector<1x8x128xf32> to vector<8x128xf32>
      %c0_235 = arith.constant 0 : index
      %c7_236 = arith.constant 7 : index
      %c0_237 = arith.constant 0 : index
      %542 = vector.load %arg10[%c0_235, %c7_236, %c0_237] : memref<8x8x128xf32, #tpu.memory_space<vmem>>, vector<8x1x128xf32>
      %543 = vector.shape_cast %542 : vector<8x1x128xf32> to vector<8x128xf32>
      %544 = vector.shape_cast %541 : vector<8x128xf32> to vector<8x1x128xf32>
      tpu.vector_store %arg10[%c0_235, %c7_236, %c0_237], %544 {strides = array<i32>} : memref<8x8x128xf32, #tpu.memory_space<vmem>>, vector<8x1x128xf32>,
    } else {
    }
    %c1_i32 = arith.constant 1 : i32
    %12 = arith.cmpi eq, %arg1, %c1_i32 : i32
    %13 = arith.extui %12 : i1 to i32
    %c0_i32_3 = arith.constant 0 : i32
    %14 = arith.cmpi ne, %13, %c0_i32_3 : i32
    scf.if %14 {
      %c0 = arith.constant 0 : index
      %c0_4 = arith.constant 0 : index
      %15 = vector.load %arg16[%c0, %c0_4] : memref<8x128xf32, #tpu.memory_space<vmem>>, vector<8x128xf32>
      %c0_5 = arith.constant 0 : index
      %c0_6 = arith.constant 0 : index
      %16 = vector.load %arg11[%c0_5, %c0_6] : memref<8x128xf32, #tpu.memory_space<vmem>>, vector<8x128xf32>
      tpu.vector_store %arg11[%c0_5, %c0_6], %15 {strides = array<i32>} : memref<8x128xf32, #tpu.memory_space<vmem>>, vector<8x128xf32>,
      %c0_7 = arith.constant 0 : index
      %c0_8 = arith.constant 0 : index
      %17 = vector.load %arg15[%c0_7, %c0_8] : memref<8x128xf32, #tpu.memory_space<vmem>>, vector<8x128xf32>
      %c0_9 = arith.constant 0 : index
      %c0_10 = arith.constant 0 : index
      %18 = vector.load %arg8[%c0_9, %c0_10] : memref<128x128xf32, #tpu.memory_space<vmem>>, vector<128x128xf32>
      %cst = arith.constant dense<0.000000e+00> : vector<8x128xf32>
      %19 = tpu.matmul %17, %18, %cst {dimension_numbers = #tpu.dot_dimension_numbers<[1], [0], [0], [1], [0, 0, 1, 1], [], []>} : vector<8x128xf32>, vector<128x128xf32>, vector<8x128xf32> -> vector<8x128xf32>
      %c0_11 = arith.constant 0 : index
      %c0_12 = arith.constant 0 : index
      %20 = vector.load %arg9[%c0_11, %c0_12] : memref<1x128xf32, #tpu.memory_space<vmem>>, vector<1x128xf32>
      %21 = vector.broadcast %20 : vector<1x128xf32> to vector<8x128xf32>
      %22 = arith.addf %19, %21 : vector<8x128xf32>
      %23 = math.tanh %22 : vector<8x128xf32>
      %c0_13 = arith.constant 0 : index
      %c0_14 = arith.constant 0 : index
      %24 = vector.load %arg12[%c0_13, %c0_14] : memref<8x128xf32, #tpu.memory_space<vmem>>, vector<8x128xf32>
      tpu.vector_store %arg12[%c0_13, %c0_14], %23 {strides = array<i32>} : memref<8x128xf32, #tpu.memory_space<vmem>>, vector<8x128xf32>,
    } else {
    }
    return
  }
  func.func @transform_0(%arg0: i32, %arg1: i32, %arg2: memref<1xi32, #tpu.memory_space<smem>>) -> (i32, i32, i32) {
    %c0_i32 = arith.constant 0 : i32
    %c0_i32_0 = arith.constant 0 : i32
    return %arg1, %arg0, %c0_i32 : i32, i32, i32
  }
  func.func @transform_1(%arg0: i32, %arg1: i32, %arg2: memref<1xi32, #tpu.memory_space<smem>>) -> (i32, i32) {
    %c0_i32 = arith.constant 0 : i32
    %c0_i32_0 = arith.constant 0 : i32
    return %arg0, %c0_i32 : i32, i32
  }
  func.func @transform_2(%arg0: i32, %arg1: i32, %arg2: memref<1xi32, #tpu.memory_space<smem>>) -> (i32, i32) {
    %c0_i32 = arith.constant 0 : i32
    %c0_i32_0 = arith.constant 0 : i32
    %c0_i32_1 = arith.constant 0 : i32
    return %c0_i32, %c0_i32_0 : i32, i32
  }
  func.func @transform_3(%arg0: i32, %arg1: i32, %arg2: memref<1xi32, #tpu.memory_space<smem>>) -> (i32, i32) {
    %c0_i32 = arith.constant 0 : i32
    %c0_i32_0 = arith.constant 0 : i32
    %c0_i32_1 = arith.constant 0 : i32
    return %c0_i32, %c0_i32_0 : i32, i32
  }
  func.func @transform_4(%arg0: i32, %arg1: i32, %arg2: memref<1xi32, #tpu.memory_space<smem>>) -> (i32, i32) {
    %c0_i32 = arith.constant 0 : i32
    %c0_i32_0 = arith.constant 0 : i32
    %c0_i32_1 = arith.constant 0 : i32
    return %c0_i32, %c0_i32_0 : i32, i32
  }
  func.func @transform_5(%arg0: i32, %arg1: i32, %arg2: memref<1xi32, #tpu.memory_space<smem>>) -> (i32, i32) {
    %c0_i32 = arith.constant 0 : i32
    %c0_i32_0 = arith.constant 0 : i32
    %c0_i32_1 = arith.constant 0 : i32
    return %c0_i32, %c0_i32_0 : i32, i32
  }
  func.func @transform_6(%arg0: i32, %arg1: i32, %arg2: memref<1xi32, #tpu.memory_space<smem>>) -> (i32, i32) {
    %c0_i32 = arith.constant 0 : i32
    %c0_i32_0 = arith.constant 0 : i32
    %c0_i32_1 = arith.constant 0 : i32
    return %c0_i32, %c0_i32_0 : i32, i32
  }
  func.func @transform_7(%arg0: i32, %arg1: i32, %arg2: memref<1xi32, #tpu.memory_space<smem>>) -> (i32, i32, i32) {
    %c0_i32 = arith.constant 0 : i32
    %c0_i32_0 = arith.constant 0 : i32
    return %arg0, %arg1, %c0_i32 : i32, i32, i32
  }
  func.func @transform_8(%arg0: i32, %arg1: i32, %arg2: memref<1xi32, #tpu.memory_space<smem>>) -> (i32, i32) {
    %c0_i32 = arith.constant 0 : i32
    %c0_i32_0 = arith.constant 0 : i32
    return %arg0, %c0_i32 : i32, i32
  }
  func.func @transform_9(%arg0: i32, %arg1: i32, %arg2: memref<1xi32, #tpu.memory_space<smem>>) -> (i32, i32) {
    %c0_i32 = arith.constant 0 : i32
    %c0_i32_0 = arith.constant 0 : i32
    return %arg0, %c0_i32 : i32, i32
  }
}

module attributes {stable_mosaic.version = 11 : i64} {
  func.func @_lstm_chunk_kernel(%arg0: i32, %arg1: i32, %arg2: memref<1xi32, #tpu.memory_space<smem>>, %arg3: memref<8x8x128xf32, #tpu.memory_space<vmem>>, %arg4: memref<8x1xi32, #tpu.memory_space<vmem>>, %arg5: memref<128x512xf32, #tpu.memory_space<vmem>>, %arg6: memref<1x512xf32, #tpu.memory_space<vmem>>, %arg7: memref<128x512xf32, #tpu.memory_space<vmem>>, %arg8: memref<128x128xf32, #tpu.memory_space<vmem>>, %arg9: memref<1x128xf32, #tpu.memory_space<vmem>>, %arg10: memref<8x8x128xf32, #tpu.memory_space<vmem>>, %arg11: memref<8x128xf32, #tpu.memory_space<vmem>>, %arg12: memref<8x128xf32, #tpu.memory_space<vmem>>, %arg13: memref<8x8x512xf32, #tpu.memory_space<vmem>>, %arg14: memref<8x8x128xf32, #tpu.memory_space<vmem>>, %arg15: memref<8x128xf32, #tpu.memory_space<vmem>>, %arg16: memref<8x128xf32, #tpu.memory_space<vmem>>) attributes {dimension_semantics = [#tpu.dimension_semantics<parallel>, #tpu.dimension_semantics<arbitrary>], iteration_bounds = array<i64: 1, 2>, scalar_prefetch = 1 : i64, scratch_operands = 4 : i64, tpu.core_type = #tpu.core_type<tc>, window_params = [{transform_indices = @transform_0, window_bounds = array<i64: 8, 8, 128>}, {transform_indices = @transform_1, window_bounds = array<i64: 8, 1>}, {pipeline_mode = #tpu.pipeline_mode<synchronous>, transform_indices = @transform_2, window_bounds = array<i64: 128, 512>}, {pipeline_mode = #tpu.pipeline_mode<synchronous>, transform_indices = @transform_3, window_bounds = array<i64: 1, 512>}, {pipeline_mode = #tpu.pipeline_mode<synchronous>, transform_indices = @transform_4, window_bounds = array<i64: 128, 512>}, {pipeline_mode = #tpu.pipeline_mode<synchronous>, transform_indices = @transform_5, window_bounds = array<i64: 128, 128>}, {pipeline_mode = #tpu.pipeline_mode<synchronous>, transform_indices = @transform_6, window_bounds = array<i64: 1, 128>}, {transform_indices = @transform_7, window_bounds = array<i64: 8, 8, 128>}, {transform_indices = @transform_8, window_bounds = array<i64: 8, 128>}, {transform_indices = @transform_9, window_bounds = array<i64: 8, 128>}]} {
    %c8_i32 = arith.constant 8 : i32
    %0 = arith.muli %arg1, %c8_i32 : i32
    %c0_i32 = arith.constant 0 : i32
    %1 = arith.cmpi eq, %arg1, %c0_i32 : i32
    %2 = arith.extui %1 : i1 to i32
    %c0_i32_0 = arith.constant 0 : i32
    %3 = arith.cmpi ne, %2, %c0_i32_0 : i32
    scf.if %3 {
      %cst = arith.constant 0.000000e+00 : f32
      %15 = vector.broadcast %cst : f32 to vector<8x128xf32>
      %c0 = arith.constant 0 : index
      %c0_4 = arith.constant 0 : index
      %16 = vector.load %arg15[%c0, %c0_4] : memref<8x128xf32, #tpu.memory_space<vmem>>, vector<8x128xf32>
      tpu.vector_store %arg15[%c0, %c0_4], %15 {strides = array<i32>} : memref<8x128xf32, #tpu.memory_space<vmem>>, vector<8x128xf32>,
      %cst_5 = arith.constant 0.000000e+00 : f32
      %17 = vector.broadcast %cst_5 : f32 to vector<8x128xf32>
      %c0_6 = arith.constant 0 : index
      %c0_7 = arith.constant 0 : index
      %18 = vector.load %arg16[%c0_6, %c0_7] : memref<8x128xf32, #tpu.memory_space<vmem>>, vector<8x128xf32>
      tpu.vector_store %arg16[%c0_6, %c0_7], %17 {strides = array<i32>} : memref<8x128xf32, #tpu.memory_space<vmem>>, vector<8x128xf32>,
    } else {
    }
    %4 = arith.index_cast %arg0 : i32 to index
    %5 = memref.load %arg2[%4] : memref<1xi32, #tpu.memory_space<smem>>
    %6 = arith.cmpi slt, %0, %5 : i32
    %true = arith.constant true
    %7 = arith.xori %6, %true : i1
    %8 = arith.extui %7 : i1 to i32
    %c0_i32_1 = arith.constant 0 : i32
    %9 = arith.cmpi ne, %8, %c0_i32_1 : i32
    scf.if %9 {
      %cst = arith.constant 0.000000e+00 : f32
      %15 = vector.broadcast %cst : f32 to vector<8x8x128xf32>
      %c0 = arith.constant 0 : index
      %c0_4 = arith.constant 0 : index
      %c0_5 = arith.constant 0 : index
      %16 = vector.load %arg10[%c0, %c0_4, %c0_5] : memref<8x8x128xf32, #tpu.memory_space<vmem>>, vector<8x8x128xf32>
      tpu.vector_store %arg10[%c0, %c0_4, %c0_5], %15 {strides = array<i32>} : memref<8x8x128xf32, #tpu.memory_space<vmem>>, vector<8x8x128xf32>,
    } else {
    }
    %10 = arith.extui %6 : i1 to i32
    %c0_i32_2 = arith.constant 0 : i32
    %11 = arith.cmpi ne, %10, %c0_i32_2 : i32
    scf.if %11 {
      %c0 = arith.constant 0 : index
      %c0_4 = arith.constant 0 : index
      %15 = vector.load %arg5[%c0, %c0_4] : memref<128x512xf32, #tpu.memory_space<vmem>>, vector<128x512xf32>
      %c0_5 = arith.constant 0 : index
      %c0_6 = arith.constant 0 : index
      %16 = vector.load %arg6[%c0_5, %c0_6] : memref<1x512xf32, #tpu.memory_space<vmem>>, vector<1x512xf32>
      %c0_7 = arith.constant 0 : index
      %c0_8 = arith.constant 0 : index
      %c0_9 = arith.constant 0 : index
      %17 = vector.load %arg3[%c0_7, %c0_8, %c0_9] : memref<8x8x128xf32, #tpu.memory_space<vmem>>, vector<1x8x128xf32>
      %18 = vector.shape_cast %17 : vector<1x8x128xf32> to vector<8x128xf32>
      %cst = arith.constant dense<0.000000e+00> : vector<8x512xf32>
      %19 = tpu.matmul %18, %15, %cst {dimension_numbers = #tpu.dot_dimension_numbers<[1], [0], [0], [1], [0, 0, 1, 1], [], []>} : vector<8x128xf32>, vector<128x512xf32>, vector<8x512xf32> -> vector<8x512xf32>
      %20 = vector.broadcast %16 : vector<1x512xf32> to vector<8x512xf32>
      %21 = arith.addf %19, %20 : vector<8x512xf32>
      %c0_10 = arith.constant 0 : index
      %c0_11 = arith.constant 0 : index
      %c0_12 = arith.constant 0 : index
      %22 = vector.load %arg13[%c0_10, %c0_11, %c0_12] : memref<8x8x512xf32, #tpu.memory_space<vmem>>, vector<1x8x512xf32>
      %23 = vector.shape_cast %22 : vector<1x8x512xf32> to vector<8x512xf32>
      %24 = vector.shape_cast %21 : vector<8x512xf32> to vector<1x8x512xf32>
      tpu.vector_store %arg13[%c0_10, %c0_11, %c0_12], %24 {strides = array<i32>} : memref<8x8x512xf32, #tpu.memory_space<vmem>>, vector<1x8x512xf32>,
      %c1 = arith.constant 1 : index
      %c0_13 = arith.constant 0 : index
      %c0_14 = arith.constant 0 : index
      %25 = vector.load %arg3[%c1, %c0_13, %c0_14] : memref<8x8x128xf32, #tpu.memory_space<vmem>>, vector<1x8x128xf32>
      %26 = vector.shape_cast %25 : vector<1x8x128xf32> to vector<8x128xf32>
      %cst_15 = arith.constant dense<0.000000e+00> : vector<8x512xf32>
      %27 = tpu.matmul %26, %15, %cst_15 {dimension_numbers = #tpu.dot_dimension_numbers<[1], [0], [0], [1], [0, 0, 1, 1], [], []>} : vector<8x128xf32>, vector<128x512xf32>, vector<8x512xf32> -> vector<8x512xf32>
      %28 = vector.broadcast %16 : vector<1x512xf32> to vector<8x512xf32>
      %29 = arith.addf %27, %28 : vector<8x512xf32>
      %c1_16 = arith.constant 1 : index
      %c0_17 = arith.constant 0 : index
      %c0_18 = arith.constant 0 : index
      %30 = vector.load %arg13[%c1_16, %c0_17, %c0_18] : memref<8x8x512xf32, #tpu.memory_space<vmem>>, vector<1x8x512xf32>
      %31 = vector.shape_cast %30 : vector<1x8x512xf32> to vector<8x512xf32>
      %32 = vector.shape_cast %29 : vector<8x512xf32> to vector<1x8x512xf32>
      tpu.vector_store %arg13[%c1_16, %c0_17, %c0_18], %32 {strides = array<i32>} : memref<8x8x512xf32, #tpu.memory_space<vmem>>, vector<1x8x512xf32>,
      %c2 = arith.constant 2 : index
      %c0_19 = arith.constant 0 : index
      %c0_20 = arith.constant 0 : index
      %33 = vector.load %arg3[%c2, %c0_19, %c0_20] : memref<8x8x128xf32, #tpu.memory_space<vmem>>, vector<1x8x128xf32>
      %34 = vector.shape_cast %33 : vector<1x8x128xf32> to vector<8x128xf32>
      %cst_21 = arith.constant dense<0.000000e+00> : vector<8x512xf32>
      %35 = tpu.matmul %34, %15, %cst_21 {dimension_numbers = #tpu.dot_dimension_numbers<[1], [0], [0], [1], [0, 0, 1, 1], [], []>} : vector<8x128xf32>, vector<128x512xf32>, vector<8x512xf32> -> vector<8x512xf32>
      %36 = vector.broadcast %16 : vector<1x512xf32> to vector<8x512xf32>
      %37 = arith.addf %35, %36 : vector<8x512xf32>
      %c2_22 = arith.constant 2 : index
      %c0_23 = arith.constant 0 : index
      %c0_24 = arith.constant 0 : index
      %38 = vector.load %arg13[%c2_22, %c0_23, %c0_24] : memref<8x8x512xf32, #tpu.memory_space<vmem>>, vector<1x8x512xf32>
      %39 = vector.shape_cast %38 : vector<1x8x512xf32> to vector<8x512xf32>
      %40 = vector.shape_cast %37 : vector<8x512xf32> to vector<1x8x512xf32>
      tpu.vector_store %arg13[%c2_22, %c0_23, %c0_24], %40 {strides = array<i32>} : memref<8x8x512xf32, #tpu.memory_space<vmem>>, vector<1x8x512xf32>,
      %c3 = arith.constant 3 : index
      %c0_25 = arith.constant 0 : index
      %c0_26 = arith.constant 0 : index
      %41 = vector.load %arg3[%c3, %c0_25, %c0_26] : memref<8x8x128xf32, #tpu.memory_space<vmem>>, vector<1x8x128xf32>
      %42 = vector.shape_cast %41 : vector<1x8x128xf32> to vector<8x128xf32>
      %cst_27 = arith.constant dense<0.000000e+00> : vector<8x512xf32>
      %43 = tpu.matmul %42, %15, %cst_27 {dimension_numbers = #tpu.dot_dimension_numbers<[1], [0], [0], [1], [0, 0, 1, 1], [], []>} : vector<8x128xf32>, vector<128x512xf32>, vector<8x512xf32> -> vector<8x512xf32>
      %44 = vector.broadcast %16 : vector<1x512xf32> to vector<8x512xf32>
      %45 = arith.addf %43, %44 : vector<8x512xf32>
      %c3_28 = arith.constant 3 : index
      %c0_29 = arith.constant 0 : index
      %c0_30 = arith.constant 0 : index
      %46 = vector.load %arg13[%c3_28, %c0_29, %c0_30] : memref<8x8x512xf32, #tpu.memory_space<vmem>>, vector<1x8x512xf32>
      %47 = vector.shape_cast %46 : vector<1x8x512xf32> to vector<8x512xf32>
      %48 = vector.shape_cast %45 : vector<8x512xf32> to vector<1x8x512xf32>
      tpu.vector_store %arg13[%c3_28, %c0_29, %c0_30], %48 {strides = array<i32>} : memref<8x8x512xf32, #tpu.memory_space<vmem>>, vector<1x8x512xf32>,
      %c4 = arith.constant 4 : index
      %c0_31 = arith.constant 0 : index
      %c0_32 = arith.constant 0 : index
      %49 = vector.load %arg3[%c4, %c0_31, %c0_32] : memref<8x8x128xf32, #tpu.memory_space<vmem>>, vector<1x8x128xf32>
      %50 = vector.shape_cast %49 : vector<1x8x128xf32> to vector<8x128xf32>
      %cst_33 = arith.constant dense<0.000000e+00> : vector<8x512xf32>
      %51 = tpu.matmul %50, %15, %cst_33 {dimension_numbers = #tpu.dot_dimension_numbers<[1], [0], [0], [1], [0, 0, 1, 1], [], []>} : vector<8x128xf32>, vector<128x512xf32>, vector<8x512xf32> -> vector<8x512xf32>
      %52 = vector.broadcast %16 : vector<1x512xf32> to vector<8x512xf32>
      %53 = arith.addf %51, %52 : vector<8x512xf32>
      %c4_34 = arith.constant 4 : index
      %c0_35 = arith.constant 0 : index
      %c0_36 = arith.constant 0 : index
      %54 = vector.load %arg13[%c4_34, %c0_35, %c0_36] : memref<8x8x512xf32, #tpu.memory_space<vmem>>, vector<1x8x512xf32>
      %55 = vector.shape_cast %54 : vector<1x8x512xf32> to vector<8x512xf32>
      %56 = vector.shape_cast %53 : vector<8x512xf32> to vector<1x8x512xf32>
      tpu.vector_store %arg13[%c4_34, %c0_35, %c0_36], %56 {strides = array<i32>} : memref<8x8x512xf32, #tpu.memory_space<vmem>>, vector<1x8x512xf32>,
      %c5 = arith.constant 5 : index
      %c0_37 = arith.constant 0 : index
      %c0_38 = arith.constant 0 : index
      %57 = vector.load %arg3[%c5, %c0_37, %c0_38] : memref<8x8x128xf32, #tpu.memory_space<vmem>>, vector<1x8x128xf32>
      %58 = vector.shape_cast %57 : vector<1x8x128xf32> to vector<8x128xf32>
      %cst_39 = arith.constant dense<0.000000e+00> : vector<8x512xf32>
      %59 = tpu.matmul %58, %15, %cst_39 {dimension_numbers = #tpu.dot_dimension_numbers<[1], [0], [0], [1], [0, 0, 1, 1], [], []>} : vector<8x128xf32>, vector<128x512xf32>, vector<8x512xf32> -> vector<8x512xf32>
      %60 = vector.broadcast %16 : vector<1x512xf32> to vector<8x512xf32>
      %61 = arith.addf %59, %60 : vector<8x512xf32>
      %c5_40 = arith.constant 5 : index
      %c0_41 = arith.constant 0 : index
      %c0_42 = arith.constant 0 : index
      %62 = vector.load %arg13[%c5_40, %c0_41, %c0_42] : memref<8x8x512xf32, #tpu.memory_space<vmem>>, vector<1x8x512xf32>
      %63 = vector.shape_cast %62 : vector<1x8x512xf32> to vector<8x512xf32>
      %64 = vector.shape_cast %61 : vector<8x512xf32> to vector<1x8x512xf32>
      tpu.vector_store %arg13[%c5_40, %c0_41, %c0_42], %64 {strides = array<i32>} : memref<8x8x512xf32, #tpu.memory_space<vmem>>, vector<1x8x512xf32>,
      %c6 = arith.constant 6 : index
      %c0_43 = arith.constant 0 : index
      %c0_44 = arith.constant 0 : index
      %65 = vector.load %arg3[%c6, %c0_43, %c0_44] : memref<8x8x128xf32, #tpu.memory_space<vmem>>, vector<1x8x128xf32>
      %66 = vector.shape_cast %65 : vector<1x8x128xf32> to vector<8x128xf32>
      %cst_45 = arith.constant dense<0.000000e+00> : vector<8x512xf32>
      %67 = tpu.matmul %66, %15, %cst_45 {dimension_numbers = #tpu.dot_dimension_numbers<[1], [0], [0], [1], [0, 0, 1, 1], [], []>} : vector<8x128xf32>, vector<128x512xf32>, vector<8x512xf32> -> vector<8x512xf32>
      %68 = vector.broadcast %16 : vector<1x512xf32> to vector<8x512xf32>
      %69 = arith.addf %67, %68 : vector<8x512xf32>
      %c6_46 = arith.constant 6 : index
      %c0_47 = arith.constant 0 : index
      %c0_48 = arith.constant 0 : index
      %70 = vector.load %arg13[%c6_46, %c0_47, %c0_48] : memref<8x8x512xf32, #tpu.memory_space<vmem>>, vector<1x8x512xf32>
      %71 = vector.shape_cast %70 : vector<1x8x512xf32> to vector<8x512xf32>
      %72 = vector.shape_cast %69 : vector<8x512xf32> to vector<1x8x512xf32>
      tpu.vector_store %arg13[%c6_46, %c0_47, %c0_48], %72 {strides = array<i32>} : memref<8x8x512xf32, #tpu.memory_space<vmem>>, vector<1x8x512xf32>,
      %c7 = arith.constant 7 : index
      %c0_49 = arith.constant 0 : index
      %c0_50 = arith.constant 0 : index
      %73 = vector.load %arg3[%c7, %c0_49, %c0_50] : memref<8x8x128xf32, #tpu.memory_space<vmem>>, vector<1x8x128xf32>
      %74 = vector.shape_cast %73 : vector<1x8x128xf32> to vector<8x128xf32>
      %cst_51 = arith.constant dense<0.000000e+00> : vector<8x512xf32>
      %75 = tpu.matmul %74, %15, %cst_51 {dimension_numbers = #tpu.dot_dimension_numbers<[1], [0], [0], [1], [0, 0, 1, 1], [], []>} : vector<8x128xf32>, vector<128x512xf32>, vector<8x512xf32> -> vector<8x512xf32>
      %76 = vector.broadcast %16 : vector<1x512xf32> to vector<8x512xf32>
      %77 = arith.addf %75, %76 : vector<8x512xf32>
      %c7_52 = arith.constant 7 : index
      %c0_53 = arith.constant 0 : index
      %c0_54 = arith.constant 0 : index
      %78 = vector.load %arg13[%c7_52, %c0_53, %c0_54] : memref<8x8x512xf32, #tpu.memory_space<vmem>>, vector<1x8x512xf32>
      %79 = vector.shape_cast %78 : vector<1x8x512xf32> to vector<8x512xf32>
      %80 = vector.shape_cast %77 : vector<8x512xf32> to vector<1x8x512xf32>
      tpu.vector_store %arg13[%c7_52, %c0_53, %c0_54], %80 {strides = array<i32>} : memref<8x8x512xf32, #tpu.memory_space<vmem>>, vector<1x8x512xf32>,
      %c0_55 = arith.constant 0 : index
      %c0_56 = arith.constant 0 : index
      %81 = vector.load %arg7[%c0_55, %c0_56] : memref<128x512xf32, #tpu.memory_space<vmem>>, vector<128x512xf32>
      %c0_57 = arith.constant 0 : index
      %c0_58 = arith.constant 0 : index
      %82 = vector.load %arg4[%c0_57, %c0_58] : memref<8x1xi32, #tpu.memory_space<vmem>>, vector<8x1xi32>
      %83 = vector.broadcast %0 : i32 to vector<8x1xi32>
      %84 = arith.subi %82, %83 : vector<8x1xi32>
      %c0_59 = arith.constant 0 : index
      %c0_60 = arith.constant 0 : index
      %85 = vector.load %arg15[%c0_59, %c0_60] : memref<8x128xf32, #tpu.memory_space<vmem>>, vector<8x128xf32>
      %c0_61 = arith.constant 0 : index
      %c0_62 = arith.constant 0 : index
      %86 = vector.load %arg16[%c0_61, %c0_62] : memref<8x128xf32, #tpu.memory_space<vmem>>, vector<8x128xf32>
      %c0_i32_63 = arith.constant 0 : i32
      %87 = arith.index_cast %c0_i32_63 : i32 to index
      %c0_64 = arith.constant 0 : index
      %c0_65 = arith.constant 0 : index
      %88 = vector.load %arg13[%87, %c0_64, %c0_65] : memref<8x8x512xf32, #tpu.memory_space<vmem>>, vector<1x8x512xf32>
      %89 = vector.shape_cast %88 : vector<1x8x512xf32> to vector<8x512xf32>
      %cst_66 = arith.constant dense<0.000000e+00> : vector<8x512xf32>
      %90 = tpu.matmul %85, %81, %cst_66 {dimension_numbers = #tpu.dot_dimension_numbers<[1], [0], [0], [1], [0, 0, 1, 1], [], []>} : vector<8x128xf32>, vector<128x512xf32>, vector<8x512xf32> -> vector<8x512xf32>
      %91 = arith.addf %89, %90 : vector<8x512xf32>
      %92 = vector.extract_strided_slice %91 {offsets = [0, 0], sizes = [8, 128], strides = [1, 1]} : vector<8x512xf32> to vector<8x128xf32>
      %cst_67 = arith.constant 5.000000e-01 : f32
      %93 = vector.broadcast %cst_67 : f32 to vector<8x128xf32>
      %94 = arith.mulf %93, %92 : vector<8x128xf32>
      %95 = math.tanh %94 : vector<8x128xf32>
      %cst_68 = arith.constant 5.000000e-01 : f32
      %96 = vector.broadcast %cst_68 : f32 to vector<8x128xf32>
      %97 = arith.mulf %96, %95 : vector<8x128xf32>
      %cst_69 = arith.constant 5.000000e-01 : f32
      %98 = vector.broadcast %cst_69 : f32 to vector<8x128xf32>
      %99 = arith.addf %97, %98 : vector<8x128xf32>
      %100 = vector.extract_strided_slice %91 {offsets = [0, 128], sizes = [8, 128], strides = [1, 1]} : vector<8x512xf32> to vector<8x128xf32>
      %cst_70 = arith.constant 5.000000e-01 : f32
      %101 = vector.broadcast %cst_70 : f32 to vector<8x128xf32>
      %102 = arith.mulf %101, %100 : vector<8x128xf32>
      %103 = math.tanh %102 : vector<8x128xf32>
      %cst_71 = arith.constant 5.000000e-01 : f32
      %104 = vector.broadcast %cst_71 : f32 to vector<8x128xf32>
      %105 = arith.mulf %104, %103 : vector<8x128xf32>
      %cst_72 = arith.constant 5.000000e-01 : f32
      %106 = vector.broadcast %cst_72 : f32 to vector<8x128xf32>
      %107 = arith.addf %105, %106 : vector<8x128xf32>
      %108 = vector.extract_strided_slice %91 {offsets = [0, 256], sizes = [8, 128], strides = [1, 1]} : vector<8x512xf32> to vector<8x128xf32>
      %109 = math.tanh %108 : vector<8x128xf32>
      %110 = vector.extract_strided_slice %91 {offsets = [0, 384], sizes = [8, 128], strides = [1, 1]} : vector<8x512xf32> to vector<8x128xf32>
      %cst_73 = arith.constant 5.000000e-01 : f32
      %111 = vector.broadcast %cst_73 : f32 to vector<8x128xf32>
      %112 = arith.mulf %111, %110 : vector<8x128xf32>
      %113 = math.tanh %112 : vector<8x128xf32>
      %cst_74 = arith.constant 5.000000e-01 : f32
      %114 = vector.broadcast %cst_74 : f32 to vector<8x128xf32>
      %115 = arith.mulf %114, %113 : vector<8x128xf32>
      %cst_75 = arith.constant 5.000000e-01 : f32
      %116 = vector.broadcast %cst_75 : f32 to vector<8x128xf32>
      %117 = arith.addf %115, %116 : vector<8x128xf32>
      %118 = arith.mulf %107, %86 : vector<8x128xf32>
      %119 = arith.mulf %99, %109 : vector<8x128xf32>
      %120 = arith.addf %118, %119 : vector<8x128xf32>
      %121 = math.tanh %120 : vector<8x128xf32>
      %122 = arith.mulf %117, %121 : vector<8x128xf32>
      %123 = vector.broadcast %c0_i32_63 : i32 to vector<8x1xi32>
      %124 = arith.cmpi slt, %123, %84 : vector<8x1xi32>
      %cst_76 = arith.constant 0.000000e+00 : f32
      %125 = vector.shape_cast %124 : vector<8x1xi1> to vector<8x1xi1>
      %126 = vector.broadcast %125 : vector<8x1xi1> to vector<8x128xi1>
      %127 = vector.broadcast %cst_76 : f32 to vector<8x128xf32>
      %128 = arith.select %126, %122, %127 : vector<8x128xi1>, vector<8x128xf32>
      %129 = arith.index_cast %c0_i32_63 : i32 to index
      %c0_77 = arith.constant 0 : index
      %c0_78 = arith.constant 0 : index
      %130 = vector.load %arg14[%129, %c0_77, %c0_78] : memref<8x8x128xf32, #tpu.memory_space<vmem>>, vector<1x8x128xf32>
      %131 = vector.shape_cast %130 : vector<1x8x128xf32> to vector<8x128xf32>
      %132 = vector.shape_cast %128 : vector<8x128xf32> to vector<1x8x128xf32>
      tpu.vector_store %arg14[%129, %c0_77, %c0_78], %132 {strides = array<i32>} : memref<8x8x128xf32, #tpu.memory_space<vmem>>, vector<1x8x128xf32>,
      %133 = vector.shape_cast %124 : vector<8x1xi1> to vector<8x1xi1>
      %134 = vector.broadcast %133 : vector<8x1xi1> to vector<8x128xi1>
      %135 = arith.select %134, %122, %85 : vector<8x128xi1>, vector<8x128xf32>
      %136 = vector.shape_cast %124 : vector<8x1xi1> to vector<8x1xi1>
      %137 = vector.broadcast %136 : vector<8x1xi1> to vector<8x128xi1>
      %138 = arith.select %137, %120, %86 : vector<8x128xi1>, vector<8x128xf32>
      %c1_i32_79 = arith.constant 1 : i32
      %139 = arith.index_cast %c1_i32_79 : i32 to index
      %c0_80 = arith.constant 0 : index
      %c0_81 = arith.constant 0 : index
      %140 = vector.load %arg13[%139, %c0_80, %c0_81] : memref<8x8x512xf32, #tpu.memory_space<vmem>>, vector<1x8x512xf32>
      %141 = vector.shape_cast %140 : vector<1x8x512xf32> to vector<8x512xf32>
      %cst_82 = arith.constant dense<0.000000e+00> : vector<8x512xf32>
      %142 = tpu.matmul %135, %81, %cst_82 {dimension_numbers = #tpu.dot_dimension_numbers<[1], [0], [0], [1], [0, 0, 1, 1], [], []>} : vector<8x128xf32>, vector<128x512xf32>, vector<8x512xf32> -> vector<8x512xf32>
      %143 = arith.addf %141, %142 : vector<8x512xf32>
      %144 = vector.extract_strided_slice %143 {offsets = [0, 0], sizes = [8, 128], strides = [1, 1]} : vector<8x512xf32> to vector<8x128xf32>
      %cst_83 = arith.constant 5.000000e-01 : f32
      %145 = vector.broadcast %cst_83 : f32 to vector<8x128xf32>
      %146 = arith.mulf %145, %144 : vector<8x128xf32>
      %147 = math.tanh %146 : vector<8x128xf32>
      %cst_84 = arith.constant 5.000000e-01 : f32
      %148 = vector.broadcast %cst_84 : f32 to vector<8x128xf32>
      %149 = arith.mulf %148, %147 : vector<8x128xf32>
      %cst_85 = arith.constant 5.000000e-01 : f32
      %150 = vector.broadcast %cst_85 : f32 to vector<8x128xf32>
      %151 = arith.addf %149, %150 : vector<8x128xf32>
      %152 = vector.extract_strided_slice %143 {offsets = [0, 128], sizes = [8, 128], strides = [1, 1]} : vector<8x512xf32> to vector<8x128xf32>
      %cst_86 = arith.constant 5.000000e-01 : f32
      %153 = vector.broadcast %cst_86 : f32 to vector<8x128xf32>
      %154 = arith.mulf %153, %152 : vector<8x128xf32>
      %155 = math.tanh %154 : vector<8x128xf32>
      %cst_87 = arith.constant 5.000000e-01 : f32
      %156 = vector.broadcast %cst_87 : f32 to vector<8x128xf32>
      %157 = arith.mulf %156, %155 : vector<8x128xf32>
      %cst_88 = arith.constant 5.000000e-01 : f32
      %158 = vector.broadcast %cst_88 : f32 to vector<8x128xf32>
      %159 = arith.addf %157, %158 : vector<8x128xf32>
      %160 = vector.extract_strided_slice %143 {offsets = [0, 256], sizes = [8, 128], strides = [1, 1]} : vector<8x512xf32> to vector<8x128xf32>
      %161 = math.tanh %160 : vector<8x128xf32>
      %162 = vector.extract_strided_slice %143 {offsets = [0, 384], sizes = [8, 128], strides = [1, 1]} : vector<8x512xf32> to vector<8x128xf32>
      %cst_89 = arith.constant 5.000000e-01 : f32
      %163 = vector.broadcast %cst_89 : f32 to vector<8x128xf32>
      %164 = arith.mulf %163, %162 : vector<8x128xf32>
      %165 = math.tanh %164 : vector<8x128xf32>
      %cst_90 = arith.constant 5.000000e-01 : f32
      %166 = vector.broadcast %cst_90 : f32 to vector<8x128xf32>
      %167 = arith.mulf %166, %165 : vector<8x128xf32>
      %cst_91 = arith.constant 5.000000e-01 : f32
      %168 = vector.broadcast %cst_91 : f32 to vector<8x128xf32>
      %169 = arith.addf %167, %168 : vector<8x128xf32>
      %170 = arith.mulf %159, %138 : vector<8x128xf32>
      %171 = arith.mulf %151, %161 : vector<8x128xf32>
      %172 = arith.addf %170, %171 : vector<8x128xf32>
      %173 = math.tanh %172 : vector<8x128xf32>
      %174 = arith.mulf %169, %173 : vector<8x128xf32>
      %175 = vector.broadcast %c1_i32_79 : i32 to vector<8x1xi32>
      %176 = arith.cmpi slt, %175, %84 : vector<8x1xi32>
      %cst_92 = arith.constant 0.000000e+00 : f32
      %177 = vector.shape_cast %176 : vector<8x1xi1> to vector<8x1xi1>
      %178 = vector.broadcast %177 : vector<8x1xi1> to vector<8x128xi1>
      %179 = vector.broadcast %cst_92 : f32 to vector<8x128xf32>
      %180 = arith.select %178, %174, %179 : vector<8x128xi1>, vector<8x128xf32>
      %181 = arith.index_cast %c1_i32_79 : i32 to index
      %c0_93 = arith.constant 0 : index
      %c0_94 = arith.constant 0 : index
      %182 = vector.load %arg14[%181, %c0_93, %c0_94] : memref<8x8x128xf32, #tpu.memory_space<vmem>>, vector<1x8x128xf32>
      %183 = vector.shape_cast %182 : vector<1x8x128xf32> to vector<8x128xf32>
      %184 = vector.shape_cast %180 : vector<8x128xf32> to vector<1x8x128xf32>
      tpu.vector_store %arg14[%181, %c0_93, %c0_94], %184 {strides = array<i32>} : memref<8x8x128xf32, #tpu.memory_space<vmem>>, vector<1x8x128xf32>,
      %185 = vector.shape_cast %176 : vector<8x1xi1> to vector<8x1xi1>
      %186 = vector.broadcast %185 : vector<8x1xi1> to vector<8x128xi1>
      %187 = arith.select %186, %174, %135 : vector<8x128xi1>, vector<8x128xf32>
      %188 = vector.shape_cast %176 : vector<8x1xi1> to vector<8x1xi1>
      %189 = vector.broadcast %188 : vector<8x1xi1> to vector<8x128xi1>
      %190 = arith.select %189, %172, %138 : vector<8x128xi1>, vector<8x128xf32>
      %c2_i32 = arith.constant 2 : i32
      %191 = arith.index_cast %c2_i32 : i32 to index
      %c0_95 = arith.constant 0 : index
      %c0_96 = arith.constant 0 : index
      %192 = vector.load %arg13[%191, %c0_95, %c0_96] : memref<8x8x512xf32, #tpu.memory_space<vmem>>, vector<1x8x512xf32>
      %193 = vector.shape_cast %192 : vector<1x8x512xf32> to vector<8x512xf32>
      %cst_97 = arith.constant dense<0.000000e+00> : vector<8x512xf32>
      %194 = tpu.matmul %187, %81, %cst_97 {dimension_numbers = #tpu.dot_dimension_numbers<[1], [0], [0], [1], [0, 0, 1, 1], [], []>} : vector<8x128xf32>, vector<128x512xf32>, vector<8x512xf32> -> vector<8x512xf32>
      %195 = arith.addf %193, %194 : vector<8x512xf32>
      %196 = vector.extract_strided_slice %195 {offsets = [0, 0], sizes = [8, 128], strides = [1, 1]} : vector<8x512xf32> to vector<8x128xf32>
      %cst_98 = arith.constant 5.000000e-01 : f32
      %197 = vector.broadcast %cst_98 : f32 to vector<8x128xf32>
      %198 = arith.mulf %197, %196 : vector<8x128xf32>
      %199 = math.tanh %198 : vector<8x128xf32>
      %cst_99 = arith.constant 5.000000e-01 : f32
      %200 = vector.broadcast %cst_99 : f32 to vector<8x128xf32>
      %201 = arith.mulf %200, %199 : vector<8x128xf32>
      %cst_100 = arith.constant 5.000000e-01 : f32
      %202 = vector.broadcast %cst_100 : f32 to vector<8x128xf32>
      %203 = arith.addf %201, %202 : vector<8x128xf32>
      %204 = vector.extract_strided_slice %195 {offsets = [0, 128], sizes = [8, 128], strides = [1, 1]} : vector<8x512xf32> to vector<8x128xf32>
      %cst_101 = arith.constant 5.000000e-01 : f32
      %205 = vector.broadcast %cst_101 : f32 to vector<8x128xf32>
      %206 = arith.mulf %205, %204 : vector<8x128xf32>
      %207 = math.tanh %206 : vector<8x128xf32>
      %cst_102 = arith.constant 5.000000e-01 : f32
      %208 = vector.broadcast %cst_102 : f32 to vector<8x128xf32>
      %209 = arith.mulf %208, %207 : vector<8x128xf32>
      %cst_103 = arith.constant 5.000000e-01 : f32
      %210 = vector.broadcast %cst_103 : f32 to vector<8x128xf32>
      %211 = arith.addf %209, %210 : vector<8x128xf32>
      %212 = vector.extract_strided_slice %195 {offsets = [0, 256], sizes = [8, 128], strides = [1, 1]} : vector<8x512xf32> to vector<8x128xf32>
      %213 = math.tanh %212 : vector<8x128xf32>
      %214 = vector.extract_strided_slice %195 {offsets = [0, 384], sizes = [8, 128], strides = [1, 1]} : vector<8x512xf32> to vector<8x128xf32>
      %cst_104 = arith.constant 5.000000e-01 : f32
      %215 = vector.broadcast %cst_104 : f32 to vector<8x128xf32>
      %216 = arith.mulf %215, %214 : vector<8x128xf32>
      %217 = math.tanh %216 : vector<8x128xf32>
      %cst_105 = arith.constant 5.000000e-01 : f32
      %218 = vector.broadcast %cst_105 : f32 to vector<8x128xf32>
      %219 = arith.mulf %218, %217 : vector<8x128xf32>
      %cst_106 = arith.constant 5.000000e-01 : f32
      %220 = vector.broadcast %cst_106 : f32 to vector<8x128xf32>
      %221 = arith.addf %219, %220 : vector<8x128xf32>
      %222 = arith.mulf %211, %190 : vector<8x128xf32>
      %223 = arith.mulf %203, %213 : vector<8x128xf32>
      %224 = arith.addf %222, %223 : vector<8x128xf32>
      %225 = math.tanh %224 : vector<8x128xf32>
      %226 = arith.mulf %221, %225 : vector<8x128xf32>
      %227 = vector.broadcast %c2_i32 : i32 to vector<8x1xi32>
      %228 = arith.cmpi slt, %227, %84 : vector<8x1xi32>
      %cst_107 = arith.constant 0.000000e+00 : f32
      %229 = vector.shape_cast %228 : vector<8x1xi1> to vector<8x1xi1>
      %230 = vector.broadcast %229 : vector<8x1xi1> to vector<8x128xi1>
      %231 = vector.broadcast %cst_107 : f32 to vector<8x128xf32>
      %232 = arith.select %230, %226, %231 : vector<8x128xi1>, vector<8x128xf32>
      %233 = arith.index_cast %c2_i32 : i32 to index
      %c0_108 = arith.constant 0 : index
      %c0_109 = arith.constant 0 : index
      %234 = vector.load %arg14[%233, %c0_108, %c0_109] : memref<8x8x128xf32, #tpu.memory_space<vmem>>, vector<1x8x128xf32>
      %235 = vector.shape_cast %234 : vector<1x8x128xf32> to vector<8x128xf32>
      %236 = vector.shape_cast %232 : vector<8x128xf32> to vector<1x8x128xf32>
      tpu.vector_store %arg14[%233, %c0_108, %c0_109], %236 {strides = array<i32>} : memref<8x8x128xf32, #tpu.memory_space<vmem>>, vector<1x8x128xf32>,
      %237 = vector.shape_cast %228 : vector<8x1xi1> to vector<8x1xi1>
      %238 = vector.broadcast %237 : vector<8x1xi1> to vector<8x128xi1>
      %239 = arith.select %238, %226, %187 : vector<8x128xi1>, vector<8x128xf32>
      %240 = vector.shape_cast %228 : vector<8x1xi1> to vector<8x1xi1>
      %241 = vector.broadcast %240 : vector<8x1xi1> to vector<8x128xi1>
      %242 = arith.select %241, %224, %190 : vector<8x128xi1>, vector<8x128xf32>
      %c3_i32 = arith.constant 3 : i32
      %243 = arith.index_cast %c3_i32 : i32 to index
      %c0_110 = arith.constant 0 : index
      %c0_111 = arith.constant 0 : index
      %244 = vector.load %arg13[%243, %c0_110, %c0_111] : memref<8x8x512xf32, #tpu.memory_space<vmem>>, vector<1x8x512xf32>
      %245 = vector.shape_cast %244 : vector<1x8x512xf32> to vector<8x512xf32>
      %cst_112 = arith.constant dense<0.000000e+00> : vector<8x512xf32>
      %246 = tpu.matmul %239, %81, %cst_112 {dimension_numbers = #tpu.dot_dimension_numbers<[1], [0], [0], [1], [0, 0, 1, 1], [], []>} : vector<8x128xf32>, vector<128x512xf32>, vector<8x512xf32> -> vector<8x512xf32>
      %247 = arith.addf %245, %246 : vector<8x512xf32>
      %248 = vector.extract_strided_slice %247 {offsets = [0, 0], sizes = [8, 128], strides = [1, 1]} : vector<8x512xf32> to vector<8x128xf32>
      %cst_113 = arith.constant 5.000000e-01 : f32
      %249 = vector.broadcast %cst_113 : f32 to vector<8x128xf32>
      %250 = arith.mulf %249, %248 : vector<8x128xf32>
      %251 = math.tanh %250 : vector<8x128xf32>
      %cst_114 = arith.constant 5.000000e-01 : f32
      %252 = vector.broadcast %cst_114 : f32 to vector<8x128xf32>
      %253 = arith.mulf %252, %251 : vector<8x128xf32>
      %cst_115 = arith.constant 5.000000e-01 : f32
      %254 = vector.broadcast %cst_115 : f32 to vector<8x128xf32>
      %255 = arith.addf %253, %254 : vector<8x128xf32>
      %256 = vector.extract_strided_slice %247 {offsets = [0, 128], sizes = [8, 128], strides = [1, 1]} : vector<8x512xf32> to vector<8x128xf32>
      %cst_116 = arith.constant 5.000000e-01 : f32
      %257 = vector.broadcast %cst_116 : f32 to vector<8x128xf32>
      %258 = arith.mulf %257, %256 : vector<8x128xf32>
      %259 = math.tanh %258 : vector<8x128xf32>
      %cst_117 = arith.constant 5.000000e-01 : f32
      %260 = vector.broadcast %cst_117 : f32 to vector<8x128xf32>
      %261 = arith.mulf %260, %259 : vector<8x128xf32>
      %cst_118 = arith.constant 5.000000e-01 : f32
      %262 = vector.broadcast %cst_118 : f32 to vector<8x128xf32>
      %263 = arith.addf %261, %262 : vector<8x128xf32>
      %264 = vector.extract_strided_slice %247 {offsets = [0, 256], sizes = [8, 128], strides = [1, 1]} : vector<8x512xf32> to vector<8x128xf32>
      %265 = math.tanh %264 : vector<8x128xf32>
      %266 = vector.extract_strided_slice %247 {offsets = [0, 384], sizes = [8, 128], strides = [1, 1]} : vector<8x512xf32> to vector<8x128xf32>
      %cst_119 = arith.constant 5.000000e-01 : f32
      %267 = vector.broadcast %cst_119 : f32 to vector<8x128xf32>
      %268 = arith.mulf %267, %266 : vector<8x128xf32>
      %269 = math.tanh %268 : vector<8x128xf32>
      %cst_120 = arith.constant 5.000000e-01 : f32
      %270 = vector.broadcast %cst_120 : f32 to vector<8x128xf32>
      %271 = arith.mulf %270, %269 : vector<8x128xf32>
      %cst_121 = arith.constant 5.000000e-01 : f32
      %272 = vector.broadcast %cst_121 : f32 to vector<8x128xf32>
      %273 = arith.addf %271, %272 : vector<8x128xf32>
      %274 = arith.mulf %263, %242 : vector<8x128xf32>
      %275 = arith.mulf %255, %265 : vector<8x128xf32>
      %276 = arith.addf %274, %275 : vector<8x128xf32>
      %277 = math.tanh %276 : vector<8x128xf32>
      %278 = arith.mulf %273, %277 : vector<8x128xf32>
      %279 = vector.broadcast %c3_i32 : i32 to vector<8x1xi32>
      %280 = arith.cmpi slt, %279, %84 : vector<8x1xi32>
      %cst_122 = arith.constant 0.000000e+00 : f32
      %281 = vector.shape_cast %280 : vector<8x1xi1> to vector<8x1xi1>
      %282 = vector.broadcast %281 : vector<8x1xi1> to vector<8x128xi1>
      %283 = vector.broadcast %cst_122 : f32 to vector<8x128xf32>
      %284 = arith.select %282, %278, %283 : vector<8x128xi1>, vector<8x128xf32>
      %285 = arith.index_cast %c3_i32 : i32 to index
      %c0_123 = arith.constant 0 : index
      %c0_124 = arith.constant 0 : index
      %286 = vector.load %arg14[%285, %c0_123, %c0_124] : memref<8x8x128xf32, #tpu.memory_space<vmem>>, vector<1x8x128xf32>
      %287 = vector.shape_cast %286 : vector<1x8x128xf32> to vector<8x128xf32>
      %288 = vector.shape_cast %284 : vector<8x128xf32> to vector<1x8x128xf32>
      tpu.vector_store %arg14[%285, %c0_123, %c0_124], %288 {strides = array<i32>} : memref<8x8x128xf32, #tpu.memory_space<vmem>>, vector<1x8x128xf32>,
      %289 = vector.shape_cast %280 : vector<8x1xi1> to vector<8x1xi1>
      %290 = vector.broadcast %289 : vector<8x1xi1> to vector<8x128xi1>
      %291 = arith.select %290, %278, %239 : vector<8x128xi1>, vector<8x128xf32>
      %292 = vector.shape_cast %280 : vector<8x1xi1> to vector<8x1xi1>
      %293 = vector.broadcast %292 : vector<8x1xi1> to vector<8x128xi1>
      %294 = arith.select %293, %276, %242 : vector<8x128xi1>, vector<8x128xf32>
      %c4_i32 = arith.constant 4 : i32
      %295 = arith.index_cast %c4_i32 : i32 to index
      %c0_125 = arith.constant 0 : index
      %c0_126 = arith.constant 0 : index
      %296 = vector.load %arg13[%295, %c0_125, %c0_126] : memref<8x8x512xf32, #tpu.memory_space<vmem>>, vector<1x8x512xf32>
      %297 = vector.shape_cast %296 : vector<1x8x512xf32> to vector<8x512xf32>
      %cst_127 = arith.constant dense<0.000000e+00> : vector<8x512xf32>
      %298 = tpu.matmul %291, %81, %cst_127 {dimension_numbers = #tpu.dot_dimension_numbers<[1], [0], [0], [1], [0, 0, 1, 1], [], []>} : vector<8x128xf32>, vector<128x512xf32>, vector<8x512xf32> -> vector<8x512xf32>
      %299 = arith.addf %297, %298 : vector<8x512xf32>
      %300 = vector.extract_strided_slice %299 {offsets = [0, 0], sizes = [8, 128], strides = [1, 1]} : vector<8x512xf32> to vector<8x128xf32>
      %cst_128 = arith.constant 5.000000e-01 : f32
      %301 = vector.broadcast %cst_128 : f32 to vector<8x128xf32>
      %302 = arith.mulf %301, %300 : vector<8x128xf32>
      %303 = math.tanh %302 : vector<8x128xf32>
      %cst_129 = arith.constant 5.000000e-01 : f32
      %304 = vector.broadcast %cst_129 : f32 to vector<8x128xf32>
      %305 = arith.mulf %304, %303 : vector<8x128xf32>
      %cst_130 = arith.constant 5.000000e-01 : f32
      %306 = vector.broadcast %cst_130 : f32 to vector<8x128xf32>
      %307 = arith.addf %305, %306 : vector<8x128xf32>
      %308 = vector.extract_strided_slice %299 {offsets = [0, 128], sizes = [8, 128], strides = [1, 1]} : vector<8x512xf32> to vector<8x128xf32>
      %cst_131 = arith.constant 5.000000e-01 : f32
      %309 = vector.broadcast %cst_131 : f32 to vector<8x128xf32>
      %310 = arith.mulf %309, %308 : vector<8x128xf32>
      %311 = math.tanh %310 : vector<8x128xf32>
      %cst_132 = arith.constant 5.000000e-01 : f32
      %312 = vector.broadcast %cst_132 : f32 to vector<8x128xf32>
      %313 = arith.mulf %312, %311 : vector<8x128xf32>
      %cst_133 = arith.constant 5.000000e-01 : f32
      %314 = vector.broadcast %cst_133 : f32 to vector<8x128xf32>
      %315 = arith.addf %313, %314 : vector<8x128xf32>
      %316 = vector.extract_strided_slice %299 {offsets = [0, 256], sizes = [8, 128], strides = [1, 1]} : vector<8x512xf32> to vector<8x128xf32>
      %317 = math.tanh %316 : vector<8x128xf32>
      %318 = vector.extract_strided_slice %299 {offsets = [0, 384], sizes = [8, 128], strides = [1, 1]} : vector<8x512xf32> to vector<8x128xf32>
      %cst_134 = arith.constant 5.000000e-01 : f32
      %319 = vector.broadcast %cst_134 : f32 to vector<8x128xf32>
      %320 = arith.mulf %319, %318 : vector<8x128xf32>
      %321 = math.tanh %320 : vector<8x128xf32>
      %cst_135 = arith.constant 5.000000e-01 : f32
      %322 = vector.broadcast %cst_135 : f32 to vector<8x128xf32>
      %323 = arith.mulf %322, %321 : vector<8x128xf32>
      %cst_136 = arith.constant 5.000000e-01 : f32
      %324 = vector.broadcast %cst_136 : f32 to vector<8x128xf32>
      %325 = arith.addf %323, %324 : vector<8x128xf32>
      %326 = arith.mulf %315, %294 : vector<8x128xf32>
      %327 = arith.mulf %307, %317 : vector<8x128xf32>
      %328 = arith.addf %326, %327 : vector<8x128xf32>
      %329 = math.tanh %328 : vector<8x128xf32>
      %330 = arith.mulf %325, %329 : vector<8x128xf32>
      %331 = vector.broadcast %c4_i32 : i32 to vector<8x1xi32>
      %332 = arith.cmpi slt, %331, %84 : vector<8x1xi32>
      %cst_137 = arith.constant 0.000000e+00 : f32
      %333 = vector.shape_cast %332 : vector<8x1xi1> to vector<8x1xi1>
      %334 = vector.broadcast %333 : vector<8x1xi1> to vector<8x128xi1>
      %335 = vector.broadcast %cst_137 : f32 to vector<8x128xf32>
      %336 = arith.select %334, %330, %335 : vector<8x128xi1>, vector<8x128xf32>
      %337 = arith.index_cast %c4_i32 : i32 to index
      %c0_138 = arith.constant 0 : index
      %c0_139 = arith.constant 0 : index
      %338 = vector.load %arg14[%337, %c0_138, %c0_139] : memref<8x8x128xf32, #tpu.memory_space<vmem>>, vector<1x8x128xf32>
      %339 = vector.shape_cast %338 : vector<1x8x128xf32> to vector<8x128xf32>
      %340 = vector.shape_cast %336 : vector<8x128xf32> to vector<1x8x128xf32>
      tpu.vector_store %arg14[%337, %c0_138, %c0_139], %340 {strides = array<i32>} : memref<8x8x128xf32, #tpu.memory_space<vmem>>, vector<1x8x128xf32>,
      %341 = vector.shape_cast %332 : vector<8x1xi1> to vector<8x1xi1>
      %342 = vector.broadcast %341 : vector<8x1xi1> to vector<8x128xi1>
      %343 = arith.select %342, %330, %291 : vector<8x128xi1>, vector<8x128xf32>
      %344 = vector.shape_cast %332 : vector<8x1xi1> to vector<8x1xi1>
      %345 = vector.broadcast %344 : vector<8x1xi1> to vector<8x128xi1>
      %346 = arith.select %345, %328, %294 : vector<8x128xi1>, vector<8x128xf32>
      %c5_i32 = arith.constant 5 : i32
      %347 = arith.index_cast %c5_i32 : i32 to index
      %c0_140 = arith.constant 0 : index
      %c0_141 = arith.constant 0 : index
      %348 = vector.load %arg13[%347, %c0_140, %c0_141] : memref<8x8x512xf32, #tpu.memory_space<vmem>>, vector<1x8x512xf32>
      %349 = vector.shape_cast %348 : vector<1x8x512xf32> to vector<8x512xf32>
      %cst_142 = arith.constant dense<0.000000e+00> : vector<8x512xf32>
      %350 = tpu.matmul %343, %81, %cst_142 {dimension_numbers = #tpu.dot_dimension_numbers<[1], [0], [0], [1], [0, 0, 1, 1], [], []>} : vector<8x128xf32>, vector<128x512xf32>, vector<8x512xf32> -> vector<8x512xf32>
      %351 = arith.addf %349, %350 : vector<8x512xf32>
      %352 = vector.extract_strided_slice %351 {offsets = [0, 0], sizes = [8, 128], strides = [1, 1]} : vector<8x512xf32> to vector<8x128xf32>
      %cst_143 = arith.constant 5.000000e-01 : f32
      %353 = vector.broadcast %cst_143 : f32 to vector<8x128xf32>
      %354 = arith.mulf %353, %352 : vector<8x128xf32>
      %355 = math.tanh %354 : vector<8x128xf32>
      %cst_144 = arith.constant 5.000000e-01 : f32
      %356 = vector.broadcast %cst_144 : f32 to vector<8x128xf32>
      %357 = arith.mulf %356, %355 : vector<8x128xf32>
      %cst_145 = arith.constant 5.000000e-01 : f32
      %358 = vector.broadcast %cst_145 : f32 to vector<8x128xf32>
      %359 = arith.addf %357, %358 : vector<8x128xf32>
      %360 = vector.extract_strided_slice %351 {offsets = [0, 128], sizes = [8, 128], strides = [1, 1]} : vector<8x512xf32> to vector<8x128xf32>
      %cst_146 = arith.constant 5.000000e-01 : f32
      %361 = vector.broadcast %cst_146 : f32 to vector<8x128xf32>
      %362 = arith.mulf %361, %360 : vector<8x128xf32>
      %363 = math.tanh %362 : vector<8x128xf32>
      %cst_147 = arith.constant 5.000000e-01 : f32
      %364 = vector.broadcast %cst_147 : f32 to vector<8x128xf32>
      %365 = arith.mulf %364, %363 : vector<8x128xf32>
      %cst_148 = arith.constant 5.000000e-01 : f32
      %366 = vector.broadcast %cst_148 : f32 to vector<8x128xf32>
      %367 = arith.addf %365, %366 : vector<8x128xf32>
      %368 = vector.extract_strided_slice %351 {offsets = [0, 256], sizes = [8, 128], strides = [1, 1]} : vector<8x512xf32> to vector<8x128xf32>
      %369 = math.tanh %368 : vector<8x128xf32>
      %370 = vector.extract_strided_slice %351 {offsets = [0, 384], sizes = [8, 128], strides = [1, 1]} : vector<8x512xf32> to vector<8x128xf32>
      %cst_149 = arith.constant 5.000000e-01 : f32
      %371 = vector.broadcast %cst_149 : f32 to vector<8x128xf32>
      %372 = arith.mulf %371, %370 : vector<8x128xf32>
      %373 = math.tanh %372 : vector<8x128xf32>
      %cst_150 = arith.constant 5.000000e-01 : f32
      %374 = vector.broadcast %cst_150 : f32 to vector<8x128xf32>
      %375 = arith.mulf %374, %373 : vector<8x128xf32>
      %cst_151 = arith.constant 5.000000e-01 : f32
      %376 = vector.broadcast %cst_151 : f32 to vector<8x128xf32>
      %377 = arith.addf %375, %376 : vector<8x128xf32>
      %378 = arith.mulf %367, %346 : vector<8x128xf32>
      %379 = arith.mulf %359, %369 : vector<8x128xf32>
      %380 = arith.addf %378, %379 : vector<8x128xf32>
      %381 = math.tanh %380 : vector<8x128xf32>
      %382 = arith.mulf %377, %381 : vector<8x128xf32>
      %383 = vector.broadcast %c5_i32 : i32 to vector<8x1xi32>
      %384 = arith.cmpi slt, %383, %84 : vector<8x1xi32>
      %cst_152 = arith.constant 0.000000e+00 : f32
      %385 = vector.shape_cast %384 : vector<8x1xi1> to vector<8x1xi1>
      %386 = vector.broadcast %385 : vector<8x1xi1> to vector<8x128xi1>
      %387 = vector.broadcast %cst_152 : f32 to vector<8x128xf32>
      %388 = arith.select %386, %382, %387 : vector<8x128xi1>, vector<8x128xf32>
      %389 = arith.index_cast %c5_i32 : i32 to index
      %c0_153 = arith.constant 0 : index
      %c0_154 = arith.constant 0 : index
      %390 = vector.load %arg14[%389, %c0_153, %c0_154] : memref<8x8x128xf32, #tpu.memory_space<vmem>>, vector<1x8x128xf32>
      %391 = vector.shape_cast %390 : vector<1x8x128xf32> to vector<8x128xf32>
      %392 = vector.shape_cast %388 : vector<8x128xf32> to vector<1x8x128xf32>
      tpu.vector_store %arg14[%389, %c0_153, %c0_154], %392 {strides = array<i32>} : memref<8x8x128xf32, #tpu.memory_space<vmem>>, vector<1x8x128xf32>,
      %393 = vector.shape_cast %384 : vector<8x1xi1> to vector<8x1xi1>
      %394 = vector.broadcast %393 : vector<8x1xi1> to vector<8x128xi1>
      %395 = arith.select %394, %382, %343 : vector<8x128xi1>, vector<8x128xf32>
      %396 = vector.shape_cast %384 : vector<8x1xi1> to vector<8x1xi1>
      %397 = vector.broadcast %396 : vector<8x1xi1> to vector<8x128xi1>
      %398 = arith.select %397, %380, %346 : vector<8x128xi1>, vector<8x128xf32>
      %c6_i32 = arith.constant 6 : i32
      %399 = arith.index_cast %c6_i32 : i32 to index
      %c0_155 = arith.constant 0 : index
      %c0_156 = arith.constant 0 : index
      %400 = vector.load %arg13[%399, %c0_155, %c0_156] : memref<8x8x512xf32, #tpu.memory_space<vmem>>, vector<1x8x512xf32>
      %401 = vector.shape_cast %400 : vector<1x8x512xf32> to vector<8x512xf32>
      %cst_157 = arith.constant dense<0.000000e+00> : vector<8x512xf32>
      %402 = tpu.matmul %395, %81, %cst_157 {dimension_numbers = #tpu.dot_dimension_numbers<[1], [0], [0], [1], [0, 0, 1, 1], [], []>} : vector<8x128xf32>, vector<128x512xf32>, vector<8x512xf32> -> vector<8x512xf32>
      %403 = arith.addf %401, %402 : vector<8x512xf32>
      %404 = vector.extract_strided_slice %403 {offsets = [0, 0], sizes = [8, 128], strides = [1, 1]} : vector<8x512xf32> to vector<8x128xf32>
      %cst_158 = arith.constant 5.000000e-01 : f32
      %405 = vector.broadcast %cst_158 : f32 to vector<8x128xf32>
      %406 = arith.mulf %405, %404 : vector<8x128xf32>
      %407 = math.tanh %406 : vector<8x128xf32>
      %cst_159 = arith.constant 5.000000e-01 : f32
      %408 = vector.broadcast %cst_159 : f32 to vector<8x128xf32>
      %409 = arith.mulf %408, %407 : vector<8x128xf32>
      %cst_160 = arith.constant 5.000000e-01 : f32
      %410 = vector.broadcast %cst_160 : f32 to vector<8x128xf32>
      %411 = arith.addf %409, %410 : vector<8x128xf32>
      %412 = vector.extract_strided_slice %403 {offsets = [0, 128], sizes = [8, 128], strides = [1, 1]} : vector<8x512xf32> to vector<8x128xf32>
      %cst_161 = arith.constant 5.000000e-01 : f32
      %413 = vector.broadcast %cst_161 : f32 to vector<8x128xf32>
      %414 = arith.mulf %413, %412 : vector<8x128xf32>
      %415 = math.tanh %414 : vector<8x128xf32>
      %cst_162 = arith.constant 5.000000e-01 : f32
      %416 = vector.broadcast %cst_162 : f32 to vector<8x128xf32>
      %417 = arith.mulf %416, %415 : vector<8x128xf32>
      %cst_163 = arith.constant 5.000000e-01 : f32
      %418 = vector.broadcast %cst_163 : f32 to vector<8x128xf32>
      %419 = arith.addf %417, %418 : vector<8x128xf32>
      %420 = vector.extract_strided_slice %403 {offsets = [0, 256], sizes = [8, 128], strides = [1, 1]} : vector<8x512xf32> to vector<8x128xf32>
      %421 = math.tanh %420 : vector<8x128xf32>
      %422 = vector.extract_strided_slice %403 {offsets = [0, 384], sizes = [8, 128], strides = [1, 1]} : vector<8x512xf32> to vector<8x128xf32>
      %cst_164 = arith.constant 5.000000e-01 : f32
      %423 = vector.broadcast %cst_164 : f32 to vector<8x128xf32>
      %424 = arith.mulf %423, %422 : vector<8x128xf32>
      %425 = math.tanh %424 : vector<8x128xf32>
      %cst_165 = arith.constant 5.000000e-01 : f32
      %426 = vector.broadcast %cst_165 : f32 to vector<8x128xf32>
      %427 = arith.mulf %426, %425 : vector<8x128xf32>
      %cst_166 = arith.constant 5.000000e-01 : f32
      %428 = vector.broadcast %cst_166 : f32 to vector<8x128xf32>
      %429 = arith.addf %427, %428 : vector<8x128xf32>
      %430 = arith.mulf %419, %398 : vector<8x128xf32>
      %431 = arith.mulf %411, %421 : vector<8x128xf32>
      %432 = arith.addf %430, %431 : vector<8x128xf32>
      %433 = math.tanh %432 : vector<8x128xf32>
      %434 = arith.mulf %429, %433 : vector<8x128xf32>
      %435 = vector.broadcast %c6_i32 : i32 to vector<8x1xi32>
      %436 = arith.cmpi slt, %435, %84 : vector<8x1xi32>
      %cst_167 = arith.constant 0.000000e+00 : f32
      %437 = vector.shape_cast %436 : vector<8x1xi1> to vector<8x1xi1>
      %438 = vector.broadcast %437 : vector<8x1xi1> to vector<8x128xi1>
      %439 = vector.broadcast %cst_167 : f32 to vector<8x128xf32>
      %440 = arith.select %438, %434, %439 : vector<8x128xi1>, vector<8x128xf32>
      %441 = arith.index_cast %c6_i32 : i32 to index
      %c0_168 = arith.constant 0 : index
      %c0_169 = arith.constant 0 : index
      %442 = vector.load %arg14[%441, %c0_168, %c0_169] : memref<8x8x128xf32, #tpu.memory_space<vmem>>, vector<1x8x128xf32>
      %443 = vector.shape_cast %442 : vector<1x8x128xf32> to vector<8x128xf32>
      %444 = vector.shape_cast %440 : vector<8x128xf32> to vector<1x8x128xf32>
      tpu.vector_store %arg14[%441, %c0_168, %c0_169], %444 {strides = array<i32>} : memref<8x8x128xf32, #tpu.memory_space<vmem>>, vector<1x8x128xf32>,
      %445 = vector.shape_cast %436 : vector<8x1xi1> to vector<8x1xi1>
      %446 = vector.broadcast %445 : vector<8x1xi1> to vector<8x128xi1>
      %447 = arith.select %446, %434, %395 : vector<8x128xi1>, vector<8x128xf32>
      %448 = vector.shape_cast %436 : vector<8x1xi1> to vector<8x1xi1>
      %449 = vector.broadcast %448 : vector<8x1xi1> to vector<8x128xi1>
      %450 = arith.select %449, %432, %398 : vector<8x128xi1>, vector<8x128xf32>
      %c7_i32 = arith.constant 7 : i32
      %451 = arith.index_cast %c7_i32 : i32 to index
      %c0_170 = arith.constant 0 : index
      %c0_171 = arith.constant 0 : index
      %452 = vector.load %arg13[%451, %c0_170, %c0_171] : memref<8x8x512xf32, #tpu.memory_space<vmem>>, vector<1x8x512xf32>
      %453 = vector.shape_cast %452 : vector<1x8x512xf32> to vector<8x512xf32>
      %cst_172 = arith.constant dense<0.000000e+00> : vector<8x512xf32>
      %454 = tpu.matmul %447, %81, %cst_172 {dimension_numbers = #tpu.dot_dimension_numbers<[1], [0], [0], [1], [0, 0, 1, 1], [], []>} : vector<8x128xf32>, vector<128x512xf32>, vector<8x512xf32> -> vector<8x512xf32>
      %455 = arith.addf %453, %454 : vector<8x512xf32>
      %456 = vector.extract_strided_slice %455 {offsets = [0, 0], sizes = [8, 128], strides = [1, 1]} : vector<8x512xf32> to vector<8x128xf32>
      %cst_173 = arith.constant 5.000000e-01 : f32
      %457 = vector.broadcast %cst_173 : f32 to vector<8x128xf32>
      %458 = arith.mulf %457, %456 : vector<8x128xf32>
      %459 = math.tanh %458 : vector<8x128xf32>
      %cst_174 = arith.constant 5.000000e-01 : f32
      %460 = vector.broadcast %cst_174 : f32 to vector<8x128xf32>
      %461 = arith.mulf %460, %459 : vector<8x128xf32>
      %cst_175 = arith.constant 5.000000e-01 : f32
      %462 = vector.broadcast %cst_175 : f32 to vector<8x128xf32>
      %463 = arith.addf %461, %462 : vector<8x128xf32>
      %464 = vector.extract_strided_slice %455 {offsets = [0, 128], sizes = [8, 128], strides = [1, 1]} : vector<8x512xf32> to vector<8x128xf32>
      %cst_176 = arith.constant 5.000000e-01 : f32
      %465 = vector.broadcast %cst_176 : f32 to vector<8x128xf32>
      %466 = arith.mulf %465, %464 : vector<8x128xf32>
      %467 = math.tanh %466 : vector<8x128xf32>
      %cst_177 = arith.constant 5.000000e-01 : f32
      %468 = vector.broadcast %cst_177 : f32 to vector<8x128xf32>
      %469 = arith.mulf %468, %467 : vector<8x128xf32>
      %cst_178 = arith.constant 5.000000e-01 : f32
      %470 = vector.broadcast %cst_178 : f32 to vector<8x128xf32>
      %471 = arith.addf %469, %470 : vector<8x128xf32>
      %472 = vector.extract_strided_slice %455 {offsets = [0, 256], sizes = [8, 128], strides = [1, 1]} : vector<8x512xf32> to vector<8x128xf32>
      %473 = math.tanh %472 : vector<8x128xf32>
      %474 = vector.extract_strided_slice %455 {offsets = [0, 384], sizes = [8, 128], strides = [1, 1]} : vector<8x512xf32> to vector<8x128xf32>
      %cst_179 = arith.constant 5.000000e-01 : f32
      %475 = vector.broadcast %cst_179 : f32 to vector<8x128xf32>
      %476 = arith.mulf %475, %474 : vector<8x128xf32>
      %477 = math.tanh %476 : vector<8x128xf32>
      %cst_180 = arith.constant 5.000000e-01 : f32
      %478 = vector.broadcast %cst_180 : f32 to vector<8x128xf32>
      %479 = arith.mulf %478, %477 : vector<8x128xf32>
      %cst_181 = arith.constant 5.000000e-01 : f32
      %480 = vector.broadcast %cst_181 : f32 to vector<8x128xf32>
      %481 = arith.addf %479, %480 : vector<8x128xf32>
      %482 = arith.mulf %471, %450 : vector<8x128xf32>
      %483 = arith.mulf %463, %473 : vector<8x128xf32>
      %484 = arith.addf %482, %483 : vector<8x128xf32>
      %485 = math.tanh %484 : vector<8x128xf32>
      %486 = arith.mulf %481, %485 : vector<8x128xf32>
      %487 = vector.broadcast %c7_i32 : i32 to vector<8x1xi32>
      %488 = arith.cmpi slt, %487, %84 : vector<8x1xi32>
      %cst_182 = arith.constant 0.000000e+00 : f32
      %489 = vector.shape_cast %488 : vector<8x1xi1> to vector<8x1xi1>
      %490 = vector.broadcast %489 : vector<8x1xi1> to vector<8x128xi1>
      %491 = vector.broadcast %cst_182 : f32 to vector<8x128xf32>
      %492 = arith.select %490, %486, %491 : vector<8x128xi1>, vector<8x128xf32>
      %493 = arith.index_cast %c7_i32 : i32 to index
      %c0_183 = arith.constant 0 : index
      %c0_184 = arith.constant 0 : index
      %494 = vector.load %arg14[%493, %c0_183, %c0_184] : memref<8x8x128xf32, #tpu.memory_space<vmem>>, vector<1x8x128xf32>
      %495 = vector.shape_cast %494 : vector<1x8x128xf32> to vector<8x128xf32>
      %496 = vector.shape_cast %492 : vector<8x128xf32> to vector<1x8x128xf32>
      tpu.vector_store %arg14[%493, %c0_183, %c0_184], %496 {strides = array<i32>} : memref<8x8x128xf32, #tpu.memory_space<vmem>>, vector<1x8x128xf32>,
      %497 = vector.shape_cast %488 : vector<8x1xi1> to vector<8x1xi1>
      %498 = vector.broadcast %497 : vector<8x1xi1> to vector<8x128xi1>
      %499 = arith.select %498, %486, %447 : vector<8x128xi1>, vector<8x128xf32>
      %500 = vector.shape_cast %488 : vector<8x1xi1> to vector<8x1xi1>
      %501 = vector.broadcast %500 : vector<8x1xi1> to vector<8x128xi1>
      %502 = arith.select %501, %484, %450 : vector<8x128xi1>, vector<8x128xf32>
      %c8_i32_185 = arith.constant 8 : i32
      %c0_186 = arith.constant 0 : index
      %c0_187 = arith.constant 0 : index
      %503 = vector.load %arg15[%c0_186, %c0_187] : memref<8x128xf32, #tpu.memory_space<vmem>>, vector<8x128xf32>
      tpu.vector_store %arg15[%c0_186, %c0_187], %499 {strides = array<i32>} : memref<8x128xf32, #tpu.memory_space<vmem>>, vector<8x128xf32>,
      %c0_188 = arith.constant 0 : index
      %c0_189 = arith.constant 0 : index
      %504 = vector.load %arg16[%c0_188, %c0_189] : memref<8x128xf32, #tpu.memory_space<vmem>>, vector<8x128xf32>
      tpu.vector_store %arg16[%c0_188, %c0_189], %502 {strides = array<i32>} : memref<8x128xf32, #tpu.memory_space<vmem>>, vector<8x128xf32>,
      %c0_190 = arith.constant 0 : index
      %c0_191 = arith.constant 0 : index
      %c0_192 = arith.constant 0 : index
      %505 = vector.load %arg14[%c0_190, %c0_191, %c0_192] : memref<8x8x128xf32, #tpu.memory_space<vmem>>, vector<8x8x128xf32>
      %c0_193 = arith.constant 0 : index
      %c0_194 = arith.constant 0 : index
      %c0_195 = arith.constant 0 : index
      %506 = vector.load %arg10[%c0_193, %c0_194, %c0_195] : memref<8x8x128xf32, #tpu.memory_space<vmem>>, vector<8x8x128xf32>
      tpu.vector_store %arg10[%c0_193, %c0_194, %c0_195], %505 {strides = array<i32>} : memref<8x8x128xf32, #tpu.memory_space<vmem>>, vector<8x8x128xf32>,
    } else {
    }
    %c1_i32 = arith.constant 1 : i32
    %12 = arith.cmpi eq, %arg1, %c1_i32 : i32
    %13 = arith.extui %12 : i1 to i32
    %c0_i32_3 = arith.constant 0 : i32
    %14 = arith.cmpi ne, %13, %c0_i32_3 : i32
    scf.if %14 {
      %c0 = arith.constant 0 : index
      %c0_4 = arith.constant 0 : index
      %15 = vector.load %arg16[%c0, %c0_4] : memref<8x128xf32, #tpu.memory_space<vmem>>, vector<8x128xf32>
      %c0_5 = arith.constant 0 : index
      %c0_6 = arith.constant 0 : index
      %16 = vector.load %arg11[%c0_5, %c0_6] : memref<8x128xf32, #tpu.memory_space<vmem>>, vector<8x128xf32>
      tpu.vector_store %arg11[%c0_5, %c0_6], %15 {strides = array<i32>} : memref<8x128xf32, #tpu.memory_space<vmem>>, vector<8x128xf32>,
      %c0_7 = arith.constant 0 : index
      %c0_8 = arith.constant 0 : index
      %17 = vector.load %arg15[%c0_7, %c0_8] : memref<8x128xf32, #tpu.memory_space<vmem>>, vector<8x128xf32>
      %c0_9 = arith.constant 0 : index
      %c0_10 = arith.constant 0 : index
      %18 = vector.load %arg8[%c0_9, %c0_10] : memref<128x128xf32, #tpu.memory_space<vmem>>, vector<128x128xf32>
      %cst = arith.constant dense<0.000000e+00> : vector<8x128xf32>
      %19 = tpu.matmul %17, %18, %cst {dimension_numbers = #tpu.dot_dimension_numbers<[1], [0], [0], [1], [0, 0, 1, 1], [], []>} : vector<8x128xf32>, vector<128x128xf32>, vector<8x128xf32> -> vector<8x128xf32>
      %c0_11 = arith.constant 0 : index
      %c0_12 = arith.constant 0 : index
      %20 = vector.load %arg9[%c0_11, %c0_12] : memref<1x128xf32, #tpu.memory_space<vmem>>, vector<1x128xf32>
      %21 = vector.broadcast %20 : vector<1x128xf32> to vector<8x128xf32>
      %22 = arith.addf %19, %21 : vector<8x128xf32>
      %23 = math.tanh %22 : vector<8x128xf32>
      %c0_13 = arith.constant 0 : index
      %c0_14 = arith.constant 0 : index
      %24 = vector.load %arg12[%c0_13, %c0_14] : memref<8x128xf32, #tpu.memory_space<vmem>>, vector<8x128xf32>
      tpu.vector_store %arg12[%c0_13, %c0_14], %23 {strides = array<i32>} : memref<8x128xf32, #tpu.memory_space<vmem>>, vector<8x128xf32>,
    } else {
    }
    return
  }
  func.func @transform_0(%arg0: i32, %arg1: i32, %arg2: memref<1xi32, #tpu.memory_space<smem>>) -> (i32, i32, i32) {
    %c0_i32 = arith.constant 0 : i32
    %c0_i32_0 = arith.constant 0 : i32
    return %arg1, %arg0, %c0_i32 : i32, i32, i32
  }
  func.func @transform_1(%arg0: i32, %arg1: i32, %arg2: memref<1xi32, #tpu.memory_space<smem>>) -> (i32, i32) {
    %c0_i32 = arith.constant 0 : i32
    %c0_i32_0 = arith.constant 0 : i32
    return %arg0, %c0_i32 : i32, i32
  }
  func.func @transform_2(%arg0: i32, %arg1: i32, %arg2: memref<1xi32, #tpu.memory_space<smem>>) -> (i32, i32) {
    %c0_i32 = arith.constant 0 : i32
    %c0_i32_0 = arith.constant 0 : i32
    %c0_i32_1 = arith.constant 0 : i32
    return %c0_i32, %c0_i32_0 : i32, i32
  }
  func.func @transform_3(%arg0: i32, %arg1: i32, %arg2: memref<1xi32, #tpu.memory_space<smem>>) -> (i32, i32) {
    %c0_i32 = arith.constant 0 : i32
    %c0_i32_0 = arith.constant 0 : i32
    %c0_i32_1 = arith.constant 0 : i32
    return %c0_i32, %c0_i32_0 : i32, i32
  }
  func.func @transform_4(%arg0: i32, %arg1: i32, %arg2: memref<1xi32, #tpu.memory_space<smem>>) -> (i32, i32) {
    %c0_i32 = arith.constant 0 : i32
    %c0_i32_0 = arith.constant 0 : i32
    %c0_i32_1 = arith.constant 0 : i32
    return %c0_i32, %c0_i32_0 : i32, i32
  }
  func.func @transform_5(%arg0: i32, %arg1: i32, %arg2: memref<1xi32, #tpu.memory_space<smem>>) -> (i32, i32) {
    %c0_i32 = arith.constant 0 : i32
    %c0_i32_0 = arith.constant 0 : i32
    %c0_i32_1 = arith.constant 0 : i32
    return %c0_i32, %c0_i32_0 : i32, i32
  }
  func.func @transform_6(%arg0: i32, %arg1: i32, %arg2: memref<1xi32, #tpu.memory_space<smem>>) -> (i32, i32) {
    %c0_i32 = arith.constant 0 : i32
    %c0_i32_0 = arith.constant 0 : i32
    %c0_i32_1 = arith.constant 0 : i32
    return %c0_i32, %c0_i32_0 : i32, i32
  }
  func.func @transform_7(%arg0: i32, %arg1: i32, %arg2: memref<1xi32, #tpu.memory_space<smem>>) -> (i32, i32, i32) {
    %c0_i32 = arith.constant 0 : i32
    %c0_i32_0 = arith.constant 0 : i32
    return %arg1, %arg0, %c0_i32 : i32, i32, i32
  }
  func.func @transform_8(%arg0: i32, %arg1: i32, %arg2: memref<1xi32, #tpu.memory_space<smem>>) -> (i32, i32) {
    %c0_i32 = arith.constant 0 : i32
    %c0_i32_0 = arith.constant 0 : i32
    return %arg0, %c0_i32 : i32, i32
  }
  func.func @transform_9(%arg0: i32, %arg1: i32, %arg2: memref<1xi32, #tpu.memory_space<smem>>) -> (i32, i32) {
    %c0_i32 = arith.constant 0 : i32
    %c0_i32_0 = arith.constant 0 : i32
    return %arg0, %c0_i32 : i32, i32
  }
}

</mosaic_0001>

<llo_original>
// kernel: encoder_lstm_oscar_pallas.1
$region0: #{encoder_lstm_oscar_pallas.1}
  #allocation0 [shape = 'u32[]', space=smem, size = 0x4, offset = 0x4, fixed_abs, tag = 'smem constant byte address 0x4 - core index']
  #allocation1 [shape = 'u32[144,128]{1,0:T(1,128)}', space=vmem, size = 0x12000, scoped, tag = 'internal scratch']
  #allocation2 [shape = 'f32[8,8,512]{2,1,0:T(8,128)}', space=vmem, size = 0x20000, scoped, tag = 'scratch operand']
  #allocation3 [shape = 'f32[8,8,128]{2,1,0:T(8,128)}', space=vmem, size = 0x8000, scoped, tag = 'scratch operand']
  #allocation4 [shape = 'f32[8,128]{1,0:T(8,128)}', space=vmem, size = 0x1000, scoped, tag = 'scratch operand']
  #allocation5 [shape = 'f32[8,128]{1,0:T(8,128)}', space=vmem, size = 0x1000, scoped, tag = 'scratch operand']
  #allocation6 [shape = 's32[1]{0}', space=sflag, size = 0x4, scoped, tag = 'scoped memory for encoder_lstm_oscar_pallas.1']
  #allocation7 [shape = 's32[1]{0:T(128)S(6)}', space=smem, size = 0x200, scoped, tag = 'prefetched SMEM operand 0']
  %s0 = inlined_call_operand.<no memory space> [shape: s32[1], index: 0, kind: input, shape index: {}]
  %s1 = inlined_call_operand.vmem [shape: f32[16,8,128], index: 1, kind: input, shape index: {}]
  %s2 = inlined_call_operand.vmem [shape: s32[8,1], index: 2, kind: input, shape index: {}]
  %s3 = inlined_call_operand.hbm [shape: f32[128,512], index: 3, kind: input, shape index: {}]
  %s4 = inlined_call_operand.vmem [shape: f32[1,512], index: 4, kind: input, shape index: {}]
  %s5 = inlined_call_operand.hbm [shape: f32[128,512], index: 5, kind: input, shape index: {}]
  %s6 = inlined_call_operand.vmem [shape: f32[128,128], index: 6, kind: input, shape index: {}]
  %s7 = inlined_call_operand.vmem [shape: f32[1,128], index: 7, kind: input, shape index: {}]
  %s8 = inlined_call_operand.vmem [shape: f32[8,16,128], index: 8, kind: output, shape index: {0}]
  %s9 = inlined_call_operand.vmem [shape: f32[8,128], index: 9, kind: output, shape index: {1}]
  %s10 = inlined_call_operand.vmem [shape: f32[8,128], index: 10, kind: output, shape index: {2}]
  %11 = xla_tuple %s8, %s9, %s10
  %s12 = sld [smem:[#allocation0]]
  $region135: #{encoder_lstm_oscar_pallas.1} parent=0
    _
  %s14 = ssub.s32 1, %s12
  %s15 = scalar_select 0, %s14, %s12
  %16 = sst [smem:[#allocation7]] %s0
  $region1: #{encoder_lstm_oscar_pallas.1} parent=0
    #allocation8 [shape = 'u8[262144]{0}', space=vmem, size = 0x40000, scoped, tag = 'input window, operand 3, single buffered']
    #allocation9 [shape = 's32[2]{0}', space=sflag, size = 0x8, scoped, tag = 'scoped memory for encoder_lstm_oscar_pallas.1']
    #allocation10 [shape = 'u8[262144]{0}', space=vmem, size = 0x40000, scoped, tag = 'input window, operand 5, single buffered']
    #allocation11 [shape = 's32[1]{0}', space=sflag, size = 0x4, scoped, tag = 'scoped memory for encoder_lstm_oscar_pallas.1']
    #allocation12 [shape = 'u8[65536]{0}', space=vmem, size = 0x10000, scoped, tag = 'output window, operand 0']
    %17 = vsyncpa [#allocation9], 0
    %18 = vsyncpa [#allocation11], 0
    loop: start=0, step=1, limit=4
    $region2: #{encoder_lstm_oscar_pallas.1} parent=1 // loop_pre_header
      _
    $region3: #{encoder_lstm_oscar_pallas.1} parent=1 // loop_header
      %s20 = sphi 0, %s24
      %p21 = scmp.ge.s32.totalorder %s20, 4
      %s27 = sphi 0, %s39
      %s28 = sphi 0, %s35
      %s29 = sphi 0, %s27
      %s30 = sphi 0, %s28
      %s31 = sphi 0, %s29
      %s32 = sphi 0, %s30
      %s44 = sphi 0, %s46
      %s47 = sphi 0, %s44
      %s48 = sphi 0, %s47
      %s64 = sphi 0, %s48
      %s70 = sphi 0, %s72
      %s73 = sphi 0, %s70
      %s74 = sphi 0, %s73
      %s90 = sphi 0, %s74
      %s94 = sphi 0, %s94
      %s96 = sphi 0, %s94
      %s97 = sphi 0, %s96
      %s111 = sphi 0, %s97
      %s115 = sphi 0, %s115
      %s117 = sphi 0, %s115
      %s118 = sphi 0, %s117
      %s132 = sphi 0, %s118
      %s136 = sphi 0, %s136
      %s138 = sphi 0, %s136
      %s139 = sphi 0, %s138
      %s153 = sphi 0, %s139
      %s157 = sphi 0, %s157
      %s159 = sphi 0, %s157
      %s160 = sphi 0, %s159
      %s174 = sphi 0, %s160
      %s178 = sphi 0, %s178
      %s180 = sphi 0, %s178
      %s181 = sphi 0, %s180
      %s195 = sphi 0, %s181
      %s203 = sphi 0, %s205
      %s206 = sphi 0, %s203
      %s207 = sphi 0, %s206
      %s223 = sphi 0, %s207
      %s229 = sphi 0, %s231
      %s232 = sphi 0, %s229
      %s233 = sphi 0, %s232
      %s249 = sphi 0, %s233
      %s255 = sphi 0, %s257
      %s258 = sphi 0, %s255
      %s259 = sphi 0, %s258
      %s275 = sphi 0, %s259
    $region4: #{encoder_lstm_oscar_pallas.1} parent=1 // loop_header_branch
      %23 = sbr.rel (%p21) target = $region8
    $region5: #{encoder_lstm_oscar_pallas.1} parent=1 // loop_body
      %s25 = ssub.s32 %s20, 1
      %s26 = ssub.s32 %s20, 2
      %s33 = sadd.s32 1, %s28
      %p34 = scmp.ge.s32.totalorder %s33, 2
      %s35 = scalar_select %p34, 0, %s33
      %s36 = sadd.s32 1, %s27
      %s37 = scalar_select %p34, %s36, %s27
      %p38 = scmp.ge.s32.totalorder %s37, 1
      %s39 = scalar_select %p38, 0, %s37
      %s40 = ssub.s32 %s28, %s35
      %s41 = ssub.s32 %s27, %s39
      %s42 = sor.u32 %s40, %s41
      %p43 = scmp.eq.s32.totalorder %s42, 0
      %s45 = sadd.s32 %s44, 1
      %s46 = scalar_select %p43, %s44, %s45
      %p49 = pneg %p43
      %p50 = scmp.eq.s32.totalorder %s20, 1
      %p51 = por %p49, %p50
      %p52 = scmp.ne.s32.totalorder %s44, %s47
      %p53 = scmp.eq.s32.totalorder %s20, 0
      %p54 = por %p52, %p53
      %p55 = scmp.ne.s32.totalorder %s44, %s47
      %p56 = scmp.eq.s32.totalorder %s25, 1
      %p57 = por %p55, %p56
      %p58 = scmp.ne.s32.totalorder %s47, %s48
      %p59 = scmp.eq.s32.totalorder %s25, 0
      %p60 = por %p58, %p59
      %p61 = scmp.ne.s32.totalorder %s47, %s48
      %p62 = scmp.eq.s32.totalorder %s26, 1
      %p63 = por %p61, %p62
      %p65 = scmp.ne.s32.totalorder %s48, %s64
      %p66 = scmp.eq.s32.totalorder %s26, 0
      %p67 = por %p65, %p66
      %s68 = ssub.s32 %s27, %s39
      %p69 = scmp.eq.s32.totalorder %s68, 0
      %s71 = sadd.s32 %s70, 1
      %s72 = scalar_select %p69, %s70, %s71
      %p75 = pneg %p69
      %p76 = scmp.eq.s32.totalorder %s20, 1
      %p77 = por %p75, %p76
      %p78 = scmp.ne.s32.totalorder %s70, %s73
      %p79 = scmp.eq.s32.totalorder %s20, 0
      %p80 = por %p78, %p79
      %p81 = scmp.ne.s32.totalorder %s70, %s73
      %p82 = scmp.eq.s32.totalorder %s25, 1
      %p83 = por %p81, %p82
      %p84 = scmp.ne.s32.totalorder %s73, %s74
      %p85 = scmp.eq.s32.totalorder %s25, 0
      %p86 = por %p84, %p85
      %p87 = scmp.ne.s32.totalorder %s73, %s74
      %p88 = scmp.eq.s32.totalorder %s26, 1
      %p89 = por %p87, %p88
      %p91 = scmp.ne.s32.totalorder %s74, %s90
      %p92 = scmp.eq.s32.totalorder %s26, 0
      %p93 = por %p91, %p92
      %s95 = sadd.s32 %s94, 1
      %p98 = scmp.eq.s32.totalorder %s20, 1
      %p99 = scmp.ne.s32.totalorder %s94, %s96
      %p100 = scmp.eq.s32.totalorder %s20, 0
      %p101 = por %p99, %p100
      %p102 = scmp.ne.s32.totalorder %s94, %s96
      %p103 = scmp.eq.s32.totalorder %s25, 1
      %p104 = por %p102, %p103
      %p105 = scmp.ne.s32.totalorder %s96, %s97
      %p106 = scmp.eq.s32.totalorder %s25, 0
      %p107 = por %p105, %p106
      %p108 = scmp.ne.s32.totalorder %s96, %s97
      %p109 = scmp.eq.s32.totalorder %s26, 1
      %p110 = por %p108, %p109
      %p112 = scmp.ne.s32.totalorder %s97, %s111
      %p113 = scmp.eq.s32.totalorder %s26, 0
      %p114 = por %p112, %p113
      %s116 = sadd.s32 %s115, 1
      %p119 = scmp.eq.s32.totalorder %s20, 1
      %p120 = scmp.ne.s32.totalorder %s115, %s117
      %p121 = scmp.eq.s32.totalorder %s20, 0
      %p122 = por %p120, %p121
      %p123 = scmp.ne.s32.totalorder %s115, %s117
      %p124 = scmp.eq.s32.totalorder %s25, 1
      %p125 = por %p123, %p124
      %p126 = scmp.ne.s32.totalorder %s117, %s118
      %p127 = scmp.eq.s32.totalorder %s25, 0
      %p128 = por %p126, %p127
      %p129 = scmp.ne.s32.totalorder %s117, %s118
      %p130 = scmp.eq.s32.totalorder %s26, 1
      %p131 = por %p129, %p130
      %p133 = scmp.ne.s32.totalorder %s118, %s132
      %p134 = scmp.eq.s32.totalorder %s26, 0
      %p135 = por %p133, %p134
      %s137 = sadd.s32 %s136, 1
      %p140 = scmp.eq.s32.totalorder %s20, 1
      %p141 = scmp.ne.s32.totalorder %s136, %s138
      %p142 = scmp.eq.s32.totalorder %s20, 0
      %p143 = por %p141, %p142
      %p144 = scmp.ne.s32.totalorder %s136, %s138
      %p145 = scmp.eq.s32.totalorder %s25, 1
      %p146 = por %p144, %p145
      %p147 = scmp.ne.s32.totalorder %s138, %s139
      %p148 = scmp.eq.s32.totalorder %s25, 0
      %p149 = por %p147, %p148
      %p150 = scmp.ne.s32.totalorder %s138, %s139
      %p151 = scmp.eq.s32.totalorder %s26, 1
      %p152 = por %p150, %p151
      %p154 = scmp.ne.s32.totalorder %s139, %s153
      %p155 = scmp.eq.s32.totalorder %s26, 0
      %p156 = por %p154, %p155
      %s158 = sadd.s32 %s157, 1
      %p161 = scmp.eq.s32.totalorder %s20, 1
      %p162 = scmp.ne.s32.totalorder %s157, %s159
      %p163 = scmp.eq.s32.totalorder %s20, 0
      %p164 = por %p162, %p163
      %p165 = scmp.ne.s32.totalorder %s157, %s159
      %p166 = scmp.eq.s32.totalorder %s25, 1
      %p167 = por %p165, %p166
      %p168 = scmp.ne.s32.totalorder %s159, %s160
      %p169 = scmp.eq.s32.totalorder %s25, 0
      %p170 = por %p168, %p169
      %p171 = scmp.ne.s32.totalorder %s159, %s160
      %p172 = scmp.eq.s32.totalorder %s26, 1
      %p173 = por %p171, %p172
      %p175 = scmp.ne.s32.totalorder %s160, %s174
      %p176 = scmp.eq.s32.totalorder %s26, 0
      %p177 = por %p175, %p176
      %s179 = sadd.s32 %s178, 1
      %p182 = scmp.eq.s32.totalorder %s20, 1
      %p183 = scmp.ne.s32.totalorder %s178, %s180
      %p184 = scmp.eq.s32.totalorder %s20, 0
      %p185 = por %p183, %p184
      %p186 = scmp.ne.s32.totalorder %s178, %s180
      %p187 = scmp.eq.s32.totalorder %s25, 1
      %p188 = por %p186, %p187
      %p189 = scmp.ne.s32.totalorder %s180, %s181
      %p190 = scmp.eq.s32.totalorder %s25, 0
      %p191 = por %p189, %p190
      %p192 = scmp.ne.s32.totalorder %s180, %s181
      %p193 = scmp.eq.s32.totalorder %s26, 1
      %p194 = por %p192, %p193
      %p196 = scmp.ne.s32.totalorder %s181, %s195
      %p197 = scmp.eq.s32.totalorder %s26, 0
      %p198 = por %p196, %p197
      %s199 = ssub.s32 %s27, %s39
      %s200 = ssub.s32 %s28, %s35
      %s201 = sor.u32 %s199, %s200
      %p202 = scmp.eq.s32.totalorder %s201, 0
      %s204 = sadd.s32 %s203, 1
      %s205 = scalar_select %p202, %s203, %s204
      %p208 = pneg %p202
      %p209 = scmp.eq.s32.totalorder %s20, 1
      %p210 = por %p208, %p209
      %p211 = scmp.ne.s32.totalorder %s203, %s206
      %p212 = scmp.eq.s32.totalorder %s20, 0
      %p213 = por %p211, %p212
      %p214 = scmp.ne.s32.totalorder %s203, %s206
      %p215 = scmp.eq.s32.totalorder %s25, 1
      %p216 = por %p214, %p215
      %p217 = scmp.ne.s32.totalorder %s206, %s207
      %p218 = scmp.eq.s32.totalorder %s25, 0
      %p219 = por %p217, %p218
      %p220 = scmp.ne.s32.totalorder %s206, %s207
      %p221 = scmp.eq.s32.totalorder %s26, 1
      %p222 = por %p220, %p221
      %p224 = scmp.ne.s32.totalorder %s207, %s223
      %p225 = scmp.eq.s32.totalorder %s26, 0
      %p226 = por %p224, %p225
      %s227 = ssub.s32 %s27, %s39
      %p228 = scmp.eq.s32.totalorder %s227, 0
      %s230 = sadd.s32 %s229, 1
      %s231 = scalar_select %p228, %s229, %s230
      %p234 = pneg %p228
      %p235 = scmp.eq.s32.totalorder %s20, 1
      %p236 = por %p234, %p235
      %p237 = scmp.ne.s32.totalorder %s229, %s232
      %p238 = scmp.eq.s32.totalorder %s20, 0
      %p239 = por %p237, %p238
      %p240 = scmp.ne.s32.totalorder %s229, %s232
      %p241 = scmp.eq.s32.totalorder %s25, 1
      %p242 = por %p240, %p241
      %p243 = scmp.ne.s32.totalorder %s232, %s233
      %p244 = scmp.eq.s32.totalorder %s25, 0
      %p245 = por %p243, %p244
      %p246 = scmp.ne.s32.totalorder %s232, %s233
      %p247 = scmp.eq.s32.totalorder %s26, 1
      %p248 = por %p246, %p247
      %p250 = scmp.ne.s32.totalorder %s233, %s249
      %p251 = scmp.eq.s32.totalorder %s26, 0
      %p252 = por %p250, %p251
      %s253 = ssub.s32 %s27, %s39
      %p254 = scmp.eq.s32.totalorder %s253, 0
      %s256 = sadd.s32 %s255, 1
      %s257 = scalar_select %p254, %s255, %s256
      %p260 = pneg %p254
      %p261 = scmp.eq.s32.totalorder %s20, 1
      %p262 = por %p260, %p261
      %p263 = scmp.ne.s32.totalorder %s255, %s258
      %p264 = scmp.eq.s32.totalorder %s20, 0
      %p265 = por %p263, %p264
      %p266 = scmp.ne.s32.totalorder %s255, %s258
      %p267 = scmp.eq.s32.totalorder %s25, 1
      %p268 = por %p266, %p267
      %p269 = scmp.ne.s32.totalorder %s258, %s259
      %p270 = scmp.eq.s32.totalorder %s25, 0
      %p271 = por %p269, %p270
      %p272 = scmp.ne.s32.totalorder %s258, %s259
      %p273 = scmp.eq.s32.totalorder %s26, 1
      %p274 = por %p272, %p273
      %p276 = scmp.ne.s32.totalorder %s259, %s275
      %p277 = scmp.eq.s32.totalorder %s26, 0
      %p278 = por %p276, %p277
      %p279 = scmp.le.s32.totalorder 1, %s20
      %p280 = scmp.lt.s32.totalorder %s20, 3
      %p281 = pnand %p279, %p280
      %p282 = pneg %p281
      // Predicated region
      $region9: #{encoder_lstm_oscar_pallas.1} parent=5 // pred_check
        _
      $region10: #{encoder_lstm_oscar_pallas.1} parent=5 // pred_check_branch
        %284 = sbr.rel (%p281) target = $region12
      $region11: #{encoder_lstm_oscar_pallas.1} parent=5 // pred_region
        %s285 = ssub.s32 %s20, 1
        // Predicated region
        $region13: #{encoder_lstm_oscar_pallas.1} parent=11 // pred_check
          %p286 = pneg %p86
        $region14: #{encoder_lstm_oscar_pallas.1} parent=11 // pred_check_branch
          %288 = sbr.rel (%p286) target = $region16
        $region15: #{encoder_lstm_oscar_pallas.1} parent=11 // pred_region
          %p289 = scmp.lt.s32.totalorder %s29, 0
          %s290 = scalar_select %p289, %s29, 0
          %s291 = smul.addr %s290, 8
          %s292 = scalar_lea.vmem %s2, %s291
        $region16: #{encoder_lstm_oscar_pallas.1} parent=11 // pred_fallthru
          _
        // Predicated region
        $region17: #{encoder_lstm_oscar_pallas.1} parent=11 // pred_check
          %p293 = pneg %p107
        $region18: #{encoder_lstm_oscar_pallas.1} parent=11 // pred_check_branch
          %295 = sbr.rel (%p293) target = $region20
        $region19: #{encoder_lstm_oscar_pallas.1} parent=11 // pred_region
          %s297 = ssub.s32 8192, 8192
          %298 = vsyncadd [#allocation9], %s297
          %s299 = sshll.u32 [#allocation8], 4
          %s300 = int_to_ptr.vmem [resolvable:$true] %s299
          %305 = dma.hbm_to_vmem [thread:$0]  %s3, 8192, %s300, [#allocation9], 512, 512, 32
        $region20: #{encoder_lstm_oscar_pallas.1} parent=11 // pred_fallthru
          _
        // Predicated region
        $region21: #{encoder_lstm_oscar_pallas.1} parent=11 // pred_check
          %p306 = pneg %p128
        $region22: #{encoder_lstm_oscar_pallas.1} parent=11 // pred_check_branch
          %308 = sbr.rel (%p306) target = $region24
        $region23: #{encoder_lstm_oscar_pallas.1} parent=11 // pred_region
          _
        $region24: #{encoder_lstm_oscar_pallas.1} parent=11 // pred_fallthru
          _
        // Predicated region
        $region25: #{encoder_lstm_oscar_pallas.1} parent=11 // pred_check
          %p309 = pneg %p149
        $region26: #{encoder_lstm_oscar_pallas.1} parent=11 // pred_check_branch
          %311 = sbr.rel (%p309) target = $region28
        $region27: #{encoder_lstm_oscar_pallas.1} parent=11 // pred_region
          %s313 = ssub.s32 8192, 8192
          %314 = vsyncadd [#allocation11], %s313
          %s315 = sshll.u32 [#allocation10], 4
          %s316 = int_to_ptr.vmem [resolvable:$true] %s315
          %321 = dma.hbm_to_vmem [thread:$0]  %s5, 8192, %s316, [#allocation11], 512, 512, 32
        $region28: #{encoder_lstm_oscar_pallas.1} parent=11 // pred_fallthru
          _
        // Predicated region
        $region29: #{encoder_lstm_oscar_pallas.1} parent=11 // pred_check
          %p322 = pneg %p170
        $region30: #{encoder_lstm_oscar_pallas.1} parent=11 // pred_check_branch
          %324 = sbr.rel (%p322) target = $region32
        $region31: #{encoder_lstm_oscar_pallas.1} parent=11 // pred_region
          _
        $region32: #{encoder_lstm_oscar_pallas.1} parent=11 // pred_fallthru
          _
        // Predicated region
        $region33: #{encoder_lstm_oscar_pallas.1} parent=11 // pred_check
          %p325 = pneg %p191
        $region34: #{encoder_lstm_oscar_pallas.1} parent=11 // pred_check_branch
          %327 = sbr.rel (%p325) target = $region36
        $region35: #{encoder_lstm_oscar_pallas.1} parent=11 // pred_region
          _
        $region36: #{encoder_lstm_oscar_pallas.1} parent=11 // pred_fallthru
          _
      $region12: #{encoder_lstm_oscar_pallas.1} parent=5 // pred_fallthru
        _
      %p328 = scmp.lt.s32.totalorder %s20, 2
      // Predicated region
      $region37: #{encoder_lstm_oscar_pallas.1} parent=5 // pred_check
        %p329 = pneg %p328
      $region38: #{encoder_lstm_oscar_pallas.1} parent=5 // pred_check_branch
        %331 = sbr.rel (%p329) target = $region40
      $region39: #{encoder_lstm_oscar_pallas.1} parent=5 // pred_region
        // Predicated region
        $region41: #{encoder_lstm_oscar_pallas.1} parent=39 // pred_check
          %p332 = pneg %p54
        $region42: #{encoder_lstm_oscar_pallas.1} parent=39 // pred_check_branch
          %334 = sbr.rel (%p332) target = $region44
        $region43: #{encoder_lstm_oscar_pallas.1} parent=39 // pred_region
          %s335 = smul.u32 8, %s28
          %p336 = scmp.lt.s32.totalorder %s335, 15
          %s337 = scalar_select %p336, %s335, 15
          %p338 = scmp.lt.s32.totalorder %s27, 0
          %s339 = scalar_select %p338, %s27, 0
          %s340 = sadd.s32 %s339, %s337
          %s341 = smul.addr %s340, 8
          %s342 = scalar_lea.vmem %s1, %s341
          %s343 = smul.u32 8, %s28
        $region44: #{encoder_lstm_oscar_pallas.1} parent=39 // pred_fallthru
          _
      $region40: #{encoder_lstm_oscar_pallas.1} parent=5 // pred_fallthru
        _
      %p344 = scmp.le.s32.totalorder 1, %s20
      %p345 = scmp.lt.s32.totalorder %s20, 3
      %p346 = pnand %p344, %p345
      %p347 = pneg %p346
      // Predicated region
      $region45: #{encoder_lstm_oscar_pallas.1} parent=5 // pred_check
        _
      $region46: #{encoder_lstm_oscar_pallas.1} parent=5 // pred_check_branch
        %349 = sbr.rel (%p346) target = $region48
      $region47: #{encoder_lstm_oscar_pallas.1} parent=5 // pred_region
        %s350 = ssub.s32 %s20, 1
        // Predicated region
        $region49: #{encoder_lstm_oscar_pallas.1} parent=47 // pred_check
          %p351 = pneg %p107
        $region50: #{encoder_lstm_oscar_pallas.1} parent=47 // pred_check_branch
          %353 = sbr.rel (%p351) target = $region52
        $region51: #{encoder_lstm_oscar_pallas.1} parent=47 // pred_region
          %354 = dma.done [#allocation9], 8192
        $region52: #{encoder_lstm_oscar_pallas.1} parent=47 // pred_fallthru
          _
        // Predicated region
        $region53: #{encoder_lstm_oscar_pallas.1} parent=47 // pred_check
          %p355 = pneg %p149
        $region54: #{encoder_lstm_oscar_pallas.1} parent=47 // pred_check_branch
          %357 = sbr.rel (%p355) target = $region56
        $region55: #{encoder_lstm_oscar_pallas.1} parent=47 // pred_region
          %358 = dma.done [#allocation11], 8192
        $region56: #{encoder_lstm_oscar_pallas.1} parent=47 // pred_fallthru
          _
        %s359 = smul.u32 8, %s30
        %p360 = scmp.lt.s32.totalorder %s359, 15
        %s361 = scalar_select %p360, %s359, 15
        %p362 = scmp.lt.s32.totalorder %s29, 0
        %s363 = scalar_select %p362, %s29, 0
        %s364 = sadd.s32 %s363, %s361
        %s365 = smul.addr %s364, 8
        %s366 = scalar_lea.vmem %s1, %s365
        %p367 = pneg %p60
        %p368 = pneg %p57
        %p369 = scmp.lt.s32.totalorder %s29, 0
        %s370 = scalar_select %p369, %s29, 0
        %s371 = smul.addr %s370, 8
        %s372 = scalar_lea.vmem %s2, %s371
        %p373 = pneg %p86
        %p374 = pneg %p83
        %p375 = pneg %p107
        %p376 = pneg %p104
        %p377 = pneg %p128
        %p378 = pneg %p125
        %p379 = pneg %p149
        %p380 = pneg %p146
        %p381 = pneg %p170
        %p382 = pneg %p167
        %p383 = pneg %p191
        %p384 = pneg %p188
        %p385 = pneg %p219
        %p386 = pneg %p216
        %s387 = sand.u32 %s206, 1
        %s388 = sand.u32 %s206, 1
        %s389 = smul.addr %s388, 64
        %s390 = scalar_lea.vmem [#allocation12], %s389
        %p391 = pneg %p245
        %p392 = pneg %p242
        %p393 = scmp.lt.s32.totalorder %s29, 0
        %s394 = scalar_select %p393, %s29, 0
        %s395 = smul.addr %s394, 8
        %s396 = scalar_lea.vmem %s9, %s395
        %p397 = pneg %p271
        %p398 = pneg %p268
        %p399 = scmp.lt.s32.totalorder %s29, 0
        %s400 = scalar_select %p399, %s29, 0
        %s401 = smul.addr %s400, 8
        %s402 = scalar_lea.vmem %s10, %s401
        %s403 = smul.u32 8, %s30
        %p404 = scmp.lt.s32.totalorder %s403, 15
        %s405 = scalar_select %p404, %s403, 15
        %p406 = scmp.lt.s32.totalorder %s29, 0
        %s407 = scalar_select %p406, %s29, 0
        %s408 = sadd.s32 %s407, %s405
        %s409 = smul.addr %s408, 8
        %s410 = scalar_lea.vmem %s1, %s409
        %s411 = smul.u32 8, %s30
        %p412 = scmp.lt.s32.totalorder %s29, 0
        %s413 = scalar_select %p412, %s29, 0
        %s414 = smul.addr %s413, 8
        %s415 = scalar_lea.vmem %s2, %s414
        %s416 = smul.u32 8, %s29
        %p417 = scmp.lt.s32.totalorder %s29, 0
        %s418 = scalar_select %p417, %s29, 0
        %s419 = smul.addr %s418, 8
        %s420 = scalar_lea.vmem %s9, %s419
        %p421 = scmp.lt.s32.totalorder %s29, 0
        %s422 = scalar_select %p421, %s29, 0
        %s423 = smul.addr %s422, 8
        %s424 = scalar_lea.vmem %s10, %s423
        %s425 = smul.u32 %s30, 8
        %p426 = scmp.eq.s32.totalorder %s30, 0
        // Predicated region
        $region57: #{encoder_lstm_oscar_pallas.1} parent=47 // pred_check
          %p427 = pneg %p426
        $region58: #{encoder_lstm_oscar_pallas.1} parent=47 // pred_check_branch
          %429 = sbr.rel (%p427) target = $region60
        $region59: #{encoder_lstm_oscar_pallas.1} parent=47 // pred_region
          %430 = vst [vmem:[#allocation4] sm:$0xff] 0.0
          %431 = vst [vmem:[#allocation5] sm:$0xff] 0.0
        $region60: #{encoder_lstm_oscar_pallas.1} parent=47 // pred_fallthru
          _
        %s432 = sld [smem:[#allocation7 + %s29]]
        %p433 = scmp.lt.s32.totalorder %s425, %s432
        %p434 = scmp.ge.s32.totalorder %s425, %s432
        // Predicated region
        $region61: #{encoder_lstm_oscar_pallas.1} parent=47 // pred_check
          %p435 = pneg %p434
        $region62: #{encoder_lstm_oscar_pallas.1} parent=47 // pred_check_branch
          %437 = sbr.rel (%p435) target = $region64
        $region63: #{encoder_lstm_oscar_pallas.1} parent=47 // pred_region
          %438 = vst [vmem:[%s390] sm:$0xff] 0.0
          %439 = vst [vmem:[%s390 + $0x8] sm:$0xff] 0.0
          %440 = vst [vmem:[%s390 + $0x10] sm:$0xff] 0.0
          %441 = vst [vmem:[%s390 + $0x18] sm:$0xff] 0.0
          %442 = vst [vmem:[%s390 + $0x20] sm:$0xff] 0.0
          %443 = vst [vmem:[%s390 + $0x28] sm:$0xff] 0.0
          %444 = vst [vmem:[%s390 + $0x30] sm:$0xff] 0.0
          %445 = vst [vmem:[%s390 + $0x38] sm:$0xff] 0.0
        $region64: #{encoder_lstm_oscar_pallas.1} parent=47 // pred_fallthru
          _
        // Predicated region
        $region65: #{encoder_lstm_oscar_pallas.1} parent=47 // pred_check
          %p446 = pneg %p433
        $region66: #{encoder_lstm_oscar_pallas.1} parent=47 // pred_check_branch
          %448 = sbr.rel (%p446) target = $region68
        $region67: #{encoder_lstm_oscar_pallas.1} parent=47 // pred_region
          %v449 = vld [vmem:[#allocation8] sm:$0xff]
          %v450 = vld [vmem:[#allocation8 + $0x8] sm:$0xff]
          %v451 = vld [vmem:[#allocation8 + $0x10] sm:$0xff]
          %v452 = vld [vmem:[#allocation8 + $0x18] sm:$0xff]
          %v453 = vld [vmem:[#allocation8 + $0x20] sm:$0xff]
          %v454 = vld [vmem:[#allocation8 + $0x28] sm:$0xff]
          %v455 = vld [vmem:[#allocation8 + $0x30] sm:$0xff]
          %v456 = vld [vmem:[#allocation8 + $0x38] sm:$0xff]
          %v457 = vld [vmem:[#allocation8 + $0x40] sm:$0xff]
          %v458 = vld [vmem:[#allocation8 + $0x48] sm:$0xff]
          %v459 = vld [vmem:[#allocation8 + $0x50] sm:$0xff]
          %v460 = vld [vmem:[#allocation8 + $0x58] sm:$0xff]
          %v461 = vld [vmem:[#allocation8 + $0x60] sm:$0xff]
          %v462 = vld [vmem:[#allocation8 + $0x68] sm:$0xff]
          %v463 = vld [vmem:[#allocation8 + $0x70] sm:$0xff]
          %v464 = vld [vmem:[#allocation8 + $0x78] sm:$0xff]
          %v465 = vld [vmem:[#allocation8 + $0x80] sm:$0xff]
          %v466 = vld [vmem:[#allocation8 + $0x88] sm:$0xff]
          %v467 = vld [vmem:[#allocation8 + $0x90] sm:$0xff]
          %v468 = vld [vmem:[#allocation8 + $0x98] sm:$0xff]
          %v469 = vld [vmem:[#allocation8 + $0xa0] sm:$0xff]
          %v470 = vld [vmem:[#allocation8 + $0xa8] sm:$0xff]
          %v471 = vld [vmem:[#allocation8 + $0xb0] sm:$0xff]
          %v472 = vld [vmem:[#allocation8 + $0xb8] sm:$0xff]
          %v473 = vld [vmem:[#allocation8 + $0xc0] sm:$0xff]
          %v474 = vld [vmem:[#allocation8 + $0xc8] sm:$0xff]
          %v475 = vld [vmem:[#allocation8 + $0xd0] sm:$0xff]
          %v476 = vld [vmem:[#allocation8 + $0xd8] sm:$0xff]
          %v477 = vld [vmem:[#allocation8 + $0xe0] sm:$0xff]
          %v478 = vld [vmem:[#allocation8 + $0xe8] sm:$0xff]
          %v479 = vld [vmem:[#allocation8 + $0xf0] sm:$0xff]
          %v480 = vld [vmem:[#allocation8 + $0xf8] sm:$0xff]
          %v481 = vld [vmem:[#allocation8 + $0x100] sm:$0xff]
          %v482 = vld [vmem:[#allocation8 + $0x108] sm:$0xff]
          %v483 = vld [vmem:[#allocation8 + $0x110] sm:$0xff]
          %v484 = vld [vmem:[#allocation8 + $0x118] sm:$0xff]
          %v485 = vld [vmem:[#allocation8 + $0x120] sm:$0xff]
          %v486 = vld [vmem:[#allocation8 + $0x128] sm:$0xff]
          %v487 = vld [vmem:[#allocation8 + $0x130] sm:$0xff]
          %v488 = vld [vmem:[#allocation8 + $0x138] sm:$0xff]
          %v489 = vld [vmem:[#allocation8 + $0x140] sm:$0xff]
          %v490 = vld [vmem:[#allocation8 + $0x148] sm:$0xff]
          %v491 = vld [vmem:[#allocation8 + $0x150] sm:$0xff]
          %v492 = vld [vmem:[#allocation8 + $0x158] sm:$0xff]
          %v493 = vld [vmem:[#allocation8 + $0x160] sm:$0xff]
          %v494 = vld [vmem:[#allocation8 + $0x168] sm:$0xff]
          %v495 = vld [vmem:[#allocation8 + $0x170] sm:$0xff]
          %v496 = vld [vmem:[#allocation8 + $0x178] sm:$0xff]
          %v497 = vld [vmem:[#allocation8 + $0x180] sm:$0xff]
          %v498 = vld [vmem:[#allocation8 + $0x188] sm:$0xff]
          %v499 = vld [vmem:[#allocation8 + $0x190] sm:$0xff]
          %v500 = vld [vmem:[#allocation8 + $0x198] sm:$0xff]
          %v501 = vld [vmem:[#allocation8 + $0x1a0] sm:$0xff]
          %v502 = vld [vmem:[#allocation8 + $0x1a8] sm:$0xff]
          %v503 = vld [vmem:[#allocation8 + $0x1b0] sm:$0xff]
          %v504 = vld [vmem:[#allocation8 + $0x1b8] sm:$0xff]
          %v505 = vld [vmem:[#allocation8 + $0x1c0] sm:$0xff]
          %v506 = vld [vmem:[#allocation8 + $0x1c8] sm:$0xff]
          %v507 = vld [vmem:[#allocation8 + $0x1d0] sm:$0xff]
          %v508 = vld [vmem:[#allocation8 + $0x1d8] sm:$0xff]
          %v509 = vld [vmem:[#allocation8 + $0x1e0] sm:$0xff]
          %v510 = vld [vmem:[#allocation8 + $0x1e8] sm:$0xff]
          %v511 = vld [vmem:[#allocation8 + $0x1f0] sm:$0xff]
          %v512 = vld [vmem:[#allocation8 + $0x1f8] sm:$0xff]
          %v513 = vld [vmem:[%s4] sm:$0xf]
          %v514 = vld [vmem:[%s410] sm:$0xff]
          %v516 = vlaneseq
          %v517 = vshrl.u32 %v516, 7
          %v518 = vsub.s32 0, %v517
          %v519 = vrot.slane %v513, %v518
          %v520 = vlaneseq
          %v521 = vshrl.u32 %v520, 7
          %v522 = vsub.s32 1, %v521
          %v523 = vrot.slane %v513, %v522
          %v524 = vlaneseq
          %v525 = vshrl.u32 %v524, 7
          %v526 = vsub.s32 2, %v525
          %v527 = vrot.slane %v513, %v526
          %v528 = vlaneseq
          %v529 = vshrl.u32 %v528, 7
          %v530 = vsub.s32 3, %v529
          %v531 = vrot.slane %v513, %v530
          %536 = vmatprep.subr.mxu0 %v450
          %537 = vmatpush1.msra.mxu0 %v449
          %538 = vmatprep.subr.mxu0 %v454
          %539 = vmatpush1.msra.mxu0 %v453
          %540 = vmatprep.subr.mxu0 %v458
          %541 = vmatpush1.msra.mxu0 %v457
          %542 = vmatprep.subr.mxu0 %v462
          %543 = vmatpush1.msra.mxu0 %v461
          %544 = vmatprep.subr.mxu0 %v466
          %545 = vmatpush1.msra.mxu0 %v465
          %546 = vmatprep.subr.mxu0 %v470
          %547 = vmatpush1.msra.mxu0 %v469
          %548 = vmatprep.subr.mxu0 %v474
          %549 = vmatpush1.msra.mxu0 %v473
          %550 = vmatprep.subr.mxu0 %v478
          %551 = vmatpush1.msra.mxu0 %v477
          %552 = vmatprep.subr.mxu0 %v482
          %553 = vmatpush1.msra.mxu0 %v481
          %554 = vmatprep.subr.mxu0 %v486
          %555 = vmatpush1.msra.mxu0 %v485
          %556 = vmatprep.subr.mxu0 %v490
          %557 = vmatpush1.msra.mxu0 %v489
          %558 = vmatprep.subr.mxu0 %v494
          %559 = vmatpush1.msra.mxu0 %v493
          %560 = vmatprep.subr.mxu0 %v498
          %561 = vmatpush1.msra.mxu0 %v497
          %562 = vmatprep.subr.mxu0 %v502
          %563 = vmatpush1.msra.mxu0 %v501
          %564 = vmatprep.subr.mxu0 %v506
          %565 = vmatpush1.msra.mxu0 %v505
          %566 = vmatprep.subr.mxu0 %v510
          %567 = vmatpush1.msra.mxu0 %v509
          %568 = vmatprep.subr.mxu0 0.0
          %569 = vmatpush1.msra.mxu0 0.0
          %570 = vmatprep.subr.mxu0 0.0
          %571 = vmatpush1.msra.mxu0 0.0
          %572 = vmatprep.subr.mxu0 0.0
          %573 = vmatpush1.msra.mxu0 0.0
          %574 = vmatprep.subr.mxu0 0.0
          %575 = vmatpush1.msra.mxu0 0.0
          %576 = vmatprep.subr.mxu0 0.0
          %577 = vmatpush1.msra.mxu0 0.0
          %578 = vmatprep.subr.mxu0 0.0
          %579 = vmatpush1.msra.mxu0 0.0
          %580 = vmatprep.subr.mxu0 0.0
          %581 = vmatpush1.msra.mxu0 0.0
          %582 = vmatprep.subr.mxu0 0.0
          %583 = vmatpush1.msra.mxu0 0.0
          %584 = vmatprep.subr.mxu0 0.0
          %585 = vmatpush1.msra.mxu0 0.0
          %586 = vmatprep.subr.mxu0 0.0
          %587 = vmatpush1.msra.mxu0 0.0
          %588 = vmatprep.subr.mxu0 0.0
          %589 = vmatpush1.msra.mxu0 0.0
          %590 = vmatprep.subr.mxu0 0.0
          %591 = vmatpush1.msra.mxu0 0.0
          %592 = vmatprep.subr.mxu0 0.0
          %593 = vmatpush1.msra.mxu0 0.0
          %594 = vmatprep.subr.mxu0 0.0
          %595 = vmatpush1.msra.mxu0 0.0
          %596 = vmatprep.subr.mxu0 0.0
          %597 = vmatpush1.msra.mxu0 0.0
          %598 = vmatprep.subr.mxu0 0.0
          %599 = vmatpush1.msra.mxu0 0.0
          %600 = vmatprep.mubr.f32.mxu0 0.0
          %601 = vmatmul.mubr.f32.gmra.mrb[0].mxu0 %v514
          %v602 = vpop.f32.mrb[0].mxu0
          %v603 = vadd.f32 %v519, %v602
          %v604 = vpop.f32.mrb[0].mxu0
          %v605 = vadd.f32 %v523, %v604
          %606 = vdwg.mxu0
          %607 = vmatprep.subr.mxu0 %v452
          %608 = vmatpush1.msra.mxu0 %v451
          %609 = vmatprep.subr.mxu0 %v456
          %610 = vmatpush1.msra.mxu0 %v455
          %611 = vmatprep.subr.mxu0 %v460
          %612 = vmatpush1.msra.mxu0 %v459
          %613 = vmatprep.subr.mxu0 %v464
          %614 = vmatpush1.msra.mxu0 %v463
          %615 = vmatprep.subr.mxu0 %v468
          %616 = vmatpush1.msra.mxu0 %v467
          %617 = vmatprep.subr.mxu0 %v472
          %618 = vmatpush1.msra.mxu0 %v471
          %619 = vmatprep.subr.mxu0 %v476
          %620 = vmatpush1.msra.mxu0 %v475
          %621 = vmatprep.subr.mxu0 %v480
          %622 = vmatpush1.msra.mxu0 %v479
          %623 = vmatprep.subr.mxu0 %v484
          %624 = vmatpush1.msra.mxu0 %v483
          %625 = vmatprep.subr.mxu0 %v488
          %626 = vmatpush1.msra.mxu0 %v487
          %627 = vmatprep.subr.mxu0 %v492
          %628 = vmatpush1.msra.mxu0 %v491
          %629 = vmatprep.subr.mxu0 %v496
          %630 = vmatpush1.msra.mxu0 %v495
          %631 = vmatprep.subr.mxu0 %v500
          %632 = vmatpush1.msra.mxu0 %v499
          %633 = vmatprep.subr.mxu0 %v504
          %634 = vmatpush1.msra.mxu0 %v503
          %635 = vmatprep.subr.mxu0 %v508
          %636 = vmatpush1.msra.mxu0 %v507
          %637 = vmatprep.subr.mxu0 %v512
          %638 = vmatpush1.msra.mxu0 %v511
          %639 = vmatprep.subr.mxu0 0.0
          %640 = vmatpush1.msra.mxu0 0.0
          %641 = vmatprep.subr.mxu0 0.0
          %642 = vmatpush1.msra.mxu0 0.0
          %643 = vmatprep.subr.mxu0 0.0
          %644 = vmatpush1.msra.mxu0 0.0
          %645 = vmatprep.subr.mxu0 0.0
          %646 = vmatpush1.msra.mxu0 0.0
          %647 = vmatprep.subr.mxu0 0.0
          %648 = vmatpush1.msra.mxu0 0.0
          %649 = vmatprep.subr.mxu0 0.0
          %650 = vmatpush1.msra.mxu0 0.0
          %651 = vmatprep.subr.mxu0 0.0
          %652 = vmatpush1.msra.mxu0 0.0
          %653 = vmatprep.subr.mxu0 0.0
          %654 = vmatpush1.msra.mxu0 0.0
          %655 = vmatprep.subr.mxu0 0.0
          %656 = vmatpush1.msra.mxu0 0.0
          %657 = vmatprep.subr.mxu0 0.0
          %658 = vmatpush1.msra.mxu0 0.0
          %659 = vmatprep.subr.mxu0 0.0
          %660 = vmatpush1.msra.mxu0 0.0
          %661 = vmatprep.subr.mxu0 0.0
          %662 = vmatpush1.msra.mxu0 0.0
          %663 = vmatprep.subr.mxu0 0.0
          %664 = vmatpush1.msra.mxu0 0.0
          %665 = vmatprep.subr.mxu0 0.0
          %666 = vmatpush1.msra.mxu0 0.0
          %667 = vmatprep.subr.mxu0 0.0
          %668 = vmatpush1.msra.mxu0 0.0
          %669 = vmatprep.subr.mxu0 0.0
          %670 = vmatpush1.msra.mxu0 0.0
          %671 = vmatprep.mubr.f32.mxu0 0.0
          %672 = vmatmul.mubr.f32.gmra.mrb[0].mxu0 %v514
          %v673 = vpop.f32.mrb[0].mxu0
          %v674 = vadd.f32 %v527, %v673
          %v675 = vpop.f32.mrb[0].mxu0
          %v676 = vadd.f32 %v531, %v675
          %677 = vdwg.mxu0
          %678 = vst [vmem:[#allocation2] sm:$0xff] %v603
          %679 = vst [vmem:[#allocation2 + $0x8] sm:$0xff] %v605
          %680 = vst [vmem:[#allocation2 + $0x10] sm:$0xff] %v674
          %681 = vst [vmem:[#allocation2 + $0x18] sm:$0xff] %v676
          %s682 = scalar_lea.vmem %s410, 8
          %v683 = vld [vmem:[%s682] sm:$0xff]
          %684 = vmatprep.subr.mxu0 %v450
          %685 = vmatpush1.msra.mxu0 %v449
          %686 = vmatprep.subr.mxu0 %v454
          %687 = vmatpush1.msra.mxu0 %v453
          %688 = vmatprep.subr.mxu0 %v458
          %689 = vmatpush1.msra.mxu0 %v457
          %690 = vmatprep.subr.mxu0 %v462
          %691 = vmatpush1.msra.mxu0 %v461
          %692 = vmatprep.subr.mxu0 %v466
          %693 = vmatpush1.msra.mxu0 %v465
          %694 = vmatprep.subr.mxu0 %v470
          %695 = vmatpush1.msra.mxu0 %v469
          %696 = vmatprep.subr.mxu0 %v474
          %697 = vmatpush1.msra.mxu0 %v473
          %698 = vmatprep.subr.mxu0 %v478
          %699 = vmatpush1.msra.mxu0 %v477
          %700 = vmatprep.subr.mxu0 %v482
          %701 = vmatpush1.msra.mxu0 %v481
          %702 = vmatprep.subr.mxu0 %v486
          %703 = vmatpush1.msra.mxu0 %v485
          %704 = vmatprep.subr.mxu0 %v490
          %705 = vmatpush1.msra.mxu0 %v489
          %706 = vmatprep.subr.mxu0 %v494
          %707 = vmatpush1.msra.mxu0 %v493
          %708 = vmatprep.subr.mxu0 %v498
          %709 = vmatpush1.msra.mxu0 %v497
          %710 = vmatprep.subr.mxu0 %v502
          %711 = vmatpush1.msra.mxu0 %v501
          %712 = vmatprep.subr.mxu0 %v506
          %713 = vmatpush1.msra.mxu0 %v505
          %714 = vmatprep.subr.mxu0 %v510
          %715 = vmatpush1.msra.mxu0 %v509
          %716 = vmatprep.subr.mxu0 0.0
          %717 = vmatpush1.msra.mxu0 0.0
          %718 = vmatprep.subr.mxu0 0.0
          %719 = vmatpush1.msra.mxu0 0.0
          %720 = vmatprep.subr.mxu0 0.0
          %721 = vmatpush1.msra.mxu0 0.0
          %722 = vmatprep.subr.mxu0 0.0
          %723 = vmatpush1.msra.mxu0 0.0
          %724 = vmatprep.subr.mxu0 0.0
          %725 = vmatpush1.msra.mxu0 0.0
          %726 = vmatprep.subr.mxu0 0.0
          %727 = vmatpush1.msra.mxu0 0.0
          %728 = vmatprep.subr.mxu0 0.0
          %729 = vmatpush1.msra.mxu0 0.0
          %730 = vmatprep.subr.mxu0 0.0
          %731 = vmatpush1.msra.mxu0 0.0
          %732 = vmatprep.subr.mxu0 0.0
          %733 = vmatpush1.msra.mxu0 0.0
          %734 = vmatprep.subr.mxu0 0.0
          %735 = vmatpush1.msra.mxu0 0.0
          %736 = vmatprep.subr.mxu0 0.0
          %737 = vmatpush1.msra.mxu0 0.0
          %738 = vmatprep.subr.mxu0 0.0
          %739 = vmatpush1.msra.mxu0 0.0
          %740 = vmatprep.subr.mxu0 0.0
          %741 = vmatpush1.msra.mxu0 0.0
          %742 = vmatprep.subr.mxu0 0.0
          %743 = vmatpush1.msra.mxu0 0.0
          %744 = vmatprep.subr.mxu0 0.0
          %745 = vmatpush1.msra.mxu0 0.0
          %746 = vmatprep.subr.mxu0 0.0
          %747 = vmatpush1.msra.mxu0 0.0
          %748 = vmatprep.mubr.f32.mxu0 0.0
          %749 = vmatmul.mubr.f32.gmra.mrb[0].mxu0 %v683
          %v750 = vpop.f32.mrb[0].mxu0
          %v751 = vadd.f32 %v519, %v750
          %v752 = vpop.f32.mrb[0].mxu0
          %v753 = vadd.f32 %v523, %v752
          %754 = vdwg.mxu0
          %755 = vmatprep.subr.mxu0 %v452
          %756 = vmatpush1.msra.mxu0 %v451
          %757 = vmatprep.subr.mxu0 %v456
          %758 = vmatpush1.msra.mxu0 %v455
          %759 = vmatprep.subr.mxu0 %v460
          %760 = vmatpush1.msra.mxu0 %v459
          %761 = vmatprep.subr.mxu0 %v464
          %762 = vmatpush1.msra.mxu0 %v463
          %763 = vmatprep.subr.mxu0 %v468
          %764 = vmatpush1.msra.mxu0 %v467
          %765 = vmatprep.subr.mxu0 %v472
          %766 = vmatpush1.msra.mxu0 %v471
          %767 = vmatprep.subr.mxu0 %v476
          %768 = vmatpush1.msra.mxu0 %v475
          %769 = vmatprep.subr.mxu0 %v480
          %770 = vmatpush1.msra.mxu0 %v479
          %771 = vmatprep.subr.mxu0 %v484
          %772 = vmatpush1.msra.mxu0 %v483
          %773 = vmatprep.subr.mxu0 %v488
          %774 = vmatpush1.msra.mxu0 %v487
          %775 = vmatprep.subr.mxu0 %v492
          %776 = vmatpush1.msra.mxu0 %v491
          %777 = vmatprep.subr.mxu0 %v496
          %778 = vmatpush1.msra.mxu0 %v495
          %779 = vmatprep.subr.mxu0 %v500
          %780 = vmatpush1.msra.mxu0 %v499
          %781 = vmatprep.subr.mxu0 %v504
          %782 = vmatpush1.msra.mxu0 %v503
          %783 = vmatprep.subr.mxu0 %v508
          %784 = vmatpush1.msra.mxu0 %v507
          %785 = vmatprep.subr.mxu0 %v512
          %786 = vmatpush1.msra.mxu0 %v511
          %787 = vmatprep.subr.mxu0 0.0
          %788 = vmatpush1.msra.mxu0 0.0
          %789 = vmatprep.subr.mxu0 0.0
          %790 = vmatpush1.msra.mxu0 0.0
          %791 = vmatprep.subr.mxu0 0.0
          %792 = vmatpush1.msra.mxu0 0.0
          %793 = vmatprep.subr.mxu0 0.0
          %794 = vmatpush1.msra.mxu0 0.0
          %795 = vmatprep.subr.mxu0 0.0
          %796 = vmatpush1.msra.mxu0 0.0
          %797 = vmatprep.subr.mxu0 0.0
          %798 = vmatpush1.msra.mxu0 0.0
          %799 = vmatprep.subr.mxu0 0.0
          %800 = vmatpush1.msra.mxu0 0.0
          %801 = vmatprep.subr.mxu0 0.0
          %802 = vmatpush1.msra.mxu0 0.0
          %803 = vmatprep.subr.mxu0 0.0
          %804 = vmatpush1.msra.mxu0 0.0
          %805 = vmatprep.subr.mxu0 0.0
          %806 = vmatpush1.msra.mxu0 0.0
          %807 = vmatprep.subr.mxu0 0.0
          %808 = vmatpush1.msra.mxu0 0.0
          %809 = vmatprep.subr.mxu0 0.0
          %810 = vmatpush1.msra.mxu0 0.0
          %811 = vmatprep.subr.mxu0 0.0
          %812 = vmatpush1.msra.mxu0 0.0
          %813 = vmatprep.subr.mxu0 0.0
          %814 = vmatpush1.msra.mxu0 0.0
          %815 = vmatprep.subr.mxu0 0.0
          %816 = vmatpush1.msra.mxu0 0.0
          %817 = vmatprep.subr.mxu0 0.0
          %818 = vmatpush1.msra.mxu0 0.0
          %819 = vmatprep.mubr.f32.mxu0 0.0
          %820 = vmatmul.mubr.f32.gmra.mrb[0].mxu0 %v683
          %v821 = vpop.f32.mrb[0].mxu0
          %v822 = vadd.f32 %v527, %v821
          %v823 = vpop.f32.mrb[0].mxu0
          %v824 = vadd.f32 %v531, %v823
          %825 = vdwg.mxu0
          %s826 = scalar_lea.vmem [#allocation2], 32
          %827 = vst [vmem:[%s826] sm:$0xff] %v751
          %828 = vst [vmem:[%s826 + $0x8] sm:$0xff] %v753
          %829 = vst [vmem:[%s826 + $0x10] sm:$0xff] %v822
          %830 = vst [vmem:[%s826 + $0x18] sm:$0xff] %v824
          %s831 = scalar_lea.vmem %s410, 16
          %v832 = vld [vmem:[%s831] sm:$0xff]
          %833 = vmatprep.subr.mxu0 %v450
          %834 = vmatpush1.msra.mxu0 %v449
          %835 = vmatprep.subr.mxu0 %v454
          %836 = vmatpush1.msra.mxu0 %v453
          %837 = vmatprep.subr.mxu0 %v458
          %838 = vmatpush1.msra.mxu0 %v457
          %839 = vmatprep.subr.mxu0 %v462
          %840 = vmatpush1.msra.mxu0 %v461
          %841 = vmatprep.subr.mxu0 %v466
          %842 = vmatpush1.msra.mxu0 %v465
          %843 = vmatprep.subr.mxu0 %v470
          %844 = vmatpush1.msra.mxu0 %v469
          %845 = vmatprep.subr.mxu0 %v474
          %846 = vmatpush1.msra.mxu0 %v473
          %847 = vmatprep.subr.mxu0 %v478
          %848 = vmatpush1.msra.mxu0 %v477
          %849 = vmatprep.subr.mxu0 %v482
          %850 = vmatpush1.msra.mxu0 %v481
          %851 = vmatprep.subr.mxu0 %v486
          %852 = vmatpush1.msra.mxu0 %v485
          %853 = vmatprep.subr.mxu0 %v490
          %854 = vmatpush1.msra.mxu0 %v489
          %855 = vmatprep.subr.mxu0 %v494
          %856 = vmatpush1.msra.mxu0 %v493
          %857 = vmatprep.subr.mxu0 %v498
          %858 = vmatpush1.msra.mxu0 %v497
          %859 = vmatprep.subr.mxu0 %v502
          %860 = vmatpush1.msra.mxu0 %v501
          %861 = vmatprep.subr.mxu0 %v506
          %862 = vmatpush1.msra.mxu0 %v505
          %863 = vmatprep.subr.mxu0 %v510
          %864 = vmatpush1.msra.mxu0 %v509
          %865 = vmatprep.subr.mxu0 0.0
          %866 = vmatpush1.msra.mxu0 0.0
          %867 = vmatprep.subr.mxu0 0.0
          %868 = vmatpush1.msra.mxu0 0.0
          %869 = vmatprep.subr.mxu0 0.0
          %870 = vmatpush1.msra.mxu0 0.0
          %871 = vmatprep.subr.mxu0 0.0
          %872 = vmatpush1.msra.mxu0 0.0
          %873 = vmatprep.subr.mxu0 0.0
          %874 = vmatpush1.msra.mxu0 0.0
          %875 = vmatprep.subr.mxu0 0.0
          %876 = vmatpush1.msra.mxu0 0.0
          %877 = vmatprep.subr.mxu0 0.0
          %878 = vmatpush1.msra.mxu0 0.0
          %879 = vmatprep.subr.mxu0 0.0
          %880 = vmatpush1.msra.mxu0 0.0
          %881 = vmatprep.subr.mxu0 0.0
          %882 = vmatpush1.msra.mxu0 0.0
          %883 = vmatprep.subr.mxu0 0.0
          %884 = vmatpush1.msra.mxu0 0.0
          %885 = vmatprep.subr.mxu0 0.0
          %886 = vmatpush1.msra.mxu0 0.0
          %887 = vmatprep.subr.mxu0 0.0
          %888 = vmatpush1.msra.mxu0 0.0
          %889 = vmatprep.subr.mxu0 0.0
          %890 = vmatpush1.msra.mxu0 0.0
          %891 = vmatprep.subr.mxu0 0.0
          %892 = vmatpush1.msra.mxu0 0.0
          %893 = vmatprep.subr.mxu0 0.0
          %894 = vmatpush1.msra.mxu0 0.0
          %895 = vmatprep.subr.mxu0 0.0
          %896 = vmatpush1.msra.mxu0 0.0
          %897 = vmatprep.mubr.f32.mxu0 0.0
          %898 = vmatmul.mubr.f32.gmra.mrb[0].mxu0 %v832
          %v899 = vpop.f32.mrb[0].mxu0
          %v900 = vadd.f32 %v519, %v899
          %v901 = vpop.f32.mrb[0].mxu0
          %v902 = vadd.f32 %v523, %v901
          %903 = vdwg.mxu0
          %904 = vmatprep.subr.mxu0 %v452
          %905 = vmatpush1.msra.mxu0 %v451
          %906 = vmatprep.subr.mxu0 %v456
          %907 = vmatpush1.msra.mxu0 %v455
          %908 = vmatprep.subr.mxu0 %v460
          %909 = vmatpush1.msra.mxu0 %v459
          %910 = vmatprep.subr.mxu0 %v464
          %911 = vmatpush1.msra.mxu0 %v463
          %912 = vmatprep.subr.mxu0 %v468
          %913 = vmatpush1.msra.mxu0 %v467
          %914 = vmatprep.subr.mxu0 %v472
          %915 = vmatpush1.msra.mxu0 %v471
          %916 = vmatprep.subr.mxu0 %v476
          %917 = vmatpush1.msra.mxu0 %v475
          %918 = vmatprep.subr.mxu0 %v480
          %919 = vmatpush1.msra.mxu0 %v479
          %920 = vmatprep.subr.mxu0 %v484
          %921 = vmatpush1.msra.mxu0 %v483
          %922 = vmatprep.subr.mxu0 %v488
          %923 = vmatpush1.msra.mxu0 %v487
          %924 = vmatprep.subr.mxu0 %v492
          %925 = vmatpush1.msra.mxu0 %v491
          %926 = vmatprep.subr.mxu0 %v496
          %927 = vmatpush1.msra.mxu0 %v495
          %928 = vmatprep.subr.mxu0 %v500
          %929 = vmatpush1.msra.mxu0 %v499
          %930 = vmatprep.subr.mxu0 %v504
          %931 = vmatpush1.msra.mxu0 %v503
          %932 = vmatprep.subr.mxu0 %v508
          %933 = vmatpush1.msra.mxu0 %v507
          %934 = vmatprep.subr.mxu0 %v512
          %935 = vmatpush1.msra.mxu0 %v511
          %936 = vmatprep.subr.mxu0 0.0
          %937 = vmatpush1.msra.mxu0 0.0
          %938 = vmatprep.subr.mxu0 0.0
          %939 = vmatpush1.msra.mxu0 0.0
          %940 = vmatprep.subr.mxu0 0.0
          %941 = vmatpush1.msra.mxu0 0.0
          %942 = vmatprep.subr.mxu0 0.0
          %943 = vmatpush1.msra.mxu0 0.0
          %944 = vmatprep.subr.mxu0 0.0
          %945 = vmatpush1.msra.mxu0 0.0
          %946 = vmatprep.subr.mxu0 0.0
          %947 = vmatpush1.msra.mxu0 0.0
          %948 = vmatprep.subr.mxu0 0.0
          %949 = vmatpush1.msra.mxu0 0.0
          %950 = vmatprep.subr.mxu0 0.0
          %951 = vmatpush1.msra.mxu0 0.0
          %952 = vmatprep.subr.mxu0 0.0
          %953 = vmatpush1.msra.mxu0 0.0
          %954 = vmatprep.subr.mxu0 0.0
          %955 = vmatpush1.msra.mxu0 0.0
          %956 = vmatprep.subr.mxu0 0.0
          %957 = vmatpush1.msra.mxu0 0.0
          %958 = vmatprep.subr.mxu0 0.0
          %959 = vmatpush1.msra.mxu0 0.0
          %960 = vmatprep.subr.mxu0 0.0
          %961 = vmatpush1.msra.mxu0 0.0
          %962 = vmatprep.subr.mxu0 0.0
          %963 = vmatpush1.msra.mxu0 0.0
          %964 = vmatprep.subr.mxu0 0.0
          %965 = vmatpush1.msra.mxu0 0.0
          %966 = vmatprep.subr.mxu0 0.0
          %967 = vmatpush1.msra.mxu0 0.0
          %968 = vmatprep.mubr.f32.mxu0 0.0
          %969 = vmatmul.mubr.f32.gmra.mrb[0].mxu0 %v832
          %v970 = vpop.f32.mrb[0].mxu0
          %v971 = vadd.f32 %v527, %v970
          %v972 = vpop.f32.mrb[0].mxu0
          %v973 = vadd.f32 %v531, %v972
          %974 = vdwg.mxu0
          %s975 = scalar_lea.vmem [#allocation2], 64
          %976 = vst [vmem:[%s975] sm:$0xff] %v900
          %977 = vst [vmem:[%s975 + $0x8] sm:$0xff] %v902
          %978 = vst [vmem:[%s975 + $0x10] sm:$0xff] %v971
          %979 = vst [vmem:[%s975 + $0x18] sm:$0xff] %v973
          %s980 = scalar_lea.vmem %s410, 24
          %v981 = vld [vmem:[%s980] sm:$0xff]
          %982 = vmatprep.subr.mxu0 %v450
          %983 = vmatpush1.msra.mxu0 %v449
          %984 = vmatprep.subr.mxu0 %v454
          %985 = vmatpush1.msra.mxu0 %v453
          %986 = vmatprep.subr.mxu0 %v458
          %987 = vmatpush1.msra.mxu0 %v457
          %988 = vmatprep.subr.mxu0 %v462
          %989 = vmatpush1.msra.mxu0 %v461
          %990 = vmatprep.subr.mxu0 %v466
          %991 = vmatpush1.msra.mxu0 %v465
          %992 = vmatprep.subr.mxu0 %v470
          %993 = vmatpush1.msra.mxu0 %v469
          %994 = vmatprep.subr.mxu0 %v474
          %995 = vmatpush1.msra.mxu0 %v473
          %996 = vmatprep.subr.mxu0 %v478
          %997 = vmatpush1.msra.mxu0 %v477
          %998 = vmatprep.subr.mxu0 %v482
          %999 = vmatpush1.msra.mxu0 %v481
          %1000 = vmatprep.subr.mxu0 %v486
          %1001 = vmatpush1.msra.mxu0 %v485
          %1002 = vmatprep.subr.mxu0 %v490
          %1003 = vmatpush1.msra.mxu0 %v489
          %1004 = vmatprep.subr.mxu0 %v494
          %1005 = vmatpush1.msra.mxu0 %v493
          %1006 = vmatprep.subr.mxu0 %v498
          %1007 = vmatpush1.msra.mxu0 %v497
          %1008 = vmatprep.subr.mxu0 %v502
          %1009 = vmatpush1.msra.mxu0 %v501
          %1010 = vmatprep.subr.mxu0 %v506
          %1011 = vmatpush1.msra.mxu0 %v505
          %1012 = vmatprep.subr.mxu0 %v510
          %1013 = vmatpush1.msra.mxu0 %v509
          %1014 = vmatprep.subr.mxu0 0.0
          %1015 = vmatpush1.msra.mxu0 0.0
          %1016 = vmatprep.subr.mxu0 0.0
          %1017 = vmatpush1.msra.mxu0 0.0
          %1018 = vmatprep.subr.mxu0 0.0
          %1019 = vmatpush1.msra.mxu0 0.0
          %1020 = vmatprep.subr.mxu0 0.0
          %1021 = vmatpush1.msra.mxu0 0.0
          %1022 = vmatprep.subr.mxu0 0.0
          %1023 = vmatpush1.msra.mxu0 0.0
          %1024 = vmatprep.subr.mxu0 0.0
          %1025 = vmatpush1.msra.mxu0 0.0
          %1026 = vmatprep.subr.mxu0 0.0
          %1027 = vmatpush1.msra.mxu0 0.0
          %1028 = vmatprep.subr.mxu0 0.0
          %1029 = vmatpush1.msra.mxu0 0.0
          %1030 = vmatprep.subr.mxu0 0.0
          %1031 = vmatpush1.msra.mxu0 0.0
          %1032 = vmatprep.subr.mxu0 0.0
          %1033 = vmatpush1.msra.mxu0 0.0
          %1034 = vmatprep.subr.mxu0 0.0
          %1035 = vmatpush1.msra.mxu0 0.0
          %1036 = vmatprep.subr.mxu0 0.0
          %1037 = vmatpush1.msra.mxu0 0.0
          %1038 = vmatprep.subr.mxu0 0.0
          %1039 = vmatpush1.msra.mxu0 0.0
          %1040 = vmatprep.subr.mxu0 0.0
          %1041 = vmatpush1.msra.mxu0 0.0
          %1042 = vmatprep.subr.mxu0 0.0
          %1043 = vmatpush1.msra.mxu0 0.0
          %1044 = vmatprep.subr.mxu0 0.0
          %1045 = vmatpush1.msra.mxu0 0.0
          %1046 = vmatprep.mubr.f32.mxu0 0.0
          %1047 = vmatmul.mubr.f32.gmra.mrb[0].mxu0 %v981
          %v1048 = vpop.f32.mrb[0].mxu0
          %v1049 = vadd.f32 %v519, %v1048
          %v1050 = vpop.f32.mrb[0].mxu0
          %v1051 = vadd.f32 %v523, %v1050
          %1052 = vdwg.mxu0
          %1053 = vmatprep.subr.mxu0 %v452
          %1054 = vmatpush1.msra.mxu0 %v451
          %1055 = vmatprep.subr.mxu0 %v456
          %1056 = vmatpush1.msra.mxu0 %v455
          %1057 = vmatprep.subr.mxu0 %v460
          %1058 = vmatpush1.msra.mxu0 %v459
          %1059 = vmatprep.subr.mxu0 %v464
          %1060 = vmatpush1.msra.mxu0 %v463
          %1061 = vmatprep.subr.mxu0 %v468
          %1062 = vmatpush1.msra.mxu0 %v467
          %1063 = vmatprep.subr.mxu0 %v472
          %1064 = vmatpush1.msra.mxu0 %v471
          %1065 = vmatprep.subr.mxu0 %v476
          %1066 = vmatpush1.msra.mxu0 %v475
          %1067 = vmatprep.subr.mxu0 %v480
          %1068 = vmatpush1.msra.mxu0 %v479
          %1069 = vmatprep.subr.mxu0 %v484
          %1070 = vmatpush1.msra.mxu0 %v483
          %1071 = vmatprep.subr.mxu0 %v488
          %1072 = vmatpush1.msra.mxu0 %v487
          %1073 = vmatprep.subr.mxu0 %v492
          %1074 = vmatpush1.msra.mxu0 %v491
          %1075 = vmatprep.subr.mxu0 %v496
          %1076 = vmatpush1.msra.mxu0 %v495
          %1077 = vmatprep.subr.mxu0 %v500
          %1078 = vmatpush1.msra.mxu0 %v499
          %1079 = vmatprep.subr.mxu0 %v504
          %1080 = vmatpush1.msra.mxu0 %v503
          %1081 = vmatprep.subr.mxu0 %v508
          %1082 = vmatpush1.msra.mxu0 %v507
          %1083 = vmatprep.subr.mxu0 %v512
          %1084 = vmatpush1.msra.mxu0 %v511
          %1085 = vmatprep.subr.mxu0 0.0
          %1086 = vmatpush1.msra.mxu0 0.0
          %1087 = vmatprep.subr.mxu0 0.0
          %1088 = vmatpush1.msra.mxu0 0.0
          %1089 = vmatprep.subr.mxu0 0.0
          %1090 = vmatpush1.msra.mxu0 0.0
          %1091 = vmatprep.subr.mxu0 0.0
          %1092 = vmatpush1.msra.mxu0 0.0
          %1093 = vmatprep.subr.mxu0 0.0
          %1094 = vmatpush1.msra.mxu0 0.0
          %1095 = vmatprep.subr.mxu0 0.0
          %1096 = vmatpush1.msra.mxu0 0.0
          %1097 = vmatprep.subr.mxu0 0.0
          %1098 = vmatpush1.msra.mxu0 0.0
          %1099 = vmatprep.subr.mxu0 0.0
          %1100 = vmatpush1.msra.mxu0 0.0
          %1101 = vmatprep.subr.mxu0 0.0
          %1102 = vmatpush1.msra.mxu0 0.0
          %1103 = vmatprep.subr.mxu0 0.0
          %1104 = vmatpush1.msra.mxu0 0.0
          %1105 = vmatprep.subr.mxu0 0.0
          %1106 = vmatpush1.msra.mxu0 0.0
          %1107 = vmatprep.subr.mxu0 0.0
          %1108 = vmatpush1.msra.mxu0 0.0
          %1109 = vmatprep.subr.mxu0 0.0
          %1110 = vmatpush1.msra.mxu0 0.0
          %1111 = vmatprep.subr.mxu0 0.0
          %1112 = vmatpush1.msra.mxu0 0.0
          %1113 = vmatprep.subr.mxu0 0.0
          %1114 = vmatpush1.msra.mxu0 0.0
          %1115 = vmatprep.subr.mxu0 0.0
          %1116 = vmatpush1.msra.mxu0 0.0
          %1117 = vmatprep.mubr.f32.mxu0 0.0
          %1118 = vmatmul.mubr.f32.gmra.mrb[0].mxu0 %v981
          %v1119 = vpop.f32.mrb[0].mxu0
          %v1120 = vadd.f32 %v527, %v1119
          %v1121 = vpop.f32.mrb[0].mxu0
          %v1122 = vadd.f32 %v531, %v1121
          %1123 = vdwg.mxu0
          %s1124 = scalar_lea.vmem [#allocation2], 96
          %1125 = vst [vmem:[%s1124] sm:$0xff] %v1049
          %1126 = vst [vmem:[%s1124 + $0x8] sm:$0xff] %v1051
          %1127 = vst [vmem:[%s1124 + $0x10] sm:$0xff] %v1120
          %1128 = vst [vmem:[%s1124 + $0x18] sm:$0xff] %v1122
          %s1129 = scalar_lea.vmem %s410, 32
          %v1130 = vld [vmem:[%s1129] sm:$0xff]
          %1131 = vmatprep.subr.mxu0 %v450
          %1132 = vmatpush1.msra.mxu0 %v449
          %1133 = vmatprep.subr.mxu0 %v454
          %1134 = vmatpush1.msra.mxu0 %v453
          %1135 = vmatprep.subr.mxu0 %v458
          %1136 = vmatpush1.msra.mxu0 %v457
          %1137 = vmatprep.subr.mxu0 %v462
          %1138 = vmatpush1.msra.mxu0 %v461
          %1139 = vmatprep.subr.mxu0 %v466
          %1140 = vmatpush1.msra.mxu0 %v465
          %1141 = vmatprep.subr.mxu0 %v470
          %1142 = vmatpush1.msra.mxu0 %v469
          %1143 = vmatprep.subr.mxu0 %v474
          %1144 = vmatpush1.msra.mxu0 %v473
          %1145 = vmatprep.subr.mxu0 %v478
          %1146 = vmatpush1.msra.mxu0 %v477
          %1147 = vmatprep.subr.mxu0 %v482
          %1148 = vmatpush1.msra.mxu0 %v481
          %1149 = vmatprep.subr.mxu0 %v486
          %1150 = vmatpush1.msra.mxu0 %v485
          %1151 = vmatprep.subr.mxu0 %v490
          %1152 = vmatpush1.msra.mxu0 %v489
          %1153 = vmatprep.subr.mxu0 %v494
          %1154 = vmatpush1.msra.mxu0 %v493
          %1155 = vmatprep.subr.mxu0 %v498
          %1156 = vmatpush1.msra.mxu0 %v497
          %1157 = vmatprep.subr.mxu0 %v502
          %1158 = vmatpush1.msra.mxu0 %v501
          %1159 = vmatprep.subr.mxu0 %v506
          %1160 = vmatpush1.msra.mxu0 %v505
          %1161 = vmatprep.subr.mxu0 %v510
          %1162 = vmatpush1.msra.mxu0 %v509
          %1163 = vmatprep.subr.mxu0 0.0
          %1164 = vmatpush1.msra.mxu0 0.0
          %1165 = vmatprep.subr.mxu0 0.0
          %1166 = vmatpush1.msra.mxu0 0.0
          %1167 = vmatprep.subr.mxu0 0.0
          %1168 = vmatpush1.msra.mxu0 0.0
          %1169 = vmatprep.subr.mxu0 0.0
          %1170 = vmatpush1.msra.mxu0 0.0
          %1171 = vmatprep.subr.mxu0 0.0
          %1172 = vmatpush1.msra.mxu0 0.0
          %1173 = vmatprep.subr.mxu0 0.0
          %1174 = vmatpush1.msra.mxu0 0.0
          %1175 = vmatprep.subr.mxu0 0.0
          %1176 = vmatpush1.msra.mxu0 0.0
          %1177 = vmatprep.subr.mxu0 0.0
          %1178 = vmatpush1.msra.mxu0 0.0
          %1179 = vmatprep.subr.mxu0 0.0
          %1180 = vmatpush1.msra.mxu0 0.0
          %1181 = vmatprep.subr.mxu0 0.0
          %1182 = vmatpush1.msra.mxu0 0.0
          %1183 = vmatprep.subr.mxu0 0.0
          %1184 = vmatpush1.msra.mxu0 0.0
          %1185 = vmatprep.subr.mxu0 0.0
          %1186 = vmatpush1.msra.mxu0 0.0
          %1187 = vmatprep.subr.mxu0 0.0
          %1188 = vmatpush1.msra.mxu0 0.0
          %1189 = vmatprep.subr.mxu0 0.0
          %1190 = vmatpush1.msra.mxu0 0.0
          %1191 = vmatprep.subr.mxu0 0.0
          %1192 = vmatpush1.msra.mxu0 0.0
          %1193 = vmatprep.subr.mxu0 0.0
          %1194 = vmatpush1.msra.mxu0 0.0
          %1195 = vmatprep.mubr.f32.mxu0 0.0
          %1196 = vmatmul.mubr.f32.gmra.mrb[0].mxu0 %v1130
          %v1197 = vpop.f32.mrb[0].mxu0
          %v1198 = vadd.f32 %v519, %v1197
          %v1199 = vpop.f32.mrb[0].mxu0
          %v1200 = vadd.f32 %v523, %v1199
          %1201 = vdwg.mxu0
          %1202 = vmatprep.subr.mxu0 %v452
          %1203 = vmatpush1.msra.mxu0 %v451
          %1204 = vmatprep.subr.mxu0 %v456
          %1205 = vmatpush1.msra.mxu0 %v455
          %1206 = vmatprep.subr.mxu0 %v460
          %1207 = vmatpush1.msra.mxu0 %v459
          %1208 = vmatprep.subr.mxu0 %v464
          %1209 = vmatpush1.msra.mxu0 %v463
          %1210 = vmatprep.subr.mxu0 %v468
          %1211 = vmatpush1.msra.mxu0 %v467
          %1212 = vmatprep.subr.mxu0 %v472
          %1213 = vmatpush1.msra.mxu0 %v471
          %1214 = vmatprep.subr.mxu0 %v476
          %1215 = vmatpush1.msra.mxu0 %v475
          %1216 = vmatprep.subr.mxu0 %v480
          %1217 = vmatpush1.msra.mxu0 %v479
          %1218 = vmatprep.subr.mxu0 %v484
          %1219 = vmatpush1.msra.mxu0 %v483
          %1220 = vmatprep.subr.mxu0 %v488
          %1221 = vmatpush1.msra.mxu0 %v487
          %1222 = vmatprep.subr.mxu0 %v492
          %1223 = vmatpush1.msra.mxu0 %v491
          %1224 = vmatprep.subr.mxu0 %v496
          %1225 = vmatpush1.msra.mxu0 %v495
          %1226 = vmatprep.subr.mxu0 %v500
          %1227 = vmatpush1.msra.mxu0 %v499
          %1228 = vmatprep.subr.mxu0 %v504
          %1229 = vmatpush1.msra.mxu0 %v503
          %1230 = vmatprep.subr.mxu0 %v508
          %1231 = vmatpush1.msra.mxu0 %v507
          %1232 = vmatprep.subr.mxu0 %v512
          %1233 = vmatpush1.msra.mxu0 %v511
          %1234 = vmatprep.subr.mxu0 0.0
          %1235 = vmatpush1.msra.mxu0 0.0
          %1236 = vmatprep.subr.mxu0 0.0
          %1237 = vmatpush1.msra.mxu0 0.0
          %1238 = vmatprep.subr.mxu0 0.0
          %1239 = vmatpush1.msra.mxu0 0.0
          %1240 = vmatprep.subr.mxu0 0.0
          %1241 = vmatpush1.msra.mxu0 0.0
          %1242 = vmatprep.subr.mxu0 0.0
          %1243 = vmatpush1.msra.mxu0 0.0
          %1244 = vmatprep.subr.mxu0 0.0
          %1245 = vmatpush1.msra.mxu0 0.0
          %1246 = vmatprep.subr.mxu0 0.0
          %1247 = vmatpush1.msra.mxu0 0.0
          %1248 = vmatprep.subr.mxu0 0.0
          %1249 = vmatpush1.msra.mxu0 0.0
          %1250 = vmatprep.subr.mxu0 0.0
          %1251 = vmatpush1.msra.mxu0 0.0
          %1252 = vmatprep.subr.mxu0 0.0
          %1253 = vmatpush1.msra.mxu0 0.0
          %1254 = vmatprep.subr.mxu0 0.0
          %1255 = vmatpush1.msra.mxu0 0.0
          %1256 = vmatprep.subr.mxu0 0.0
          %1257 = vmatpush1.msra.mxu0 0.0
          %1258 = vmatprep.subr.mxu0 0.0
          %1259 = vmatpush1.msra.mxu0 0.0
          %1260 = vmatprep.subr.mxu0 0.0
          %1261 = vmatpush1.msra.mxu0 0.0
          %1262 = vmatprep.subr.mxu0 0.0
          %1263 = vmatpush1.msra.mxu0 0.0
          %1264 = vmatprep.subr.mxu0 0.0
          %1265 = vmatpush1.msra.mxu0 0.0
          %1266 = vmatprep.mubr.f32.mxu0 0.0
          %1267 = vmatmul.mubr.f32.gmra.mrb[0].mxu0 %v1130
          %v1268 = vpop.f32.mrb[0].mxu0
          %v1269 = vadd.f32 %v527, %v1268
          %v1270 = vpop.f32.mrb[0].mxu0
          %v1271 = vadd.f32 %v531, %v1270
          %1272 = vdwg.mxu0
          %s1273 = scalar_lea.vmem [#allocation2], 128
          %1274 = vst [vmem:[%s1273] sm:$0xff] %v1198
          %1275 = vst [vmem:[%s1273 + $0x8] sm:$0xff] %v1200
          %1276 = vst [vmem:[%s1273 + $0x10] sm:$0xff] %v1269
          %1277 = vst [vmem:[%s1273 + $0x18] sm:$0xff] %v1271
          %s1278 = scalar_lea.vmem %s410, 40
          %v1279 = vld [vmem:[%s1278] sm:$0xff]
          %1280 = vmatprep.subr.mxu0 %v450
          %1281 = vmatpush1.msra.mxu0 %v449
          %1282 = vmatprep.subr.mxu0 %v454
          %1283 = vmatpush1.msra.mxu0 %v453
          %1284 = vmatprep.subr.mxu0 %v458
          %1285 = vmatpush1.msra.mxu0 %v457
          %1286 = vmatprep.subr.mxu0 %v462
          %1287 = vmatpush1.msra.mxu0 %v461
          %1288 = vmatprep.subr.mxu0 %v466
          %1289 = vmatpush1.msra.mxu0 %v465
          %1290 = vmatprep.subr.mxu0 %v470
          %1291 = vmatpush1.msra.mxu0 %v469
          %1292 = vmatprep.subr.mxu0 %v474
          %1293 = vmatpush1.msra.mxu0 %v473
          %1294 = vmatprep.subr.mxu0 %v478
          %1295 = vmatpush1.msra.mxu0 %v477
          %1296 = vmatprep.subr.mxu0 %v482
          %1297 = vmatpush1.msra.mxu0 %v481
          %1298 = vmatprep.subr.mxu0 %v486
          %1299 = vmatpush1.msra.mxu0 %v485
          %1300 = vmatprep.subr.mxu0 %v490
          %1301 = vmatpush1.msra.mxu0 %v489
          %1302 = vmatprep.subr.mxu0 %v494
          %1303 = vmatpush1.msra.mxu0 %v493
          %1304 = vmatprep.subr.mxu0 %v498
          %1305 = vmatpush1.msra.mxu0 %v497
          %1306 = vmatprep.subr.mxu0 %v502
          %1307 = vmatpush1.msra.mxu0 %v501
          %1308 = vmatprep.subr.mxu0 %v506
          %1309 = vmatpush1.msra.mxu0 %v505
          %1310 = vmatprep.subr.mxu0 %v510
          %1311 = vmatpush1.msra.mxu0 %v509
          %1312 = vmatprep.subr.mxu0 0.0
          %1313 = vmatpush1.msra.mxu0 0.0
          %1314 = vmatprep.subr.mxu0 0.0
          %1315 = vmatpush1.msra.mxu0 0.0
          %1316 = vmatprep.subr.mxu0 0.0
          %1317 = vmatpush1.msra.mxu0 0.0
          %1318 = vmatprep.subr.mxu0 0.0
          %1319 = vmatpush1.msra.mxu0 0.0
          %1320 = vmatprep.subr.mxu0 0.0
          %1321 = vmatpush1.msra.mxu0 0.0
          %1322 = vmatprep.subr.mxu0 0.0
          %1323 = vmatpush1.msra.mxu0 0.0
          %1324 = vmatprep.subr.mxu0 0.0
          %1325 = vmatpush1.msra.mxu0 0.0
          %1326 = vmatprep.subr.mxu0 0.0
          %1327 = vmatpush1.msra.mxu0 0.0
          %1328 = vmatprep.subr.mxu0 0.0
          %1329 = vmatpush1.msra.mxu0 0.0
          %1330 = vmatprep.subr.mxu0 0.0
          %1331 = vmatpush1.msra.mxu0 0.0
          %1332 = vmatprep.subr.mxu0 0.0
          %1333 = vmatpush1.msra.mxu0 0.0
          %1334 = vmatprep.subr.mxu0 0.0
          %1335 = vmatpush1.msra.mxu0 0.0
          %1336 = vmatprep.subr.mxu0 0.0
          %1337 = vmatpush1.msra.mxu0 0.0
          %1338 = vmatprep.subr.mxu0 0.0
          %1339 = vmatpush1.msra.mxu0 0.0
          %1340 = vmatprep.subr.mxu0 0.0
          %1341 = vmatpush1.msra.mxu0 0.0
          %1342 = vmatprep.subr.mxu0 0.0
          %1343 = vmatpush1.msra.mxu0 0.0
          %1344 = vmatprep.mubr.f32.mxu0 0.0
          %1345 = vmatmul.mubr.f32.gmra.mrb[0].mxu0 %v1279
          %v1346 = vpop.f32.mrb[0].mxu0
          %v1347 = vadd.f32 %v519, %v1346
          %v1348 = vpop.f32.mrb[0].mxu0
          %v1349 = vadd.f32 %v523, %v1348
          %1350 = vdwg.mxu0
          %1351 = vmatprep.subr.mxu0 %v452
          %1352 = vmatpush1.msra.mxu0 %v451
          %1353 = vmatprep.subr.mxu0 %v456
          %1354 = vmatpush1.msra.mxu0 %v455
          %1355 = vmatprep.subr.mxu0 %v460
          %1356 = vmatpush1.msra.mxu0 %v459
          %1357 = vmatprep.subr.mxu0 %v464
          %1358 = vmatpush1.msra.mxu0 %v463
          %1359 = vmatprep.subr.mxu0 %v468
          %1360 = vmatpush1.msra.mxu0 %v467
          %1361 = vmatprep.subr.mxu0 %v472
          %1362 = vmatpush1.msra.mxu0 %v471
          %1363 = vmatprep.subr.mxu0 %v476
          %1364 = vmatpush1.msra.mxu0 %v475
          %1365 = vmatprep.subr.mxu0 %v480
          %1366 = vmatpush1.msra.mxu0 %v479
          %1367 = vmatprep.subr.mxu0 %v484
          %1368 = vmatpush1.msra.mxu0 %v483
          %1369 = vmatprep.subr.mxu0 %v488
          %1370 = vmatpush1.msra.mxu0 %v487
          %1371 = vmatprep.subr.mxu0 %v492
          %1372 = vmatpush1.msra.mxu0 %v491
          %1373 = vmatprep.subr.mxu0 %v496
          %1374 = vmatpush1.msra.mxu0 %v495
          %1375 = vmatprep.subr.mxu0 %v500
          %1376 = vmatpush1.msra.mxu0 %v499
          %1377 = vmatprep.subr.mxu0 %v504
          %1378 = vmatpush1.msra.mxu0 %v503
          %1379 = vmatprep.subr.mxu0 %v508
          %1380 = vmatpush1.msra.mxu0 %v507
          %1381 = vmatprep.subr.mxu0 %v512
          %1382 = vmatpush1.msra.mxu0 %v511
          %1383 = vmatprep.subr.mxu0 0.0
          %1384 = vmatpush1.msra.mxu0 0.0
          %1385 = vmatprep.subr.mxu0 0.0
          %1386 = vmatpush1.msra.mxu0 0.0
          %1387 = vmatprep.subr.mxu0 0.0
          %1388 = vmatpush1.msra.mxu0 0.0
          %1389 = vmatprep.subr.mxu0 0.0
          %1390 = vmatpush1.msra.mxu0 0.0
          %1391 = vmatprep.subr.mxu0 0.0
          %1392 = vmatpush1.msra.mxu0 0.0
          %1393 = vmatprep.subr.mxu0 0.0
          %1394 = vmatpush1.msra.mxu0 0.0
          %1395 = vmatprep.subr.mxu0 0.0
          %1396 = vmatpush1.msra.mxu0 0.0
          %1397 = vmatprep.subr.mxu0 0.0
          %1398 = vmatpush1.msra.mxu0 0.0
          %1399 = vmatprep.subr.mxu0 0.0
          %1400 = vmatpush1.msra.mxu0 0.0
          %1401 = vmatprep.subr.mxu0 0.0
          %1402 = vmatpush1.msra.mxu0 0.0
          %1403 = vmatprep.subr.mxu0 0.0
          %1404 = vmatpush1.msra.mxu0 0.0
          %1405 = vmatprep.subr.mxu0 0.0
          %1406 = vmatpush1.msra.mxu0 0.0
          %1407 = vmatprep.subr.mxu0 0.0
          %1408 = vmatpush1.msra.mxu0 0.0
          %1409 = vmatprep.subr.mxu0 0.0
          %1410 = vmatpush1.msra.mxu0 0.0
          %1411 = vmatprep.subr.mxu0 0.0
          %1412 = vmatpush1.msra.mxu0 0.0
          %1413 = vmatprep.subr.mxu0 0.0
          %1414 = vmatpush1.msra.mxu0 0.0
          %1415 = vmatprep.mubr.f32.mxu0 0.0
          %1416 = vmatmul.mubr.f32.gmra.mrb[0].mxu0 %v1279
          %v1417 = vpop.f32.mrb[0].mxu0
          %v1418 = vadd.f32 %v527, %v1417
          %v1419 = vpop.f32.mrb[0].mxu0
          %v1420 = vadd.f32 %v531, %v1419
          %1421 = vdwg.mxu0
          %s1422 = scalar_lea.vmem [#allocation2], 160
          %1423 = vst [vmem:[%s1422] sm:$0xff] %v1347
          %1424 = vst [vmem:[%s1422 + $0x8] sm:$0xff] %v1349
          %1425 = vst [vmem:[%s1422 + $0x10] sm:$0xff] %v1418
          %1426 = vst [vmem:[%s1422 + $0x18] sm:$0xff] %v1420
          %s1427 = scalar_lea.vmem %s410, 48
          %v1428 = vld [vmem:[%s1427] sm:$0xff]
          %1429 = vmatprep.subr.mxu0 %v450
          %1430 = vmatpush1.msra.mxu0 %v449
          %1431 = vmatprep.subr.mxu0 %v454
          %1432 = vmatpush1.msra.mxu0 %v453
          %1433 = vmatprep.subr.mxu0 %v458
          %1434 = vmatpush1.msra.mxu0 %v457
          %1435 = vmatprep.subr.mxu0 %v462
          %1436 = vmatpush1.msra.mxu0 %v461
          %1437 = vmatprep.subr.mxu0 %v466
          %1438 = vmatpush1.msra.mxu0 %v465
          %1439 = vmatprep.subr.mxu0 %v470
          %1440 = vmatpush1.msra.mxu0 %v469
          %1441 = vmatprep.subr.mxu0 %v474
          %1442 = vmatpush1.msra.mxu0 %v473
          %1443 = vmatprep.subr.mxu0 %v478
          %1444 = vmatpush1.msra.mxu0 %v477
          %1445 = vmatprep.subr.mxu0 %v482
          %1446 = vmatpush1.msra.mxu0 %v481
          %1447 = vmatprep.subr.mxu0 %v486
          %1448 = vmatpush1.msra.mxu0 %v485
          %1449 = vmatprep.subr.mxu0 %v490
          %1450 = vmatpush1.msra.mxu0 %v489
          %1451 = vmatprep.subr.mxu0 %v494
          %1452 = vmatpush1.msra.mxu0 %v493
          %1453 = vmatprep.subr.mxu0 %v498
          %1454 = vmatpush1.msra.mxu0 %v497
          %1455 = vmatprep.subr.mxu0 %v502
          %1456 = vmatpush1.msra.mxu0 %v501
          %1457 = vmatprep.subr.mxu0 %v506
          %1458 = vmatpush1.msra.mxu0 %v505
          %1459 = vmatprep.subr.mxu0 %v510
          %1460 = vmatpush1.msra.mxu0 %v509
          %1461 = vmatprep.subr.mxu0 0.0
          %1462 = vmatpush1.msra.mxu0 0.0
          %1463 = vmatprep.subr.mxu0 0.0
          %1464 = vmatpush1.msra.mxu0 0.0
          %1465 = vmatprep.subr.mxu0 0.0
          %1466 = vmatpush1.msra.mxu0 0.0
          %1467 = vmatprep.subr.mxu0 0.0
          %1468 = vmatpush1.msra.mxu0 0.0
          %1469 = vmatprep.subr.mxu0 0.0
          %1470 = vmatpush1.msra.mxu0 0.0
          %1471 = vmatprep.subr.mxu0 0.0
          %1472 = vmatpush1.msra.mxu0 0.0
          %1473 = vmatprep.subr.mxu0 0.0
          %1474 = vmatpush1.msra.mxu0 0.0
          %1475 = vmatprep.subr.mxu0 0.0
          %1476 = vmatpush1.msra.mxu0 0.0
          %1477 = vmatprep.subr.mxu0 0.0
          %1478 = vmatpush1.msra.mxu0 0.0
          %1479 = vmatprep.subr.mxu0 0.0
          %1480 = vmatpush1.msra.mxu0 0.0
          %1481 = vmatprep.subr.mxu0 0.0
          %1482 = vmatpush1.msra.mxu0 0.0
          %1483 = vmatprep.subr.mxu0 0.0
          %1484 = vmatpush1.msra.mxu0 0.0
          %1485 = vmatprep.subr.mxu0 0.0
          %1486 = vmatpush1.msra.mxu0 0.0
          %1487 = vmatprep.subr.mxu0 0.0
          %1488 = vmatpush1.msra.mxu0 0.0
          %1489 = vmatprep.subr.mxu0 0.0
          %1490 = vmatpush1.msra.mxu0 0.0
          %1491 = vmatprep.subr.mxu0 0.0
          %1492 = vmatpush1.msra.mxu0 0.0
          %1493 = vmatprep.mubr.f32.mxu0 0.0
          %1494 = vmatmul.mubr.f32.gmra.mrb[0].mxu0 %v1428
          %v1495 = vpop.f32.mrb[0].mxu0
          %v1496 = vadd.f32 %v519, %v1495
          %v1497 = vpop.f32.mrb[0].mxu0
          %v1498 = vadd.f32 %v523, %v1497
          %1499 = vdwg.mxu0
          %1500 = vmatprep.subr.mxu0 %v452
          %1501 = vmatpush1.msra.mxu0 %v451
          %1502 = vmatprep.subr.mxu0 %v456
          %1503 = vmatpush1.msra.mxu0 %v455
          %1504 = vmatprep.subr.mxu0 %v460
          %1505 = vmatpush1.msra.mxu0 %v459
          %1506 = vmatprep.subr.mxu0 %v464
          %1507 = vmatpush1.msra.mxu0 %v463
          %1508 = vmatprep.subr.mxu0 %v468
          %1509 = vmatpush1.msra.mxu0 %v467
          %1510 = vmatprep.subr.mxu0 %v472
          %1511 = vmatpush1.msra.mxu0 %v471
          %1512 = vmatprep.subr.mxu0 %v476
          %1513 = vmatpush1.msra.mxu0 %v475
          %1514 = vmatprep.subr.mxu0 %v480
          %1515 = vmatpush1.msra.mxu0 %v479
          %1516 = vmatprep.subr.mxu0 %v484
          %1517 = vmatpush1.msra.mxu0 %v483
          %1518 = vmatprep.subr.mxu0 %v488
          %1519 = vmatpush1.msra.mxu0 %v487
          %1520 = vmatprep.subr.mxu0 %v492
          %1521 = vmatpush1.msra.mxu0 %v491
          %1522 = vmatprep.subr.mxu0 %v496
          %1523 = vmatpush1.msra.mxu0 %v495
          %1524 = vmatprep.subr.mxu0 %v500
          %1525 = vmatpush1.msra.mxu0 %v499
          %1526 = vmatprep.subr.mxu0 %v504
          %1527 = vmatpush1.msra.mxu0 %v503
          %1528 = vmatprep.subr.mxu0 %v508
          %1529 = vmatpush1.msra.mxu0 %v507
          %1530 = vmatprep.subr.mxu0 %v512
          %1531 = vmatpush1.msra.mxu0 %v511
          %1532 = vmatprep.subr.mxu0 0.0
          %1533 = vmatpush1.msra.mxu0 0.0
          %1534 = vmatprep.subr.mxu0 0.0
          %1535 = vmatpush1.msra.mxu0 0.0
          %1536 = vmatprep.subr.mxu0 0.0
          %1537 = vmatpush1.msra.mxu0 0.0
          %1538 = vmatprep.subr.mxu0 0.0
          %1539 = vmatpush1.msra.mxu0 0.0
          %1540 = vmatprep.subr.mxu0 0.0
          %1541 = vmatpush1.msra.mxu0 0.0
          %1542 = vmatprep.subr.mxu0 0.0
          %1543 = vmatpush1.msra.mxu0 0.0
          %1544 = vmatprep.subr.mxu0 0.0
          %1545 = vmatpush1.msra.mxu0 0.0
          %1546 = vmatprep.subr.mxu0 0.0
          %1547 = vmatpush1.msra.mxu0 0.0
          %1548 = vmatprep.subr.mxu0 0.0
          %1549 = vmatpush1.msra.mxu0 0.0
          %1550 = vmatprep.subr.mxu0 0.0
          %1551 = vmatpush1.msra.mxu0 0.0
          %1552 = vmatprep.subr.mxu0 0.0
          %1553 = vmatpush1.msra.mxu0 0.0
          %1554 = vmatprep.subr.mxu0 0.0
          %1555 = vmatpush1.msra.mxu0 0.0
          %1556 = vmatprep.subr.mxu0 0.0
          %1557 = vmatpush1.msra.mxu0 0.0
          %1558 = vmatprep.subr.mxu0 0.0
          %1559 = vmatpush1.msra.mxu0 0.0
          %1560 = vmatprep.subr.mxu0 0.0
          %1561 = vmatpush1.msra.mxu0 0.0
          %1562 = vmatprep.subr.mxu0 0.0
          %1563 = vmatpush1.msra.mxu0 0.0
          %1564 = vmatprep.mubr.f32.mxu0 0.0
          %1565 = vmatmul.mubr.f32.gmra.mrb[0].mxu0 %v1428
          %v1566 = vpop.f32.mrb[0].mxu0
          %v1567 = vadd.f32 %v527, %v1566
          %v1568 = vpop.f32.mrb[0].mxu0
          %v1569 = vadd.f32 %v531, %v1568
          %1570 = vdwg.mxu0
          %s1571 = scalar_lea.vmem [#allocation2], 192
          %1572 = vst [vmem:[%s1571] sm:$0xff] %v1496
          %1573 = vst [vmem:[%s1571 + $0x8] sm:$0xff] %v1498
          %1574 = vst [vmem:[%s1571 + $0x10] sm:$0xff] %v1567
          %1575 = vst [vmem:[%s1571 + $0x18] sm:$0xff] %v1569
          %s1576 = scalar_lea.vmem %s410, 56
          %v1577 = vld [vmem:[%s1576] sm:$0xff]
          %1578 = vmatprep.subr.mxu0 %v450
          %1579 = vmatpush1.msra.mxu0 %v449
          %1580 = vmatprep.subr.mxu0 %v454
          %1581 = vmatpush1.msra.mxu0 %v453
          %1582 = vmatprep.subr.mxu0 %v458
          %1583 = vmatpush1.msra.mxu0 %v457
          %1584 = vmatprep.subr.mxu0 %v462
          %1585 = vmatpush1.msra.mxu0 %v461
          %1586 = vmatprep.subr.mxu0 %v466
          %1587 = vmatpush1.msra.mxu0 %v465
          %1588 = vmatprep.subr.mxu0 %v470
          %1589 = vmatpush1.msra.mxu0 %v469
          %1590 = vmatprep.subr.mxu0 %v474
          %1591 = vmatpush1.msra.mxu0 %v473
          %1592 = vmatprep.subr.mxu0 %v478
          %1593 = vmatpush1.msra.mxu0 %v477
          %1594 = vmatprep.subr.mxu0 %v482
          %1595 = vmatpush1.msra.mxu0 %v481
          %1596 = vmatprep.subr.mxu0 %v486
          %1597 = vmatpush1.msra.mxu0 %v485
          %1598 = vmatprep.subr.mxu0 %v490
          %1599 = vmatpush1.msra.mxu0 %v489
          %1600 = vmatprep.subr.mxu0 %v494
          %1601 = vmatpush1.msra.mxu0 %v493
          %1602 = vmatprep.subr.mxu0 %v498
          %1603 = vmatpush1.msra.mxu0 %v497
          %1604 = vmatprep.subr.mxu0 %v502
          %1605 = vmatpush1.msra.mxu0 %v501
          %1606 = vmatprep.subr.mxu0 %v506
          %1607 = vmatpush1.msra.mxu0 %v505
          %1608 = vmatprep.subr.mxu0 %v510
          %1609 = vmatpush1.msra.mxu0 %v509
          %1610 = vmatprep.subr.mxu0 0.0
          %1611 = vmatpush1.msra.mxu0 0.0
          %1612 = vmatprep.subr.mxu0 0.0
          %1613 = vmatpush1.msra.mxu0 0.0
          %1614 = vmatprep.subr.mxu0 0.0
          %1615 = vmatpush1.msra.mxu0 0.0
          %1616 = vmatprep.subr.mxu0 0.0
          %1617 = vmatpush1.msra.mxu0 0.0
          %1618 = vmatprep.subr.mxu0 0.0
          %1619 = vmatpush1.msra.mxu0 0.0
          %1620 = vmatprep.subr.mxu0 0.0
          %1621 = vmatpush1.msra.mxu0 0.0
          %1622 = vmatprep.subr.mxu0 0.0
          %1623 = vmatpush1.msra.mxu0 0.0
          %1624 = vmatprep.subr.mxu0 0.0
          %1625 = vmatpush1.msra.mxu0 0.0
          %1626 = vmatprep.subr.mxu0 0.0
          %1627 = vmatpush1.msra.mxu0 0.0
          %1628 = vmatprep.subr.mxu0 0.0
          %1629 = vmatpush1.msra.mxu0 0.0
          %1630 = vmatprep.subr.mxu0 0.0
          %1631 = vmatpush1.msra.mxu0 0.0
          %1632 = vmatprep.subr.mxu0 0.0
          %1633 = vmatpush1.msra.mxu0 0.0
          %1634 = vmatprep.subr.mxu0 0.0
          %1635 = vmatpush1.msra.mxu0 0.0
          %1636 = vmatprep.subr.mxu0 0.0
          %1637 = vmatpush1.msra.mxu0 0.0
          %1638 = vmatprep.subr.mxu0 0.0
          %1639 = vmatpush1.msra.mxu0 0.0
          %1640 = vmatprep.subr.mxu0 0.0
          %1641 = vmatpush1.msra.mxu0 0.0
          %1642 = vmatprep.mubr.f32.mxu0 0.0
          %1643 = vmatmul.mubr.f32.gmra.mrb[0].mxu0 %v1577
          %v1644 = vpop.f32.mrb[0].mxu0
          %v1645 = vadd.f32 %v519, %v1644
          %v1646 = vpop.f32.mrb[0].mxu0
          %v1647 = vadd.f32 %v523, %v1646
          %1648 = vdwg.mxu0
          %1649 = vmatprep.subr.mxu0 %v452
          %1650 = vmatpush1.msra.mxu0 %v451
          %1651 = vmatprep.subr.mxu0 %v456
          %1652 = vmatpush1.msra.mxu0 %v455
          %1653 = vmatprep.subr.mxu0 %v460
          %1654 = vmatpush1.msra.mxu0 %v459
          %1655 = vmatprep.subr.mxu0 %v464
          %1656 = vmatpush1.msra.mxu0 %v463
          %1657 = vmatprep.subr.mxu0 %v468
          %1658 = vmatpush1.msra.mxu0 %v467
          %1659 = vmatprep.subr.mxu0 %v472
          %1660 = vmatpush1.msra.mxu0 %v471
          %1661 = vmatprep.subr.mxu0 %v476
          %1662 = vmatpush1.msra.mxu0 %v475
          %1663 = vmatprep.subr.mxu0 %v480
          %1664 = vmatpush1.msra.mxu0 %v479
          %1665 = vmatprep.subr.mxu0 %v484
          %1666 = vmatpush1.msra.mxu0 %v483
          %1667 = vmatprep.subr.mxu0 %v488
          %1668 = vmatpush1.msra.mxu0 %v487
          %1669 = vmatprep.subr.mxu0 %v492
          %1670 = vmatpush1.msra.mxu0 %v491
          %1671 = vmatprep.subr.mxu0 %v496
          %1672 = vmatpush1.msra.mxu0 %v495
          %1673 = vmatprep.subr.mxu0 %v500
          %1674 = vmatpush1.msra.mxu0 %v499
          %1675 = vmatprep.subr.mxu0 %v504
          %1676 = vmatpush1.msra.mxu0 %v503
          %1677 = vmatprep.subr.mxu0 %v508
          %1678 = vmatpush1.msra.mxu0 %v507
          %1679 = vmatprep.subr.mxu0 %v512
          %1680 = vmatpush1.msra.mxu0 %v511
          %1681 = vmatprep.subr.mxu0 0.0
          %1682 = vmatpush1.msra.mxu0 0.0
          %1683 = vmatprep.subr.mxu0 0.0
          %1684 = vmatpush1.msra.mxu0 0.0
          %1685 = vmatprep.subr.mxu0 0.0
          %1686 = vmatpush1.msra.mxu0 0.0
          %1687 = vmatprep.subr.mxu0 0.0
          %1688 = vmatpush1.msra.mxu0 0.0
          %1689 = vmatprep.subr.mxu0 0.0
          %1690 = vmatpush1.msra.mxu0 0.0
          %1691 = vmatprep.subr.mxu0 0.0
          %1692 = vmatpush1.msra.mxu0 0.0
          %1693 = vmatprep.subr.mxu0 0.0
          %1694 = vmatpush1.msra.mxu0 0.0
          %1695 = vmatprep.subr.mxu0 0.0
          %1696 = vmatpush1.msra.mxu0 0.0
          %1697 = vmatprep.subr.mxu0 0.0
          %1698 = vmatpush1.msra.mxu0 0.0
          %1699 = vmatprep.subr.mxu0 0.0
          %1700 = vmatpush1.msra.mxu0 0.0
          %1701 = vmatprep.subr.mxu0 0.0
          %1702 = vmatpush1.msra.mxu0 0.0
          %1703 = vmatprep.subr.mxu0 0.0
          %1704 = vmatpush1.msra.mxu0 0.0
          %1705 = vmatprep.subr.mxu0 0.0
          %1706 = vmatpush1.msra.mxu0 0.0
          %1707 = vmatprep.subr.mxu0 0.0
          %1708 = vmatpush1.msra.mxu0 0.0
          %1709 = vmatprep.subr.mxu0 0.0
          %1710 = vmatpush1.msra.mxu0 0.0
          %1711 = vmatprep.subr.mxu0 0.0
          %1712 = vmatpush1.msra.mxu0 0.0
          %1713 = vmatprep.mubr.f32.mxu0 0.0
          %1714 = vmatmul.mubr.f32.gmra.mrb[0].mxu0 %v1577
          %v1715 = vpop.f32.mrb[0].mxu0
          %v1716 = vadd.f32 %v527, %v1715
          %v1717 = vpop.f32.mrb[0].mxu0
          %v1718 = vadd.f32 %v531, %v1717
          %1719 = vdwg.mxu0
          %s1720 = scalar_lea.vmem [#allocation2], 224
          %1721 = vst [vmem:[%s1720] sm:$0xff] %v1645
          %1722 = vst [vmem:[%s1720 + $0x8] sm:$0xff] %v1647
          %1723 = vst [vmem:[%s1720 + $0x10] sm:$0xff] %v1716
          %1724 = vst [vmem:[%s1720 + $0x18] sm:$0xff] %v1718
          %v1725 = vld [vmem:[#allocation10] sm:$0xff]
          %v1726 = vld [vmem:[#allocation10 + $0x8] sm:$0xff]
          %v1727 = vld [vmem:[#allocation10 + $0x10] sm:$0xff]
          %v1728 = vld [vmem:[#allocation10 + $0x18] sm:$0xff]
          %v1729 = vld [vmem:[#allocation10 + $0x20] sm:$0xff]
          %v1730 = vld [vmem:[#allocation10 + $0x28] sm:$0xff]
          %v1731 = vld [vmem:[#allocation10 + $0x30] sm:$0xff]
          %v1732 = vld [vmem:[#allocation10 + $0x38] sm:$0xff]
          %v1733 = vld [vmem:[#allocation10 + $0x40] sm:$0xff]
          %v1734 = vld [vmem:[#allocation10 + $0x48] sm:$0xff]
          %v1735 = vld [vmem:[#allocation10 + $0x50] sm:$0xff]
          %v1736 = vld [vmem:[#allocation10 + $0x58] sm:$0xff]
          %v1737 = vld [vmem:[#allocation10 + $0x60] sm:$0xff]
          %v1738 = vld [vmem:[#allocation10 + $0x68] sm:$0xff]
          %v1739 = vld [vmem:[#allocation10 + $0x70] sm:$0xff]
          %v1740 = vld [vmem:[#allocation10 + $0x78] sm:$0xff]
          %v1741 = vld [vmem:[#allocation10 + $0x80] sm:$0xff]
          %v1742 = vld [vmem:[#allocation10 + $0x88] sm:$0xff]
          %v1743 = vld [vmem:[#allocation10 + $0x90] sm:$0xff]
          %v1744 = vld [vmem:[#allocation10 + $0x98] sm:$0xff]
          %v1745 = vld [vmem:[#allocation10 + $0xa0] sm:$0xff]
          %v1746 = vld [vmem:[#allocation10 + $0xa8] sm:$0xff]
          %v1747 = vld [vmem:[#allocation10 + $0xb0] sm:$0xff]
          %v1748 = vld [vmem:[#allocation10 + $0xb8] sm:$0xff]
          %v1749 = vld [vmem:[#allocation10 + $0xc0] sm:$0xff]
          %v1750 = vld [vmem:[#allocation10 + $0xc8] sm:$0xff]
          %v1751 = vld [vmem:[#allocation10 + $0xd0] sm:$0xff]
          %v1752 = vld [vmem:[#allocation10 + $0xd8] sm:$0xff]
          %v1753 = vld [vmem:[#allocation10 + $0xe0] sm:$0xff]
          %v1754 = vld [vmem:[#allocation10 + $0xe8] sm:$0xff]
          %v1755 = vld [vmem:[#allocation10 + $0xf0] sm:$0xff]
          %v1756 = vld [vmem:[#allocation10 + $0xf8] sm:$0xff]
          %v1757 = vld [vmem:[#allocation10 + $0x100] sm:$0xff]
          %v1758 = vld [vmem:[#allocation10 + $0x108] sm:$0xff]
          %v1759 = vld [vmem:[#allocation10 + $0x110] sm:$0xff]
          %v1760 = vld [vmem:[#allocation10 + $0x118] sm:$0xff]
          %v1761 = vld [vmem:[#allocation10 + $0x120] sm:$0xff]
          %v1762 = vld [vmem:[#allocation10 + $0x128] sm:$0xff]
          %v1763 = vld [vmem:[#allocation10 + $0x130] sm:$0xff]
          %v1764 = vld [vmem:[#allocation10 + $0x138] sm:$0xff]
          %v1765 = vld [vmem:[#allocation10 + $0x140] sm:$0xff]
          %v1766 = vld [vmem:[#allocation10 + $0x148] sm:$0xff]
          %v1767 = vld [vmem:[#allocation10 + $0x150] sm:$0xff]
          %v1768 = vld [vmem:[#allocation10 + $0x158] sm:$0xff]
          %v1769 = vld [vmem:[#allocation10 + $0x160] sm:$0xff]
          %v1770 = vld [vmem:[#allocation10 + $0x168] sm:$0xff]
          %v1771 = vld [vmem:[#allocation10 + $0x170] sm:$0xff]
          %v1772 = vld [vmem:[#allocation10 + $0x178] sm:$0xff]
          %v1773 = vld [vmem:[#allocation10 + $0x180] sm:$0xff]
          %v1774 = vld [vmem:[#allocation10 + $0x188] sm:$0xff]
          %v1775 = vld [vmem:[#allocation10 + $0x190] sm:$0xff]
          %v1776 = vld [vmem:[#allocation10 + $0x198] sm:$0xff]
          %v1777 = vld [vmem:[#allocation10 + $0x1a0] sm:$0xff]
          %v1778 = vld [vmem:[#allocation10 + $0x1a8] sm:$0xff]
          %v1779 = vld [vmem:[#allocation10 + $0x1b0] sm:$0xff]
          %v1780 = vld [vmem:[#allocation10 + $0x1b8] sm:$0xff]
          %v1781 = vld [vmem:[#allocation10 + $0x1c0] sm:$0xff]
          %v1782 = vld [vmem:[#allocation10 + $0x1c8] sm:$0xff]
          %v1783 = vld [vmem:[#allocation10 + $0x1d0] sm:$0xff]
          %v1784 = vld [vmem:[#allocation10 + $0x1d8] sm:$0xff]
          %v1785 = vld [vmem:[#allocation10 + $0x1e0] sm:$0xff]
          %v1786 = vld [vmem:[#allocation10 + $0x1e8] sm:$0xff]
          %v1787 = vld [vmem:[#allocation10 + $0x1f0] sm:$0xff]
          %v1788 = vld [vmem:[#allocation10 + $0x1f8] sm:$0xff]
          %v1789 = vld [vmem:[%s415] sm:$0xff]
          %v1790 = vstv %s425
          %v1791 = vsub.s32 %v1789, %v1790
          %v1792 = vld [vmem:[#allocation4] sm:$0xff]
          %v1793 = vld [vmem:[#allocation5] sm:$0xff]
          %v1794 = vld [vmem:[#allocation2] sm:$0xff]
          %v1795 = vld [vmem:[#allocation2 + $0x8] sm:$0xff]
          %v1796 = vld [vmem:[#allocation2 + $0x10] sm:$0xff]
          %v1797 = vld [vmem:[#allocation2 + $0x18] sm:$0xff]
          %1798 = vmatprep.subr.mxu0 %v1726
          %1799 = vmatpush1.msra.mxu0 %v1725
          %1800 = vmatprep.subr.mxu0 %v1730
          %1801 = vmatpush1.msra.mxu0 %v1729
          %1802 = vmatprep.subr.mxu0 %v1734
          %1803 = vmatpush1.msra.mxu0 %v1733
          %1804 = vmatprep.subr.mxu0 %v1738
          %1805 = vmatpush1.msra.mxu0 %v1737
          %1806 = vmatprep.subr.mxu0 %v1742
          %1807 = vmatpush1.msra.mxu0 %v1741
          %1808 = vmatprep.subr.mxu0 %v1746
          %1809 = vmatpush1.msra.mxu0 %v1745
          %1810 = vmatprep.subr.mxu0 %v1750
          %1811 = vmatpush1.msra.mxu0 %v1749
          %1812 = vmatprep.subr.mxu0 %v1754
          %1813 = vmatpush1.msra.mxu0 %v1753
          %1814 = vmatprep.subr.mxu0 %v1758
          %1815 = vmatpush1.msra.mxu0 %v1757
          %1816 = vmatprep.subr.mxu0 %v1762
          %1817 = vmatpush1.msra.mxu0 %v1761
          %1818 = vmatprep.subr.mxu0 %v1766
          %1819 = vmatpush1.msra.mxu0 %v1765
          %1820 = vmatprep.subr.mxu0 %v1770
          %1821 = vmatpush1.msra.mxu0 %v1769
          %1822 = vmatprep.subr.mxu0 %v1774
          %1823 = vmatpush1.msra.mxu0 %v1773
          %1824 = vmatprep.subr.mxu0 %v1778
          %1825 = vmatpush1.msra.mxu0 %v1777
          %1826 = vmatprep.subr.mxu0 %v1782
          %1827 = vmatpush1.msra.mxu0 %v1781
          %1828 = vmatprep.subr.mxu0 %v1786
          %1829 = vmatpush1.msra.mxu0 %v1785
          %1830 = vmatprep.subr.mxu0 0.0
          %1831 = vmatpush1.msra.mxu0 0.0
          %1832 = vmatprep.subr.mxu0 0.0
          %1833 = vmatpush1.msra.mxu0 0.0
          %1834 = vmatprep.subr.mxu0 0.0
          %1835 = vmatpush1.msra.mxu0 0.0
          %1836 = vmatprep.subr.mxu0 0.0
          %1837 = vmatpush1.msra.mxu0 0.0
          %1838 = vmatprep.subr.mxu0 0.0
          %1839 = vmatpush1.msra.mxu0 0.0
          %1840 = vmatprep.subr.mxu0 0.0
          %1841 = vmatpush1.msra.mxu0 0.0
          %1842 = vmatprep.subr.mxu0 0.0
          %1843 = vmatpush1.msra.mxu0 0.0
          %1844 = vmatprep.subr.mxu0 0.0
          %1845 = vmatpush1.msra.mxu0 0.0
          %1846 = vmatprep.subr.mxu0 0.0
          %1847 = vmatpush1.msra.mxu0 0.0
          %1848 = vmatprep.subr.mxu0 0.0
          %1849 = vmatpush1.msra.mxu0 0.0
          %1850 = vmatprep.subr.mxu0 0.0
          %1851 = vmatpush1.msra.mxu0 0.0
          %1852 = vmatprep.subr.mxu0 0.0
          %1853 = vmatpush1.msra.mxu0 0.0
          %1854 = vmatprep.subr.mxu0 0.0
          %1855 = vmatpush1.msra.mxu0 0.0
          %1856 = vmatprep.subr.mxu0 0.0
          %1857 = vmatpush1.msra.mxu0 0.0
          %1858 = vmatprep.subr.mxu0 0.0
          %1859 = vmatpush1.msra.mxu0 0.0
          %1860 = vmatprep.subr.mxu0 0.0
          %1861 = vmatpush1.msra.mxu0 0.0
          %1862 = vmatprep.mubr.f32.mxu0 0.0
          %1863 = vmatmul.mubr.f32.gmra.mrb[0].mxu0 %v1792
          %v1864 = vpop.f32.mrb[0].mxu0
          %v1865 = vadd.f32 0.0, %v1864
          %v1866 = vpop.f32.mrb[0].mxu0
          %v1867 = vadd.f32 0.0, %v1866
          %1868 = vdwg.mxu0
          %1869 = vmatprep.subr.mxu0 %v1728
          %1870 = vmatpush1.msra.mxu0 %v1727
          %1871 = vmatprep.subr.mxu0 %v1732
          %1872 = vmatpush1.msra.mxu0 %v1731
          %1873 = vmatprep.subr.mxu0 %v1736
          %1874 = vmatpush1.msra.mxu0 %v1735
          %1875 = vmatprep.subr.mxu0 %v1740
          %1876 = vmatpush1.msra.mxu0 %v1739
          %1877 = vmatprep.subr.mxu0 %v1744
          %1878 = vmatpush1.msra.mxu0 %v1743
          %1879 = vmatprep.subr.mxu0 %v1748
          %1880 = vmatpush1.msra.mxu0 %v1747
          %1881 = vmatprep.subr.mxu0 %v1752
          %1882 = vmatpush1.msra.mxu0 %v1751
          %1883 = vmatprep.subr.mxu0 %v1756
          %1884 = vmatpush1.msra.mxu0 %v1755
          %1885 = vmatprep.subr.mxu0 %v1760
          %1886 = vmatpush1.msra.mxu0 %v1759
          %1887 = vmatprep.subr.mxu0 %v1764
          %1888 = vmatpush1.msra.mxu0 %v1763
          %1889 = vmatprep.subr.mxu0 %v1768
          %1890 = vmatpush1.msra.mxu0 %v1767
          %1891 = vmatprep.subr.mxu0 %v1772
          %1892 = vmatpush1.msra.mxu0 %v1771
          %1893 = vmatprep.subr.mxu0 %v1776
          %1894 = vmatpush1.msra.mxu0 %v1775
          %1895 = vmatprep.subr.mxu0 %v1780
          %1896 = vmatpush1.msra.mxu0 %v1779
          %1897 = vmatprep.subr.mxu0 %v1784
          %1898 = vmatpush1.msra.mxu0 %v1783
          %1899 = vmatprep.subr.mxu0 %v1788
          %1900 = vmatpush1.msra.mxu0 %v1787
          %1901 = vmatprep.subr.mxu0 0.0
          %1902 = vmatpush1.msra.mxu0 0.0
          %1903 = vmatprep.subr.mxu0 0.0
          %1904 = vmatpush1.msra.mxu0 0.0
          %1905 = vmatprep.subr.mxu0 0.0
          %1906 = vmatpush1.msra.mxu0 0.0
          %1907 = vmatprep.subr.mxu0 0.0
          %1908 = vmatpush1.msra.mxu0 0.0
          %1909 = vmatprep.subr.mxu0 0.0
          %1910 = vmatpush1.msra.mxu0 0.0
          %1911 = vmatprep.subr.mxu0 0.0
          %1912 = vmatpush1.msra.mxu0 0.0
          %1913 = vmatprep.subr.mxu0 0.0
          %1914 = vmatpush1.msra.mxu0 0.0
          %1915 = vmatprep.subr.mxu0 0.0
          %1916 = vmatpush1.msra.mxu0 0.0
          %1917 = vmatprep.subr.mxu0 0.0
          %1918 = vmatpush1.msra.mxu0 0.0
          %1919 = vmatprep.subr.mxu0 0.0
          %1920 = vmatpush1.msra.mxu0 0.0
          %1921 = vmatprep.subr.mxu0 0.0
          %1922 = vmatpush1.msra.mxu0 0.0
          %1923 = vmatprep.subr.mxu0 0.0
          %1924 = vmatpush1.msra.mxu0 0.0
          %1925 = vmatprep.subr.mxu0 0.0
          %1926 = vmatpush1.msra.mxu0 0.0
          %1927 = vmatprep.subr.mxu0 0.0
          %1928 = vmatpush1.msra.mxu0 0.0
          %1929 = vmatprep.subr.mxu0 0.0
          %1930 = vmatpush1.msra.mxu0 0.0
          %1931 = vmatprep.subr.mxu0 0.0
          %1932 = vmatpush1.msra.mxu0 0.0
          %1933 = vmatprep.mubr.f32.mxu0 0.0
          %1934 = vmatmul.mubr.f32.gmra.mrb[0].mxu0 %v1792
          %v1935 = vpop.f32.mrb[0].mxu0
          %v1936 = vadd.f32 0.0, %v1935
          %v1937 = vpop.f32.mrb[0].mxu0
          %v1938 = vadd.f32 0.0, %v1937
          %1939 = vdwg.mxu0
          %v1940 = vadd.f32 %v1794, %v1865
          %v1941 = vadd.f32 %v1795, %v1867
          %v1942 = vadd.f32 %v1796, %v1936
          %v1943 = vadd.f32 %v1797, %v1938
          %v1944 = vmul.f32 %v1940, 0.5
          %v1945 = vtanh.pop %v1944
          %v1946 = vmul.f32 %v1945, 0.5
          %v1947 = vadd.f32 %v1946, 0.5
          %v1948 = vmul.f32 %v1941, 0.5
          %v1949 = vtanh.pop %v1948
          %v1950 = vmul.f32 %v1949, 0.5
          %v1951 = vadd.f32 %v1950, 0.5
          %v1952 = vtanh.pop %v1942
          %v1953 = vmul.f32 %v1943, 0.5
          %v1954 = vtanh.pop %v1953
          %v1955 = vmul.f32 %v1954, 0.5
          %v1956 = vadd.f32 %v1955, 0.5
          %v1957 = vmul.f32 %v1951, %v1793
          %v1958 = vmul.f32 %v1947, %v1952
          %v1959 = vadd.f32 %v1957, %v1958
          %v1960 = vtanh.pop %v1959
          %v1961 = vmul.f32 %v1956, %v1960
          %vm1962 = vcmp.gt.s32.totalorder %v1791, 0
          %v1963 = vsel %vm1962, 1, 0
          %1964 = vset.pattern.permute.xlu0 0
          %1965 = vperm.xlu0 %1964, %v1963
          %v1966 = vpop.permute.xlu0 %1965
          %vm1967 = vcmp.eq.s32.totalorder %v1966, 1
          %v1968 = vsel %vm1967, %v1961, 0.0
          %1969 = vst [vmem:[#allocation3] sm:$0xff] %v1968
          %v1970 = vsel %vm1967, %v1961, %v1792
          %v1971 = vsel %vm1967, %v1959, %v1793
          %v1972 = vld [vmem:[%s826] sm:$0xff]
          %v1973 = vld [vmem:[%s826 + $0x8] sm:$0xff]
          %v1974 = vld [vmem:[%s826 + $0x10] sm:$0xff]
          %v1975 = vld [vmem:[%s826 + $0x18] sm:$0xff]
          %1976 = vmatprep.subr.mxu0 %v1726
          %1977 = vmatpush1.msra.mxu0 %v1725
          %1978 = vmatprep.subr.mxu0 %v1730
          %1979 = vmatpush1.msra.mxu0 %v1729
          %1980 = vmatprep.subr.mxu0 %v1734
          %1981 = vmatpush1.msra.mxu0 %v1733
          %1982 = vmatprep.subr.mxu0 %v1738
          %1983 = vmatpush1.msra.mxu0 %v1737
          %1984 = vmatprep.subr.mxu0 %v1742
          %1985 = vmatpush1.msra.mxu0 %v1741
          %1986 = vmatprep.subr.mxu0 %v1746
          %1987 = vmatpush1.msra.mxu0 %v1745
          %1988 = vmatprep.subr.mxu0 %v1750
          %1989 = vmatpush1.msra.mxu0 %v1749
          %1990 = vmatprep.subr.mxu0 %v1754
          %1991 = vmatpush1.msra.mxu0 %v1753
          %1992 = vmatprep.subr.mxu0 %v1758
          %1993 = vmatpush1.msra.mxu0 %v1757
          %1994 = vmatprep.subr.mxu0 %v1762
          %1995 = vmatpush1.msra.mxu0 %v1761
          %1996 = vmatprep.subr.mxu0 %v1766
          %1997 = vmatpush1.msra.mxu0 %v1765
          %1998 = vmatprep.subr.mxu0 %v1770
          %1999 = vmatpush1.msra.mxu0 %v1769
          %2000 = vmatprep.subr.mxu0 %v1774
          %2001 = vmatpush1.msra.mxu0 %v1773
          %2002 = vmatprep.subr.mxu0 %v1778
          %2003 = vmatpush1.msra.mxu0 %v1777
          %2004 = vmatprep.subr.mxu0 %v1782
          %2005 = vmatpush1.msra.mxu0 %v1781
          %2006 = vmatprep.subr.mxu0 %v1786
          %2007 = vmatpush1.msra.mxu0 %v1785
          %2008 = vmatprep.subr.mxu0 0.0
          %2009 = vmatpush1.msra.mxu0 0.0
          %2010 = vmatprep.subr.mxu0 0.0
          %2011 = vmatpush1.msra.mxu0 0.0
          %2012 = vmatprep.subr.mxu0 0.0
          %2013 = vmatpush1.msra.mxu0 0.0
          %2014 = vmatprep.subr.mxu0 0.0
          %2015 = vmatpush1.msra.mxu0 0.0
          %2016 = vmatprep.subr.mxu0 0.0
          %2017 = vmatpush1.msra.mxu0 0.0
          %2018 = vmatprep.subr.mxu0 0.0
          %2019 = vmatpush1.msra.mxu0 0.0
          %2020 = vmatprep.subr.mxu0 0.0
          %2021 = vmatpush1.msra.mxu0 0.0
          %2022 = vmatprep.subr.mxu0 0.0
          %2023 = vmatpush1.msra.mxu0 0.0
          %2024 = vmatprep.subr.mxu0 0.0
          %2025 = vmatpush1.msra.mxu0 0.0
          %2026 = vmatprep.subr.mxu0 0.0
          %2027 = vmatpush1.msra.mxu0 0.0
          %2028 = vmatprep.subr.mxu0 0.0
          %2029 = vmatpush1.msra.mxu0 0.0
          %2030 = vmatprep.subr.mxu0 0.0
          %2031 = vmatpush1.msra.mxu0 0.0
          %2032 = vmatprep.subr.mxu0 0.0
          %2033 = vmatpush1.msra.mxu0 0.0
          %2034 = vmatprep.subr.mxu0 0.0
          %2035 = vmatpush1.msra.mxu0 0.0
          %2036 = vmatprep.subr.mxu0 0.0
          %2037 = vmatpush1.msra.mxu0 0.0
          %2038 = vmatprep.subr.mxu0 0.0
          %2039 = vmatpush1.msra.mxu0 0.0
          %2040 = vmatprep.mubr.f32.mxu0 0.0
          %2041 = vmatmul.mubr.f32.gmra.mrb[0].mxu0 %v1970
          %v2042 = vpop.f32.mrb[0].mxu0
          %v2043 = vadd.f32 0.0, %v2042
          %v2044 = vpop.f32.mrb[0].mxu0
          %v2045 = vadd.f32 0.0, %v2044
          %2046 = vdwg.mxu0
          %2047 = vmatprep.subr.mxu0 %v1728
          %2048 = vmatpush1.msra.mxu0 %v1727
          %2049 = vmatprep.subr.mxu0 %v1732
          %2050 = vmatpush1.msra.mxu0 %v1731
          %2051 = vmatprep.subr.mxu0 %v1736
          %2052 = vmatpush1.msra.mxu0 %v1735
          %2053 = vmatprep.subr.mxu0 %v1740
          %2054 = vmatpush1.msra.mxu0 %v1739
          %2055 = vmatprep.subr.mxu0 %v1744
          %2056 = vmatpush1.msra.mxu0 %v1743
          %2057 = vmatprep.subr.mxu0 %v1748
          %2058 = vmatpush1.msra.mxu0 %v1747
          %2059 = vmatprep.subr.mxu0 %v1752
          %2060 = vmatpush1.msra.mxu0 %v1751
          %2061 = vmatprep.subr.mxu0 %v1756
          %2062 = vmatpush1.msra.mxu0 %v1755
          %2063 = vmatprep.subr.mxu0 %v1760
          %2064 = vmatpush1.msra.mxu0 %v1759
          %2065 = vmatprep.subr.mxu0 %v1764
          %2066 = vmatpush1.msra.mxu0 %v1763
          %2067 = vmatprep.subr.mxu0 %v1768
          %2068 = vmatpush1.msra.mxu0 %v1767
          %2069 = vmatprep.subr.mxu0 %v1772
          %2070 = vmatpush1.msra.mxu0 %v1771
          %2071 = vmatprep.subr.mxu0 %v1776
          %2072 = vmatpush1.msra.mxu0 %v1775
          %2073 = vmatprep.subr.mxu0 %v1780
          %2074 = vmatpush1.msra.mxu0 %v1779
          %2075 = vmatprep.subr.mxu0 %v1784
          %2076 = vmatpush1.msra.mxu0 %v1783
          %2077 = vmatprep.subr.mxu0 %v1788
          %2078 = vmatpush1.msra.mxu0 %v1787
          %2079 = vmatprep.subr.mxu0 0.0
          %2080 = vmatpush1.msra.mxu0 0.0
          %2081 = vmatprep.subr.mxu0 0.0
          %2082 = vmatpush1.msra.mxu0 0.0
          %2083 = vmatprep.subr.mxu0 0.0
          %2084 = vmatpush1.msra.mxu0 0.0
          %2085 = vmatprep.subr.mxu0 0.0
          %2086 = vmatpush1.msra.mxu0 0.0
          %2087 = vmatprep.subr.mxu0 0.0
          %2088 = vmatpush1.msra.mxu0 0.0
          %2089 = vmatprep.subr.mxu0 0.0
          %2090 = vmatpush1.msra.mxu0 0.0
          %2091 = vmatprep.subr.mxu0 0.0
          %2092 = vmatpush1.msra.mxu0 0.0
          %2093 = vmatprep.subr.mxu0 0.0
          %2094 = vmatpush1.msra.mxu0 0.0
          %2095 = vmatprep.subr.mxu0 0.0
          %2096 = vmatpush1.msra.mxu0 0.0
          %2097 = vmatprep.subr.mxu0 0.0
          %2098 = vmatpush1.msra.mxu0 0.0
          %2099 = vmatprep.subr.mxu0 0.0
          %2100 = vmatpush1.msra.mxu0 0.0
          %2101 = vmatprep.subr.mxu0 0.0
          %2102 = vmatpush1.msra.mxu0 0.0
          %2103 = vmatprep.subr.mxu0 0.0
          %2104 = vmatpush1.msra.mxu0 0.0
          %2105 = vmatprep.subr.mxu0 0.0
          %2106 = vmatpush1.msra.mxu0 0.0
          %2107 = vmatprep.subr.mxu0 0.0
          %2108 = vmatpush1.msra.mxu0 0.0
          %2109 = vmatprep.subr.mxu0 0.0
          %2110 = vmatpush1.msra.mxu0 0.0
          %2111 = vmatprep.mubr.f32.mxu0 0.0
          %2112 = vmatmul.mubr.f32.gmra.mrb[0].mxu0 %v1970
          %v2113 = vpop.f32.mrb[0].mxu0
          %v2114 = vadd.f32 0.0, %v2113
          %v2115 = vpop.f32.mrb[0].mxu0
          %v2116 = vadd.f32 0.0, %v2115
          %2117 = vdwg.mxu0
          %v2118 = vadd.f32 %v1972, %v2043
          %v2119 = vadd.f32 %v1973, %v2045
          %v2120 = vadd.f32 %v1974, %v2114
          %v2121 = vadd.f32 %v1975, %v2116
          %v2122 = vmul.f32 %v2118, 0.5
          %v2123 = vtanh.pop %v2122
          %v2124 = vmul.f32 %v2123, 0.5
          %v2125 = vadd.f32 %v2124, 0.5
          %v2126 = vmul.f32 %v2119, 0.5
          %v2127 = vtanh.pop %v2126
          %v2128 = vmul.f32 %v2127, 0.5
          %v2129 = vadd.f32 %v2128, 0.5
          %v2130 = vtanh.pop %v2120
          %v2131 = vmul.f32 %v2121, 0.5
          %v2132 = vtanh.pop %v2131
          %v2133 = vmul.f32 %v2132, 0.5
          %v2134 = vadd.f32 %v2133, 0.5
          %v2135 = vmul.f32 %v2129, %v1971
          %v2136 = vmul.f32 %v2125, %v2130
          %v2137 = vadd.f32 %v2135, %v2136
          %v2138 = vtanh.pop %v2137
          %v2139 = vmul.f32 %v2134, %v2138
          %vm2140 = vcmp.gt.s32.totalorder %v1791, 1
          %v2141 = vsel %vm2140, 1, 0
          %2142 = vset.pattern.permute.xlu0 0
          %2143 = vperm.xlu0 %2142, %v2141
          %v2144 = vpop.permute.xlu0 %2143
          %vm2145 = vcmp.eq.s32.totalorder %v2144, 1
          %v2146 = vsel %vm2145, %v2139, 0.0
          %s2147 = scalar_lea.vmem [#allocation3], 8
          %2148 = vst [vmem:[%s2147] sm:$0xff] %v2146
          %v2149 = vsel %vm2145, %v2139, %v1970
          %v2150 = vsel %vm2145, %v2137, %v1971
          %v2151 = vld [vmem:[%s975] sm:$0xff]
          %v2152 = vld [vmem:[%s975 + $0x8] sm:$0xff]
          %v2153 = vld [vmem:[%s975 + $0x10] sm:$0xff]
          %v2154 = vld [vmem:[%s975 + $0x18] sm:$0xff]
          %2155 = vmatprep.subr.mxu0 %v1726
          %2156 = vmatpush1.msra.mxu0 %v1725
          %2157 = vmatprep.subr.mxu0 %v1730
          %2158 = vmatpush1.msra.mxu0 %v1729
          %2159 = vmatprep.subr.mxu0 %v1734
          %2160 = vmatpush1.msra.mxu0 %v1733
          %2161 = vmatprep.subr.mxu0 %v1738
          %2162 = vmatpush1.msra.mxu0 %v1737
          %2163 = vmatprep.subr.mxu0 %v1742
          %2164 = vmatpush1.msra.mxu0 %v1741
          %2165 = vmatprep.subr.mxu0 %v1746
          %2166 = vmatpush1.msra.mxu0 %v1745
          %2167 = vmatprep.subr.mxu0 %v1750
          %2168 = vmatpush1.msra.mxu0 %v1749
          %2169 = vmatprep.subr.mxu0 %v1754
          %2170 = vmatpush1.msra.mxu0 %v1753
          %2171 = vmatprep.subr.mxu0 %v1758
          %2172 = vmatpush1.msra.mxu0 %v1757
          %2173 = vmatprep.subr.mxu0 %v1762
          %2174 = vmatpush1.msra.mxu0 %v1761
          %2175 = vmatprep.subr.mxu0 %v1766
          %2176 = vmatpush1.msra.mxu0 %v1765
          %2177 = vmatprep.subr.mxu0 %v1770
          %2178 = vmatpush1.msra.mxu0 %v1769
          %2179 = vmatprep.subr.mxu0 %v1774
          %2180 = vmatpush1.msra.mxu0 %v1773
          %2181 = vmatprep.subr.mxu0 %v1778
          %2182 = vmatpush1.msra.mxu0 %v1777
          %2183 = vmatprep.subr.mxu0 %v1782
          %2184 = vmatpush1.msra.mxu0 %v1781
          %2185 = vmatprep.subr.mxu0 %v1786
          %2186 = vmatpush1.msra.mxu0 %v1785
          %2187 = vmatprep.subr.mxu0 0.0
          %2188 = vmatpush1.msra.mxu0 0.0
          %2189 = vmatprep.subr.mxu0 0.0
          %2190 = vmatpush1.msra.mxu0 0.0
          %2191 = vmatprep.subr.mxu0 0.0
          %2192 = vmatpush1.msra.mxu0 0.0
          %2193 = vmatprep.subr.mxu0 0.0
          %2194 = vmatpush1.msra.mxu0 0.0
          %2195 = vmatprep.subr.mxu0 0.0
          %2196 = vmatpush1.msra.mxu0 0.0
          %2197 = vmatprep.subr.mxu0 0.0
          %2198 = vmatpush1.msra.mxu0 0.0
          %2199 = vmatprep.subr.mxu0 0.0
          %2200 = vmatpush1.msra.mxu0 0.0
          %2201 = vmatprep.subr.mxu0 0.0
          %2202 = vmatpush1.msra.mxu0 0.0
          %2203 = vmatprep.subr.mxu0 0.0
          %2204 = vmatpush1.msra.mxu0 0.0
          %2205 = vmatprep.subr.mxu0 0.0
          %2206 = vmatpush1.msra.mxu0 0.0
          %2207 = vmatprep.subr.mxu0 0.0
          %2208 = vmatpush1.msra.mxu0 0.0
          %2209 = vmatprep.subr.mxu0 0.0
          %2210 = vmatpush1.msra.mxu0 0.0
          %2211 = vmatprep.subr.mxu0 0.0
          %2212 = vmatpush1.msra.mxu0 0.0
          %2213 = vmatprep.subr.mxu0 0.0
          %2214 = vmatpush1.msra.mxu0 0.0
          %2215 = vmatprep.subr.mxu0 0.0
          %2216 = vmatpush1.msra.mxu0 0.0
          %2217 = vmatprep.subr.mxu0 0.0
          %2218 = vmatpush1.msra.mxu0 0.0
          %2219 = vmatprep.mubr.f32.mxu0 0.0
          %2220 = vmatmul.mubr.f32.gmra.mrb[0].mxu0 %v2149
          %v2221 = vpop.f32.mrb[0].mxu0
          %v2222 = vadd.f32 0.0, %v2221
          %v2223 = vpop.f32.mrb[0].mxu0
          %v2224 = vadd.f32 0.0, %v2223
          %2225 = vdwg.mxu0
          %2226 = vmatprep.subr.mxu0 %v1728
          %2227 = vmatpush1.msra.mxu0 %v1727
          %2228 = vmatprep.subr.mxu0 %v1732
          %2229 = vmatpush1.msra.mxu0 %v1731
          %2230 = vmatprep.subr.mxu0 %v1736
          %2231 = vmatpush1.msra.mxu0 %v1735
          %2232 = vmatprep.subr.mxu0 %v1740
          %2233 = vmatpush1.msra.mxu0 %v1739
          %2234 = vmatprep.subr.mxu0 %v1744
          %2235 = vmatpush1.msra.mxu0 %v1743
          %2236 = vmatprep.subr.mxu0 %v1748
          %2237 = vmatpush1.msra.mxu0 %v1747
          %2238 = vmatprep.subr.mxu0 %v1752
          %2239 = vmatpush1.msra.mxu0 %v1751
          %2240 = vmatprep.subr.mxu0 %v1756
          %2241 = vmatpush1.msra.mxu0 %v1755
          %2242 = vmatprep.subr.mxu0 %v1760
          %2243 = vmatpush1.msra.mxu0 %v1759
          %2244 = vmatprep.subr.mxu0 %v1764
          %2245 = vmatpush1.msra.mxu0 %v1763
          %2246 = vmatprep.subr.mxu0 %v1768
          %2247 = vmatpush1.msra.mxu0 %v1767
          %2248 = vmatprep.subr.mxu0 %v1772
          %2249 = vmatpush1.msra.mxu0 %v1771
          %2250 = vmatprep.subr.mxu0 %v1776
          %2251 = vmatpush1.msra.mxu0 %v1775
          %2252 = vmatprep.subr.mxu0 %v1780
          %2253 = vmatpush1.msra.mxu0 %v1779
          %2254 = vmatprep.subr.mxu0 %v1784
          %2255 = vmatpush1.msra.mxu0 %v1783
          %2256 = vmatprep.subr.mxu0 %v1788
          %2257 = vmatpush1.msra.mxu0 %v1787
          %2258 = vmatprep.subr.mxu0 0.0
          %2259 = vmatpush1.msra.mxu0 0.0
          %2260 = vmatprep.subr.mxu0 0.0
          %2261 = vmatpush1.msra.mxu0 0.0
          %2262 = vmatprep.subr.mxu0 0.0
          %2263 = vmatpush1.msra.mxu0 0.0
          %2264 = vmatprep.subr.mxu0 0.0
          %2265 = vmatpush1.msra.mxu0 0.0
          %2266 = vmatprep.subr.mxu0 0.0
          %2267 = vmatpush1.msra.mxu0 0.0
          %2268 = vmatprep.subr.mxu0 0.0
          %2269 = vmatpush1.msra.mxu0 0.0
          %2270 = vmatprep.subr.mxu0 0.0
          %2271 = vmatpush1.msra.mxu0 0.0
          %2272 = vmatprep.subr.mxu0 0.0
          %2273 = vmatpush1.msra.mxu0 0.0
          %2274 = vmatprep.subr.mxu0 0.0
          %2275 = vmatpush1.msra.mxu0 0.0
          %2276 = vmatprep.subr.mxu0 0.0
          %2277 = vmatpush1.msra.mxu0 0.0
          %2278 = vmatprep.subr.mxu0 0.0
          %2279 = vmatpush1.msra.mxu0 0.0
          %2280 = vmatprep.subr.mxu0 0.0
          %2281 = vmatpush1.msra.mxu0 0.0
          %2282 = vmatprep.subr.mxu0 0.0
          %2283 = vmatpush1.msra.mxu0 0.0
          %2284 = vmatprep.subr.mxu0 0.0
          %2285 = vmatpush1.msra.mxu0 0.0
          %2286 = vmatprep.subr.mxu0 0.0
          %2287 = vmatpush1.msra.mxu0 0.0
          %2288 = vmatprep.subr.mxu0 0.0
          %2289 = vmatpush1.msra.mxu0 0.0
          %2290 = vmatprep.mubr.f32.mxu0 0.0
          %2291 = vmatmul.mubr.f32.gmra.mrb[0].mxu0 %v2149
          %v2292 = vpop.f32.mrb[0].mxu0
          %v2293 = vadd.f32 0.0, %v2292
          %v2294 = vpop.f32.mrb[0].mxu0
          %v2295 = vadd.f32 0.0, %v2294
          %2296 = vdwg.mxu0
          %v2297 = vadd.f32 %v2151, %v2222
          %v2298 = vadd.f32 %v2152, %v2224
          %v2299 = vadd.f32 %v2153, %v2293
          %v2300 = vadd.f32 %v2154, %v2295
          %v2301 = vmul.f32 %v2297, 0.5
          %v2302 = vtanh.pop %v2301
          %v2303 = vmul.f32 %v2302, 0.5
          %v2304 = vadd.f32 %v2303, 0.5
          %v2305 = vmul.f32 %v2298, 0.5
          %v2306 = vtanh.pop %v2305
          %v2307 = vmul.f32 %v2306, 0.5
          %v2308 = vadd.f32 %v2307, 0.5
          %v2309 = vtanh.pop %v2299
          %v2310 = vmul.f32 %v2300, 0.5
          %v2311 = vtanh.pop %v2310
          %v2312 = vmul.f32 %v2311, 0.5
          %v2313 = vadd.f32 %v2312, 0.5
          %v2314 = vmul.f32 %v2308, %v2150
          %v2315 = vmul.f32 %v2304, %v2309
          %v2316 = vadd.f32 %v2314, %v2315
          %v2317 = vtanh.pop %v2316
          %v2318 = vmul.f32 %v2313, %v2317
          %vm2319 = vcmp.gt.s32.totalorder %v1791, 2
          %v2320 = vsel %vm2319, 1, 0
          %2321 = vset.pattern.permute.xlu0 0
          %2322 = vperm.xlu0 %2321, %v2320
          %v2323 = vpop.permute.xlu0 %2322
          %vm2324 = vcmp.eq.s32.totalorder %v2323, 1
          %v2325 = vsel %vm2324, %v2318, 0.0
          %s2326 = scalar_lea.vmem [#allocation3], 16
          %2327 = vst [vmem:[%s2326] sm:$0xff] %v2325
          %v2328 = vsel %vm2324, %v2318, %v2149
          %v2329 = vsel %vm2324, %v2316, %v2150
          %v2330 = vld [vmem:[%s1124] sm:$0xff]
          %v2331 = vld [vmem:[%s1124 + $0x8] sm:$0xff]
          %v2332 = vld [vmem:[%s1124 + $0x10] sm:$0xff]
          %v2333 = vld [vmem:[%s1124 + $0x18] sm:$0xff]
          %2334 = vmatprep.subr.mxu0 %v1726
          %2335 = vmatpush1.msra.mxu0 %v1725
          %2336 = vmatprep.subr.mxu0 %v1730
          %2337 = vmatpush1.msra.mxu0 %v1729
          %2338 = vmatprep.subr.mxu0 %v1734
          %2339 = vmatpush1.msra.mxu0 %v1733
          %2340 = vmatprep.subr.mxu0 %v1738
          %2341 = vmatpush1.msra.mxu0 %v1737
          %2342 = vmatprep.subr.mxu0 %v1742
          %2343 = vmatpush1.msra.mxu0 %v1741
          %2344 = vmatprep.subr.mxu0 %v1746
          %2345 = vmatpush1.msra.mxu0 %v1745
          %2346 = vmatprep.subr.mxu0 %v1750
          %2347 = vmatpush1.msra.mxu0 %v1749
          %2348 = vmatprep.subr.mxu0 %v1754
          %2349 = vmatpush1.msra.mxu0 %v1753
          %2350 = vmatprep.subr.mxu0 %v1758
          %2351 = vmatpush1.msra.mxu0 %v1757
          %2352 = vmatprep.subr.mxu0 %v1762
          %2353 = vmatpush1.msra.mxu0 %v1761
          %2354 = vmatprep.subr.mxu0 %v1766
          %2355 = vmatpush1.msra.mxu0 %v1765
          %2356 = vmatprep.subr.mxu0 %v1770
          %2357 = vmatpush1.msra.mxu0 %v1769
          %2358 = vmatprep.subr.mxu0 %v1774
          %2359 = vmatpush1.msra.mxu0 %v1773
          %2360 = vmatprep.subr.mxu0 %v1778
          %2361 = vmatpush1.msra.mxu0 %v1777
          %2362 = vmatprep.subr.mxu0 %v1782
          %2363 = vmatpush1.msra.mxu0 %v1781
          %2364 = vmatprep.subr.mxu0 %v1786
          %2365 = vmatpush1.msra.mxu0 %v1785
          %2366 = vmatprep.subr.mxu0 0.0
          %2367 = vmatpush1.msra.mxu0 0.0
          %2368 = vmatprep.subr.mxu0 0.0
          %2369 = vmatpush1.msra.mxu0 0.0
          %2370 = vmatprep.subr.mxu0 0.0
          %2371 = vmatpush1.msra.mxu0 0.0
          %2372 = vmatprep.subr.mxu0 0.0
          %2373 = vmatpush1.msra.mxu0 0.0
          %2374 = vmatprep.subr.mxu0 0.0
          %2375 = vmatpush1.msra.mxu0 0.0
          %2376 = vmatprep.subr.mxu0 0.0
          %2377 = vmatpush1.msra.mxu0 0.0
          %2378 = vmatprep.subr.mxu0 0.0
          %2379 = vmatpush1.msra.mxu0 0.0
          %2380 = vmatprep.subr.mxu0 0.0
          %2381 = vmatpush1.msra.mxu0 0.0
          %2382 = vmatprep.subr.mxu0 0.0
          %2383 = vmatpush1.msra.mxu0 0.0
          %2384 = vmatprep.subr.mxu0 0.0
          %2385 = vmatpush1.msra.mxu0 0.0
          %2386 = vmatprep.subr.mxu0 0.0
          %2387 = vmatpush1.msra.mxu0 0.0
          %2388 = vmatprep.subr.mxu0 0.0
          %2389 = vmatpush1.msra.mxu0 0.0
          %2390 = vmatprep.subr.mxu0 0.0
          %2391 = vmatpush1.msra.mxu0 0.0
          %2392 = vmatprep.subr.mxu0 0.0
          %2393 = vmatpush1.msra.mxu0 0.0
          %2394 = vmatprep.subr.mxu0 0.0
          %2395 = vmatpush1.msra.mxu0 0.0
          %2396 = vmatprep.subr.mxu0 0.0
          %2397 = vmatpush1.msra.mxu0 0.0
          %2398 = vmatprep.mubr.f32.mxu0 0.0
          %2399 = vmatmul.mubr.f32.gmra.mrb[0].mxu0 %v2328
          %v2400 = vpop.f32.mrb[0].mxu0
          %v2401 = vadd.f32 0.0, %v2400
          %v2402 = vpop.f32.mrb[0].mxu0
          %v2403 = vadd.f32 0.0, %v2402
          %2404 = vdwg.mxu0
          %2405 = vmatprep.subr.mxu0 %v1728
          %2406 = vmatpush1.msra.mxu0 %v1727
          %2407 = vmatprep.subr.mxu0 %v1732
          %2408 = vmatpush1.msra.mxu0 %v1731
          %2409 = vmatprep.subr.mxu0 %v1736
          %2410 = vmatpush1.msra.mxu0 %v1735
          %2411 = vmatprep.subr.mxu0 %v1740
          %2412 = vmatpush1.msra.mxu0 %v1739
          %2413 = vmatprep.subr.mxu0 %v1744
          %2414 = vmatpush1.msra.mxu0 %v1743
          %2415 = vmatprep.subr.mxu0 %v1748
          %2416 = vmatpush1.msra.mxu0 %v1747
          %2417 = vmatprep.subr.mxu0 %v1752
          %2418 = vmatpush1.msra.mxu0 %v1751
          %2419 = vmatprep.subr.mxu0 %v1756
          %2420 = vmatpush1.msra.mxu0 %v1755
          %2421 = vmatprep.subr.mxu0 %v1760
          %2422 = vmatpush1.msra.mxu0 %v1759
          %2423 = vmatprep.subr.mxu0 %v1764
          %2424 = vmatpush1.msra.mxu0 %v1763
          %2425 = vmatprep.subr.mxu0 %v1768
          %2426 = vmatpush1.msra.mxu0 %v1767
          %2427 = vmatprep.subr.mxu0 %v1772
          %2428 = vmatpush1.msra.mxu0 %v1771
          %2429 = vmatprep.subr.mxu0 %v1776
          %2430 = vmatpush1.msra.mxu0 %v1775
          %2431 = vmatprep.subr.mxu0 %v1780
          %2432 = vmatpush1.msra.mxu0 %v1779
          %2433 = vmatprep.subr.mxu0 %v1784
          %2434 = vmatpush1.msra.mxu0 %v1783
          %2435 = vmatprep.subr.mxu0 %v1788
          %2436 = vmatpush1.msra.mxu0 %v1787
          %2437 = vmatprep.subr.mxu0 0.0
          %2438 = vmatpush1.msra.mxu0 0.0
          %2439 = vmatprep.subr.mxu0 0.0
          %2440 = vmatpush1.msra.mxu0 0.0
          %2441 = vmatprep.subr.mxu0 0.0
          %2442 = vmatpush1.msra.mxu0 0.0
          %2443 = vmatprep.subr.mxu0 0.0
          %2444 = vmatpush1.msra.mxu0 0.0
          %2445 = vmatprep.subr.mxu0 0.0
          %2446 = vmatpush1.msra.mxu0 0.0
          %2447 = vmatprep.subr.mxu0 0.0
          %2448 = vmatpush1.msra.mxu0 0.0
          %2449 = vmatprep.subr.mxu0 0.0
          %2450 = vmatpush1.msra.mxu0 0.0
          %2451 = vmatprep.subr.mxu0 0.0
          %2452 = vmatpush1.msra.mxu0 0.0
          %2453 = vmatprep.subr.mxu0 0.0
          %2454 = vmatpush1.msra.mxu0 0.0
          %2455 = vmatprep.subr.mxu0 0.0
          %2456 = vmatpush1.msra.mxu0 0.0
          %2457 = vmatprep.subr.mxu0 0.0
          %2458 = vmatpush1.msra.mxu0 0.0
          %2459 = vmatprep.subr.mxu0 0.0
          %2460 = vmatpush1.msra.mxu0 0.0
          %2461 = vmatprep.subr.mxu0 0.0
          %2462 = vmatpush1.msra.mxu0 0.0
          %2463 = vmatprep.subr.mxu0 0.0
          %2464 = vmatpush1.msra.mxu0 0.0
          %2465 = vmatprep.subr.mxu0 0.0
          %2466 = vmatpush1.msra.mxu0 0.0
          %2467 = vmatprep.subr.mxu0 0.0
          %2468 = vmatpush1.msra.mxu0 0.0
          %2469 = vmatprep.mubr.f32.mxu0 0.0
          %2470 = vmatmul.mubr.f32.gmra.mrb[0].mxu0 %v2328
          %v2471 = vpop.f32.mrb[0].mxu0
          %v2472 = vadd.f32 0.0, %v2471
          %v2473 = vpop.f32.mrb[0].mxu0
          %v2474 = vadd.f32 0.0, %v2473
          %2475 = vdwg.mxu0
          %v2476 = vadd.f32 %v2330, %v2401
          %v2477 = vadd.f32 %v2331, %v2403
          %v2478 = vadd.f32 %v2332, %v2472
          %v2479 = vadd.f32 %v2333, %v2474
          %v2480 = vmul.f32 %v2476, 0.5
          %v2481 = vtanh.pop %v2480
          %v2482 = vmul.f32 %v2481, 0.5
          %v2483 = vadd.f32 %v2482, 0.5
          %v2484 = vmul.f32 %v2477, 0.5
          %v2485 = vtanh.pop %v2484
          %v2486 = vmul.f32 %v2485, 0.5
          %v2487 = vadd.f32 %v2486, 0.5
          %v2488 = vtanh.pop %v2478
          %v2489 = vmul.f32 %v2479, 0.5
          %v2490 = vtanh.pop %v2489
          %v2491 = vmul.f32 %v2490, 0.5
          %v2492 = vadd.f32 %v2491, 0.5
          %v2493 = vmul.f32 %v2487, %v2329
          %v2494 = vmul.f32 %v2483, %v2488
          %v2495 = vadd.f32 %v2493, %v2494
          %v2496 = vtanh.pop %v2495
          %v2497 = vmul.f32 %v2492, %v2496
          %vm2498 = vcmp.gt.s32.totalorder %v1791, 3
          %v2499 = vsel %vm2498, 1, 0
          %2500 = vset.pattern.permute.xlu0 0
          %2501 = vperm.xlu0 %2500, %v2499
          %v2502 = vpop.permute.xlu0 %2501
          %vm2503 = vcmp.eq.s32.totalorder %v2502, 1
          %v2504 = vsel %vm2503, %v2497, 0.0
          %s2505 = scalar_lea.vmem [#allocation3], 24
          %2506 = vst [vmem:[%s2505] sm:$0xff] %v2504
          %v2507 = vsel %vm2503, %v2497, %v2328
          %v2508 = vsel %vm2503, %v2495, %v2329
          %v2509 = vld [vmem:[%s1273] sm:$0xff]
          %v2510 = vld [vmem:[%s1273 + $0x8] sm:$0xff]
          %v2511 = vld [vmem:[%s1273 + $0x10] sm:$0xff]
          %v2512 = vld [vmem:[%s1273 + $0x18] sm:$0xff]
          %2513 = vmatprep.subr.mxu0 %v1726
          %2514 = vmatpush1.msra.mxu0 %v1725
          %2515 = vmatprep.subr.mxu0 %v1730
          %2516 = vmatpush1.msra.mxu0 %v1729
          %2517 = vmatprep.subr.mxu0 %v1734
          %2518 = vmatpush1.msra.mxu0 %v1733
          %2519 = vmatprep.subr.mxu0 %v1738
          %2520 = vmatpush1.msra.mxu0 %v1737
          %2521 = vmatprep.subr.mxu0 %v1742
          %2522 = vmatpush1.msra.mxu0 %v1741
          %2523 = vmatprep.subr.mxu0 %v1746
          %2524 = vmatpush1.msra.mxu0 %v1745
          %2525 = vmatprep.subr.mxu0 %v1750
          %2526 = vmatpush1.msra.mxu0 %v1749
          %2527 = vmatprep.subr.mxu0 %v1754
          %2528 = vmatpush1.msra.mxu0 %v1753
          %2529 = vmatprep.subr.mxu0 %v1758
          %2530 = vmatpush1.msra.mxu0 %v1757
          %2531 = vmatprep.subr.mxu0 %v1762
          %2532 = vmatpush1.msra.mxu0 %v1761
          %2533 = vmatprep.subr.mxu0 %v1766
          %2534 = vmatpush1.msra.mxu0 %v1765
          %2535 = vmatprep.subr.mxu0 %v1770
          %2536 = vmatpush1.msra.mxu0 %v1769
          %2537 = vmatprep.subr.mxu0 %v1774
          %2538 = vmatpush1.msra.mxu0 %v1773
          %2539 = vmatprep.subr.mxu0 %v1778
          %2540 = vmatpush1.msra.mxu0 %v1777
          %2541 = vmatprep.subr.mxu0 %v1782
          %2542 = vmatpush1.msra.mxu0 %v1781
          %2543 = vmatprep.subr.mxu0 %v1786
          %2544 = vmatpush1.msra.mxu0 %v1785
          %2545 = vmatprep.subr.mxu0 0.0
          %2546 = vmatpush1.msra.mxu0 0.0
          %2547 = vmatprep.subr.mxu0 0.0
          %2548 = vmatpush1.msra.mxu0 0.0
          %2549 = vmatprep.subr.mxu0 0.0
          %2550 = vmatpush1.msra.mxu0 0.0
          %2551 = vmatprep.subr.mxu0 0.0
          %2552 = vmatpush1.msra.mxu0 0.0
          %2553 = vmatprep.subr.mxu0 0.0
          %2554 = vmatpush1.msra.mxu0 0.0
          %2555 = vmatprep.subr.mxu0 0.0
          %2556 = vmatpush1.msra.mxu0 0.0
          %2557 = vmatprep.subr.mxu0 0.0
          %2558 = vmatpush1.msra.mxu0 0.0
          %2559 = vmatprep.subr.mxu0 0.0
          %2560 = vmatpush1.msra.mxu0 0.0
          %2561 = vmatprep.subr.mxu0 0.0
          %2562 = vmatpush1.msra.mxu0 0.0
          %2563 = vmatprep.subr.mxu0 0.0
          %2564 = vmatpush1.msra.mxu0 0.0
          %2565 = vmatprep.subr.mxu0 0.0
          %2566 = vmatpush1.msra.mxu0 0.0
          %2567 = vmatprep.subr.mxu0 0.0
          %2568 = vmatpush1.msra.mxu0 0.0
          %2569 = vmatprep.subr.mxu0 0.0
          %2570 = vmatpush1.msra.mxu0 0.0
          %2571 = vmatprep.subr.mxu0 0.0
          %2572 = vmatpush1.msra.mxu0 0.0
          %2573 = vmatprep.subr.mxu0 0.0
          %2574 = vmatpush1.msra.mxu0 0.0
          %2575 = vmatprep.subr.mxu0 0.0
          %2576 = vmatpush1.msra.mxu0 0.0
          %2577 = vmatprep.mubr.f32.mxu0 0.0
          %2578 = vmatmul.mubr.f32.gmra.mrb[0].mxu0 %v2507
          %v2579 = vpop.f32.mrb[0].mxu0
          %v2580 = vadd.f32 0.0, %v2579
          %v2581 = vpop.f32.mrb[0].mxu0
          %v2582 = vadd.f32 0.0, %v2581
          %2583 = vdwg.mxu0
          %2584 = vmatprep.subr.mxu0 %v1728
          %2585 = vmatpush1.msra.mxu0 %v1727
          %2586 = vmatprep.subr.mxu0 %v1732
          %2587 = vmatpush1.msra.mxu0 %v1731
          %2588 = vmatprep.subr.mxu0 %v1736
          %2589 = vmatpush1.msra.mxu0 %v1735
          %2590 = vmatprep.subr.mxu0 %v1740
          %2591 = vmatpush1.msra.mxu0 %v1739
          %2592 = vmatprep.subr.mxu0 %v1744
          %2593 = vmatpush1.msra.mxu0 %v1743
          %2594 = vmatprep.subr.mxu0 %v1748
          %2595 = vmatpush1.msra.mxu0 %v1747
          %2596 = vmatprep.subr.mxu0 %v1752
          %2597 = vmatpush1.msra.mxu0 %v1751
          %2598 = vmatprep.subr.mxu0 %v1756
          %2599 = vmatpush1.msra.mxu0 %v1755
          %2600 = vmatprep.subr.mxu0 %v1760
          %2601 = vmatpush1.msra.mxu0 %v1759
          %2602 = vmatprep.subr.mxu0 %v1764
          %2603 = vmatpush1.msra.mxu0 %v1763
          %2604 = vmatprep.subr.mxu0 %v1768
          %2605 = vmatpush1.msra.mxu0 %v1767
          %2606 = vmatprep.subr.mxu0 %v1772
          %2607 = vmatpush1.msra.mxu0 %v1771
          %2608 = vmatprep.subr.mxu0 %v1776
          %2609 = vmatpush1.msra.mxu0 %v1775
          %2610 = vmatprep.subr.mxu0 %v1780
          %2611 = vmatpush1.msra.mxu0 %v1779
          %2612 = vmatprep.subr.mxu0 %v1784
          %2613 = vmatpush1.msra.mxu0 %v1783
          %2614 = vmatprep.subr.mxu0 %v1788
          %2615 = vmatpush1.msra.mxu0 %v1787
          %2616 = vmatprep.subr.mxu0 0.0
          %2617 = vmatpush1.msra.mxu0 0.0
          %2618 = vmatprep.subr.mxu0 0.0
          %2619 = vmatpush1.msra.mxu0 0.0
          %2620 = vmatprep.subr.mxu0 0.0
          %2621 = vmatpush1.msra.mxu0 0.0
          %2622 = vmatprep.subr.mxu0 0.0
          %2623 = vmatpush1.msra.mxu0 0.0
          %2624 = vmatprep.subr.mxu0 0.0
          %2625 = vmatpush1.msra.mxu0 0.0
          %2626 = vmatprep.subr.mxu0 0.0
          %2627 = vmatpush1.msra.mxu0 0.0
          %2628 = vmatprep.subr.mxu0 0.0
          %2629 = vmatpush1.msra.mxu0 0.0
          %2630 = vmatprep.subr.mxu0 0.0
          %2631 = vmatpush1.msra.mxu0 0.0
          %2632 = vmatprep.subr.mxu0 0.0
          %2633 = vmatpush1.msra.mxu0 0.0
          %2634 = vmatprep.subr.mxu0 0.0
          %2635 = vmatpush1.msra.mxu0 0.0
          %2636 = vmatprep.subr.mxu0 0.0
          %2637 = vmatpush1.msra.mxu0 0.0
          %2638 = vmatprep.subr.mxu0 0.0
          %2639 = vmatpush1.msra.mxu0 0.0
          %2640 = vmatprep.subr.mxu0 0.0
          %2641 = vmatpush1.msra.mxu0 0.0
          %2642 = vmatprep.subr.mxu0 0.0
          %2643 = vmatpush1.msra.mxu0 0.0
          %2644 = vmatprep.subr.mxu0 0.0
          %2645 = vmatpush1.msra.mxu0 0.0
          %2646 = vmatprep.subr.mxu0 0.0
          %2647 = vmatpush1.msra.mxu0 0.0
          %2648 = vmatprep.mubr.f32.mxu0 0.0
          %2649 = vmatmul.mubr.f32.gmra.mrb[0].mxu0 %v2507
          %v2650 = vpop.f32.mrb[0].mxu0
          %v2651 = vadd.f32 0.0, %v2650
          %v2652 = vpop.f32.mrb[0].mxu0
          %v2653 = vadd.f32 0.0, %v2652
          %2654 = vdwg.mxu0
          %v2655 = vadd.f32 %v2509, %v2580
          %v2656 = vadd.f32 %v2510, %v2582
          %v2657 = vadd.f32 %v2511, %v2651
          %v2658 = vadd.f32 %v2512, %v2653
          %v2659 = vmul.f32 %v2655, 0.5
          %v2660 = vtanh.pop %v2659
          %v2661 = vmul.f32 %v2660, 0.5
          %v2662 = vadd.f32 %v2661, 0.5
          %v2663 = vmul.f32 %v2656, 0.5
          %v2664 = vtanh.pop %v2663
          %v2665 = vmul.f32 %v2664, 0.5
          %v2666 = vadd.f32 %v2665, 0.5
          %v2667 = vtanh.pop %v2657
          %v2668 = vmul.f32 %v2658, 0.5
          %v2669 = vtanh.pop %v2668
          %v2670 = vmul.f32 %v2669, 0.5
          %v2671 = vadd.f32 %v2670, 0.5
          %v2672 = vmul.f32 %v2666, %v2508
          %v2673 = vmul.f32 %v2662, %v2667
          %v2674 = vadd.f32 %v2672, %v2673
          %v2675 = vtanh.pop %v2674
          %v2676 = vmul.f32 %v2671, %v2675
          %vm2677 = vcmp.gt.s32.totalorder %v1791, 4
          %v2678 = vsel %vm2677, 1, 0
          %2679 = vset.pattern.permute.xlu0 0
          %2680 = vperm.xlu0 %2679, %v2678
          %v2681 = vpop.permute.xlu0 %2680
          %vm2682 = vcmp.eq.s32.totalorder %v2681, 1
          %v2683 = vsel %vm2682, %v2676, 0.0
          %s2684 = scalar_lea.vmem [#allocation3], 32
          %2685 = vst [vmem:[%s2684] sm:$0xff] %v2683
          %v2686 = vsel %vm2682, %v2676, %v2507
          %v2687 = vsel %vm2682, %v2674, %v2508
          %v2688 = vld [vmem:[%s1422] sm:$0xff]
          %v2689 = vld [vmem:[%s1422 + $0x8] sm:$0xff]
          %v2690 = vld [vmem:[%s1422 + $0x10] sm:$0xff]
          %v2691 = vld [vmem:[%s1422 + $0x18] sm:$0xff]
          %2692 = vmatprep.subr.mxu0 %v1726
          %2693 = vmatpush1.msra.mxu0 %v1725
          %2694 = vmatprep.subr.mxu0 %v1730
          %2695 = vmatpush1.msra.mxu0 %v1729
          %2696 = vmatprep.subr.mxu0 %v1734
          %2697 = vmatpush1.msra.mxu0 %v1733
          %2698 = vmatprep.subr.mxu0 %v1738
          %2699 = vmatpush1.msra.mxu0 %v1737
          %2700 = vmatprep.subr.mxu0 %v1742
          %2701 = vmatpush1.msra.mxu0 %v1741
          %2702 = vmatprep.subr.mxu0 %v1746
          %2703 = vmatpush1.msra.mxu0 %v1745
          %2704 = vmatprep.subr.mxu0 %v1750
          %2705 = vmatpush1.msra.mxu0 %v1749
          %2706 = vmatprep.subr.mxu0 %v1754
          %2707 = vmatpush1.msra.mxu0 %v1753
          %2708 = vmatprep.subr.mxu0 %v1758
          %2709 = vmatpush1.msra.mxu0 %v1757
          %2710 = vmatprep.subr.mxu0 %v1762
          %2711 = vmatpush1.msra.mxu0 %v1761
          %2712 = vmatprep.subr.mxu0 %v1766
          %2713 = vmatpush1.msra.mxu0 %v1765
          %2714 = vmatprep.subr.mxu0 %v1770
          %2715 = vmatpush1.msra.mxu0 %v1769
          %2716 = vmatprep.subr.mxu0 %v1774
          %2717 = vmatpush1.msra.mxu0 %v1773
          %2718 = vmatprep.subr.mxu0 %v1778
          %2719 = vmatpush1.msra.mxu0 %v1777
          %2720 = vmatprep.subr.mxu0 %v1782
          %2721 = vmatpush1.msra.mxu0 %v1781
          %2722 = vmatprep.subr.mxu0 %v1786
          %2723 = vmatpush1.msra.mxu0 %v1785
          %2724 = vmatprep.subr.mxu0 0.0
          %2725 = vmatpush1.msra.mxu0 0.0
          %2726 = vmatprep.subr.mxu0 0.0
          %2727 = vmatpush1.msra.mxu0 0.0
          %2728 = vmatprep.subr.mxu0 0.0
          %2729 = vmatpush1.msra.mxu0 0.0
          %2730 = vmatprep.subr.mxu0 0.0
          %2731 = vmatpush1.msra.mxu0 0.0
          %2732 = vmatprep.subr.mxu0 0.0
          %2733 = vmatpush1.msra.mxu0 0.0
          %2734 = vmatprep.subr.mxu0 0.0
          %2735 = vmatpush1.msra.mxu0 0.0
          %2736 = vmatprep.subr.mxu0 0.0
          %2737 = vmatpush1.msra.mxu0 0.0
          %2738 = vmatprep.subr.mxu0 0.0
          %2739 = vmatpush1.msra.mxu0 0.0
          %2740 = vmatprep.subr.mxu0 0.0
          %2741 = vmatpush1.msra.mxu0 0.0
          %2742 = vmatprep.subr.mxu0 0.0
          %2743 = vmatpush1.msra.mxu0 0.0
          %2744 = vmatprep.subr.mxu0 0.0
          %2745 = vmatpush1.msra.mxu0 0.0
          %2746 = vmatprep.subr.mxu0 0.0
          %2747 = vmatpush1.msra.mxu0 0.0
          %2748 = vmatprep.subr.mxu0 0.0
          %2749 = vmatpush1.msra.mxu0 0.0
          %2750 = vmatprep.subr.mxu0 0.0
          %2751 = vmatpush1.msra.mxu0 0.0
          %2752 = vmatprep.subr.mxu0 0.0
          %2753 = vmatpush1.msra.mxu0 0.0
          %2754 = vmatprep.subr.mxu0 0.0
          %2755 = vmatpush1.msra.mxu0 0.0
          %2756 = vmatprep.mubr.f32.mxu0 0.0
          %2757 = vmatmul.mubr.f32.gmra.mrb[0].mxu0 %v2686
          %v2758 = vpop.f32.mrb[0].mxu0
          %v2759 = vadd.f32 0.0, %v2758
          %v2760 = vpop.f32.mrb[0].mxu0
          %v2761 = vadd.f32 0.0, %v2760
          %2762 = vdwg.mxu0
          %2763 = vmatprep.subr.mxu0 %v1728
          %2764 = vmatpush1.msra.mxu0 %v1727
          %2765 = vmatprep.subr.mxu0 %v1732
          %2766 = vmatpush1.msra.mxu0 %v1731
          %2767 = vmatprep.subr.mxu0 %v1736
          %2768 = vmatpush1.msra.mxu0 %v1735
          %2769 = vmatprep.subr.mxu0 %v1740
          %2770 = vmatpush1.msra.mxu0 %v1739
          %2771 = vmatprep.subr.mxu0 %v1744
          %2772 = vmatpush1.msra.mxu0 %v1743
          %2773 = vmatprep.subr.mxu0 %v1748
          %2774 = vmatpush1.msra.mxu0 %v1747
          %2775 = vmatprep.subr.mxu0 %v1752
          %2776 = vmatpush1.msra.mxu0 %v1751
          %2777 = vmatprep.subr.mxu0 %v1756
          %2778 = vmatpush1.msra.mxu0 %v1755
          %2779 = vmatprep.subr.mxu0 %v1760
          %2780 = vmatpush1.msra.mxu0 %v1759
          %2781 = vmatprep.subr.mxu0 %v1764
          %2782 = vmatpush1.msra.mxu0 %v1763
          %2783 = vmatprep.subr.mxu0 %v1768
          %2784 = vmatpush1.msra.mxu0 %v1767
          %2785 = vmatprep.subr.mxu0 %v1772
          %2786 = vmatpush1.msra.mxu0 %v1771
          %2787 = vmatprep.subr.mxu0 %v1776
          %2788 = vmatpush1.msra.mxu0 %v1775
          %2789 = vmatprep.subr.mxu0 %v1780
          %2790 = vmatpush1.msra.mxu0 %v1779
          %2791 = vmatprep.subr.mxu0 %v1784
          %2792 = vmatpush1.msra.mxu0 %v1783
          %2793 = vmatprep.subr.mxu0 %v1788
          %2794 = vmatpush1.msra.mxu0 %v1787
          %2795 = vmatprep.subr.mxu0 0.0
          %2796 = vmatpush1.msra.mxu0 0.0
          %2797 = vmatprep.subr.mxu0 0.0
          %2798 = vmatpush1.msra.mxu0 0.0
          %2799 = vmatprep.subr.mxu0 0.0
          %2800 = vmatpush1.msra.mxu0 0.0
          %2801 = vmatprep.subr.mxu0 0.0
          %2802 = vmatpush1.msra.mxu0 0.0
          %2803 = vmatprep.subr.mxu0 0.0
          %2804 = vmatpush1.msra.mxu0 0.0
          %2805 = vmatprep.subr.mxu0 0.0
          %2806 = vmatpush1.msra.mxu0 0.0
          %2807 = vmatprep.subr.mxu0 0.0
          %2808 = vmatpush1.msra.mxu0 0.0
          %2809 = vmatprep.subr.mxu0 0.0
          %2810 = vmatpush1.msra.mxu0 0.0
          %2811 = vmatprep.subr.mxu0 0.0
          %2812 = vmatpush1.msra.mxu0 0.0
          %2813 = vmatprep.subr.mxu0 0.0
          %2814 = vmatpush1.msra.mxu0 0.0
          %2815 = vmatprep.subr.mxu0 0.0
          %2816 = vmatpush1.msra.mxu0 0.0
          %2817 = vmatprep.subr.mxu0 0.0
          %2818 = vmatpush1.msra.mxu0 0.0
          %2819 = vmatprep.subr.mxu0 0.0
          %2820 = vmatpush1.msra.mxu0 0.0
          %2821 = vmatprep.subr.mxu0 0.0
          %2822 = vmatpush1.msra.mxu0 0.0
          %2823 = vmatprep.subr.mxu0 0.0
          %2824 = vmatpush1.msra.mxu0 0.0
          %2825 = vmatprep.subr.mxu0 0.0
          %2826 = vmatpush1.msra.mxu0 0.0
          %2827 = vmatprep.mubr.f32.mxu0 0.0
          %2828 = vmatmul.mubr.f32.gmra.mrb[0].mxu0 %v2686
          %v2829 = vpop.f32.mrb[0].mxu0
          %v2830 = vadd.f32 0.0, %v2829
          %v2831 = vpop.f32.mrb[0].mxu0
          %v2832 = vadd.f32 0.0, %v2831
          %2833 = vdwg.mxu0
          %v2834 = vadd.f32 %v2688, %v2759
          %v2835 = vadd.f32 %v2689, %v2761
          %v2836 = vadd.f32 %v2690, %v2830
          %v2837 = vadd.f32 %v2691, %v2832
          %v2838 = vmul.f32 %v2834, 0.5
          %v2839 = vtanh.pop %v2838
          %v2840 = vmul.f32 %v2839, 0.5
          %v2841 = vadd.f32 %v2840, 0.5
          %v2842 = vmul.f32 %v2835, 0.5
          %v2843 = vtanh.pop %v2842
          %v2844 = vmul.f32 %v2843, 0.5
          %v2845 = vadd.f32 %v2844, 0.5
          %v2846 = vtanh.pop %v2836
          %v2847 = vmul.f32 %v2837, 0.5
          %v2848 = vtanh.pop %v2847
          %v2849 = vmul.f32 %v2848, 0.5
          %v2850 = vadd.f32 %v2849, 0.5
          %v2851 = vmul.f32 %v2845, %v2687
          %v2852 = vmul.f32 %v2841, %v2846
          %v2853 = vadd.f32 %v2851, %v2852
          %v2854 = vtanh.pop %v2853
          %v2855 = vmul.f32 %v2850, %v2854
          %vm2856 = vcmp.gt.s32.totalorder %v1791, 5
          %v2857 = vsel %vm2856, 1, 0
          %2858 = vset.pattern.permute.xlu0 0
          %2859 = vperm.xlu0 %2858, %v2857
          %v2860 = vpop.permute.xlu0 %2859
          %vm2861 = vcmp.eq.s32.totalorder %v2860, 1
          %v2862 = vsel %vm2861, %v2855, 0.0
          %s2863 = scalar_lea.vmem [#allocation3], 40
          %2864 = vst [vmem:[%s2863] sm:$0xff] %v2862
          %v2865 = vsel %vm2861, %v2855, %v2686
          %v2866 = vsel %vm2861, %v2853, %v2687
          %v2867 = vld [vmem:[%s1571] sm:$0xff]
          %v2868 = vld [vmem:[%s1571 + $0x8] sm:$0xff]
          %v2869 = vld [vmem:[%s1571 + $0x10] sm:$0xff]
          %v2870 = vld [vmem:[%s1571 + $0x18] sm:$0xff]
          %2871 = vmatprep.subr.mxu0 %v1726
          %2872 = vmatpush1.msra.mxu0 %v1725
          %2873 = vmatprep.subr.mxu0 %v1730
          %2874 = vmatpush1.msra.mxu0 %v1729
          %2875 = vmatprep.subr.mxu0 %v1734
          %2876 = vmatpush1.msra.mxu0 %v1733
          %2877 = vmatprep.subr.mxu0 %v1738
          %2878 = vmatpush1.msra.mxu0 %v1737
          %2879 = vmatprep.subr.mxu0 %v1742
          %2880 = vmatpush1.msra.mxu0 %v1741
          %2881 = vmatprep.subr.mxu0 %v1746
          %2882 = vmatpush1.msra.mxu0 %v1745
          %2883 = vmatprep.subr.mxu0 %v1750
          %2884 = vmatpush1.msra.mxu0 %v1749
          %2885 = vmatprep.subr.mxu0 %v1754
          %2886 = vmatpush1.msra.mxu0 %v1753
          %2887 = vmatprep.subr.mxu0 %v1758
          %2888 = vmatpush1.msra.mxu0 %v1757
          %2889 = vmatprep.subr.mxu0 %v1762
          %2890 = vmatpush1.msra.mxu0 %v1761
          %2891 = vmatprep.subr.mxu0 %v1766
          %2892 = vmatpush1.msra.mxu0 %v1765
          %2893 = vmatprep.subr.mxu0 %v1770
          %2894 = vmatpush1.msra.mxu0 %v1769
          %2895 = vmatprep.subr.mxu0 %v1774
          %2896 = vmatpush1.msra.mxu0 %v1773
          %2897 = vmatprep.subr.mxu0 %v1778
          %2898 = vmatpush1.msra.mxu0 %v1777
          %2899 = vmatprep.subr.mxu0 %v1782
          %2900 = vmatpush1.msra.mxu0 %v1781
          %2901 = vmatprep.subr.mxu0 %v1786
          %2902 = vmatpush1.msra.mxu0 %v1785
          %2903 = vmatprep.subr.mxu0 0.0
          %2904 = vmatpush1.msra.mxu0 0.0
          %2905 = vmatprep.subr.mxu0 0.0
          %2906 = vmatpush1.msra.mxu0 0.0
          %2907 = vmatprep.subr.mxu0 0.0
          %2908 = vmatpush1.msra.mxu0 0.0
          %2909 = vmatprep.subr.mxu0 0.0
          %2910 = vmatpush1.msra.mxu0 0.0
          %2911 = vmatprep.subr.mxu0 0.0
          %2912 = vmatpush1.msra.mxu0 0.0
          %2913 = vmatprep.subr.mxu0 0.0
          %2914 = vmatpush1.msra.mxu0 0.0
          %2915 = vmatprep.subr.mxu0 0.0
          %2916 = vmatpush1.msra.mxu0 0.0
          %2917 = vmatprep.subr.mxu0 0.0
          %2918 = vmatpush1.msra.mxu0 0.0
          %2919 = vmatprep.subr.mxu0 0.0
          %2920 = vmatpush1.msra.mxu0 0.0
          %2921 = vmatprep.subr.mxu0 0.0
          %2922 = vmatpush1.msra.mxu0 0.0
          %2923 = vmatprep.subr.mxu0 0.0
          %2924 = vmatpush1.msra.mxu0 0.0
          %2925 = vmatprep.subr.mxu0 0.0
          %2926 = vmatpush1.msra.mxu0 0.0
          %2927 = vmatprep.subr.mxu0 0.0
          %2928 = vmatpush1.msra.mxu0 0.0
          %2929 = vmatprep.subr.mxu0 0.0
          %2930 = vmatpush1.msra.mxu0 0.0
          %2931 = vmatprep.subr.mxu0 0.0
          %2932 = vmatpush1.msra.mxu0 0.0
          %2933 = vmatprep.subr.mxu0 0.0
          %2934 = vmatpush1.msra.mxu0 0.0
          %2935 = vmatprep.mubr.f32.mxu0 0.0
          %2936 = vmatmul.mubr.f32.gmra.mrb[0].mxu0 %v2865
          %v2937 = vpop.f32.mrb[0].mxu0
          %v2938 = vadd.f32 0.0, %v2937
          %v2939 = vpop.f32.mrb[0].mxu0
          %v2940 = vadd.f32 0.0, %v2939
          %2941 = vdwg.mxu0
          %2942 = vmatprep.subr.mxu0 %v1728
          %2943 = vmatpush1.msra.mxu0 %v1727
          %2944 = vmatprep.subr.mxu0 %v1732
          %2945 = vmatpush1.msra.mxu0 %v1731
          %2946 = vmatprep.subr.mxu0 %v1736
          %2947 = vmatpush1.msra.mxu0 %v1735
          %2948 = vmatprep.subr.mxu0 %v1740
          %2949 = vmatpush1.msra.mxu0 %v1739
          %2950 = vmatprep.subr.mxu0 %v1744
          %2951 = vmatpush1.msra.mxu0 %v1743
          %2952 = vmatprep.subr.mxu0 %v1748
          %2953 = vmatpush1.msra.mxu0 %v1747
          %2954 = vmatprep.subr.mxu0 %v1752
          %2955 = vmatpush1.msra.mxu0 %v1751
          %2956 = vmatprep.subr.mxu0 %v1756
          %2957 = vmatpush1.msra.mxu0 %v1755
          %2958 = vmatprep.subr.mxu0 %v1760
          %2959 = vmatpush1.msra.mxu0 %v1759
          %2960 = vmatprep.subr.mxu0 %v1764
          %2961 = vmatpush1.msra.mxu0 %v1763
          %2962 = vmatprep.subr.mxu0 %v1768
          %2963 = vmatpush1.msra.mxu0 %v1767
          %2964 = vmatprep.subr.mxu0 %v1772
          %2965 = vmatpush1.msra.mxu0 %v1771
          %2966 = vmatprep.subr.mxu0 %v1776
          %2967 = vmatpush1.msra.mxu0 %v1775
          %2968 = vmatprep.subr.mxu0 %v1780
          %2969 = vmatpush1.msra.mxu0 %v1779
          %2970 = vmatprep.subr.mxu0 %v1784
          %2971 = vmatpush1.msra.mxu0 %v1783
          %2972 = vmatprep.subr.mxu0 %v1788
          %2973 = vmatpush1.msra.mxu0 %v1787
          %2974 = vmatprep.subr.mxu0 0.0
          %2975 = vmatpush1.msra.mxu0 0.0
          %2976 = vmatprep.subr.mxu0 0.0
          %2977 = vmatpush1.msra.mxu0 0.0
          %2978 = vmatprep.subr.mxu0 0.0
          %2979 = vmatpush1.msra.mxu0 0.0
          %2980 = vmatprep.subr.mxu0 0.0
          %2981 = vmatpush1.msra.mxu0 0.0
          %2982 = vmatprep.subr.mxu0 0.0
          %2983 = vmatpush1.msra.mxu0 0.0
          %2984 = vmatprep.subr.mxu0 0.0
          %2985 = vmatpush1.msra.mxu0 0.0
          %2986 = vmatprep.subr.mxu0 0.0
          %2987 = vmatpush1.msra.mxu0 0.0
          %2988 = vmatprep.subr.mxu0 0.0
          %2989 = vmatpush1.msra.mxu0 0.0
          %2990 = vmatprep.subr.mxu0 0.0
          %2991 = vmatpush1.msra.mxu0 0.0
          %2992 = vmatprep.subr.mxu0 0.0
          %2993 = vmatpush1.msra.mxu0 0.0
          %2994 = vmatprep.subr.mxu0 0.0
          %2995 = vmatpush1.msra.mxu0 0.0
          %2996 = vmatprep.subr.mxu0 0.0
          %2997 = vmatpush1.msra.mxu0 0.0
          %2998 = vmatprep.subr.mxu0 0.0
          %2999 = vmatpush1.msra.mxu0 0.0
          %3000 = vmatprep.subr.mxu0 0.0
          %3001 = vmatpush1.msra.mxu0 0.0
          %3002 = vmatprep.subr.mxu0 0.0
          %3003 = vmatpush1.msra.mxu0 0.0
          %3004 = vmatprep.subr.mxu0 0.0
          %3005 = vmatpush1.msra.mxu0 0.0
          %3006 = vmatprep.mubr.f32.mxu0 0.0
          %3007 = vmatmul.mubr.f32.gmra.mrb[0].mxu0 %v2865
          %v3008 = vpop.f32.mrb[0].mxu0
          %v3009 = vadd.f32 0.0, %v3008
          %v3010 = vpop.f32.mrb[0].mxu0
          %v3011 = vadd.f32 0.0, %v3010
          %3012 = vdwg.mxu0
          %v3013 = vadd.f32 %v2867, %v2938
          %v3014 = vadd.f32 %v2868, %v2940
          %v3015 = vadd.f32 %v2869, %v3009
          %v3016 = vadd.f32 %v2870, %v3011
          %v3017 = vmul.f32 %v3013, 0.5
          %v3018 = vtanh.pop %v3017
          %v3019 = vmul.f32 %v3018, 0.5
          %v3020 = vadd.f32 %v3019, 0.5
          %v3021 = vmul.f32 %v3014, 0.5
          %v3022 = vtanh.pop %v3021
          %v3023 = vmul.f32 %v3022, 0.5
          %v3024 = vadd.f32 %v3023, 0.5
          %v3025 = vtanh.pop %v3015
          %v3026 = vmul.f32 %v3016, 0.5
          %v3027 = vtanh.pop %v3026
          %v3028 = vmul.f32 %v3027, 0.5
          %v3029 = vadd.f32 %v3028, 0.5
          %v3030 = vmul.f32 %v3024, %v2866
          %v3031 = vmul.f32 %v3020, %v3025
          %v3032 = vadd.f32 %v3030, %v3031
          %v3033 = vtanh.pop %v3032
          %v3034 = vmul.f32 %v3029, %v3033
          %vm3035 = vcmp.gt.s32.totalorder %v1791, 6
          %v3036 = vsel %vm3035, 1, 0
          %3037 = vset.pattern.permute.xlu0 0
          %3038 = vperm.xlu0 %3037, %v3036
          %v3039 = vpop.permute.xlu0 %3038
          %vm3040 = vcmp.eq.s32.totalorder %v3039, 1
          %v3041 = vsel %vm3040, %v3034, 0.0
          %s3042 = scalar_lea.vmem [#allocation3], 48
          %3043 = vst [vmem:[%s3042] sm:$0xff] %v3041
          %v3044 = vsel %vm3040, %v3034, %v2865
          %v3045 = vsel %vm3040, %v3032, %v2866
          %v3046 = vld [vmem:[%s1720] sm:$0xff]
          %v3047 = vld [vmem:[%s1720 + $0x8] sm:$0xff]
          %v3048 = vld [vmem:[%s1720 + $0x10] sm:$0xff]
          %v3049 = vld [vmem:[%s1720 + $0x18] sm:$0xff]
          %3050 = vmatprep.subr.mxu0 %v1726
          %3051 = vmatpush1.msra.mxu0 %v1725
          %3052 = vmatprep.subr.mxu0 %v1730
          %3053 = vmatpush1.msra.mxu0 %v1729
          %3054 = vmatprep.subr.mxu0 %v1734
          %3055 = vmatpush1.msra.mxu0 %v1733
          %3056 = vmatprep.subr.mxu0 %v1738
          %3057 = vmatpush1.msra.mxu0 %v1737
          %3058 = vmatprep.subr.mxu0 %v1742
          %3059 = vmatpush1.msra.mxu0 %v1741
          %3060 = vmatprep.subr.mxu0 %v1746
          %3061 = vmatpush1.msra.mxu0 %v1745
          %3062 = vmatprep.subr.mxu0 %v1750
          %3063 = vmatpush1.msra.mxu0 %v1749
          %3064 = vmatprep.subr.mxu0 %v1754
          %3065 = vmatpush1.msra.mxu0 %v1753
          %3066 = vmatprep.subr.mxu0 %v1758
          %3067 = vmatpush1.msra.mxu0 %v1757
          %3068 = vmatprep.subr.mxu0 %v1762
          %3069 = vmatpush1.msra.mxu0 %v1761
          %3070 = vmatprep.subr.mxu0 %v1766
          %3071 = vmatpush1.msra.mxu0 %v1765
          %3072 = vmatprep.subr.mxu0 %v1770
          %3073 = vmatpush1.msra.mxu0 %v1769
          %3074 = vmatprep.subr.mxu0 %v1774
          %3075 = vmatpush1.msra.mxu0 %v1773
          %3076 = vmatprep.subr.mxu0 %v1778
          %3077 = vmatpush1.msra.mxu0 %v1777
          %3078 = vmatprep.subr.mxu0 %v1782
          %3079 = vmatpush1.msra.mxu0 %v1781
          %3080 = vmatprep.subr.mxu0 %v1786
          %3081 = vmatpush1.msra.mxu0 %v1785
          %3082 = vmatprep.subr.mxu0 0.0
          %3083 = vmatpush1.msra.mxu0 0.0
          %3084 = vmatprep.subr.mxu0 0.0
          %3085 = vmatpush1.msra.mxu0 0.0
          %3086 = vmatprep.subr.mxu0 0.0
          %3087 = vmatpush1.msra.mxu0 0.0
          %3088 = vmatprep.subr.mxu0 0.0
          %3089 = vmatpush1.msra.mxu0 0.0
          %3090 = vmatprep.subr.mxu0 0.0
          %3091 = vmatpush1.msra.mxu0 0.0
          %3092 = vmatprep.subr.mxu0 0.0
          %3093 = vmatpush1.msra.mxu0 0.0
          %3094 = vmatprep.subr.mxu0 0.0
          %3095 = vmatpush1.msra.mxu0 0.0
          %3096 = vmatprep.subr.mxu0 0.0
          %3097 = vmatpush1.msra.mxu0 0.0
          %3098 = vmatprep.subr.mxu0 0.0
          %3099 = vmatpush1.msra.mxu0 0.0
          %3100 = vmatprep.subr.mxu0 0.0
          %3101 = vmatpush1.msra.mxu0 0.0
          %3102 = vmatprep.subr.mxu0 0.0
          %3103 = vmatpush1.msra.mxu0 0.0
          %3104 = vmatprep.subr.mxu0 0.0
          %3105 = vmatpush1.msra.mxu0 0.0
          %3106 = vmatprep.subr.mxu0 0.0
          %3107 = vmatpush1.msra.mxu0 0.0
          %3108 = vmatprep.subr.mxu0 0.0
          %3109 = vmatpush1.msra.mxu0 0.0
          %3110 = vmatprep.subr.mxu0 0.0
          %3111 = vmatpush1.msra.mxu0 0.0
          %3112 = vmatprep.subr.mxu0 0.0
          %3113 = vmatpush1.msra.mxu0 0.0
          %3114 = vmatprep.mubr.f32.mxu0 0.0
          %3115 = vmatmul.mubr.f32.gmra.mrb[0].mxu0 %v3044
          %v3116 = vpop.f32.mrb[0].mxu0
          %v3117 = vadd.f32 0.0, %v3116
          %v3118 = vpop.f32.mrb[0].mxu0
          %v3119 = vadd.f32 0.0, %v3118
          %3120 = vdwg.mxu0
          %3121 = vmatprep.subr.mxu0 %v1728
          %3122 = vmatpush1.msra.mxu0 %v1727
          %3123 = vmatprep.subr.mxu0 %v1732
          %3124 = vmatpush1.msra.mxu0 %v1731
          %3125 = vmatprep.subr.mxu0 %v1736
          %3126 = vmatpush1.msra.mxu0 %v1735
          %3127 = vmatprep.subr.mxu0 %v1740
          %3128 = vmatpush1.msra.mxu0 %v1739
          %3129 = vmatprep.subr.mxu0 %v1744
          %3130 = vmatpush1.msra.mxu0 %v1743
          %3131 = vmatprep.subr.mxu0 %v1748
          %3132 = vmatpush1.msra.mxu0 %v1747
          %3133 = vmatprep.subr.mxu0 %v1752
          %3134 = vmatpush1.msra.mxu0 %v1751
          %3135 = vmatprep.subr.mxu0 %v1756
          %3136 = vmatpush1.msra.mxu0 %v1755
          %3137 = vmatprep.subr.mxu0 %v1760
          %3138 = vmatpush1.msra.mxu0 %v1759
          %3139 = vmatprep.subr.mxu0 %v1764
          %3140 = vmatpush1.msra.mxu0 %v1763
          %3141 = vmatprep.subr.mxu0 %v1768
          %3142 = vmatpush1.msra.mxu0 %v1767
          %3143 = vmatprep.subr.mxu0 %v1772
          %3144 = vmatpush1.msra.mxu0 %v1771
          %3145 = vmatprep.subr.mxu0 %v1776
          %3146 = vmatpush1.msra.mxu0 %v1775
          %3147 = vmatprep.subr.mxu0 %v1780
          %3148 = vmatpush1.msra.mxu0 %v1779
          %3149 = vmatprep.subr.mxu0 %v1784
          %3150 = vmatpush1.msra.mxu0 %v1783
          %3151 = vmatprep.subr.mxu0 %v1788
          %3152 = vmatpush1.msra.mxu0 %v1787
          %3153 = vmatprep.subr.mxu0 0.0
          %3154 = vmatpush1.msra.mxu0 0.0
          %3155 = vmatprep.subr.mxu0 0.0
          %3156 = vmatpush1.msra.mxu0 0.0
          %3157 = vmatprep.subr.mxu0 0.0
          %3158 = vmatpush1.msra.mxu0 0.0
          %3159 = vmatprep.subr.mxu0 0.0
          %3160 = vmatpush1.msra.mxu0 0.0
          %3161 = vmatprep.subr.mxu0 0.0
          %3162 = vmatpush1.msra.mxu0 0.0
          %3163 = vmatprep.subr.mxu0 0.0
          %3164 = vmatpush1.msra.mxu0 0.0
          %3165 = vmatprep.subr.mxu0 0.0
          %3166 = vmatpush1.msra.mxu0 0.0
          %3167 = vmatprep.subr.mxu0 0.0
          %3168 = vmatpush1.msra.mxu0 0.0
          %3169 = vmatprep.subr.mxu0 0.0
          %3170 = vmatpush1.msra.mxu0 0.0
          %3171 = vmatprep.subr.mxu0 0.0
          %3172 = vmatpush1.msra.mxu0 0.0
          %3173 = vmatprep.subr.mxu0 0.0
          %3174 = vmatpush1.msra.mxu0 0.0
          %3175 = vmatprep.subr.mxu0 0.0
          %3176 = vmatpush1.msra.mxu0 0.0
          %3177 = vmatprep.subr.mxu0 0.0
          %3178 = vmatpush1.msra.mxu0 0.0
          %3179 = vmatprep.subr.mxu0 0.0
          %3180 = vmatpush1.msra.mxu0 0.0
          %3181 = vmatprep.subr.mxu0 0.0
          %3182 = vmatpush1.msra.mxu0 0.0
          %3183 = vmatprep.subr.mxu0 0.0
          %3184 = vmatpush1.msra.mxu0 0.0
          %3185 = vmatprep.mubr.f32.mxu0 0.0
          %3186 = vmatmul.mubr.f32.gmra.mrb[0].mxu0 %v3044
          %v3187 = vpop.f32.mrb[0].mxu0
          %v3188 = vadd.f32 0.0, %v3187
          %v3189 = vpop.f32.mrb[0].mxu0
          %v3190 = vadd.f32 0.0, %v3189
          %3191 = vdwg.mxu0
          %v3192 = vadd.f32 %v3046, %v3117
          %v3193 = vadd.f32 %v3047, %v3119
          %v3194 = vadd.f32 %v3048, %v3188
          %v3195 = vadd.f32 %v3049, %v3190
          %v3196 = vmul.f32 %v3192, 0.5
          %v3197 = vtanh.pop %v3196
          %v3198 = vmul.f32 %v3197, 0.5
          %v3199 = vadd.f32 %v3198, 0.5
          %v3200 = vmul.f32 %v3193, 0.5
          %v3201 = vtanh.pop %v3200
          %v3202 = vmul.f32 %v3201, 0.5
          %v3203 = vadd.f32 %v3202, 0.5
          %v3204 = vtanh.pop %v3194
          %v3205 = vmul.f32 %v3195, 0.5
          %v3206 = vtanh.pop %v3205
          %v3207 = vmul.f32 %v3206, 0.5
          %v3208 = vadd.f32 %v3207, 0.5
          %v3209 = vmul.f32 %v3203, %v3045
          %v3210 = vmul.f32 %v3199, %v3204
          %v3211 = vadd.f32 %v3209, %v3210
          %v3212 = vtanh.pop %v3211
          %v3213 = vmul.f32 %v3208, %v3212
          %vm3214 = vcmp.gt.s32.totalorder %v1791, 7
          %v3215 = vsel %vm3214, 1, 0
          %3216 = vset.pattern.permute.xlu0 0
          %3217 = vperm.xlu0 %3216, %v3215
          %v3218 = vpop.permute.xlu0 %3217
          %vm3219 = vcmp.eq.s32.totalorder %v3218, 1
          %v3220 = vsel %vm3219, %v3213, 0.0
          %s3221 = scalar_lea.vmem [#allocation3], 56
          %3222 = vst [vmem:[%s3221] sm:$0xff] %v3220
          %v3223 = vsel %vm3219, %v3213, %v3044
          %v3224 = vsel %vm3219, %v3211, %v3045
          %3225 = vst [vmem:[#allocation4] sm:$0xff] %v3223
          %3226 = vst [vmem:[#allocation5] sm:$0xff] %v3224
          %v3227 = vld [vmem:[#allocation3] sm:$0xff]
          %v3229 = vcombine.high %v3227, %v3227
          %v3231 = vunpack.c.l.s4 1966171168
          %v3232 = vunpack.c.0.s8 %v3231
          %v3233 = vlaneseq
          %v3234 = vshrl.u32 %v3233, 7
          %v3235 = vsub.s32 %v3232, %v3234
          %v3236 = vrot.slane %v3227, %v3235
          %v3238 = vunpack.c.l.s4 1966171168
          %v3239 = vunpack.c.0.s8 %v3238
          %v3240 = vlaneseq
          %v3241 = vshrl.u32 %v3240, 7
          %v3242 = vsub.s32 %v3239, %v3241
          %v3243 = vrot.slane %v3229, %v3242
          %v3244 = vcombine.high %v3236, %v3236
          %v3245 = vcombine.high %v3243, %v3243
          %v3247 = vunpack.c.l.s4 1966171168
          %v3248 = vunpack.c.0.s8 %v3247
          %v3249 = vlaneseq
          %v3250 = vshrl.u32 %v3249, 7
          %v3251 = vsub.s32 %v3248, %v3250
          %v3252 = vrot.slane %v3236, %v3251
          %v3254 = vunpack.c.l.s4 1966171168
          %v3255 = vunpack.c.0.s8 %v3254
          %v3256 = vlaneseq
          %v3257 = vshrl.u32 %v3256, 7
          %v3258 = vsub.s32 %v3255, %v3257
          %v3259 = vrot.slane %v3243, %v3258
          %v3261 = vunpack.c.l.s4 1966171168
          %v3262 = vunpack.c.0.s8 %v3261
          %v3263 = vlaneseq
          %v3264 = vshrl.u32 %v3263, 7
          %v3265 = vsub.s32 %v3262, %v3264
          %v3266 = vrot.slane %v3244, %v3265
          %v3268 = vunpack.c.l.s4 1966171168
          %v3269 = vunpack.c.0.s8 %v3268
          %v3270 = vlaneseq
          %v3271 = vshrl.u32 %v3270, 7
          %v3272 = vsub.s32 %v3269, %v3271
          %v3273 = vrot.slane %v3245, %v3272
          %v3274 = vcombine.high %v3252, %v3252
          %v3275 = vcombine.high %v3259, %v3259
          %v3276 = vcombine.high %v3266, %v3266
          %v3277 = vcombine.high %v3273, %v3273
          %3286 = vst [vmem:[%s390] sm:$0x1] %v3252
          %3287 = vst [vmem:[%s390 + $0x8] sm:$0x1] %v3266
          %3288 = vst [vmem:[%s390 + $0x10] sm:$0x1] %v3274
          %3289 = vst [vmem:[%s390 + $0x18] sm:$0x1] %v3276
          %3290 = vst [vmem:[%s390 + $0x20] sm:$0x1] %v3259
          %3291 = vst [vmem:[%s390 + $0x28] sm:$0x1] %v3273
          %3292 = vst [vmem:[%s390 + $0x30] sm:$0x1] %v3275
          %3293 = vst [vmem:[%s390 + $0x38] sm:$0x1] %v3277
          %v3294 = vld [vmem:[%s2147] sm:$0xff]
          %v3296 = vcombine.high %v3294, %v3294
          %v3298 = vunpack.c.l.s4 1966171168
          %v3299 = vunpack.c.0.s8 %v3298
          %v3300 = vlaneseq
          %v3301 = vshrl.u32 %v3300, 7
          %v3302 = vsub.s32 %v3299, %v3301
          %v3303 = vrot.slane %v3294, %v3302
          %v3305 = vunpack.c.l.s4 1966171168
          %v3306 = vunpack.c.0.s8 %v3305
          %v3307 = vlaneseq
          %v3308 = vshrl.u32 %v3307, 7
          %v3309 = vsub.s32 %v3306, %v3308
          %v3310 = vrot.slane %v3296, %v3309
          %v3311 = vcombine.high %v3303, %v3303
          %v3312 = vcombine.high %v3310, %v3310
          %v3314 = vunpack.c.l.s4 1966171168
          %v3315 = vunpack.c.0.s8 %v3314
          %v3316 = vlaneseq
          %v3317 = vshrl.u32 %v3316, 7
          %v3318 = vsub.s32 %v3315, %v3317
          %v3319 = vrot.slane %v3303, %v3318
          %v3321 = vunpack.c.l.s4 1966171168
          %v3322 = vunpack.c.0.s8 %v3321
          %v3323 = vlaneseq
          %v3324 = vshrl.u32 %v3323, 7
          %v3325 = vsub.s32 %v3322, %v3324
          %v3326 = vrot.slane %v3310, %v3325
          %v3328 = vunpack.c.l.s4 1966171168
          %v3329 = vunpack.c.0.s8 %v3328
          %v3330 = vlaneseq
          %v3331 = vshrl.u32 %v3330, 7
          %v3332 = vsub.s32 %v3329, %v3331
          %v3333 = vrot.slane %v3311, %v3332
          %v3335 = vunpack.c.l.s4 1966171168
          %v3336 = vunpack.c.0.s8 %v3335
          %v3337 = vlaneseq
          %v3338 = vshrl.u32 %v3337, 7
          %v3339 = vsub.s32 %v3336, %v3338
          %v3340 = vrot.slane %v3312, %v3339
          %v3341 = vcombine.high %v3319, %v3319
          %v3342 = vcombine.high %v3326, %v3326
          %v3343 = vcombine.high %v3333, %v3333
          %v3344 = vcombine.high %v3340, %v3340
          %3353 = vst [vmem:[%s390 + $0x1] sm:$0x1] %v3319
          %3354 = vst [vmem:[%s390 + $0x9] sm:$0x1] %v3333
          %3355 = vst [vmem:[%s390 + $0x11] sm:$0x1] %v3341
          %3356 = vst [vmem:[%s390 + $0x19] sm:$0x1] %v3343
          %3357 = vst [vmem:[%s390 + $0x21] sm:$0x1] %v3326
          %3358 = vst [vmem:[%s390 + $0x29] sm:$0x1] %v3340
          %3359 = vst [vmem:[%s390 + $0x31] sm:$0x1] %v3342
          %3360 = vst [vmem:[%s390 + $0x39] sm:$0x1] %v3344
          %v3361 = vld [vmem:[%s2326] sm:$0xff]
          %v3363 = vcombine.high %v3361, %v3361
          %v3365 = vunpack.c.l.s4 1966171168
          %v3366 = vunpack.c.0.s8 %v3365
          %v3367 = vlaneseq
          %v3368 = vshrl.u32 %v3367, 7
          %v3369 = vsub.s32 %v3366, %v3368
          %v3370 = vrot.slane %v3361, %v3369
          %v3372 = vunpack.c.l.s4 1966171168
          %v3373 = vunpack.c.0.s8 %v3372
          %v3374 = vlaneseq
          %v3375 = vshrl.u32 %v3374, 7
          %v3376 = vsub.s32 %v3373, %v3375
          %v3377 = vrot.slane %v3363, %v3376
          %v3378 = vcombine.high %v3370, %v3370
          %v3379 = vcombine.high %v3377, %v3377
          %v3381 = vunpack.c.l.s4 1966171168
          %v3382 = vunpack.c.0.s8 %v3381
          %v3383 = vlaneseq
          %v3384 = vshrl.u32 %v3383, 7
          %v3385 = vsub.s32 %v3382, %v3384
          %v3386 = vrot.slane %v3370, %v3385
          %v3388 = vunpack.c.l.s4 1966171168
          %v3389 = vunpack.c.0.s8 %v3388
          %v3390 = vlaneseq
          %v3391 = vshrl.u32 %v3390, 7
          %v3392 = vsub.s32 %v3389, %v3391
          %v3393 = vrot.slane %v3377, %v3392
          %v3395 = vunpack.c.l.s4 1966171168
          %v3396 = vunpack.c.0.s8 %v3395
          %v3397 = vlaneseq
          %v3398 = vshrl.u32 %v3397, 7
          %v3399 = vsub.s32 %v3396, %v3398
          %v3400 = vrot.slane %v3378, %v3399
          %v3402 = vunpack.c.l.s4 1966171168
          %v3403 = vunpack.c.0.s8 %v3402
          %v3404 = vlaneseq
          %v3405 = vshrl.u32 %v3404, 7
          %v3406 = vsub.s32 %v3403, %v3405
          %v3407 = vrot.slane %v3379, %v3406
          %v3408 = vcombine.high %v3386, %v3386
          %v3409 = vcombine.high %v3393, %v3393
          %v3410 = vcombine.high %v3400, %v3400
          %v3411 = vcombine.high %v3407, %v3407
          %3420 = vst [vmem:[%s390 + $0x2] sm:$0x1] %v3386
          %3421 = vst [vmem:[%s390 + $0xa] sm:$0x1] %v3400
          %3422 = vst [vmem:[%s390 + $0x12] sm:$0x1] %v3408
          %3423 = vst [vmem:[%s390 + $0x1a] sm:$0x1] %v3410
          %3424 = vst [vmem:[%s390 + $0x22] sm:$0x1] %v3393
          %3425 = vst [vmem:[%s390 + $0x2a] sm:$0x1] %v3407
          %3426 = vst [vmem:[%s390 + $0x32] sm:$0x1] %v3409
          %3427 = vst [vmem:[%s390 + $0x3a] sm:$0x1] %v3411
          %v3428 = vld [vmem:[%s2505] sm:$0xff]
          %v3430 = vcombine.high %v3428, %v3428
          %v3432 = vunpack.c.l.s4 1966171168
          %v3433 = vunpack.c.0.s8 %v3432
          %v3434 = vlaneseq
          %v3435 = vshrl.u32 %v3434, 7
          %v3436 = vsub.s32 %v3433, %v3435
          %v3437 = vrot.slane %v3428, %v3436
          %v3439 = vunpack.c.l.s4 1966171168
          %v3440 = vunpack.c.0.s8 %v3439
          %v3441 = vlaneseq
          %v3442 = vshrl.u32 %v3441, 7
          %v3443 = vsub.s32 %v3440, %v3442
          %v3444 = vrot.slane %v3430, %v3443
          %v3445 = vcombine.high %v3437, %v3437
          %v3446 = vcombine.high %v3444, %v3444
          %v3448 = vunpack.c.l.s4 1966171168
          %v3449 = vunpack.c.0.s8 %v3448
          %v3450 = vlaneseq
          %v3451 = vshrl.u32 %v3450, 7
          %v3452 = vsub.s32 %v3449, %v3451
          %v3453 = vrot.slane %v3437, %v3452
          %v3455 = vunpack.c.l.s4 1966171168
          %v3456 = vunpack.c.0.s8 %v3455
          %v3457 = vlaneseq
          %v3458 = vshrl.u32 %v3457, 7
          %v3459 = vsub.s32 %v3456, %v3458
          %v3460 = vrot.slane %v3444, %v3459
          %v3462 = vunpack.c.l.s4 1966171168
          %v3463 = vunpack.c.0.s8 %v3462
          %v3464 = vlaneseq
          %v3465 = vshrl.u32 %v3464, 7
          %v3466 = vsub.s32 %v3463, %v3465
          %v3467 = vrot.slane %v3445, %v3466
          %v3469 = vunpack.c.l.s4 1966171168
          %v3470 = vunpack.c.0.s8 %v3469
          %v3471 = vlaneseq
          %v3472 = vshrl.u32 %v3471, 7
          %v3473 = vsub.s32 %v3470, %v3472
          %v3474 = vrot.slane %v3446, %v3473
          %v3475 = vcombine.high %v3453, %v3453
          %v3476 = vcombine.high %v3460, %v3460
          %v3477 = vcombine.high %v3467, %v3467
          %v3478 = vcombine.high %v3474, %v3474
          %3487 = vst [vmem:[%s390 + $0x3] sm:$0x1] %v3453
          %3488 = vst [vmem:[%s390 + $0xb] sm:$0x1] %v3467
          %3489 = vst [vmem:[%s390 + $0x13] sm:$0x1] %v3475
          %3490 = vst [vmem:[%s390 + $0x1b] sm:$0x1] %v3477
          %3491 = vst [vmem:[%s390 + $0x23] sm:$0x1] %v3460
          %3492 = vst [vmem:[%s390 + $0x2b] sm:$0x1] %v3474
          %3493 = vst [vmem:[%s390 + $0x33] sm:$0x1] %v3476
          %3494 = vst [vmem:[%s390 + $0x3b] sm:$0x1] %v3478
          %v3495 = vld [vmem:[%s2684] sm:$0xff]
          %v3497 = vcombine.high %v3495, %v3495
          %v3499 = vunpack.c.l.s4 1966171168
          %v3500 = vunpack.c.0.s8 %v3499
          %v3501 = vlaneseq
          %v3502 = vshrl.u32 %v3501, 7
          %v3503 = vsub.s32 %v3500, %v3502
          %v3504 = vrot.slane %v3495, %v3503
          %v3506 = vunpack.c.l.s4 1966171168
          %v3507 = vunpack.c.0.s8 %v3506
          %v3508 = vlaneseq
          %v3509 = vshrl.u32 %v3508, 7
          %v3510 = vsub.s32 %v3507, %v3509
          %v3511 = vrot.slane %v3497, %v3510
          %v3512 = vcombine.high %v3504, %v3504
          %v3513 = vcombine.high %v3511, %v3511
          %v3515 = vunpack.c.l.s4 1966171168
          %v3516 = vunpack.c.0.s8 %v3515
          %v3517 = vlaneseq
          %v3518 = vshrl.u32 %v3517, 7
          %v3519 = vsub.s32 %v3516, %v3518
          %v3520 = vrot.slane %v3504, %v3519
          %v3522 = vunpack.c.l.s4 1966171168
          %v3523 = vunpack.c.0.s8 %v3522
          %v3524 = vlaneseq
          %v3525 = vshrl.u32 %v3524, 7
          %v3526 = vsub.s32 %v3523, %v3525
          %v3527 = vrot.slane %v3511, %v3526
          %v3529 = vunpack.c.l.s4 1966171168
          %v3530 = vunpack.c.0.s8 %v3529
          %v3531 = vlaneseq
          %v3532 = vshrl.u32 %v3531, 7
          %v3533 = vsub.s32 %v3530, %v3532
          %v3534 = vrot.slane %v3512, %v3533
          %v3536 = vunpack.c.l.s4 1966171168
          %v3537 = vunpack.c.0.s8 %v3536
          %v3538 = vlaneseq
          %v3539 = vshrl.u32 %v3538, 7
          %v3540 = vsub.s32 %v3537, %v3539
          %v3541 = vrot.slane %v3513, %v3540
          %v3542 = vcombine.high %v3520, %v3520
          %v3543 = vcombine.high %v3527, %v3527
          %v3544 = vcombine.high %v3534, %v3534
          %v3545 = vcombine.high %v3541, %v3541
          %3554 = vst [vmem:[%s390 + $0x4] sm:$0x1] %v3520
          %3555 = vst [vmem:[%s390 + $0xc] sm:$0x1] %v3534
          %3556 = vst [vmem:[%s390 + $0x14] sm:$0x1] %v3542
          %3557 = vst [vmem:[%s390 + $0x1c] sm:$0x1] %v3544
          %3558 = vst [vmem:[%s390 + $0x24] sm:$0x1] %v3527
          %3559 = vst [vmem:[%s390 + $0x2c] sm:$0x1] %v3541
          %3560 = vst [vmem:[%s390 + $0x34] sm:$0x1] %v3543
          %3561 = vst [vmem:[%s390 + $0x3c] sm:$0x1] %v3545
          %v3562 = vld [vmem:[%s2863] sm:$0xff]
          %v3564 = vcombine.high %v3562, %v3562
          %v3566 = vunpack.c.l.s4 1966171168
          %v3567 = vunpack.c.0.s8 %v3566
          %v3568 = vlaneseq
          %v3569 = vshrl.u32 %v3568, 7
          %v3570 = vsub.s32 %v3567, %v3569
          %v3571 = vrot.slane %v3562, %v3570
          %v3573 = vunpack.c.l.s4 1966171168
          %v3574 = vunpack.c.0.s8 %v3573
          %v3575 = vlaneseq
          %v3576 = vshrl.u32 %v3575, 7
          %v3577 = vsub.s32 %v3574, %v3576
          %v3578 = vrot.slane %v3564, %v3577
          %v3579 = vcombine.high %v3571, %v3571
          %v3580 = vcombine.high %v3578, %v3578
          %v3582 = vunpack.c.l.s4 1966171168
          %v3583 = vunpack.c.0.s8 %v3582
          %v3584 = vlaneseq
          %v3585 = vshrl.u32 %v3584, 7
          %v3586 = vsub.s32 %v3583, %v3585
          %v3587 = vrot.slane %v3571, %v3586
          %v3589 = vunpack.c.l.s4 1966171168
          %v3590 = vunpack.c.0.s8 %v3589
          %v3591 = vlaneseq
          %v3592 = vshrl.u32 %v3591, 7
          %v3593 = vsub.s32 %v3590, %v3592
          %v3594 = vrot.slane %v3578, %v3593
          %v3596 = vunpack.c.l.s4 1966171168
          %v3597 = vunpack.c.0.s8 %v3596
          %v3598 = vlaneseq
          %v3599 = vshrl.u32 %v3598, 7
          %v3600 = vsub.s32 %v3597, %v3599
          %v3601 = vrot.slane %v3579, %v3600
          %v3603 = vunpack.c.l.s4 1966171168
          %v3604 = vunpack.c.0.s8 %v3603
          %v3605 = vlaneseq
          %v3606 = vshrl.u32 %v3605, 7
          %v3607 = vsub.s32 %v3604, %v3606
          %v3608 = vrot.slane %v3580, %v3607
          %v3609 = vcombine.high %v3587, %v3587
          %v3610 = vcombine.high %v3594, %v3594
          %v3611 = vcombine.high %v3601, %v3601
          %v3612 = vcombine.high %v3608, %v3608
          %3621 = vst [vmem:[%s390 + $0x5] sm:$0x1] %v3587
          %3622 = vst [vmem:[%s390 + $0xd] sm:$0x1] %v3601
          %3623 = vst [vmem:[%s390 + $0x15] sm:$0x1] %v3609
          %3624 = vst [vmem:[%s390 + $0x1d] sm:$0x1] %v3611
          %3625 = vst [vmem:[%s390 + $0x25] sm:$0x1] %v3594
          %3626 = vst [vmem:[%s390 + $0x2d] sm:$0x1] %v3608
          %3627 = vst [vmem:[%s390 + $0x35] sm:$0x1] %v3610
          %3628 = vst [vmem:[%s390 + $0x3d] sm:$0x1] %v3612
          %v3629 = vld [vmem:[%s3042] sm:$0xff]
          %v3631 = vcombine.high %v3629, %v3629
          %v3633 = vunpack.c.l.s4 1966171168
          %v3634 = vunpack.c.0.s8 %v3633
          %v3635 = vlaneseq
          %v3636 = vshrl.u32 %v3635, 7
          %v3637 = vsub.s32 %v3634, %v3636
          %v3638 = vrot.slane %v3629, %v3637
          %v3640 = vunpack.c.l.s4 1966171168
          %v3641 = vunpack.c.0.s8 %v3640
          %v3642 = vlaneseq
          %v3643 = vshrl.u32 %v3642, 7
          %v3644 = vsub.s32 %v3641, %v3643
          %v3645 = vrot.slane %v3631, %v3644
          %v3646 = vcombine.high %v3638, %v3638
          %v3647 = vcombine.high %v3645, %v3645
          %v3649 = vunpack.c.l.s4 1966171168
          %v3650 = vunpack.c.0.s8 %v3649
          %v3651 = vlaneseq
          %v3652 = vshrl.u32 %v3651, 7
          %v3653 = vsub.s32 %v3650, %v3652
          %v3654 = vrot.slane %v3638, %v3653
          %v3656 = vunpack.c.l.s4 1966171168
          %v3657 = vunpack.c.0.s8 %v3656
          %v3658 = vlaneseq
          %v3659 = vshrl.u32 %v3658, 7
          %v3660 = vsub.s32 %v3657, %v3659
          %v3661 = vrot.slane %v3645, %v3660
          %v3663 = vunpack.c.l.s4 1966171168
          %v3664 = vunpack.c.0.s8 %v3663
          %v3665 = vlaneseq
          %v3666 = vshrl.u32 %v3665, 7
          %v3667 = vsub.s32 %v3664, %v3666
          %v3668 = vrot.slane %v3646, %v3667
          %v3670 = vunpack.c.l.s4 1966171168
          %v3671 = vunpack.c.0.s8 %v3670
          %v3672 = vlaneseq
          %v3673 = vshrl.u32 %v3672, 7
          %v3674 = vsub.s32 %v3671, %v3673
          %v3675 = vrot.slane %v3647, %v3674
          %v3676 = vcombine.high %v3654, %v3654
          %v3677 = vcombine.high %v3661, %v3661
          %v3678 = vcombine.high %v3668, %v3668
          %v3679 = vcombine.high %v3675, %v3675
          %3688 = vst [vmem:[%s390 + $0x6] sm:$0x1] %v3654
          %3689 = vst [vmem:[%s390 + $0xe] sm:$0x1] %v3668
          %3690 = vst [vmem:[%s390 + $0x16] sm:$0x1] %v3676
          %3691 = vst [vmem:[%s390 + $0x1e] sm:$0x1] %v3678
          %3692 = vst [vmem:[%s390 + $0x26] sm:$0x1] %v3661
          %3693 = vst [vmem:[%s390 + $0x2e] sm:$0x1] %v3675
          %3694 = vst [vmem:[%s390 + $0x36] sm:$0x1] %v3677
          %3695 = vst [vmem:[%s390 + $0x3e] sm:$0x1] %v3679
          %v3696 = vld [vmem:[%s3221] sm:$0xff]
          %v3698 = vcombine.high %v3696, %v3696
          %v3700 = vunpack.c.l.s4 1966171168
          %v3701 = vunpack.c.0.s8 %v3700
          %v3702 = vlaneseq
          %v3703 = vshrl.u32 %v3702, 7
          %v3704 = vsub.s32 %v3701, %v3703
          %v3705 = vrot.slane %v3696, %v3704
          %v3707 = vunpack.c.l.s4 1966171168
          %v3708 = vunpack.c.0.s8 %v3707
          %v3709 = vlaneseq
          %v3710 = vshrl.u32 %v3709, 7
          %v3711 = vsub.s32 %v3708, %v3710
          %v3712 = vrot.slane %v3698, %v3711
          %v3713 = vcombine.high %v3705, %v3705
          %v3714 = vcombine.high %v3712, %v3712
          %v3716 = vunpack.c.l.s4 1966171168
          %v3717 = vunpack.c.0.s8 %v3716
          %v3718 = vlaneseq
          %v3719 = vshrl.u32 %v3718, 7
          %v3720 = vsub.s32 %v3717, %v3719
          %v3721 = vrot.slane %v3705, %v3720
          %v3723 = vunpack.c.l.s4 1966171168
          %v3724 = vunpack.c.0.s8 %v3723
          %v3725 = vlaneseq
          %v3726 = vshrl.u32 %v3725, 7
          %v3727 = vsub.s32 %v3724, %v3726
          %v3728 = vrot.slane %v3712, %v3727
          %v3730 = vunpack.c.l.s4 1966171168
          %v3731 = vunpack.c.0.s8 %v3730
          %v3732 = vlaneseq
          %v3733 = vshrl.u32 %v3732, 7
          %v3734 = vsub.s32 %v3731, %v3733
          %v3735 = vrot.slane %v3713, %v3734
          %v3737 = vunpack.c.l.s4 1966171168
          %v3738 = vunpack.c.0.s8 %v3737
          %v3739 = vlaneseq
          %v3740 = vshrl.u32 %v3739, 7
          %v3741 = vsub.s32 %v3738, %v3740
          %v3742 = vrot.slane %v3714, %v3741
          %v3743 = vcombine.high %v3721, %v3721
          %v3744 = vcombine.high %v3728, %v3728
          %v3745 = vcombine.high %v3735, %v3735
          %v3746 = vcombine.high %v3742, %v3742
          %3755 = vst [vmem:[%s390 + $0x7] sm:$0x1] %v3721
          %3756 = vst [vmem:[%s390 + $0xf] sm:$0x1] %v3735
          %3757 = vst [vmem:[%s390 + $0x17] sm:$0x1] %v3743
          %3758 = vst [vmem:[%s390 + $0x1f] sm:$0x1] %v3745
          %3759 = vst [vmem:[%s390 + $0x27] sm:$0x1] %v3728
          %3760 = vst [vmem:[%s390 + $0x2f] sm:$0x1] %v3742
          %3761 = vst [vmem:[%s390 + $0x37] sm:$0x1] %v3744
          %3762 = vst [vmem:[%s390 + $0x3f] sm:$0x1] %v3746
        $region68: #{encoder_lstm_oscar_pallas.1} parent=47 // pred_fallthru
          _
        %p3763 = scmp.eq.s32.totalorder %s30, 1
        // Predicated region
        $region69: #{encoder_lstm_oscar_pallas.1} parent=47 // pred_check
          %p3764 = pneg %p3763
        $region70: #{encoder_lstm_oscar_pallas.1} parent=47 // pred_check_branch
          %3766 = sbr.rel (%p3764) target = $region72
        $region71: #{encoder_lstm_oscar_pallas.1} parent=47 // pred_region
          %v3767 = vld [vmem:[#allocation5] sm:$0xff]
          %3768 = vst [vmem:[%s420] sm:$0xff] %v3767
          %v3769 = vld [vmem:[#allocation4] sm:$0xff]
          %v3770 = vld [vmem:[%s6] sm:$0xff]
          %v3771 = vld [vmem:[%s6 + $0x8] sm:$0xff]
          %v3772 = vld [vmem:[%s6 + $0x10] sm:$0xff]
          %v3773 = vld [vmem:[%s6 + $0x18] sm:$0xff]
          %v3774 = vld [vmem:[%s6 + $0x20] sm:$0xff]
          %v3775 = vld [vmem:[%s6 + $0x28] sm:$0xff]
          %v3776 = vld [vmem:[%s6 + $0x30] sm:$0xff]
          %v3777 = vld [vmem:[%s6 + $0x38] sm:$0xff]
          %v3778 = vld [vmem:[%s6 + $0x40] sm:$0xff]
          %v3779 = vld [vmem:[%s6 + $0x48] sm:$0xff]
          %v3780 = vld [vmem:[%s6 + $0x50] sm:$0xff]
          %v3781 = vld [vmem:[%s6 + $0x58] sm:$0xff]
          %v3782 = vld [vmem:[%s6 + $0x60] sm:$0xff]
          %v3783 = vld [vmem:[%s6 + $0x68] sm:$0xff]
          %v3784 = vld [vmem:[%s6 + $0x70] sm:$0xff]
          %v3785 = vld [vmem:[%s6 + $0x78] sm:$0xff]
          %v3786 = vld [vmem:[%s7] sm:$0x1]
          %v3788 = vlaneseq
          %v3789 = vshrl.u32 %v3788, 7
          %v3790 = vsub.s32 0, %v3789
          %v3791 = vrot.slane %v3786, %v3790
          %3793 = vmatprep.subr.mxu0 0.0
          %3794 = vmatpush1.msra.mxu0 %v3770
          %3795 = vmatprep.subr.mxu0 0.0
          %3796 = vmatpush1.msra.mxu0 %v3771
          %3797 = vmatprep.subr.mxu0 0.0
          %3798 = vmatpush1.msra.mxu0 %v3772
          %3799 = vmatprep.subr.mxu0 0.0
          %3800 = vmatpush1.msra.mxu0 %v3773
          %3801 = vmatprep.subr.mxu0 0.0
          %3802 = vmatpush1.msra.mxu0 %v3774
          %3803 = vmatprep.subr.mxu0 0.0
          %3804 = vmatpush1.msra.mxu0 %v3775
          %3805 = vmatprep.subr.mxu0 0.0
          %3806 = vmatpush1.msra.mxu0 %v3776
          %3807 = vmatprep.subr.mxu0 0.0
          %3808 = vmatpush1.msra.mxu0 %v3777
          %3809 = vmatprep.subr.mxu0 0.0
          %3810 = vmatpush1.msra.mxu0 %v3778
          %3811 = vmatprep.subr.mxu0 0.0
          %3812 = vmatpush1.msra.mxu0 %v3779
          %3813 = vmatprep.subr.mxu0 0.0
          %3814 = vmatpush1.msra.mxu0 %v3780
          %3815 = vmatprep.subr.mxu0 0.0
          %3816 = vmatpush1.msra.mxu0 %v3781
          %3817 = vmatprep.subr.mxu0 0.0
          %3818 = vmatpush1.msra.mxu0 %v3782
          %3819 = vmatprep.subr.mxu0 0.0
          %3820 = vmatpush1.msra.mxu0 %v3783
          %3821 = vmatprep.subr.mxu0 0.0
          %3822 = vmatpush1.msra.mxu0 %v3784
          %3823 = vmatprep.subr.mxu0 0.0
          %3824 = vmatpush1.msra.mxu0 %v3785
          %3825 = vmatprep.subr.mxu0 0.0
          %3826 = vmatpush1.msra.mxu0 0.0
          %3827 = vmatprep.subr.mxu0 0.0
          %3828 = vmatpush1.msra.mxu0 0.0
          %3829 = vmatprep.subr.mxu0 0.0
          %3830 = vmatpush1.msra.mxu0 0.0
          %3831 = vmatprep.subr.mxu0 0.0
          %3832 = vmatpush1.msra.mxu0 0.0
          %3833 = vmatprep.subr.mxu0 0.0
          %3834 = vmatpush1.msra.mxu0 0.0
          %3835 = vmatprep.subr.mxu0 0.0
          %3836 = vmatpush1.msra.mxu0 0.0
          %3837 = vmatprep.subr.mxu0 0.0
          %3838 = vmatpush1.msra.mxu0 0.0
          %3839 = vmatprep.subr.mxu0 0.0
          %3840 = vmatpush1.msra.mxu0 0.0
          %3841 = vmatprep.subr.mxu0 0.0
          %3842 = vmatpush1.msra.mxu0 0.0
          %3843 = vmatprep.subr.mxu0 0.0
          %3844 = vmatpush1.msra.mxu0 0.0
          %3845 = vmatprep.subr.mxu0 0.0
          %3846 = vmatpush1.msra.mxu0 0.0
          %3847 = vmatprep.subr.mxu0 0.0
          %3848 = vmatpush1.msra.mxu0 0.0
          %3849 = vmatprep.subr.mxu0 0.0
          %3850 = vmatpush1.msra.mxu0 0.0
          %3851 = vmatprep.subr.mxu0 0.0
          %3852 = vmatpush1.msra.mxu0 0.0
          %3853 = vmatprep.subr.mxu0 0.0
          %3854 = vmatpush1.msra.mxu0 0.0
          %3855 = vmatprep.subr.mxu0 0.0
          %3856 = vmatpush1.msra.mxu0 0.0
          %3857 = vmatprep.mubr.f32.mxu0 0.0
          %3858 = vmatmul.mubr.f32.gmra.mrb[0].mxu0 %v3769
          %v3859 = vpop.f32.mrb[0].mxu0
          %v3860 = vadd.f32 %v3791, %v3859
          %v3861 = vpop.f32.mrb[0].mxu0
          %3862 = vdwg.mxu0
          %v3863 = vtanh.pop %v3860
          %3864 = vst [vmem:[%s424] sm:$0xff] %v3863
        $region72: #{encoder_lstm_oscar_pallas.1} parent=47 // pred_fallthru
          _
        %s3865 = sand.u32 %s206, 1
        %s3866 = sand.u32 %s206, 1
        %s3867 = smul.addr %s3866, 64
        %s3868 = scalar_lea.vmem [#allocation12], %s3867
        %p3869 = scmp.lt.s32.totalorder %s29, 0
        %s3870 = scalar_select %p3869, %s29, 0
        %s3871 = smul.addr %s3870, 8
        %s3872 = scalar_lea.vmem %s9, %s3871
        %p3873 = scmp.lt.s32.totalorder %s29, 0
        %s3874 = scalar_select %p3873, %s29, 0
        %s3875 = smul.addr %s3874, 8
        %s3876 = scalar_lea.vmem %s10, %s3875
        // Predicated region
        $region73: #{encoder_lstm_oscar_pallas.1} parent=47 // pred_check
          %p3877 = pneg %p216
        $region74: #{encoder_lstm_oscar_pallas.1} parent=47 // pred_check_branch
          %3879 = sbr.rel (%p3877) target = $region76
        $region75: #{encoder_lstm_oscar_pallas.1} parent=47 // pred_region
          %s3880 = smul.u32 8, %s29
          %s3881 = smul.addr %s3880, 2
          %s3882 = sadd.s32 %s30, %s3881
          %s3883 = smul.addr %s3882, 8
          %s3884 = scalar_lea.vmem %s8, %s3883
          // Predicated region
          $region77: #{encoder_lstm_oscar_pallas.1} parent=75 // pred_check
            _
          $region78: #{encoder_lstm_oscar_pallas.1} parent=75 // pred_check_branch
            %3886 = sbr.rel (0) target = $region80
          $region79: #{encoder_lstm_oscar_pallas.1} parent=75 // pred_region
            // Predicated region
            $region81: #{encoder_lstm_oscar_pallas.1} parent=79 // pred_check
              _
            $region82: #{encoder_lstm_oscar_pallas.1} parent=79 // pred_check_branch
              %3888 = sbr.rel (0) target = $region84
            $region83: #{encoder_lstm_oscar_pallas.1} parent=79 // pred_region
              // Predicated region
              $region96: #{encoder_lstm_oscar_pallas.1} parent=83 // pred_check
                _
              $region97: #{encoder_lstm_oscar_pallas.1} parent=83 // pred_check_branch
                %3917 = sbr.rel (0) target = $region99
              $region98: #{encoder_lstm_oscar_pallas.1} parent=83 // pred_region
                loop: start=0, step=1, limit=1
                $region100: #{encoder_lstm_oscar_pallas.1} parent=98 // loop_pre_header
                  _
                $region101: #{encoder_lstm_oscar_pallas.1} parent=98 // loop_header
                  %s3919 = sphi 0, %s3923
                  %p3920 = scmp.ge.s32.totalorder %s3919, 1
                  %s3924 = sphi %s3868, %s3868
                  %s3925 = sphi %s3884, %s3884
                $region102: #{encoder_lstm_oscar_pallas.1} parent=98 // loop_header_branch
                  %3922 = sbr.rel (%p3920) target = $region106
                $region103: #{encoder_lstm_oscar_pallas.1} parent=98 // loop_body
                  %v3926 = vld [vmem:[%s3924] sm:$0xff]
                  %3927 = vst [vmem:[%s3925] sm:$0xff] %v3926
                  %v3928 = vld [vmem:[%s3924 + $0x8] sm:$0xff]
                  %3929 = vst [vmem:[%s3925 + $0x10] sm:$0xff] %v3928
                  %v3930 = vld [vmem:[%s3924 + $0x10] sm:$0xff]
                  %3931 = vst [vmem:[%s3925 + $0x20] sm:$0xff] %v3930
                  %v3932 = vld [vmem:[%s3924 + $0x18] sm:$0xff]
                  %3933 = vst [vmem:[%s3925 + $0x30] sm:$0xff] %v3932
                  %v3934 = vld [vmem:[%s3924 + $0x20] sm:$0xff]
                  %3935 = vst [vmem:[%s3925 + $0x40] sm:$0xff] %v3934
                  %v3936 = vld [vmem:[%s3924 + $0x28] sm:$0xff]
                  %3937 = vst [vmem:[%s3925 + $0x50] sm:$0xff] %v3936
                  %v3938 = vld [vmem:[%s3924 + $0x30] sm:$0xff]
                  %3939 = vst [vmem:[%s3925 + $0x60] sm:$0xff] %v3938
                  %v3940 = vld [vmem:[%s3924 + $0x38] sm:$0xff]
                  %3941 = vst [vmem:[%s3925 + $0x70] sm:$0xff] %v3940
                $region104: #{encoder_lstm_oscar_pallas.1} parent=98 // loop_footer
                  %s3923 = sadd.s32 1, %s3919
                $region105: #{encoder_lstm_oscar_pallas.1} parent=98 // loop_footer_branch
                  %3918 = sbr.rel target = $region101
                $region106: #{encoder_lstm_oscar_pallas.1} parent=98 // loop_exit
                  _
              $region99: #{encoder_lstm_oscar_pallas.1} parent=83 // pred_fallthru
                _
              // Predicated region
              $region107: #{encoder_lstm_oscar_pallas.1} parent=83 // pred_check
                _
              $region108: #{encoder_lstm_oscar_pallas.1} parent=83 // pred_check_branch
                %3943 = sbr.rel target = $region110
              $region109: #{encoder_lstm_oscar_pallas.1} parent=83 // pred_region
                _
              $region110: #{encoder_lstm_oscar_pallas.1} parent=83 // pred_fallthru
                _
            $region84: #{encoder_lstm_oscar_pallas.1} parent=79 // pred_fallthru
              _
            // Predicated region
            $region85: #{encoder_lstm_oscar_pallas.1} parent=79 // pred_check
              _
            $region86: #{encoder_lstm_oscar_pallas.1} parent=79 // pred_check_branch
              %3890 = sbr.rel target = $region88
            $region87: #{encoder_lstm_oscar_pallas.1} parent=79 // pred_region
              loop: start=0, step=1, limit=1
              $region89: #{encoder_lstm_oscar_pallas.1} parent=87 // loop_pre_header
                _
              $region90: #{encoder_lstm_oscar_pallas.1} parent=87 // loop_header
                %s3893 = sphi 0, %s3897
                %p3894 = scmp.ge.s32.totalorder %s3893, 1
                %s3898 = sphi %s3868, %s3868
                %s3899 = sphi %s3884, %s3884
              $region91: #{encoder_lstm_oscar_pallas.1} parent=87 // loop_header_branch
                %3896 = sbr.rel (%p3894) target = $region95
              $region92: #{encoder_lstm_oscar_pallas.1} parent=87 // loop_body
                %v3900 = vld [vmem:[%s3898] sm:$0xff]
                %3901 = vst [vmem:[%s3899] sm:$0xff] %v3900
                %v3902 = vld [vmem:[%s3898 + $0x8] sm:$0xff]
                %3903 = vst [vmem:[%s3899 + $0x10] sm:$0xff] %v3902
                %v3904 = vld [vmem:[%s3898 + $0x10] sm:$0xff]
                %3905 = vst [vmem:[%s3899 + $0x20] sm:$0xff] %v3904
                %v3906 = vld [vmem:[%s3898 + $0x18] sm:$0xff]
                %3907 = vst [vmem:[%s3899 + $0x30] sm:$0xff] %v3906
                %v3908 = vld [vmem:[%s3898 + $0x20] sm:$0xff]
                %3909 = vst [vmem:[%s3899 + $0x40] sm:$0xff] %v3908
                %v3910 = vld [vmem:[%s3898 + $0x28] sm:$0xff]
                %3911 = vst [vmem:[%s3899 + $0x50] sm:$0xff] %v3910
                %v3912 = vld [vmem:[%s3898 + $0x30] sm:$0xff]
                %3913 = vst [vmem:[%s3899 + $0x60] sm:$0xff] %v3912
                %v3914 = vld [vmem:[%s3898 + $0x38] sm:$0xff]
                %3915 = vst [vmem:[%s3899 + $0x70] sm:$0xff] %v3914
              $region93: #{encoder_lstm_oscar_pallas.1} parent=87 // loop_footer
                %s3897 = sadd.s32 1, %s3893
              $region94: #{encoder_lstm_oscar_pallas.1} parent=87 // loop_footer_branch
                %3892 = sbr.rel target = $region90
              $region95: #{encoder_lstm_oscar_pallas.1} parent=87 // loop_exit
                _
            $region88: #{encoder_lstm_oscar_pallas.1} parent=79 // pred_fallthru
              _
          $region80: #{encoder_lstm_oscar_pallas.1} parent=75 // pred_fallthru
            _
          %3944 = vnop
        $region76: #{encoder_lstm_oscar_pallas.1} parent=47 // pred_fallthru
          _
        // Predicated region
        $region111: #{encoder_lstm_oscar_pallas.1} parent=47 // pred_check
          %p3945 = pneg %p242
        $region112: #{encoder_lstm_oscar_pallas.1} parent=47 // pred_check_branch
          %3947 = sbr.rel (%p3945) target = $region114
        $region113: #{encoder_lstm_oscar_pallas.1} parent=47 // pred_region
          _
        $region114: #{encoder_lstm_oscar_pallas.1} parent=47 // pred_fallthru
          _
        // Predicated region
        $region115: #{encoder_lstm_oscar_pallas.1} parent=47 // pred_check
          %p3948 = pneg %p268
        $region116: #{encoder_lstm_oscar_pallas.1} parent=47 // pred_check_branch
          %3950 = sbr.rel (%p3948) target = $region118
        $region117: #{encoder_lstm_oscar_pallas.1} parent=47 // pred_region
          _
        $region118: #{encoder_lstm_oscar_pallas.1} parent=47 // pred_fallthru
          _
        // Predicated region
        $region119: #{encoder_lstm_oscar_pallas.1} parent=47 // pred_check
          %p3951 = pneg %p242
        $region120: #{encoder_lstm_oscar_pallas.1} parent=47 // pred_check_branch
          %3953 = sbr.rel (%p3951) target = $region122
        $region121: #{encoder_lstm_oscar_pallas.1} parent=47 // pred_region
          %p3954 = scmp.lt.s32.totalorder %s29, 0
          %s3955 = scalar_select %p3954, %s29, 0
          %s3956 = smul.addr %s3955, 8
          %s3957 = scalar_lea.vmem %s9, %s3956
        $region122: #{encoder_lstm_oscar_pallas.1} parent=47 // pred_fallthru
          _
        // Predicated region
        $region123: #{encoder_lstm_oscar_pallas.1} parent=47 // pred_check
          %p3958 = pneg %p268
        $region124: #{encoder_lstm_oscar_pallas.1} parent=47 // pred_check_branch
          %3960 = sbr.rel (%p3958) target = $region126
        $region125: #{encoder_lstm_oscar_pallas.1} parent=47 // pred_region
          %p3961 = scmp.lt.s32.totalorder %s29, 0
          %s3962 = scalar_select %p3961, %s29, 0
          %s3963 = smul.addr %s3962, 8
          %s3964 = scalar_lea.vmem %s10, %s3963
        $region126: #{encoder_lstm_oscar_pallas.1} parent=47 // pred_fallthru
          _
      $region48: #{encoder_lstm_oscar_pallas.1} parent=5 // pred_fallthru
        _
      %p3965 = scmp.le.s32.totalorder 2, %s20
      // Predicated region
      $region127: #{encoder_lstm_oscar_pallas.1} parent=5 // pred_check
        %p3966 = pneg %p3965
      $region128: #{encoder_lstm_oscar_pallas.1} parent=5 // pred_check_branch
        %3968 = sbr.rel (%p3966) target = $region130
      $region129: #{encoder_lstm_oscar_pallas.1} parent=5 // pred_region
        %s3969 = ssub.s32 %s20, 2
        // Predicated region
        $region131: #{encoder_lstm_oscar_pallas.1} parent=129 // pred_check
          %p3970 = pneg %p222
        $region132: #{encoder_lstm_oscar_pallas.1} parent=129 // pred_check_branch
          %3972 = sbr.rel (%p3970) target = $region134
        $region133: #{encoder_lstm_oscar_pallas.1} parent=129 // pred_region
          %s3973 = sand.u32 %s207, 1
          %s3974 = sand.u32 %s207, 1
          %s3975 = smul.addr %s3974, 64
          %s3976 = scalar_lea.vmem [#allocation12], %s3975
        $region134: #{encoder_lstm_oscar_pallas.1} parent=129 // pred_fallthru
          _
      $region130: #{encoder_lstm_oscar_pallas.1} parent=5 // pred_fallthru
        _
    $region6: #{encoder_lstm_oscar_pallas.1} parent=1 // loop_footer
      %s24 = sadd.s32 1, %s20
    $region7: #{encoder_lstm_oscar_pallas.1} parent=1 // loop_footer_branch
      %19 = sbr.rel target = $region3
    $region8: #{encoder_lstm_oscar_pallas.1} parent=1 // loop_exit
      _
    %3977 = vsyncpa [#allocation9], 1
    %s3978 = scalar_lea.sflag [#allocation9], 1
    %3979 = vsyncpa %s3978, 1
    %3980 = vsyncpa [#allocation11], 1

// kernel: encoder_lstm_oscar_pallas.1
$region0: #{encoder_lstm_oscar_pallas.1}
  #allocation0 [shape = 'u32[]', space=smem, size = 0x4, offset = 0x4, fixed_abs, tag = 'smem constant byte address 0x4 - core index']
  #allocation1 [shape = 'u32[144,128]{1,0:T(1,128)}', space=vmem, size = 0x12000, scoped, tag = 'internal scratch']
  #allocation2 [shape = 'f32[8,8,512]{2,1,0:T(8,128)}', space=vmem, size = 0x20000, scoped, tag = 'scratch operand']
  #allocation3 [shape = 'f32[8,8,128]{2,1,0:T(8,128)}', space=vmem, size = 0x8000, scoped, tag = 'scratch operand']
  #allocation4 [shape = 'f32[8,128]{1,0:T(8,128)}', space=vmem, size = 0x1000, scoped, tag = 'scratch operand']
  #allocation5 [shape = 'f32[8,128]{1,0:T(8,128)}', space=vmem, size = 0x1000, scoped, tag = 'scratch operand']
  #allocation6 [shape = 's32[1]{0}', space=sflag, size = 0x4, scoped, tag = 'scoped memory for encoder_lstm_oscar_pallas.1']
  #allocation7 [shape = 's32[1]{0:T(128)S(6)}', space=smem, size = 0x200, scoped, tag = 'prefetched SMEM operand 0']
  %s0 = inlined_call_operand.<no memory space> [shape: s32[1], index: 0, kind: input, shape index: {}]
  %s1 = inlined_call_operand.vmem [shape: f32[16,8,128], index: 1, kind: input, shape index: {}]
  %s2 = inlined_call_operand.vmem [shape: s32[8,1], index: 2, kind: input, shape index: {}]
  %s3 = inlined_call_operand.hbm [shape: f32[128,512], index: 3, kind: input, shape index: {}]
  %s4 = inlined_call_operand.vmem [shape: f32[1,512], index: 4, kind: input, shape index: {}]
  %s5 = inlined_call_operand.hbm [shape: f32[128,512], index: 5, kind: input, shape index: {}]
  %s6 = inlined_call_operand.vmem [shape: f32[128,128], index: 6, kind: input, shape index: {}]
  %s7 = inlined_call_operand.vmem [shape: f32[1,128], index: 7, kind: input, shape index: {}]
  %s8 = inlined_call_operand.vmem [shape: f32[16,8,128], index: 8, kind: output, shape index: {0}]
  %s9 = inlined_call_operand.vmem [shape: f32[8,128], index: 9, kind: output, shape index: {1}]
  %s10 = inlined_call_operand.vmem [shape: f32[8,128], index: 10, kind: output, shape index: {2}]
  %11 = xla_tuple %s8, %s9, %s10
  %s12 = sld [smem:[#allocation0]]
  $region101: #{encoder_lstm_oscar_pallas.1} parent=0
    _
  %s14 = ssub.s32 1, %s12
  %s15 = scalar_select 0, %s14, %s12
  %16 = sst [smem:[#allocation7]] %s0
  $region1: #{encoder_lstm_oscar_pallas.1} parent=0
    #allocation8 [shape = 'u8[262144]{0}', space=vmem, size = 0x40000, scoped, tag = 'input window, operand 3, single buffered']
    #allocation9 [shape = 's32[2]{0}', space=sflag, size = 0x8, scoped, tag = 'scoped memory for encoder_lstm_oscar_pallas.1']
    #allocation10 [shape = 'u8[262144]{0}', space=vmem, size = 0x40000, scoped, tag = 'input window, operand 5, single buffered']
    #allocation11 [shape = 's32[1]{0}', space=sflag, size = 0x4, scoped, tag = 'scoped memory for encoder_lstm_oscar_pallas.1']
    %17 = vsyncpa [#allocation9], 0
    %18 = vsyncpa [#allocation11], 0
    loop: start=0, step=1, limit=4
    $region2: #{encoder_lstm_oscar_pallas.1} parent=1 // loop_pre_header
      _
    $region3: #{encoder_lstm_oscar_pallas.1} parent=1 // loop_header
      %s20 = sphi 0, %s24
      %p21 = scmp.ge.s32.totalorder %s20, 4
      %s27 = sphi 0, %s39
      %s28 = sphi 0, %s35
      %s29 = sphi 0, %s27
      %s30 = sphi 0, %s28
      %s31 = sphi 0, %s29
      %s32 = sphi 0, %s30
      %s44 = sphi 0, %s46
      %s47 = sphi 0, %s44
      %s48 = sphi 0, %s47
      %s64 = sphi 0, %s48
      %s70 = sphi 0, %s72
      %s73 = sphi 0, %s70
      %s74 = sphi 0, %s73
      %s90 = sphi 0, %s74
      %s94 = sphi 0, %s94
      %s96 = sphi 0, %s94
      %s97 = sphi 0, %s96
      %s111 = sphi 0, %s97
      %s115 = sphi 0, %s115
      %s117 = sphi 0, %s115
      %s118 = sphi 0, %s117
      %s132 = sphi 0, %s118
      %s136 = sphi 0, %s136
      %s138 = sphi 0, %s136
      %s139 = sphi 0, %s138
      %s153 = sphi 0, %s139
      %s157 = sphi 0, %s157
      %s159 = sphi 0, %s157
      %s160 = sphi 0, %s159
      %s174 = sphi 0, %s160
      %s178 = sphi 0, %s178
      %s180 = sphi 0, %s178
      %s181 = sphi 0, %s180
      %s195 = sphi 0, %s181
      %s203 = sphi 0, %s205
      %s206 = sphi 0, %s203
      %s207 = sphi 0, %s206
      %s223 = sphi 0, %s207
      %s229 = sphi 0, %s231
      %s232 = sphi 0, %s229
      %s233 = sphi 0, %s232
      %s249 = sphi 0, %s233
      %s255 = sphi 0, %s257
      %s258 = sphi 0, %s255
      %s259 = sphi 0, %s258
      %s275 = sphi 0, %s259
    $region4: #{encoder_lstm_oscar_pallas.1} parent=1 // loop_header_branch
      %23 = sbr.rel (%p21) target = $region8
    $region5: #{encoder_lstm_oscar_pallas.1} parent=1 // loop_body
      %s25 = ssub.s32 %s20, 1
      %s26 = ssub.s32 %s20, 2
      %s33 = sadd.s32 1, %s28
      %p34 = scmp.ge.s32.totalorder %s33, 2
      %s35 = scalar_select %p34, 0, %s33
      %s36 = sadd.s32 1, %s27
      %s37 = scalar_select %p34, %s36, %s27
      %p38 = scmp.ge.s32.totalorder %s37, 1
      %s39 = scalar_select %p38, 0, %s37
      %s40 = ssub.s32 %s28, %s35
      %s41 = ssub.s32 %s27, %s39
      %s42 = sor.u32 %s40, %s41
      %p43 = scmp.eq.s32.totalorder %s42, 0
      %s45 = sadd.s32 %s44, 1
      %s46 = scalar_select %p43, %s44, %s45
      %p49 = pneg %p43
      %p50 = scmp.eq.s32.totalorder %s20, 1
      %p51 = por %p49, %p50
      %p52 = scmp.ne.s32.totalorder %s44, %s47
      %p53 = scmp.eq.s32.totalorder %s20, 0
      %p54 = por %p52, %p53
      %p55 = scmp.ne.s32.totalorder %s44, %s47
      %p56 = scmp.eq.s32.totalorder %s25, 1
      %p57 = por %p55, %p56
      %p58 = scmp.ne.s32.totalorder %s47, %s48
      %p59 = scmp.eq.s32.totalorder %s25, 0
      %p60 = por %p58, %p59
      %p61 = scmp.ne.s32.totalorder %s47, %s48
      %p62 = scmp.eq.s32.totalorder %s26, 1
      %p63 = por %p61, %p62
      %p65 = scmp.ne.s32.totalorder %s48, %s64
      %p66 = scmp.eq.s32.totalorder %s26, 0
      %p67 = por %p65, %p66
      %s68 = ssub.s32 %s27, %s39
      %p69 = scmp.eq.s32.totalorder %s68, 0
      %s71 = sadd.s32 %s70, 1
      %s72 = scalar_select %p69, %s70, %s71
      %p75 = pneg %p69
      %p76 = scmp.eq.s32.totalorder %s20, 1
      %p77 = por %p75, %p76
      %p78 = scmp.ne.s32.totalorder %s70, %s73
      %p79 = scmp.eq.s32.totalorder %s20, 0
      %p80 = por %p78, %p79
      %p81 = scmp.ne.s32.totalorder %s70, %s73
      %p82 = scmp.eq.s32.totalorder %s25, 1
      %p83 = por %p81, %p82
      %p84 = scmp.ne.s32.totalorder %s73, %s74
      %p85 = scmp.eq.s32.totalorder %s25, 0
      %p86 = por %p84, %p85
      %p87 = scmp.ne.s32.totalorder %s73, %s74
      %p88 = scmp.eq.s32.totalorder %s26, 1
      %p89 = por %p87, %p88
      %p91 = scmp.ne.s32.totalorder %s74, %s90
      %p92 = scmp.eq.s32.totalorder %s26, 0
      %p93 = por %p91, %p92
      %s95 = sadd.s32 %s94, 1
      %p98 = scmp.eq.s32.totalorder %s20, 1
      %p99 = scmp.ne.s32.totalorder %s94, %s96
      %p100 = scmp.eq.s32.totalorder %s20, 0
      %p101 = por %p99, %p100
      %p102 = scmp.ne.s32.totalorder %s94, %s96
      %p103 = scmp.eq.s32.totalorder %s25, 1
      %p104 = por %p102, %p103
      %p105 = scmp.ne.s32.totalorder %s96, %s97
      %p106 = scmp.eq.s32.totalorder %s25, 0
      %p107 = por %p105, %p106
      %p108 = scmp.ne.s32.totalorder %s96, %s97
      %p109 = scmp.eq.s32.totalorder %s26, 1
      %p110 = por %p108, %p109
      %p112 = scmp.ne.s32.totalorder %s97, %s111
      %p113 = scmp.eq.s32.totalorder %s26, 0
      %p114 = por %p112, %p113
      %s116 = sadd.s32 %s115, 1
      %p119 = scmp.eq.s32.totalorder %s20, 1
      %p120 = scmp.ne.s32.totalorder %s115, %s117
      %p121 = scmp.eq.s32.totalorder %s20, 0
      %p122 = por %p120, %p121
      %p123 = scmp.ne.s32.totalorder %s115, %s117
      %p124 = scmp.eq.s32.totalorder %s25, 1
      %p125 = por %p123, %p124
      %p126 = scmp.ne.s32.totalorder %s117, %s118
      %p127 = scmp.eq.s32.totalorder %s25, 0
      %p128 = por %p126, %p127
      %p129 = scmp.ne.s32.totalorder %s117, %s118
      %p130 = scmp.eq.s32.totalorder %s26, 1
      %p131 = por %p129, %p130
      %p133 = scmp.ne.s32.totalorder %s118, %s132
      %p134 = scmp.eq.s32.totalorder %s26, 0
      %p135 = por %p133, %p134
      %s137 = sadd.s32 %s136, 1
      %p140 = scmp.eq.s32.totalorder %s20, 1
      %p141 = scmp.ne.s32.totalorder %s136, %s138
      %p142 = scmp.eq.s32.totalorder %s20, 0
      %p143 = por %p141, %p142
      %p144 = scmp.ne.s32.totalorder %s136, %s138
      %p145 = scmp.eq.s32.totalorder %s25, 1
      %p146 = por %p144, %p145
      %p147 = scmp.ne.s32.totalorder %s138, %s139
      %p148 = scmp.eq.s32.totalorder %s25, 0
      %p149 = por %p147, %p148
      %p150 = scmp.ne.s32.totalorder %s138, %s139
      %p151 = scmp.eq.s32.totalorder %s26, 1
      %p152 = por %p150, %p151
      %p154 = scmp.ne.s32.totalorder %s139, %s153
      %p155 = scmp.eq.s32.totalorder %s26, 0
      %p156 = por %p154, %p155
      %s158 = sadd.s32 %s157, 1
      %p161 = scmp.eq.s32.totalorder %s20, 1
      %p162 = scmp.ne.s32.totalorder %s157, %s159
      %p163 = scmp.eq.s32.totalorder %s20, 0
      %p164 = por %p162, %p163
      %p165 = scmp.ne.s32.totalorder %s157, %s159
      %p166 = scmp.eq.s32.totalorder %s25, 1
      %p167 = por %p165, %p166
      %p168 = scmp.ne.s32.totalorder %s159, %s160
      %p169 = scmp.eq.s32.totalorder %s25, 0
      %p170 = por %p168, %p169
      %p171 = scmp.ne.s32.totalorder %s159, %s160
      %p172 = scmp.eq.s32.totalorder %s26, 1
      %p173 = por %p171, %p172
      %p175 = scmp.ne.s32.totalorder %s160, %s174
      %p176 = scmp.eq.s32.totalorder %s26, 0
      %p177 = por %p175, %p176
      %s179 = sadd.s32 %s178, 1
      %p182 = scmp.eq.s32.totalorder %s20, 1
      %p183 = scmp.ne.s32.totalorder %s178, %s180
      %p184 = scmp.eq.s32.totalorder %s20, 0
      %p185 = por %p183, %p184
      %p186 = scmp.ne.s32.totalorder %s178, %s180
      %p187 = scmp.eq.s32.totalorder %s25, 1
      %p188 = por %p186, %p187
      %p189 = scmp.ne.s32.totalorder %s180, %s181
      %p190 = scmp.eq.s32.totalorder %s25, 0
      %p191 = por %p189, %p190
      %p192 = scmp.ne.s32.totalorder %s180, %s181
      %p193 = scmp.eq.s32.totalorder %s26, 1
      %p194 = por %p192, %p193
      %p196 = scmp.ne.s32.totalorder %s181, %s195
      %p197 = scmp.eq.s32.totalorder %s26, 0
      %p198 = por %p196, %p197
      %s199 = ssub.s32 %s28, %s35
      %s200 = ssub.s32 %s27, %s39
      %s201 = sor.u32 %s199, %s200
      %p202 = scmp.eq.s32.totalorder %s201, 0
      %s204 = sadd.s32 %s203, 1
      %s205 = scalar_select %p202, %s203, %s204
      %p208 = pneg %p202
      %p209 = scmp.eq.s32.totalorder %s20, 1
      %p210 = por %p208, %p209
      %p211 = scmp.ne.s32.totalorder %s203, %s206
      %p212 = scmp.eq.s32.totalorder %s20, 0
      %p213 = por %p211, %p212
      %p214 = scmp.ne.s32.totalorder %s203, %s206
      %p215 = scmp.eq.s32.totalorder %s25, 1
      %p216 = por %p214, %p215
      %p217 = scmp.ne.s32.totalorder %s206, %s207
      %p218 = scmp.eq.s32.totalorder %s25, 0
      %p219 = por %p217, %p218
      %p220 = scmp.ne.s32.totalorder %s206, %s207
      %p221 = scmp.eq.s32.totalorder %s26, 1
      %p222 = por %p220, %p221
      %p224 = scmp.ne.s32.totalorder %s207, %s223
      %p225 = scmp.eq.s32.totalorder %s26, 0
      %p226 = por %p224, %p225
      %s227 = ssub.s32 %s27, %s39
      %p228 = scmp.eq.s32.totalorder %s227, 0
      %s230 = sadd.s32 %s229, 1
      %s231 = scalar_select %p228, %s229, %s230
      %p234 = pneg %p228
      %p235 = scmp.eq.s32.totalorder %s20, 1
      %p236 = por %p234, %p235
      %p237 = scmp.ne.s32.totalorder %s229, %s232
      %p238 = scmp.eq.s32.totalorder %s20, 0
      %p239 = por %p237, %p238
      %p240 = scmp.ne.s32.totalorder %s229, %s232
      %p241 = scmp.eq.s32.totalorder %s25, 1
      %p242 = por %p240, %p241
      %p243 = scmp.ne.s32.totalorder %s232, %s233
      %p244 = scmp.eq.s32.totalorder %s25, 0
      %p245 = por %p243, %p244
      %p246 = scmp.ne.s32.totalorder %s232, %s233
      %p247 = scmp.eq.s32.totalorder %s26, 1
      %p248 = por %p246, %p247
      %p250 = scmp.ne.s32.totalorder %s233, %s249
      %p251 = scmp.eq.s32.totalorder %s26, 0
      %p252 = por %p250, %p251
      %s253 = ssub.s32 %s27, %s39
      %p254 = scmp.eq.s32.totalorder %s253, 0
      %s256 = sadd.s32 %s255, 1
      %s257 = scalar_select %p254, %s255, %s256
      %p260 = pneg %p254
      %p261 = scmp.eq.s32.totalorder %s20, 1
      %p262 = por %p260, %p261
      %p263 = scmp.ne.s32.totalorder %s255, %s258
      %p264 = scmp.eq.s32.totalorder %s20, 0
      %p265 = por %p263, %p264
      %p266 = scmp.ne.s32.totalorder %s255, %s258
      %p267 = scmp.eq.s32.totalorder %s25, 1
      %p268 = por %p266, %p267
      %p269 = scmp.ne.s32.totalorder %s258, %s259
      %p270 = scmp.eq.s32.totalorder %s25, 0
      %p271 = por %p269, %p270
      %p272 = scmp.ne.s32.totalorder %s258, %s259
      %p273 = scmp.eq.s32.totalorder %s26, 1
      %p274 = por %p272, %p273
      %p276 = scmp.ne.s32.totalorder %s259, %s275
      %p277 = scmp.eq.s32.totalorder %s26, 0
      %p278 = por %p276, %p277
      %p279 = scmp.le.s32.totalorder 1, %s20
      %p280 = scmp.lt.s32.totalorder %s20, 3
      %p281 = pnand %p279, %p280
      %p282 = pneg %p281
      // Predicated region
      $region9: #{encoder_lstm_oscar_pallas.1} parent=5 // pred_check
        _
      $region10: #{encoder_lstm_oscar_pallas.1} parent=5 // pred_check_branch
        %284 = sbr.rel (%p281) target = $region12
      $region11: #{encoder_lstm_oscar_pallas.1} parent=5 // pred_region
        %s285 = ssub.s32 %s20, 1
        // Predicated region
        $region13: #{encoder_lstm_oscar_pallas.1} parent=11 // pred_check
          %p286 = pneg %p86
        $region14: #{encoder_lstm_oscar_pallas.1} parent=11 // pred_check_branch
          %288 = sbr.rel (%p286) target = $region16
        $region15: #{encoder_lstm_oscar_pallas.1} parent=11 // pred_region
          %p289 = scmp.lt.s32.totalorder %s29, 0
          %s290 = scalar_select %p289, %s29, 0
          %s291 = smul.addr %s290, 8
          %s292 = scalar_lea.vmem %s2, %s291
        $region16: #{encoder_lstm_oscar_pallas.1} parent=11 // pred_fallthru
          _
        // Predicated region
        $region17: #{encoder_lstm_oscar_pallas.1} parent=11 // pred_check
          %p293 = pneg %p107
        $region18: #{encoder_lstm_oscar_pallas.1} parent=11 // pred_check_branch
          %295 = sbr.rel (%p293) target = $region20
        $region19: #{encoder_lstm_oscar_pallas.1} parent=11 // pred_region
          %s297 = ssub.s32 8192, 8192
          %298 = vsyncadd [#allocation9], %s297
          %s299 = sshll.u32 [#allocation8], 4
          %s300 = int_to_ptr.vmem [resolvable:$true] %s299
          %305 = dma.hbm_to_vmem [thread:$0]  %s3, 8192, %s300, [#allocation9], 512, 512, 32
        $region20: #{encoder_lstm_oscar_pallas.1} parent=11 // pred_fallthru
          _
        // Predicated region
        $region21: #{encoder_lstm_oscar_pallas.1} parent=11 // pred_check
          %p306 = pneg %p128
        $region22: #{encoder_lstm_oscar_pallas.1} parent=11 // pred_check_branch
          %308 = sbr.rel (%p306) target = $region24
        $region23: #{encoder_lstm_oscar_pallas.1} parent=11 // pred_region
          _
        $region24: #{encoder_lstm_oscar_pallas.1} parent=11 // pred_fallthru
          _
        // Predicated region
        $region25: #{encoder_lstm_oscar_pallas.1} parent=11 // pred_check
          %p309 = pneg %p149
        $region26: #{encoder_lstm_oscar_pallas.1} parent=11 // pred_check_branch
          %311 = sbr.rel (%p309) target = $region28
        $region27: #{encoder_lstm_oscar_pallas.1} parent=11 // pred_region
          %s313 = ssub.s32 8192, 8192
          %314 = vsyncadd [#allocation11], %s313
          %s315 = sshll.u32 [#allocation10], 4
          %s316 = int_to_ptr.vmem [resolvable:$true] %s315
          %321 = dma.hbm_to_vmem [thread:$0]  %s5, 8192, %s316, [#allocation11], 512, 512, 32
        $region28: #{encoder_lstm_oscar_pallas.1} parent=11 // pred_fallthru
          _
        // Predicated region
        $region29: #{encoder_lstm_oscar_pallas.1} parent=11 // pred_check
          %p322 = pneg %p170
        $region30: #{encoder_lstm_oscar_pallas.1} parent=11 // pred_check_branch
          %324 = sbr.rel (%p322) target = $region32
        $region31: #{encoder_lstm_oscar_pallas.1} parent=11 // pred_region
          _
        $region32: #{encoder_lstm_oscar_pallas.1} parent=11 // pred_fallthru
          _
        // Predicated region
        $region33: #{encoder_lstm_oscar_pallas.1} parent=11 // pred_check
          %p325 = pneg %p191
        $region34: #{encoder_lstm_oscar_pallas.1} parent=11 // pred_check_branch
          %327 = sbr.rel (%p325) target = $region36
        $region35: #{encoder_lstm_oscar_pallas.1} parent=11 // pred_region
          _
        $region36: #{encoder_lstm_oscar_pallas.1} parent=11 // pred_fallthru
          _
      $region12: #{encoder_lstm_oscar_pallas.1} parent=5 // pred_fallthru
        _
      %p328 = scmp.lt.s32.totalorder %s20, 2
      // Predicated region
      $region37: #{encoder_lstm_oscar_pallas.1} parent=5 // pred_check
        %p329 = pneg %p328
      $region38: #{encoder_lstm_oscar_pallas.1} parent=5 // pred_check_branch
        %331 = sbr.rel (%p329) target = $region40
      $region39: #{encoder_lstm_oscar_pallas.1} parent=5 // pred_region
        // Predicated region
        $region41: #{encoder_lstm_oscar_pallas.1} parent=39 // pred_check
          %p332 = pneg %p54
        $region42: #{encoder_lstm_oscar_pallas.1} parent=39 // pred_check_branch
          %334 = sbr.rel (%p332) target = $region44
        $region43: #{encoder_lstm_oscar_pallas.1} parent=39 // pred_region
          %s335 = smul.u32 8, %s28
          %p336 = scmp.lt.s32.totalorder %s335, 15
          %s337 = scalar_select %p336, %s335, 15
          %p338 = scmp.lt.s32.totalorder %s27, 0
          %s339 = scalar_select %p338, %s27, 0
          %s340 = sadd.s32 %s339, %s337
          %s341 = smul.addr %s340, 8
          %s342 = scalar_lea.vmem %s1, %s341
          %s343 = smul.u32 8, %s28
        $region44: #{encoder_lstm_oscar_pallas.1} parent=39 // pred_fallthru
          _
      $region40: #{encoder_lstm_oscar_pallas.1} parent=5 // pred_fallthru
        _
      %p344 = scmp.le.s32.totalorder 1, %s20
      %p345 = scmp.lt.s32.totalorder %s20, 3
      %p346 = pnand %p344, %p345
      %p347 = pneg %p346
      // Predicated region
      $region45: #{encoder_lstm_oscar_pallas.1} parent=5 // pred_check
        _
      $region46: #{encoder_lstm_oscar_pallas.1} parent=5 // pred_check_branch
        %349 = sbr.rel (%p346) target = $region48
      $region47: #{encoder_lstm_oscar_pallas.1} parent=5 // pred_region
        %s350 = ssub.s32 %s20, 1
        // Predicated region
        $region49: #{encoder_lstm_oscar_pallas.1} parent=47 // pred_check
          %p351 = pneg %p107
        $region50: #{encoder_lstm_oscar_pallas.1} parent=47 // pred_check_branch
          %353 = sbr.rel (%p351) target = $region52
        $region51: #{encoder_lstm_oscar_pallas.1} parent=47 // pred_region
          %354 = dma.done [#allocation9], 8192
        $region52: #{encoder_lstm_oscar_pallas.1} parent=47 // pred_fallthru
          _
        // Predicated region
        $region53: #{encoder_lstm_oscar_pallas.1} parent=47 // pred_check
          %p355 = pneg %p149
        $region54: #{encoder_lstm_oscar_pallas.1} parent=47 // pred_check_branch
          %357 = sbr.rel (%p355) target = $region56
        $region55: #{encoder_lstm_oscar_pallas.1} parent=47 // pred_region
          %358 = dma.done [#allocation11], 8192
        $region56: #{encoder_lstm_oscar_pallas.1} parent=47 // pred_fallthru
          _
        %s359 = smul.u32 8, %s30
        %p360 = scmp.lt.s32.totalorder %s359, 15
        %s361 = scalar_select %p360, %s359, 15
        %p362 = scmp.lt.s32.totalorder %s29, 0
        %s363 = scalar_select %p362, %s29, 0
        %s364 = sadd.s32 %s363, %s361
        %s365 = smul.addr %s364, 8
        %s366 = scalar_lea.vmem %s1, %s365
        %p367 = pneg %p60
        %p368 = pneg %p57
        %p369 = scmp.lt.s32.totalorder %s29, 0
        %s370 = scalar_select %p369, %s29, 0
        %s371 = smul.addr %s370, 8
        %s372 = scalar_lea.vmem %s2, %s371
        %p373 = pneg %p86
        %p374 = pneg %p83
        %p375 = pneg %p107
        %p376 = pneg %p104
        %p377 = pneg %p128
        %p378 = pneg %p125
        %p379 = pneg %p149
        %p380 = pneg %p146
        %p381 = pneg %p170
        %p382 = pneg %p167
        %p383 = pneg %p191
        %p384 = pneg %p188
        %p385 = pneg %p219
        %p386 = pneg %p216
        %s387 = smul.u32 8, %s30
        %p388 = scmp.lt.s32.totalorder %s387, 15
        %s389 = scalar_select %p388, %s387, 15
        %p390 = scmp.lt.s32.totalorder %s29, 0
        %s391 = scalar_select %p390, %s29, 0
        %s392 = sadd.s32 %s391, %s389
        %s393 = smul.addr %s392, 8
        %s394 = scalar_lea.vmem %s8, %s393
        %p395 = pneg %p245
        %p396 = pneg %p242
        %p397 = scmp.lt.s32.totalorder %s29, 0
        %s398 = scalar_select %p397, %s29, 0
        %s399 = smul.addr %s398, 8
        %s400 = scalar_lea.vmem %s9, %s399
        %p401 = pneg %p271
        %p402 = pneg %p268
        %p403 = scmp.lt.s32.totalorder %s29, 0
        %s404 = scalar_select %p403, %s29, 0
        %s405 = smul.addr %s404, 8
        %s406 = scalar_lea.vmem %s10, %s405
        %s407 = smul.u32 8, %s30
        %p408 = scmp.lt.s32.totalorder %s407, 15
        %s409 = scalar_select %p408, %s407, 15
        %p410 = scmp.lt.s32.totalorder %s29, 0
        %s411 = scalar_select %p410, %s29, 0
        %s412 = sadd.s32 %s411, %s409
        %s413 = smul.addr %s412, 8
        %s414 = scalar_lea.vmem %s1, %s413
        %s415 = smul.u32 8, %s30
        %p416 = scmp.lt.s32.totalorder %s29, 0
        %s417 = scalar_select %p416, %s29, 0
        %s418 = smul.addr %s417, 8
        %s419 = scalar_lea.vmem %s2, %s418
        %s420 = smul.u32 8, %s30
        %p421 = scmp.lt.s32.totalorder %s420, 15
        %s422 = scalar_select %p421, %s420, 15
        %p423 = scmp.lt.s32.totalorder %s29, 0
        %s424 = scalar_select %p423, %s29, 0
        %s425 = sadd.s32 %s424, %s422
        %s426 = smul.addr %s425, 8
        %s427 = scalar_lea.vmem %s8, %s426
        %s428 = smul.u32 8, %s30
        %p429 = scmp.lt.s32.totalorder %s29, 0
        %s430 = scalar_select %p429, %s29, 0
        %s431 = smul.addr %s430, 8
        %s432 = scalar_lea.vmem %s9, %s431
        %p433 = scmp.lt.s32.totalorder %s29, 0
        %s434 = scalar_select %p433, %s29, 0
        %s435 = smul.addr %s434, 8
        %s436 = scalar_lea.vmem %s10, %s435
        %s437 = smul.u32 %s30, 8
        %p438 = scmp.eq.s32.totalorder %s30, 0
        // Predicated region
        $region57: #{encoder_lstm_oscar_pallas.1} parent=47 // pred_check
          %p439 = pneg %p438
        $region58: #{encoder_lstm_oscar_pallas.1} parent=47 // pred_check_branch
          %441 = sbr.rel (%p439) target = $region60
        $region59: #{encoder_lstm_oscar_pallas.1} parent=47 // pred_region
          %442 = vst [vmem:[#allocation4] sm:$0xff] 0.0
          %443 = vst [vmem:[#allocation5] sm:$0xff] 0.0
        $region60: #{encoder_lstm_oscar_pallas.1} parent=47 // pred_fallthru
          _
        %s444 = sld [smem:[#allocation7 + %s29]]
        %p445 = scmp.lt.s32.totalorder %s437, %s444
        %p446 = scmp.ge.s32.totalorder %s437, %s444
        // Predicated region
        $region61: #{encoder_lstm_oscar_pallas.1} parent=47 // pred_check
          %p447 = pneg %p446
        $region62: #{encoder_lstm_oscar_pallas.1} parent=47 // pred_check_branch
          %449 = sbr.rel (%p447) target = $region64
        $region63: #{encoder_lstm_oscar_pallas.1} parent=47 // pred_region
          %450 = vst [vmem:[%s427] sm:$0xff] 0.0
          %451 = vst [vmem:[%s427 + $0x8] sm:$0xff] 0.0
          %452 = vst [vmem:[%s427 + $0x10] sm:$0xff] 0.0
          %453 = vst [vmem:[%s427 + $0x18] sm:$0xff] 0.0
          %454 = vst [vmem:[%s427 + $0x20] sm:$0xff] 0.0
          %455 = vst [vmem:[%s427 + $0x28] sm:$0xff] 0.0
          %456 = vst [vmem:[%s427 + $0x30] sm:$0xff] 0.0
          %457 = vst [vmem:[%s427 + $0x38] sm:$0xff] 0.0
        $region64: #{encoder_lstm_oscar_pallas.1} parent=47 // pred_fallthru
          _
        // Predicated region
        $region65: #{encoder_lstm_oscar_pallas.1} parent=47 // pred_check
          %p458 = pneg %p445
        $region66: #{encoder_lstm_oscar_pallas.1} parent=47 // pred_check_branch
          %460 = sbr.rel (%p458) target = $region68
        $region67: #{encoder_lstm_oscar_pallas.1} parent=47 // pred_region
          %v461 = vld [vmem:[#allocation8] sm:$0xff]
          %v462 = vld [vmem:[#allocation8 + $0x8] sm:$0xff]
          %v463 = vld [vmem:[#allocation8 + $0x10] sm:$0xff]
          %v464 = vld [vmem:[#allocation8 + $0x18] sm:$0xff]
          %v465 = vld [vmem:[#allocation8 + $0x20] sm:$0xff]
          %v466 = vld [vmem:[#allocation8 + $0x28] sm:$0xff]
          %v467 = vld [vmem:[#allocation8 + $0x30] sm:$0xff]
          %v468 = vld [vmem:[#allocation8 + $0x38] sm:$0xff]
          %v469 = vld [vmem:[#allocation8 + $0x40] sm:$0xff]
          %v470 = vld [vmem:[#allocation8 + $0x48] sm:$0xff]
          %v471 = vld [vmem:[#allocation8 + $0x50] sm:$0xff]
          %v472 = vld [vmem:[#allocation8 + $0x58] sm:$0xff]
          %v473 = vld [vmem:[#allocation8 + $0x60] sm:$0xff]
          %v474 = vld [vmem:[#allocation8 + $0x68] sm:$0xff]
          %v475 = vld [vmem:[#allocation8 + $0x70] sm:$0xff]
          %v476 = vld [vmem:[#allocation8 + $0x78] sm:$0xff]
          %v477 = vld [vmem:[#allocation8 + $0x80] sm:$0xff]
          %v478 = vld [vmem:[#allocation8 + $0x88] sm:$0xff]
          %v479 = vld [vmem:[#allocation8 + $0x90] sm:$0xff]
          %v480 = vld [vmem:[#allocation8 + $0x98] sm:$0xff]
          %v481 = vld [vmem:[#allocation8 + $0xa0] sm:$0xff]
          %v482 = vld [vmem:[#allocation8 + $0xa8] sm:$0xff]
          %v483 = vld [vmem:[#allocation8 + $0xb0] sm:$0xff]
          %v484 = vld [vmem:[#allocation8 + $0xb8] sm:$0xff]
          %v485 = vld [vmem:[#allocation8 + $0xc0] sm:$0xff]
          %v486 = vld [vmem:[#allocation8 + $0xc8] sm:$0xff]
          %v487 = vld [vmem:[#allocation8 + $0xd0] sm:$0xff]
          %v488 = vld [vmem:[#allocation8 + $0xd8] sm:$0xff]
          %v489 = vld [vmem:[#allocation8 + $0xe0] sm:$0xff]
          %v490 = vld [vmem:[#allocation8 + $0xe8] sm:$0xff]
          %v491 = vld [vmem:[#allocation8 + $0xf0] sm:$0xff]
          %v492 = vld [vmem:[#allocation8 + $0xf8] sm:$0xff]
          %v493 = vld [vmem:[#allocation8 + $0x100] sm:$0xff]
          %v494 = vld [vmem:[#allocation8 + $0x108] sm:$0xff]
          %v495 = vld [vmem:[#allocation8 + $0x110] sm:$0xff]
          %v496 = vld [vmem:[#allocation8 + $0x118] sm:$0xff]
          %v497 = vld [vmem:[#allocation8 + $0x120] sm:$0xff]
          %v498 = vld [vmem:[#allocation8 + $0x128] sm:$0xff]
          %v499 = vld [vmem:[#allocation8 + $0x130] sm:$0xff]
          %v500 = vld [vmem:[#allocation8 + $0x138] sm:$0xff]
          %v501 = vld [vmem:[#allocation8 + $0x140] sm:$0xff]
          %v502 = vld [vmem:[#allocation8 + $0x148] sm:$0xff]
          %v503 = vld [vmem:[#allocation8 + $0x150] sm:$0xff]
          %v504 = vld [vmem:[#allocation8 + $0x158] sm:$0xff]
          %v505 = vld [vmem:[#allocation8 + $0x160] sm:$0xff]
          %v506 = vld [vmem:[#allocation8 + $0x168] sm:$0xff]
          %v507 = vld [vmem:[#allocation8 + $0x170] sm:$0xff]
          %v508 = vld [vmem:[#allocation8 + $0x178] sm:$0xff]
          %v509 = vld [vmem:[#allocation8 + $0x180] sm:$0xff]
          %v510 = vld [vmem:[#allocation8 + $0x188] sm:$0xff]
          %v511 = vld [vmem:[#allocation8 + $0x190] sm:$0xff]
          %v512 = vld [vmem:[#allocation8 + $0x198] sm:$0xff]
          %v513 = vld [vmem:[#allocation8 + $0x1a0] sm:$0xff]
          %v514 = vld [vmem:[#allocation8 + $0x1a8] sm:$0xff]
          %v515 = vld [vmem:[#allocation8 + $0x1b0] sm:$0xff]
          %v516 = vld [vmem:[#allocation8 + $0x1b8] sm:$0xff]
          %v517 = vld [vmem:[#allocation8 + $0x1c0] sm:$0xff]
          %v518 = vld [vmem:[#allocation8 + $0x1c8] sm:$0xff]
          %v519 = vld [vmem:[#allocation8 + $0x1d0] sm:$0xff]
          %v520 = vld [vmem:[#allocation8 + $0x1d8] sm:$0xff]
          %v521 = vld [vmem:[#allocation8 + $0x1e0] sm:$0xff]
          %v522 = vld [vmem:[#allocation8 + $0x1e8] sm:$0xff]
          %v523 = vld [vmem:[#allocation8 + $0x1f0] sm:$0xff]
          %v524 = vld [vmem:[#allocation8 + $0x1f8] sm:$0xff]
          %v525 = vld [vmem:[%s4] sm:$0xf]
          %v526 = vld [vmem:[%s414] sm:$0xff]
          %v528 = vlaneseq
          %v529 = vshrl.u32 %v528, 7
          %v530 = vsub.s32 0, %v529
          %v531 = vrot.slane %v525, %v530
          %v532 = vlaneseq
          %v533 = vshrl.u32 %v532, 7
          %v534 = vsub.s32 1, %v533
          %v535 = vrot.slane %v525, %v534
          %v536 = vlaneseq
          %v537 = vshrl.u32 %v536, 7
          %v538 = vsub.s32 2, %v537
          %v539 = vrot.slane %v525, %v538
          %v540 = vlaneseq
          %v541 = vshrl.u32 %v540, 7
          %v542 = vsub.s32 3, %v541
          %v543 = vrot.slane %v525, %v542
          %548 = vmatprep.subr.mxu0 %v462
          %549 = vmatpush1.msra.mxu0 %v461
          %550 = vmatprep.subr.mxu0 %v466
          %551 = vmatpush1.msra.mxu0 %v465
          %552 = vmatprep.subr.mxu0 %v470
          %553 = vmatpush1.msra.mxu0 %v469
          %554 = vmatprep.subr.mxu0 %v474
          %555 = vmatpush1.msra.mxu0 %v473
          %556 = vmatprep.subr.mxu0 %v478
          %557 = vmatpush1.msra.mxu0 %v477
          %558 = vmatprep.subr.mxu0 %v482
          %559 = vmatpush1.msra.mxu0 %v481
          %560 = vmatprep.subr.mxu0 %v486
          %561 = vmatpush1.msra.mxu0 %v485
          %562 = vmatprep.subr.mxu0 %v490
          %563 = vmatpush1.msra.mxu0 %v489
          %564 = vmatprep.subr.mxu0 %v494
          %565 = vmatpush1.msra.mxu0 %v493
          %566 = vmatprep.subr.mxu0 %v498
          %567 = vmatpush1.msra.mxu0 %v497
          %568 = vmatprep.subr.mxu0 %v502
          %569 = vmatpush1.msra.mxu0 %v501
          %570 = vmatprep.subr.mxu0 %v506
          %571 = vmatpush1.msra.mxu0 %v505
          %572 = vmatprep.subr.mxu0 %v510
          %573 = vmatpush1.msra.mxu0 %v509
          %574 = vmatprep.subr.mxu0 %v514
          %575 = vmatpush1.msra.mxu0 %v513
          %576 = vmatprep.subr.mxu0 %v518
          %577 = vmatpush1.msra.mxu0 %v517
          %578 = vmatprep.subr.mxu0 %v522
          %579 = vmatpush1.msra.mxu0 %v521
          %580 = vmatprep.subr.mxu0 0.0
          %581 = vmatpush1.msra.mxu0 0.0
          %582 = vmatprep.subr.mxu0 0.0
          %583 = vmatpush1.msra.mxu0 0.0
          %584 = vmatprep.subr.mxu0 0.0
          %585 = vmatpush1.msra.mxu0 0.0
          %586 = vmatprep.subr.mxu0 0.0
          %587 = vmatpush1.msra.mxu0 0.0
          %588 = vmatprep.subr.mxu0 0.0
          %589 = vmatpush1.msra.mxu0 0.0
          %590 = vmatprep.subr.mxu0 0.0
          %591 = vmatpush1.msra.mxu0 0.0
          %592 = vmatprep.subr.mxu0 0.0
          %593 = vmatpush1.msra.mxu0 0.0
          %594 = vmatprep.subr.mxu0 0.0
          %595 = vmatpush1.msra.mxu0 0.0
          %596 = vmatprep.subr.mxu0 0.0
          %597 = vmatpush1.msra.mxu0 0.0
          %598 = vmatprep.subr.mxu0 0.0
          %599 = vmatpush1.msra.mxu0 0.0
          %600 = vmatprep.subr.mxu0 0.0
          %601 = vmatpush1.msra.mxu0 0.0
          %602 = vmatprep.subr.mxu0 0.0
          %603 = vmatpush1.msra.mxu0 0.0
          %604 = vmatprep.subr.mxu0 0.0
          %605 = vmatpush1.msra.mxu0 0.0
          %606 = vmatprep.subr.mxu0 0.0
          %607 = vmatpush1.msra.mxu0 0.0
          %608 = vmatprep.subr.mxu0 0.0
          %609 = vmatpush1.msra.mxu0 0.0
          %610 = vmatprep.subr.mxu0 0.0
          %611 = vmatpush1.msra.mxu0 0.0
          %612 = vmatprep.mubr.f32.mxu0 0.0
          %613 = vmatmul.mubr.f32.gmra.mrb[0].mxu0 %v526
          %v614 = vpop.f32.mrb[0].mxu0
          %v615 = vadd.f32 %v531, %v614
          %v616 = vpop.f32.mrb[0].mxu0
          %v617 = vadd.f32 %v535, %v616
          %618 = vdwg.mxu0
          %619 = vmatprep.subr.mxu0 %v464
          %620 = vmatpush1.msra.mxu0 %v463
          %621 = vmatprep.subr.mxu0 %v468
          %622 = vmatpush1.msra.mxu0 %v467
          %623 = vmatprep.subr.mxu0 %v472
          %624 = vmatpush1.msra.mxu0 %v471
          %625 = vmatprep.subr.mxu0 %v476
          %626 = vmatpush1.msra.mxu0 %v475
          %627 = vmatprep.subr.mxu0 %v480
          %628 = vmatpush1.msra.mxu0 %v479
          %629 = vmatprep.subr.mxu0 %v484
          %630 = vmatpush1.msra.mxu0 %v483
          %631 = vmatprep.subr.mxu0 %v488
          %632 = vmatpush1.msra.mxu0 %v487
          %633 = vmatprep.subr.mxu0 %v492
          %634 = vmatpush1.msra.mxu0 %v491
          %635 = vmatprep.subr.mxu0 %v496
          %636 = vmatpush1.msra.mxu0 %v495
          %637 = vmatprep.subr.mxu0 %v500
          %638 = vmatpush1.msra.mxu0 %v499
          %639 = vmatprep.subr.mxu0 %v504
          %640 = vmatpush1.msra.mxu0 %v503
          %641 = vmatprep.subr.mxu0 %v508
          %642 = vmatpush1.msra.mxu0 %v507
          %643 = vmatprep.subr.mxu0 %v512
          %644 = vmatpush1.msra.mxu0 %v511
          %645 = vmatprep.subr.mxu0 %v516
          %646 = vmatpush1.msra.mxu0 %v515
          %647 = vmatprep.subr.mxu0 %v520
          %648 = vmatpush1.msra.mxu0 %v519
          %649 = vmatprep.subr.mxu0 %v524
          %650 = vmatpush1.msra.mxu0 %v523
          %651 = vmatprep.subr.mxu0 0.0
          %652 = vmatpush1.msra.mxu0 0.0
          %653 = vmatprep.subr.mxu0 0.0
          %654 = vmatpush1.msra.mxu0 0.0
          %655 = vmatprep.subr.mxu0 0.0
          %656 = vmatpush1.msra.mxu0 0.0
          %657 = vmatprep.subr.mxu0 0.0
          %658 = vmatpush1.msra.mxu0 0.0
          %659 = vmatprep.subr.mxu0 0.0
          %660 = vmatpush1.msra.mxu0 0.0
          %661 = vmatprep.subr.mxu0 0.0
          %662 = vmatpush1.msra.mxu0 0.0
          %663 = vmatprep.subr.mxu0 0.0
          %664 = vmatpush1.msra.mxu0 0.0
          %665 = vmatprep.subr.mxu0 0.0
          %666 = vmatpush1.msra.mxu0 0.0
          %667 = vmatprep.subr.mxu0 0.0
          %668 = vmatpush1.msra.mxu0 0.0
          %669 = vmatprep.subr.mxu0 0.0
          %670 = vmatpush1.msra.mxu0 0.0
          %671 = vmatprep.subr.mxu0 0.0
          %672 = vmatpush1.msra.mxu0 0.0
          %673 = vmatprep.subr.mxu0 0.0
          %674 = vmatpush1.msra.mxu0 0.0
          %675 = vmatprep.subr.mxu0 0.0
          %676 = vmatpush1.msra.mxu0 0.0
          %677 = vmatprep.subr.mxu0 0.0
          %678 = vmatpush1.msra.mxu0 0.0
          %679 = vmatprep.subr.mxu0 0.0
          %680 = vmatpush1.msra.mxu0 0.0
          %681 = vmatprep.subr.mxu0 0.0
          %682 = vmatpush1.msra.mxu0 0.0
          %683 = vmatprep.mubr.f32.mxu0 0.0
          %684 = vmatmul.mubr.f32.gmra.mrb[0].mxu0 %v526
          %v685 = vpop.f32.mrb[0].mxu0
          %v686 = vadd.f32 %v539, %v685
          %v687 = vpop.f32.mrb[0].mxu0
          %v688 = vadd.f32 %v543, %v687
          %689 = vdwg.mxu0
          %690 = vst [vmem:[#allocation2] sm:$0xff] %v615
          %691 = vst [vmem:[#allocation2 + $0x8] sm:$0xff] %v617
          %692 = vst [vmem:[#allocation2 + $0x10] sm:$0xff] %v686
          %693 = vst [vmem:[#allocation2 + $0x18] sm:$0xff] %v688
          %s694 = scalar_lea.vmem %s414, 8
          %v695 = vld [vmem:[%s694] sm:$0xff]
          %696 = vmatprep.subr.mxu0 %v462
          %697 = vmatpush1.msra.mxu0 %v461
          %698 = vmatprep.subr.mxu0 %v466
          %699 = vmatpush1.msra.mxu0 %v465
          %700 = vmatprep.subr.mxu0 %v470
          %701 = vmatpush1.msra.mxu0 %v469
          %702 = vmatprep.subr.mxu0 %v474
          %703 = vmatpush1.msra.mxu0 %v473
          %704 = vmatprep.subr.mxu0 %v478
          %705 = vmatpush1.msra.mxu0 %v477
          %706 = vmatprep.subr.mxu0 %v482
          %707 = vmatpush1.msra.mxu0 %v481
          %708 = vmatprep.subr.mxu0 %v486
          %709 = vmatpush1.msra.mxu0 %v485
          %710 = vmatprep.subr.mxu0 %v490
          %711 = vmatpush1.msra.mxu0 %v489
          %712 = vmatprep.subr.mxu0 %v494
          %713 = vmatpush1.msra.mxu0 %v493
          %714 = vmatprep.subr.mxu0 %v498
          %715 = vmatpush1.msra.mxu0 %v497
          %716 = vmatprep.subr.mxu0 %v502
          %717 = vmatpush1.msra.mxu0 %v501
          %718 = vmatprep.subr.mxu0 %v506
          %719 = vmatpush1.msra.mxu0 %v505
          %720 = vmatprep.subr.mxu0 %v510
          %721 = vmatpush1.msra.mxu0 %v509
          %722 = vmatprep.subr.mxu0 %v514
          %723 = vmatpush1.msra.mxu0 %v513
          %724 = vmatprep.subr.mxu0 %v518
          %725 = vmatpush1.msra.mxu0 %v517
          %726 = vmatprep.subr.mxu0 %v522
          %727 = vmatpush1.msra.mxu0 %v521
          %728 = vmatprep.subr.mxu0 0.0
          %729 = vmatpush1.msra.mxu0 0.0
          %730 = vmatprep.subr.mxu0 0.0
          %731 = vmatpush1.msra.mxu0 0.0
          %732 = vmatprep.subr.mxu0 0.0
          %733 = vmatpush1.msra.mxu0 0.0
          %734 = vmatprep.subr.mxu0 0.0
          %735 = vmatpush1.msra.mxu0 0.0
          %736 = vmatprep.subr.mxu0 0.0
          %737 = vmatpush1.msra.mxu0 0.0
          %738 = vmatprep.subr.mxu0 0.0
          %739 = vmatpush1.msra.mxu0 0.0
          %740 = vmatprep.subr.mxu0 0.0
          %741 = vmatpush1.msra.mxu0 0.0
          %742 = vmatprep.subr.mxu0 0.0
          %743 = vmatpush1.msra.mxu0 0.0
          %744 = vmatprep.subr.mxu0 0.0
          %745 = vmatpush1.msra.mxu0 0.0
          %746 = vmatprep.subr.mxu0 0.0
          %747 = vmatpush1.msra.mxu0 0.0
          %748 = vmatprep.subr.mxu0 0.0
          %749 = vmatpush1.msra.mxu0 0.0
          %750 = vmatprep.subr.mxu0 0.0
          %751 = vmatpush1.msra.mxu0 0.0
          %752 = vmatprep.subr.mxu0 0.0
          %753 = vmatpush1.msra.mxu0 0.0
          %754 = vmatprep.subr.mxu0 0.0
          %755 = vmatpush1.msra.mxu0 0.0
          %756 = vmatprep.subr.mxu0 0.0
          %757 = vmatpush1.msra.mxu0 0.0
          %758 = vmatprep.subr.mxu0 0.0
          %759 = vmatpush1.msra.mxu0 0.0
          %760 = vmatprep.mubr.f32.mxu0 0.0
          %761 = vmatmul.mubr.f32.gmra.mrb[0].mxu0 %v695
          %v762 = vpop.f32.mrb[0].mxu0
          %v763 = vadd.f32 %v531, %v762
          %v764 = vpop.f32.mrb[0].mxu0
          %v765 = vadd.f32 %v535, %v764
          %766 = vdwg.mxu0
          %767 = vmatprep.subr.mxu0 %v464
          %768 = vmatpush1.msra.mxu0 %v463
          %769 = vmatprep.subr.mxu0 %v468
          %770 = vmatpush1.msra.mxu0 %v467
          %771 = vmatprep.subr.mxu0 %v472
          %772 = vmatpush1.msra.mxu0 %v471
          %773 = vmatprep.subr.mxu0 %v476
          %774 = vmatpush1.msra.mxu0 %v475
          %775 = vmatprep.subr.mxu0 %v480
          %776 = vmatpush1.msra.mxu0 %v479
          %777 = vmatprep.subr.mxu0 %v484
          %778 = vmatpush1.msra.mxu0 %v483
          %779 = vmatprep.subr.mxu0 %v488
          %780 = vmatpush1.msra.mxu0 %v487
          %781 = vmatprep.subr.mxu0 %v492
          %782 = vmatpush1.msra.mxu0 %v491
          %783 = vmatprep.subr.mxu0 %v496
          %784 = vmatpush1.msra.mxu0 %v495
          %785 = vmatprep.subr.mxu0 %v500
          %786 = vmatpush1.msra.mxu0 %v499
          %787 = vmatprep.subr.mxu0 %v504
          %788 = vmatpush1.msra.mxu0 %v503
          %789 = vmatprep.subr.mxu0 %v508
          %790 = vmatpush1.msra.mxu0 %v507
          %791 = vmatprep.subr.mxu0 %v512
          %792 = vmatpush1.msra.mxu0 %v511
          %793 = vmatprep.subr.mxu0 %v516
          %794 = vmatpush1.msra.mxu0 %v515
          %795 = vmatprep.subr.mxu0 %v520
          %796 = vmatpush1.msra.mxu0 %v519
          %797 = vmatprep.subr.mxu0 %v524
          %798 = vmatpush1.msra.mxu0 %v523
          %799 = vmatprep.subr.mxu0 0.0
          %800 = vmatpush1.msra.mxu0 0.0
          %801 = vmatprep.subr.mxu0 0.0
          %802 = vmatpush1.msra.mxu0 0.0
          %803 = vmatprep.subr.mxu0 0.0
          %804 = vmatpush1.msra.mxu0 0.0
          %805 = vmatprep.subr.mxu0 0.0
          %806 = vmatpush1.msra.mxu0 0.0
          %807 = vmatprep.subr.mxu0 0.0
          %808 = vmatpush1.msra.mxu0 0.0
          %809 = vmatprep.subr.mxu0 0.0
          %810 = vmatpush1.msra.mxu0 0.0
          %811 = vmatprep.subr.mxu0 0.0
          %812 = vmatpush1.msra.mxu0 0.0
          %813 = vmatprep.subr.mxu0 0.0
          %814 = vmatpush1.msra.mxu0 0.0
          %815 = vmatprep.subr.mxu0 0.0
          %816 = vmatpush1.msra.mxu0 0.0
          %817 = vmatprep.subr.mxu0 0.0
          %818 = vmatpush1.msra.mxu0 0.0
          %819 = vmatprep.subr.mxu0 0.0
          %820 = vmatpush1.msra.mxu0 0.0
          %821 = vmatprep.subr.mxu0 0.0
          %822 = vmatpush1.msra.mxu0 0.0
          %823 = vmatprep.subr.mxu0 0.0
          %824 = vmatpush1.msra.mxu0 0.0
          %825 = vmatprep.subr.mxu0 0.0
          %826 = vmatpush1.msra.mxu0 0.0
          %827 = vmatprep.subr.mxu0 0.0
          %828 = vmatpush1.msra.mxu0 0.0
          %829 = vmatprep.subr.mxu0 0.0
          %830 = vmatpush1.msra.mxu0 0.0
          %831 = vmatprep.mubr.f32.mxu0 0.0
          %832 = vmatmul.mubr.f32.gmra.mrb[0].mxu0 %v695
          %v833 = vpop.f32.mrb[0].mxu0
          %v834 = vadd.f32 %v539, %v833
          %v835 = vpop.f32.mrb[0].mxu0
          %v836 = vadd.f32 %v543, %v835
          %837 = vdwg.mxu0
          %s838 = scalar_lea.vmem [#allocation2], 32
          %839 = vst [vmem:[%s838] sm:$0xff] %v763
          %840 = vst [vmem:[%s838 + $0x8] sm:$0xff] %v765
          %841 = vst [vmem:[%s838 + $0x10] sm:$0xff] %v834
          %842 = vst [vmem:[%s838 + $0x18] sm:$0xff] %v836
          %s843 = scalar_lea.vmem %s414, 16
          %v844 = vld [vmem:[%s843] sm:$0xff]
          %845 = vmatprep.subr.mxu0 %v462
          %846 = vmatpush1.msra.mxu0 %v461
          %847 = vmatprep.subr.mxu0 %v466
          %848 = vmatpush1.msra.mxu0 %v465
          %849 = vmatprep.subr.mxu0 %v470
          %850 = vmatpush1.msra.mxu0 %v469
          %851 = vmatprep.subr.mxu0 %v474
          %852 = vmatpush1.msra.mxu0 %v473
          %853 = vmatprep.subr.mxu0 %v478
          %854 = vmatpush1.msra.mxu0 %v477
          %855 = vmatprep.subr.mxu0 %v482
          %856 = vmatpush1.msra.mxu0 %v481
          %857 = vmatprep.subr.mxu0 %v486
          %858 = vmatpush1.msra.mxu0 %v485
          %859 = vmatprep.subr.mxu0 %v490
          %860 = vmatpush1.msra.mxu0 %v489
          %861 = vmatprep.subr.mxu0 %v494
          %862 = vmatpush1.msra.mxu0 %v493
          %863 = vmatprep.subr.mxu0 %v498
          %864 = vmatpush1.msra.mxu0 %v497
          %865 = vmatprep.subr.mxu0 %v502
          %866 = vmatpush1.msra.mxu0 %v501
          %867 = vmatprep.subr.mxu0 %v506
          %868 = vmatpush1.msra.mxu0 %v505
          %869 = vmatprep.subr.mxu0 %v510
          %870 = vmatpush1.msra.mxu0 %v509
          %871 = vmatprep.subr.mxu0 %v514
          %872 = vmatpush1.msra.mxu0 %v513
          %873 = vmatprep.subr.mxu0 %v518
          %874 = vmatpush1.msra.mxu0 %v517
          %875 = vmatprep.subr.mxu0 %v522
          %876 = vmatpush1.msra.mxu0 %v521
          %877 = vmatprep.subr.mxu0 0.0
          %878 = vmatpush1.msra.mxu0 0.0
          %879 = vmatprep.subr.mxu0 0.0
          %880 = vmatpush1.msra.mxu0 0.0
          %881 = vmatprep.subr.mxu0 0.0
          %882 = vmatpush1.msra.mxu0 0.0
          %883 = vmatprep.subr.mxu0 0.0
          %884 = vmatpush1.msra.mxu0 0.0
          %885 = vmatprep.subr.mxu0 0.0
          %886 = vmatpush1.msra.mxu0 0.0
          %887 = vmatprep.subr.mxu0 0.0
          %888 = vmatpush1.msra.mxu0 0.0
          %889 = vmatprep.subr.mxu0 0.0
          %890 = vmatpush1.msra.mxu0 0.0
          %891 = vmatprep.subr.mxu0 0.0
          %892 = vmatpush1.msra.mxu0 0.0
          %893 = vmatprep.subr.mxu0 0.0
          %894 = vmatpush1.msra.mxu0 0.0
          %895 = vmatprep.subr.mxu0 0.0
          %896 = vmatpush1.msra.mxu0 0.0
          %897 = vmatprep.subr.mxu0 0.0
          %898 = vmatpush1.msra.mxu0 0.0
          %899 = vmatprep.subr.mxu0 0.0
          %900 = vmatpush1.msra.mxu0 0.0
          %901 = vmatprep.subr.mxu0 0.0
          %902 = vmatpush1.msra.mxu0 0.0
          %903 = vmatprep.subr.mxu0 0.0
          %904 = vmatpush1.msra.mxu0 0.0
          %905 = vmatprep.subr.mxu0 0.0
          %906 = vmatpush1.msra.mxu0 0.0
          %907 = vmatprep.subr.mxu0 0.0
          %908 = vmatpush1.msra.mxu0 0.0
          %909 = vmatprep.mubr.f32.mxu0 0.0
          %910 = vmatmul.mubr.f32.gmra.mrb[0].mxu0 %v844
          %v911 = vpop.f32.mrb[0].mxu0
          %v912 = vadd.f32 %v531, %v911
          %v913 = vpop.f32.mrb[0].mxu0
          %v914 = vadd.f32 %v535, %v913
          %915 = vdwg.mxu0
          %916 = vmatprep.subr.mxu0 %v464
          %917 = vmatpush1.msra.mxu0 %v463
          %918 = vmatprep.subr.mxu0 %v468
          %919 = vmatpush1.msra.mxu0 %v467
          %920 = vmatprep.subr.mxu0 %v472
          %921 = vmatpush1.msra.mxu0 %v471
          %922 = vmatprep.subr.mxu0 %v476
          %923 = vmatpush1.msra.mxu0 %v475
          %924 = vmatprep.subr.mxu0 %v480
          %925 = vmatpush1.msra.mxu0 %v479
          %926 = vmatprep.subr.mxu0 %v484
          %927 = vmatpush1.msra.mxu0 %v483
          %928 = vmatprep.subr.mxu0 %v488
          %929 = vmatpush1.msra.mxu0 %v487
          %930 = vmatprep.subr.mxu0 %v492
          %931 = vmatpush1.msra.mxu0 %v491
          %932 = vmatprep.subr.mxu0 %v496
          %933 = vmatpush1.msra.mxu0 %v495
          %934 = vmatprep.subr.mxu0 %v500
          %935 = vmatpush1.msra.mxu0 %v499
          %936 = vmatprep.subr.mxu0 %v504
          %937 = vmatpush1.msra.mxu0 %v503
          %938 = vmatprep.subr.mxu0 %v508
          %939 = vmatpush1.msra.mxu0 %v507
          %940 = vmatprep.subr.mxu0 %v512
          %941 = vmatpush1.msra.mxu0 %v511
          %942 = vmatprep.subr.mxu0 %v516
          %943 = vmatpush1.msra.mxu0 %v515
          %944 = vmatprep.subr.mxu0 %v520
          %945 = vmatpush1.msra.mxu0 %v519
          %946 = vmatprep.subr.mxu0 %v524
          %947 = vmatpush1.msra.mxu0 %v523
          %948 = vmatprep.subr.mxu0 0.0
          %949 = vmatpush1.msra.mxu0 0.0
          %950 = vmatprep.subr.mxu0 0.0
          %951 = vmatpush1.msra.mxu0 0.0
          %952 = vmatprep.subr.mxu0 0.0
          %953 = vmatpush1.msra.mxu0 0.0
          %954 = vmatprep.subr.mxu0 0.0
          %955 = vmatpush1.msra.mxu0 0.0
          %956 = vmatprep.subr.mxu0 0.0
          %957 = vmatpush1.msra.mxu0 0.0
          %958 = vmatprep.subr.mxu0 0.0
          %959 = vmatpush1.msra.mxu0 0.0
          %960 = vmatprep.subr.mxu0 0.0
          %961 = vmatpush1.msra.mxu0 0.0
          %962 = vmatprep.subr.mxu0 0.0
          %963 = vmatpush1.msra.mxu0 0.0
          %964 = vmatprep.subr.mxu0 0.0
          %965 = vmatpush1.msra.mxu0 0.0
          %966 = vmatprep.subr.mxu0 0.0
          %967 = vmatpush1.msra.mxu0 0.0
          %968 = vmatprep.subr.mxu0 0.0
          %969 = vmatpush1.msra.mxu0 0.0
          %970 = vmatprep.subr.mxu0 0.0
          %971 = vmatpush1.msra.mxu0 0.0
          %972 = vmatprep.subr.mxu0 0.0
          %973 = vmatpush1.msra.mxu0 0.0
          %974 = vmatprep.subr.mxu0 0.0
          %975 = vmatpush1.msra.mxu0 0.0
          %976 = vmatprep.subr.mxu0 0.0
          %977 = vmatpush1.msra.mxu0 0.0
          %978 = vmatprep.subr.mxu0 0.0
          %979 = vmatpush1.msra.mxu0 0.0
          %980 = vmatprep.mubr.f32.mxu0 0.0
          %981 = vmatmul.mubr.f32.gmra.mrb[0].mxu0 %v844
          %v982 = vpop.f32.mrb[0].mxu0
          %v983 = vadd.f32 %v539, %v982
          %v984 = vpop.f32.mrb[0].mxu0
          %v985 = vadd.f32 %v543, %v984
          %986 = vdwg.mxu0
          %s987 = scalar_lea.vmem [#allocation2], 64
          %988 = vst [vmem:[%s987] sm:$0xff] %v912
          %989 = vst [vmem:[%s987 + $0x8] sm:$0xff] %v914
          %990 = vst [vmem:[%s987 + $0x10] sm:$0xff] %v983
          %991 = vst [vmem:[%s987 + $0x18] sm:$0xff] %v985
          %s992 = scalar_lea.vmem %s414, 24
          %v993 = vld [vmem:[%s992] sm:$0xff]
          %994 = vmatprep.subr.mxu0 %v462
          %995 = vmatpush1.msra.mxu0 %v461
          %996 = vmatprep.subr.mxu0 %v466
          %997 = vmatpush1.msra.mxu0 %v465
          %998 = vmatprep.subr.mxu0 %v470
          %999 = vmatpush1.msra.mxu0 %v469
          %1000 = vmatprep.subr.mxu0 %v474
          %1001 = vmatpush1.msra.mxu0 %v473
          %1002 = vmatprep.subr.mxu0 %v478
          %1003 = vmatpush1.msra.mxu0 %v477
          %1004 = vmatprep.subr.mxu0 %v482
          %1005 = vmatpush1.msra.mxu0 %v481
          %1006 = vmatprep.subr.mxu0 %v486
          %1007 = vmatpush1.msra.mxu0 %v485
          %1008 = vmatprep.subr.mxu0 %v490
          %1009 = vmatpush1.msra.mxu0 %v489
          %1010 = vmatprep.subr.mxu0 %v494
          %1011 = vmatpush1.msra.mxu0 %v493
          %1012 = vmatprep.subr.mxu0 %v498
          %1013 = vmatpush1.msra.mxu0 %v497
          %1014 = vmatprep.subr.mxu0 %v502
          %1015 = vmatpush1.msra.mxu0 %v501
          %1016 = vmatprep.subr.mxu0 %v506
          %1017 = vmatpush1.msra.mxu0 %v505
          %1018 = vmatprep.subr.mxu0 %v510
          %1019 = vmatpush1.msra.mxu0 %v509
          %1020 = vmatprep.subr.mxu0 %v514
          %1021 = vmatpush1.msra.mxu0 %v513
          %1022 = vmatprep.subr.mxu0 %v518
          %1023 = vmatpush1.msra.mxu0 %v517
          %1024 = vmatprep.subr.mxu0 %v522
          %1025 = vmatpush1.msra.mxu0 %v521
          %1026 = vmatprep.subr.mxu0 0.0
          %1027 = vmatpush1.msra.mxu0 0.0
          %1028 = vmatprep.subr.mxu0 0.0
          %1029 = vmatpush1.msra.mxu0 0.0
          %1030 = vmatprep.subr.mxu0 0.0
          %1031 = vmatpush1.msra.mxu0 0.0
          %1032 = vmatprep.subr.mxu0 0.0
          %1033 = vmatpush1.msra.mxu0 0.0
          %1034 = vmatprep.subr.mxu0 0.0
          %1035 = vmatpush1.msra.mxu0 0.0
          %1036 = vmatprep.subr.mxu0 0.0
          %1037 = vmatpush1.msra.mxu0 0.0
          %1038 = vmatprep.subr.mxu0 0.0
          %1039 = vmatpush1.msra.mxu0 0.0
          %1040 = vmatprep.subr.mxu0 0.0
          %1041 = vmatpush1.msra.mxu0 0.0
          %1042 = vmatprep.subr.mxu0 0.0
          %1043 = vmatpush1.msra.mxu0 0.0
          %1044 = vmatprep.subr.mxu0 0.0
          %1045 = vmatpush1.msra.mxu0 0.0
          %1046 = vmatprep.subr.mxu0 0.0
          %1047 = vmatpush1.msra.mxu0 0.0
          %1048 = vmatprep.subr.mxu0 0.0
          %1049 = vmatpush1.msra.mxu0 0.0
          %1050 = vmatprep.subr.mxu0 0.0
          %1051 = vmatpush1.msra.mxu0 0.0
          %1052 = vmatprep.subr.mxu0 0.0
          %1053 = vmatpush1.msra.mxu0 0.0
          %1054 = vmatprep.subr.mxu0 0.0
          %1055 = vmatpush1.msra.mxu0 0.0
          %1056 = vmatprep.subr.mxu0 0.0
          %1057 = vmatpush1.msra.mxu0 0.0
          %1058 = vmatprep.mubr.f32.mxu0 0.0
          %1059 = vmatmul.mubr.f32.gmra.mrb[0].mxu0 %v993
          %v1060 = vpop.f32.mrb[0].mxu0
          %v1061 = vadd.f32 %v531, %v1060
          %v1062 = vpop.f32.mrb[0].mxu0
          %v1063 = vadd.f32 %v535, %v1062
          %1064 = vdwg.mxu0
          %1065 = vmatprep.subr.mxu0 %v464
          %1066 = vmatpush1.msra.mxu0 %v463
          %1067 = vmatprep.subr.mxu0 %v468
          %1068 = vmatpush1.msra.mxu0 %v467
          %1069 = vmatprep.subr.mxu0 %v472
          %1070 = vmatpush1.msra.mxu0 %v471
          %1071 = vmatprep.subr.mxu0 %v476
          %1072 = vmatpush1.msra.mxu0 %v475
          %1073 = vmatprep.subr.mxu0 %v480
          %1074 = vmatpush1.msra.mxu0 %v479
          %1075 = vmatprep.subr.mxu0 %v484
          %1076 = vmatpush1.msra.mxu0 %v483
          %1077 = vmatprep.subr.mxu0 %v488
          %1078 = vmatpush1.msra.mxu0 %v487
          %1079 = vmatprep.subr.mxu0 %v492
          %1080 = vmatpush1.msra.mxu0 %v491
          %1081 = vmatprep.subr.mxu0 %v496
          %1082 = vmatpush1.msra.mxu0 %v495
          %1083 = vmatprep.subr.mxu0 %v500
          %1084 = vmatpush1.msra.mxu0 %v499
          %1085 = vmatprep.subr.mxu0 %v504
          %1086 = vmatpush1.msra.mxu0 %v503
          %1087 = vmatprep.subr.mxu0 %v508
          %1088 = vmatpush1.msra.mxu0 %v507
          %1089 = vmatprep.subr.mxu0 %v512
          %1090 = vmatpush1.msra.mxu0 %v511
          %1091 = vmatprep.subr.mxu0 %v516
          %1092 = vmatpush1.msra.mxu0 %v515
          %1093 = vmatprep.subr.mxu0 %v520
          %1094 = vmatpush1.msra.mxu0 %v519
          %1095 = vmatprep.subr.mxu0 %v524
          %1096 = vmatpush1.msra.mxu0 %v523
          %1097 = vmatprep.subr.mxu0 0.0
          %1098 = vmatpush1.msra.mxu0 0.0
          %1099 = vmatprep.subr.mxu0 0.0
          %1100 = vmatpush1.msra.mxu0 0.0
          %1101 = vmatprep.subr.mxu0 0.0
          %1102 = vmatpush1.msra.mxu0 0.0
          %1103 = vmatprep.subr.mxu0 0.0
          %1104 = vmatpush1.msra.mxu0 0.0
          %1105 = vmatprep.subr.mxu0 0.0
          %1106 = vmatpush1.msra.mxu0 0.0
          %1107 = vmatprep.subr.mxu0 0.0
          %1108 = vmatpush1.msra.mxu0 0.0
          %1109 = vmatprep.subr.mxu0 0.0
          %1110 = vmatpush1.msra.mxu0 0.0
          %1111 = vmatprep.subr.mxu0 0.0
          %1112 = vmatpush1.msra.mxu0 0.0
          %1113 = vmatprep.subr.mxu0 0.0
          %1114 = vmatpush1.msra.mxu0 0.0
          %1115 = vmatprep.subr.mxu0 0.0
          %1116 = vmatpush1.msra.mxu0 0.0
          %1117 = vmatprep.subr.mxu0 0.0
          %1118 = vmatpush1.msra.mxu0 0.0
          %1119 = vmatprep.subr.mxu0 0.0
          %1120 = vmatpush1.msra.mxu0 0.0
          %1121 = vmatprep.subr.mxu0 0.0
          %1122 = vmatpush1.msra.mxu0 0.0
          %1123 = vmatprep.subr.mxu0 0.0
          %1124 = vmatpush1.msra.mxu0 0.0
          %1125 = vmatprep.subr.mxu0 0.0
          %1126 = vmatpush1.msra.mxu0 0.0
          %1127 = vmatprep.subr.mxu0 0.0
          %1128 = vmatpush1.msra.mxu0 0.0
          %1129 = vmatprep.mubr.f32.mxu0 0.0
          %1130 = vmatmul.mubr.f32.gmra.mrb[0].mxu0 %v993
          %v1131 = vpop.f32.mrb[0].mxu0
          %v1132 = vadd.f32 %v539, %v1131
          %v1133 = vpop.f32.mrb[0].mxu0
          %v1134 = vadd.f32 %v543, %v1133
          %1135 = vdwg.mxu0
          %s1136 = scalar_lea.vmem [#allocation2], 96
          %1137 = vst [vmem:[%s1136] sm:$0xff] %v1061
          %1138 = vst [vmem:[%s1136 + $0x8] sm:$0xff] %v1063
          %1139 = vst [vmem:[%s1136 + $0x10] sm:$0xff] %v1132
          %1140 = vst [vmem:[%s1136 + $0x18] sm:$0xff] %v1134
          %s1141 = scalar_lea.vmem %s414, 32
          %v1142 = vld [vmem:[%s1141] sm:$0xff]
          %1143 = vmatprep.subr.mxu0 %v462
          %1144 = vmatpush1.msra.mxu0 %v461
          %1145 = vmatprep.subr.mxu0 %v466
          %1146 = vmatpush1.msra.mxu0 %v465
          %1147 = vmatprep.subr.mxu0 %v470
          %1148 = vmatpush1.msra.mxu0 %v469
          %1149 = vmatprep.subr.mxu0 %v474
          %1150 = vmatpush1.msra.mxu0 %v473
          %1151 = vmatprep.subr.mxu0 %v478
          %1152 = vmatpush1.msra.mxu0 %v477
          %1153 = vmatprep.subr.mxu0 %v482
          %1154 = vmatpush1.msra.mxu0 %v481
          %1155 = vmatprep.subr.mxu0 %v486
          %1156 = vmatpush1.msra.mxu0 %v485
          %1157 = vmatprep.subr.mxu0 %v490
          %1158 = vmatpush1.msra.mxu0 %v489
          %1159 = vmatprep.subr.mxu0 %v494
          %1160 = vmatpush1.msra.mxu0 %v493
          %1161 = vmatprep.subr.mxu0 %v498
          %1162 = vmatpush1.msra.mxu0 %v497
          %1163 = vmatprep.subr.mxu0 %v502
          %1164 = vmatpush1.msra.mxu0 %v501
          %1165 = vmatprep.subr.mxu0 %v506
          %1166 = vmatpush1.msra.mxu0 %v505
          %1167 = vmatprep.subr.mxu0 %v510
          %1168 = vmatpush1.msra.mxu0 %v509
          %1169 = vmatprep.subr.mxu0 %v514
          %1170 = vmatpush1.msra.mxu0 %v513
          %1171 = vmatprep.subr.mxu0 %v518
          %1172 = vmatpush1.msra.mxu0 %v517
          %1173 = vmatprep.subr.mxu0 %v522
          %1174 = vmatpush1.msra.mxu0 %v521
          %1175 = vmatprep.subr.mxu0 0.0
          %1176 = vmatpush1.msra.mxu0 0.0
          %1177 = vmatprep.subr.mxu0 0.0
          %1178 = vmatpush1.msra.mxu0 0.0
          %1179 = vmatprep.subr.mxu0 0.0
          %1180 = vmatpush1.msra.mxu0 0.0
          %1181 = vmatprep.subr.mxu0 0.0
          %1182 = vmatpush1.msra.mxu0 0.0
          %1183 = vmatprep.subr.mxu0 0.0
          %1184 = vmatpush1.msra.mxu0 0.0
          %1185 = vmatprep.subr.mxu0 0.0
          %1186 = vmatpush1.msra.mxu0 0.0
          %1187 = vmatprep.subr.mxu0 0.0
          %1188 = vmatpush1.msra.mxu0 0.0
          %1189 = vmatprep.subr.mxu0 0.0
          %1190 = vmatpush1.msra.mxu0 0.0
          %1191 = vmatprep.subr.mxu0 0.0
          %1192 = vmatpush1.msra.mxu0 0.0
          %1193 = vmatprep.subr.mxu0 0.0
          %1194 = vmatpush1.msra.mxu0 0.0
          %1195 = vmatprep.subr.mxu0 0.0
          %1196 = vmatpush1.msra.mxu0 0.0
          %1197 = vmatprep.subr.mxu0 0.0
          %1198 = vmatpush1.msra.mxu0 0.0
          %1199 = vmatprep.subr.mxu0 0.0
          %1200 = vmatpush1.msra.mxu0 0.0
          %1201 = vmatprep.subr.mxu0 0.0
          %1202 = vmatpush1.msra.mxu0 0.0
          %1203 = vmatprep.subr.mxu0 0.0
          %1204 = vmatpush1.msra.mxu0 0.0
          %1205 = vmatprep.subr.mxu0 0.0
          %1206 = vmatpush1.msra.mxu0 0.0
          %1207 = vmatprep.mubr.f32.mxu0 0.0
          %1208 = vmatmul.mubr.f32.gmra.mrb[0].mxu0 %v1142
          %v1209 = vpop.f32.mrb[0].mxu0
          %v1210 = vadd.f32 %v531, %v1209
          %v1211 = vpop.f32.mrb[0].mxu0
          %v1212 = vadd.f32 %v535, %v1211
          %1213 = vdwg.mxu0
          %1214 = vmatprep.subr.mxu0 %v464
          %1215 = vmatpush1.msra.mxu0 %v463
          %1216 = vmatprep.subr.mxu0 %v468
          %1217 = vmatpush1.msra.mxu0 %v467
          %1218 = vmatprep.subr.mxu0 %v472
          %1219 = vmatpush1.msra.mxu0 %v471
          %1220 = vmatprep.subr.mxu0 %v476
          %1221 = vmatpush1.msra.mxu0 %v475
          %1222 = vmatprep.subr.mxu0 %v480
          %1223 = vmatpush1.msra.mxu0 %v479
          %1224 = vmatprep.subr.mxu0 %v484
          %1225 = vmatpush1.msra.mxu0 %v483
          %1226 = vmatprep.subr.mxu0 %v488
          %1227 = vmatpush1.msra.mxu0 %v487
          %1228 = vmatprep.subr.mxu0 %v492
          %1229 = vmatpush1.msra.mxu0 %v491
          %1230 = vmatprep.subr.mxu0 %v496
          %1231 = vmatpush1.msra.mxu0 %v495
          %1232 = vmatprep.subr.mxu0 %v500
          %1233 = vmatpush1.msra.mxu0 %v499
          %1234 = vmatprep.subr.mxu0 %v504
          %1235 = vmatpush1.msra.mxu0 %v503
          %1236 = vmatprep.subr.mxu0 %v508
          %1237 = vmatpush1.msra.mxu0 %v507
          %1238 = vmatprep.subr.mxu0 %v512
          %1239 = vmatpush1.msra.mxu0 %v511
          %1240 = vmatprep.subr.mxu0 %v516
          %1241 = vmatpush1.msra.mxu0 %v515
          %1242 = vmatprep.subr.mxu0 %v520
          %1243 = vmatpush1.msra.mxu0 %v519
          %1244 = vmatprep.subr.mxu0 %v524
          %1245 = vmatpush1.msra.mxu0 %v523
          %1246 = vmatprep.subr.mxu0 0.0
          %1247 = vmatpush1.msra.mxu0 0.0
          %1248 = vmatprep.subr.mxu0 0.0
          %1249 = vmatpush1.msra.mxu0 0.0
          %1250 = vmatprep.subr.mxu0 0.0
          %1251 = vmatpush1.msra.mxu0 0.0
          %1252 = vmatprep.subr.mxu0 0.0
          %1253 = vmatpush1.msra.mxu0 0.0
          %1254 = vmatprep.subr.mxu0 0.0
          %1255 = vmatpush1.msra.mxu0 0.0
          %1256 = vmatprep.subr.mxu0 0.0
          %1257 = vmatpush1.msra.mxu0 0.0
          %1258 = vmatprep.subr.mxu0 0.0
          %1259 = vmatpush1.msra.mxu0 0.0
          %1260 = vmatprep.subr.mxu0 0.0
          %1261 = vmatpush1.msra.mxu0 0.0
          %1262 = vmatprep.subr.mxu0 0.0
          %1263 = vmatpush1.msra.mxu0 0.0
          %1264 = vmatprep.subr.mxu0 0.0
          %1265 = vmatpush1.msra.mxu0 0.0
          %1266 = vmatprep.subr.mxu0 0.0
          %1267 = vmatpush1.msra.mxu0 0.0
          %1268 = vmatprep.subr.mxu0 0.0
          %1269 = vmatpush1.msra.mxu0 0.0
          %1270 = vmatprep.subr.mxu0 0.0
          %1271 = vmatpush1.msra.mxu0 0.0
          %1272 = vmatprep.subr.mxu0 0.0
          %1273 = vmatpush1.msra.mxu0 0.0
          %1274 = vmatprep.subr.mxu0 0.0
          %1275 = vmatpush1.msra.mxu0 0.0
          %1276 = vmatprep.subr.mxu0 0.0
          %1277 = vmatpush1.msra.mxu0 0.0
          %1278 = vmatprep.mubr.f32.mxu0 0.0
          %1279 = vmatmul.mubr.f32.gmra.mrb[0].mxu0 %v1142
          %v1280 = vpop.f32.mrb[0].mxu0
          %v1281 = vadd.f32 %v539, %v1280
          %v1282 = vpop.f32.mrb[0].mxu0
          %v1283 = vadd.f32 %v543, %v1282
          %1284 = vdwg.mxu0
          %s1285 = scalar_lea.vmem [#allocation2], 128
          %1286 = vst [vmem:[%s1285] sm:$0xff] %v1210
          %1287 = vst [vmem:[%s1285 + $0x8] sm:$0xff] %v1212
          %1288 = vst [vmem:[%s1285 + $0x10] sm:$0xff] %v1281
          %1289 = vst [vmem:[%s1285 + $0x18] sm:$0xff] %v1283
          %s1290 = scalar_lea.vmem %s414, 40
          %v1291 = vld [vmem:[%s1290] sm:$0xff]
          %1292 = vmatprep.subr.mxu0 %v462
          %1293 = vmatpush1.msra.mxu0 %v461
          %1294 = vmatprep.subr.mxu0 %v466
          %1295 = vmatpush1.msra.mxu0 %v465
          %1296 = vmatprep.subr.mxu0 %v470
          %1297 = vmatpush1.msra.mxu0 %v469
          %1298 = vmatprep.subr.mxu0 %v474
          %1299 = vmatpush1.msra.mxu0 %v473
          %1300 = vmatprep.subr.mxu0 %v478
          %1301 = vmatpush1.msra.mxu0 %v477
          %1302 = vmatprep.subr.mxu0 %v482
          %1303 = vmatpush1.msra.mxu0 %v481
          %1304 = vmatprep.subr.mxu0 %v486
          %1305 = vmatpush1.msra.mxu0 %v485
          %1306 = vmatprep.subr.mxu0 %v490
          %1307 = vmatpush1.msra.mxu0 %v489
          %1308 = vmatprep.subr.mxu0 %v494
          %1309 = vmatpush1.msra.mxu0 %v493
          %1310 = vmatprep.subr.mxu0 %v498
          %1311 = vmatpush1.msra.mxu0 %v497
          %1312 = vmatprep.subr.mxu0 %v502
          %1313 = vmatpush1.msra.mxu0 %v501
          %1314 = vmatprep.subr.mxu0 %v506
          %1315 = vmatpush1.msra.mxu0 %v505
          %1316 = vmatprep.subr.mxu0 %v510
          %1317 = vmatpush1.msra.mxu0 %v509
          %1318 = vmatprep.subr.mxu0 %v514
          %1319 = vmatpush1.msra.mxu0 %v513
          %1320 = vmatprep.subr.mxu0 %v518
          %1321 = vmatpush1.msra.mxu0 %v517
          %1322 = vmatprep.subr.mxu0 %v522
          %1323 = vmatpush1.msra.mxu0 %v521
          %1324 = vmatprep.subr.mxu0 0.0
          %1325 = vmatpush1.msra.mxu0 0.0
          %1326 = vmatprep.subr.mxu0 0.0
          %1327 = vmatpush1.msra.mxu0 0.0
          %1328 = vmatprep.subr.mxu0 0.0
          %1329 = vmatpush1.msra.mxu0 0.0
          %1330 = vmatprep.subr.mxu0 0.0
          %1331 = vmatpush1.msra.mxu0 0.0
          %1332 = vmatprep.subr.mxu0 0.0
          %1333 = vmatpush1.msra.mxu0 0.0
          %1334 = vmatprep.subr.mxu0 0.0
          %1335 = vmatpush1.msra.mxu0 0.0
          %1336 = vmatprep.subr.mxu0 0.0
          %1337 = vmatpush1.msra.mxu0 0.0
          %1338 = vmatprep.subr.mxu0 0.0
          %1339 = vmatpush1.msra.mxu0 0.0
          %1340 = vmatprep.subr.mxu0 0.0
          %1341 = vmatpush1.msra.mxu0 0.0
          %1342 = vmatprep.subr.mxu0 0.0
          %1343 = vmatpush1.msra.mxu0 0.0
          %1344 = vmatprep.subr.mxu0 0.0
          %1345 = vmatpush1.msra.mxu0 0.0
          %1346 = vmatprep.subr.mxu0 0.0
          %1347 = vmatpush1.msra.mxu0 0.0
          %1348 = vmatprep.subr.mxu0 0.0
          %1349 = vmatpush1.msra.mxu0 0.0
          %1350 = vmatprep.subr.mxu0 0.0
          %1351 = vmatpush1.msra.mxu0 0.0
          %1352 = vmatprep.subr.mxu0 0.0
          %1353 = vmatpush1.msra.mxu0 0.0
          %1354 = vmatprep.subr.mxu0 0.0
          %1355 = vmatpush1.msra.mxu0 0.0
          %1356 = vmatprep.mubr.f32.mxu0 0.0
          %1357 = vmatmul.mubr.f32.gmra.mrb[0].mxu0 %v1291
          %v1358 = vpop.f32.mrb[0].mxu0
          %v1359 = vadd.f32 %v531, %v1358
          %v1360 = vpop.f32.mrb[0].mxu0
          %v1361 = vadd.f32 %v535, %v1360
          %1362 = vdwg.mxu0
          %1363 = vmatprep.subr.mxu0 %v464
          %1364 = vmatpush1.msra.mxu0 %v463
          %1365 = vmatprep.subr.mxu0 %v468
          %1366 = vmatpush1.msra.mxu0 %v467
          %1367 = vmatprep.subr.mxu0 %v472
          %1368 = vmatpush1.msra.mxu0 %v471
          %1369 = vmatprep.subr.mxu0 %v476
          %1370 = vmatpush1.msra.mxu0 %v475
          %1371 = vmatprep.subr.mxu0 %v480
          %1372 = vmatpush1.msra.mxu0 %v479
          %1373 = vmatprep.subr.mxu0 %v484
          %1374 = vmatpush1.msra.mxu0 %v483
          %1375 = vmatprep.subr.mxu0 %v488
          %1376 = vmatpush1.msra.mxu0 %v487
          %1377 = vmatprep.subr.mxu0 %v492
          %1378 = vmatpush1.msra.mxu0 %v491
          %1379 = vmatprep.subr.mxu0 %v496
          %1380 = vmatpush1.msra.mxu0 %v495
          %1381 = vmatprep.subr.mxu0 %v500
          %1382 = vmatpush1.msra.mxu0 %v499
          %1383 = vmatprep.subr.mxu0 %v504
          %1384 = vmatpush1.msra.mxu0 %v503
          %1385 = vmatprep.subr.mxu0 %v508
          %1386 = vmatpush1.msra.mxu0 %v507
          %1387 = vmatprep.subr.mxu0 %v512
          %1388 = vmatpush1.msra.mxu0 %v511
          %1389 = vmatprep.subr.mxu0 %v516
          %1390 = vmatpush1.msra.mxu0 %v515
          %1391 = vmatprep.subr.mxu0 %v520
          %1392 = vmatpush1.msra.mxu0 %v519
          %1393 = vmatprep.subr.mxu0 %v524
          %1394 = vmatpush1.msra.mxu0 %v523
          %1395 = vmatprep.subr.mxu0 0.0
          %1396 = vmatpush1.msra.mxu0 0.0
          %1397 = vmatprep.subr.mxu0 0.0
          %1398 = vmatpush1.msra.mxu0 0.0
          %1399 = vmatprep.subr.mxu0 0.0
          %1400 = vmatpush1.msra.mxu0 0.0
          %1401 = vmatprep.subr.mxu0 0.0
          %1402 = vmatpush1.msra.mxu0 0.0
          %1403 = vmatprep.subr.mxu0 0.0
          %1404 = vmatpush1.msra.mxu0 0.0
          %1405 = vmatprep.subr.mxu0 0.0
          %1406 = vmatpush1.msra.mxu0 0.0
          %1407 = vmatprep.subr.mxu0 0.0
          %1408 = vmatpush1.msra.mxu0 0.0
          %1409 = vmatprep.subr.mxu0 0.0
          %1410 = vmatpush1.msra.mxu0 0.0
          %1411 = vmatprep.subr.mxu0 0.0
          %1412 = vmatpush1.msra.mxu0 0.0
          %1413 = vmatprep.subr.mxu0 0.0
          %1414 = vmatpush1.msra.mxu0 0.0
          %1415 = vmatprep.subr.mxu0 0.0
          %1416 = vmatpush1.msra.mxu0 0.0
          %1417 = vmatprep.subr.mxu0 0.0
          %1418 = vmatpush1.msra.mxu0 0.0
          %1419 = vmatprep.subr.mxu0 0.0
          %1420 = vmatpush1.msra.mxu0 0.0
          %1421 = vmatprep.subr.mxu0 0.0
          %1422 = vmatpush1.msra.mxu0 0.0
          %1423 = vmatprep.subr.mxu0 0.0
          %1424 = vmatpush1.msra.mxu0 0.0
          %1425 = vmatprep.subr.mxu0 0.0
          %1426 = vmatpush1.msra.mxu0 0.0
          %1427 = vmatprep.mubr.f32.mxu0 0.0
          %1428 = vmatmul.mubr.f32.gmra.mrb[0].mxu0 %v1291
          %v1429 = vpop.f32.mrb[0].mxu0
          %v1430 = vadd.f32 %v539, %v1429
          %v1431 = vpop.f32.mrb[0].mxu0
          %v1432 = vadd.f32 %v543, %v1431
          %1433 = vdwg.mxu0
          %s1434 = scalar_lea.vmem [#allocation2], 160
          %1435 = vst [vmem:[%s1434] sm:$0xff] %v1359
          %1436 = vst [vmem:[%s1434 + $0x8] sm:$0xff] %v1361
          %1437 = vst [vmem:[%s1434 + $0x10] sm:$0xff] %v1430
          %1438 = vst [vmem:[%s1434 + $0x18] sm:$0xff] %v1432
          %s1439 = scalar_lea.vmem %s414, 48
          %v1440 = vld [vmem:[%s1439] sm:$0xff]
          %1441 = vmatprep.subr.mxu0 %v462
          %1442 = vmatpush1.msra.mxu0 %v461
          %1443 = vmatprep.subr.mxu0 %v466
          %1444 = vmatpush1.msra.mxu0 %v465
          %1445 = vmatprep.subr.mxu0 %v470
          %1446 = vmatpush1.msra.mxu0 %v469
          %1447 = vmatprep.subr.mxu0 %v474
          %1448 = vmatpush1.msra.mxu0 %v473
          %1449 = vmatprep.subr.mxu0 %v478
          %1450 = vmatpush1.msra.mxu0 %v477
          %1451 = vmatprep.subr.mxu0 %v482
          %1452 = vmatpush1.msra.mxu0 %v481
          %1453 = vmatprep.subr.mxu0 %v486
          %1454 = vmatpush1.msra.mxu0 %v485
          %1455 = vmatprep.subr.mxu0 %v490
          %1456 = vmatpush1.msra.mxu0 %v489
          %1457 = vmatprep.subr.mxu0 %v494
          %1458 = vmatpush1.msra.mxu0 %v493
          %1459 = vmatprep.subr.mxu0 %v498
          %1460 = vmatpush1.msra.mxu0 %v497
          %1461 = vmatprep.subr.mxu0 %v502
          %1462 = vmatpush1.msra.mxu0 %v501
          %1463 = vmatprep.subr.mxu0 %v506
          %1464 = vmatpush1.msra.mxu0 %v505
          %1465 = vmatprep.subr.mxu0 %v510
          %1466 = vmatpush1.msra.mxu0 %v509
          %1467 = vmatprep.subr.mxu0 %v514
          %1468 = vmatpush1.msra.mxu0 %v513
          %1469 = vmatprep.subr.mxu0 %v518
          %1470 = vmatpush1.msra.mxu0 %v517
          %1471 = vmatprep.subr.mxu0 %v522
          %1472 = vmatpush1.msra.mxu0 %v521
          %1473 = vmatprep.subr.mxu0 0.0
          %1474 = vmatpush1.msra.mxu0 0.0
          %1475 = vmatprep.subr.mxu0 0.0
          %1476 = vmatpush1.msra.mxu0 0.0
          %1477 = vmatprep.subr.mxu0 0.0
          %1478 = vmatpush1.msra.mxu0 0.0
          %1479 = vmatprep.subr.mxu0 0.0
          %1480 = vmatpush1.msra.mxu0 0.0
          %1481 = vmatprep.subr.mxu0 0.0
          %1482 = vmatpush1.msra.mxu0 0.0
          %1483 = vmatprep.subr.mxu0 0.0
          %1484 = vmatpush1.msra.mxu0 0.0
          %1485 = vmatprep.subr.mxu0 0.0
          %1486 = vmatpush1.msra.mxu0 0.0
          %1487 = vmatprep.subr.mxu0 0.0
          %1488 = vmatpush1.msra.mxu0 0.0
          %1489 = vmatprep.subr.mxu0 0.0
          %1490 = vmatpush1.msra.mxu0 0.0
          %1491 = vmatprep.subr.mxu0 0.0
          %1492 = vmatpush1.msra.mxu0 0.0
          %1493 = vmatprep.subr.mxu0 0.0
          %1494 = vmatpush1.msra.mxu0 0.0
          %1495 = vmatprep.subr.mxu0 0.0
          %1496 = vmatpush1.msra.mxu0 0.0
          %1497 = vmatprep.subr.mxu0 0.0
          %1498 = vmatpush1.msra.mxu0 0.0
          %1499 = vmatprep.subr.mxu0 0.0
          %1500 = vmatpush1.msra.mxu0 0.0
          %1501 = vmatprep.subr.mxu0 0.0
          %1502 = vmatpush1.msra.mxu0 0.0
          %1503 = vmatprep.subr.mxu0 0.0
          %1504 = vmatpush1.msra.mxu0 0.0
          %1505 = vmatprep.mubr.f32.mxu0 0.0
          %1506 = vmatmul.mubr.f32.gmra.mrb[0].mxu0 %v1440
          %v1507 = vpop.f32.mrb[0].mxu0
          %v1508 = vadd.f32 %v531, %v1507
          %v1509 = vpop.f32.mrb[0].mxu0
          %v1510 = vadd.f32 %v535, %v1509
          %1511 = vdwg.mxu0
          %1512 = vmatprep.subr.mxu0 %v464
          %1513 = vmatpush1.msra.mxu0 %v463
          %1514 = vmatprep.subr.mxu0 %v468
          %1515 = vmatpush1.msra.mxu0 %v467
          %1516 = vmatprep.subr.mxu0 %v472
          %1517 = vmatpush1.msra.mxu0 %v471
          %1518 = vmatprep.subr.mxu0 %v476
          %1519 = vmatpush1.msra.mxu0 %v475
          %1520 = vmatprep.subr.mxu0 %v480
          %1521 = vmatpush1.msra.mxu0 %v479
          %1522 = vmatprep.subr.mxu0 %v484
          %1523 = vmatpush1.msra.mxu0 %v483
          %1524 = vmatprep.subr.mxu0 %v488
          %1525 = vmatpush1.msra.mxu0 %v487
          %1526 = vmatprep.subr.mxu0 %v492
          %1527 = vmatpush1.msra.mxu0 %v491
          %1528 = vmatprep.subr.mxu0 %v496
          %1529 = vmatpush1.msra.mxu0 %v495
          %1530 = vmatprep.subr.mxu0 %v500
          %1531 = vmatpush1.msra.mxu0 %v499
          %1532 = vmatprep.subr.mxu0 %v504
          %1533 = vmatpush1.msra.mxu0 %v503
          %1534 = vmatprep.subr.mxu0 %v508
          %1535 = vmatpush1.msra.mxu0 %v507
          %1536 = vmatprep.subr.mxu0 %v512
          %1537 = vmatpush1.msra.mxu0 %v511
          %1538 = vmatprep.subr.mxu0 %v516
          %1539 = vmatpush1.msra.mxu0 %v515
          %1540 = vmatprep.subr.mxu0 %v520
          %1541 = vmatpush1.msra.mxu0 %v519
          %1542 = vmatprep.subr.mxu0 %v524
          %1543 = vmatpush1.msra.mxu0 %v523
          %1544 = vmatprep.subr.mxu0 0.0
          %1545 = vmatpush1.msra.mxu0 0.0
          %1546 = vmatprep.subr.mxu0 0.0
          %1547 = vmatpush1.msra.mxu0 0.0
          %1548 = vmatprep.subr.mxu0 0.0
          %1549 = vmatpush1.msra.mxu0 0.0
          %1550 = vmatprep.subr.mxu0 0.0
          %1551 = vmatpush1.msra.mxu0 0.0
          %1552 = vmatprep.subr.mxu0 0.0
          %1553 = vmatpush1.msra.mxu0 0.0
          %1554 = vmatprep.subr.mxu0 0.0
          %1555 = vmatpush1.msra.mxu0 0.0
          %1556 = vmatprep.subr.mxu0 0.0
          %1557 = vmatpush1.msra.mxu0 0.0
          %1558 = vmatprep.subr.mxu0 0.0
          %1559 = vmatpush1.msra.mxu0 0.0
          %1560 = vmatprep.subr.mxu0 0.0
          %1561 = vmatpush1.msra.mxu0 0.0
          %1562 = vmatprep.subr.mxu0 0.0
          %1563 = vmatpush1.msra.mxu0 0.0
          %1564 = vmatprep.subr.mxu0 0.0
          %1565 = vmatpush1.msra.mxu0 0.0
          %1566 = vmatprep.subr.mxu0 0.0
          %1567 = vmatpush1.msra.mxu0 0.0
          %1568 = vmatprep.subr.mxu0 0.0
          %1569 = vmatpush1.msra.mxu0 0.0
          %1570 = vmatprep.subr.mxu0 0.0
          %1571 = vmatpush1.msra.mxu0 0.0
          %1572 = vmatprep.subr.mxu0 0.0
          %1573 = vmatpush1.msra.mxu0 0.0
          %1574 = vmatprep.subr.mxu0 0.0
          %1575 = vmatpush1.msra.mxu0 0.0
          %1576 = vmatprep.mubr.f32.mxu0 0.0
          %1577 = vmatmul.mubr.f32.gmra.mrb[0].mxu0 %v1440
          %v1578 = vpop.f32.mrb[0].mxu0
          %v1579 = vadd.f32 %v539, %v1578
          %v1580 = vpop.f32.mrb[0].mxu0
          %v1581 = vadd.f32 %v543, %v1580
          %1582 = vdwg.mxu0
          %s1583 = scalar_lea.vmem [#allocation2], 192
          %1584 = vst [vmem:[%s1583] sm:$0xff] %v1508
          %1585 = vst [vmem:[%s1583 + $0x8] sm:$0xff] %v1510
          %1586 = vst [vmem:[%s1583 + $0x10] sm:$0xff] %v1579
          %1587 = vst [vmem:[%s1583 + $0x18] sm:$0xff] %v1581
          %s1588 = scalar_lea.vmem %s414, 56
          %v1589 = vld [vmem:[%s1588] sm:$0xff]
          %1590 = vmatprep.subr.mxu0 %v462
          %1591 = vmatpush1.msra.mxu0 %v461
          %1592 = vmatprep.subr.mxu0 %v466
          %1593 = vmatpush1.msra.mxu0 %v465
          %1594 = vmatprep.subr.mxu0 %v470
          %1595 = vmatpush1.msra.mxu0 %v469
          %1596 = vmatprep.subr.mxu0 %v474
          %1597 = vmatpush1.msra.mxu0 %v473
          %1598 = vmatprep.subr.mxu0 %v478
          %1599 = vmatpush1.msra.mxu0 %v477
          %1600 = vmatprep.subr.mxu0 %v482
          %1601 = vmatpush1.msra.mxu0 %v481
          %1602 = vmatprep.subr.mxu0 %v486
          %1603 = vmatpush1.msra.mxu0 %v485
          %1604 = vmatprep.subr.mxu0 %v490
          %1605 = vmatpush1.msra.mxu0 %v489
          %1606 = vmatprep.subr.mxu0 %v494
          %1607 = vmatpush1.msra.mxu0 %v493
          %1608 = vmatprep.subr.mxu0 %v498
          %1609 = vmatpush1.msra.mxu0 %v497
          %1610 = vmatprep.subr.mxu0 %v502
          %1611 = vmatpush1.msra.mxu0 %v501
          %1612 = vmatprep.subr.mxu0 %v506
          %1613 = vmatpush1.msra.mxu0 %v505
          %1614 = vmatprep.subr.mxu0 %v510
          %1615 = vmatpush1.msra.mxu0 %v509
          %1616 = vmatprep.subr.mxu0 %v514
          %1617 = vmatpush1.msra.mxu0 %v513
          %1618 = vmatprep.subr.mxu0 %v518
          %1619 = vmatpush1.msra.mxu0 %v517
          %1620 = vmatprep.subr.mxu0 %v522
          %1621 = vmatpush1.msra.mxu0 %v521
          %1622 = vmatprep.subr.mxu0 0.0
          %1623 = vmatpush1.msra.mxu0 0.0
          %1624 = vmatprep.subr.mxu0 0.0
          %1625 = vmatpush1.msra.mxu0 0.0
          %1626 = vmatprep.subr.mxu0 0.0
          %1627 = vmatpush1.msra.mxu0 0.0
          %1628 = vmatprep.subr.mxu0 0.0
          %1629 = vmatpush1.msra.mxu0 0.0
          %1630 = vmatprep.subr.mxu0 0.0
          %1631 = vmatpush1.msra.mxu0 0.0
          %1632 = vmatprep.subr.mxu0 0.0
          %1633 = vmatpush1.msra.mxu0 0.0
          %1634 = vmatprep.subr.mxu0 0.0
          %1635 = vmatpush1.msra.mxu0 0.0
          %1636 = vmatprep.subr.mxu0 0.0
          %1637 = vmatpush1.msra.mxu0 0.0
          %1638 = vmatprep.subr.mxu0 0.0
          %1639 = vmatpush1.msra.mxu0 0.0
          %1640 = vmatprep.subr.mxu0 0.0
          %1641 = vmatpush1.msra.mxu0 0.0
          %1642 = vmatprep.subr.mxu0 0.0
          %1643 = vmatpush1.msra.mxu0 0.0
          %1644 = vmatprep.subr.mxu0 0.0
          %1645 = vmatpush1.msra.mxu0 0.0
          %1646 = vmatprep.subr.mxu0 0.0
          %1647 = vmatpush1.msra.mxu0 0.0
          %1648 = vmatprep.subr.mxu0 0.0
          %1649 = vmatpush1.msra.mxu0 0.0
          %1650 = vmatprep.subr.mxu0 0.0
          %1651 = vmatpush1.msra.mxu0 0.0
          %1652 = vmatprep.subr.mxu0 0.0
          %1653 = vmatpush1.msra.mxu0 0.0
          %1654 = vmatprep.mubr.f32.mxu0 0.0
          %1655 = vmatmul.mubr.f32.gmra.mrb[0].mxu0 %v1589
          %v1656 = vpop.f32.mrb[0].mxu0
          %v1657 = vadd.f32 %v531, %v1656
          %v1658 = vpop.f32.mrb[0].mxu0
          %v1659 = vadd.f32 %v535, %v1658
          %1660 = vdwg.mxu0
          %1661 = vmatprep.subr.mxu0 %v464
          %1662 = vmatpush1.msra.mxu0 %v463
          %1663 = vmatprep.subr.mxu0 %v468
          %1664 = vmatpush1.msra.mxu0 %v467
          %1665 = vmatprep.subr.mxu0 %v472
          %1666 = vmatpush1.msra.mxu0 %v471
          %1667 = vmatprep.subr.mxu0 %v476
          %1668 = vmatpush1.msra.mxu0 %v475
          %1669 = vmatprep.subr.mxu0 %v480
          %1670 = vmatpush1.msra.mxu0 %v479
          %1671 = vmatprep.subr.mxu0 %v484
          %1672 = vmatpush1.msra.mxu0 %v483
          %1673 = vmatprep.subr.mxu0 %v488
          %1674 = vmatpush1.msra.mxu0 %v487
          %1675 = vmatprep.subr.mxu0 %v492
          %1676 = vmatpush1.msra.mxu0 %v491
          %1677 = vmatprep.subr.mxu0 %v496
          %1678 = vmatpush1.msra.mxu0 %v495
          %1679 = vmatprep.subr.mxu0 %v500
          %1680 = vmatpush1.msra.mxu0 %v499
          %1681 = vmatprep.subr.mxu0 %v504
          %1682 = vmatpush1.msra.mxu0 %v503
          %1683 = vmatprep.subr.mxu0 %v508
          %1684 = vmatpush1.msra.mxu0 %v507
          %1685 = vmatprep.subr.mxu0 %v512
          %1686 = vmatpush1.msra.mxu0 %v511
          %1687 = vmatprep.subr.mxu0 %v516
          %1688 = vmatpush1.msra.mxu0 %v515
          %1689 = vmatprep.subr.mxu0 %v520
          %1690 = vmatpush1.msra.mxu0 %v519
          %1691 = vmatprep.subr.mxu0 %v524
          %1692 = vmatpush1.msra.mxu0 %v523
          %1693 = vmatprep.subr.mxu0 0.0
          %1694 = vmatpush1.msra.mxu0 0.0
          %1695 = vmatprep.subr.mxu0 0.0
          %1696 = vmatpush1.msra.mxu0 0.0
          %1697 = vmatprep.subr.mxu0 0.0
          %1698 = vmatpush1.msra.mxu0 0.0
          %1699 = vmatprep.subr.mxu0 0.0
          %1700 = vmatpush1.msra.mxu0 0.0
          %1701 = vmatprep.subr.mxu0 0.0
          %1702 = vmatpush1.msra.mxu0 0.0
          %1703 = vmatprep.subr.mxu0 0.0
          %1704 = vmatpush1.msra.mxu0 0.0
          %1705 = vmatprep.subr.mxu0 0.0
          %1706 = vmatpush1.msra.mxu0 0.0
          %1707 = vmatprep.subr.mxu0 0.0
          %1708 = vmatpush1.msra.mxu0 0.0
          %1709 = vmatprep.subr.mxu0 0.0
          %1710 = vmatpush1.msra.mxu0 0.0
          %1711 = vmatprep.subr.mxu0 0.0
          %1712 = vmatpush1.msra.mxu0 0.0
          %1713 = vmatprep.subr.mxu0 0.0
          %1714 = vmatpush1.msra.mxu0 0.0
          %1715 = vmatprep.subr.mxu0 0.0
          %1716 = vmatpush1.msra.mxu0 0.0
          %1717 = vmatprep.subr.mxu0 0.0
          %1718 = vmatpush1.msra.mxu0 0.0
          %1719 = vmatprep.subr.mxu0 0.0
          %1720 = vmatpush1.msra.mxu0 0.0
          %1721 = vmatprep.subr.mxu0 0.0
          %1722 = vmatpush1.msra.mxu0 0.0
          %1723 = vmatprep.subr.mxu0 0.0
          %1724 = vmatpush1.msra.mxu0 0.0
          %1725 = vmatprep.mubr.f32.mxu0 0.0
          %1726 = vmatmul.mubr.f32.gmra.mrb[0].mxu0 %v1589
          %v1727 = vpop.f32.mrb[0].mxu0
          %v1728 = vadd.f32 %v539, %v1727
          %v1729 = vpop.f32.mrb[0].mxu0
          %v1730 = vadd.f32 %v543, %v1729
          %1731 = vdwg.mxu0
          %s1732 = scalar_lea.vmem [#allocation2], 224
          %1733 = vst [vmem:[%s1732] sm:$0xff] %v1657
          %1734 = vst [vmem:[%s1732 + $0x8] sm:$0xff] %v1659
          %1735 = vst [vmem:[%s1732 + $0x10] sm:$0xff] %v1728
          %1736 = vst [vmem:[%s1732 + $0x18] sm:$0xff] %v1730
          %v1737 = vld [vmem:[#allocation10] sm:$0xff]
          %v1738 = vld [vmem:[#allocation10 + $0x8] sm:$0xff]
          %v1739 = vld [vmem:[#allocation10 + $0x10] sm:$0xff]
          %v1740 = vld [vmem:[#allocation10 + $0x18] sm:$0xff]
          %v1741 = vld [vmem:[#allocation10 + $0x20] sm:$0xff]
          %v1742 = vld [vmem:[#allocation10 + $0x28] sm:$0xff]
          %v1743 = vld [vmem:[#allocation10 + $0x30] sm:$0xff]
          %v1744 = vld [vmem:[#allocation10 + $0x38] sm:$0xff]
          %v1745 = vld [vmem:[#allocation10 + $0x40] sm:$0xff]
          %v1746 = vld [vmem:[#allocation10 + $0x48] sm:$0xff]
          %v1747 = vld [vmem:[#allocation10 + $0x50] sm:$0xff]
          %v1748 = vld [vmem:[#allocation10 + $0x58] sm:$0xff]
          %v1749 = vld [vmem:[#allocation10 + $0x60] sm:$0xff]
          %v1750 = vld [vmem:[#allocation10 + $0x68] sm:$0xff]
          %v1751 = vld [vmem:[#allocation10 + $0x70] sm:$0xff]
          %v1752 = vld [vmem:[#allocation10 + $0x78] sm:$0xff]
          %v1753 = vld [vmem:[#allocation10 + $0x80] sm:$0xff]
          %v1754 = vld [vmem:[#allocation10 + $0x88] sm:$0xff]
          %v1755 = vld [vmem:[#allocation10 + $0x90] sm:$0xff]
          %v1756 = vld [vmem:[#allocation10 + $0x98] sm:$0xff]
          %v1757 = vld [vmem:[#allocation10 + $0xa0] sm:$0xff]
          %v1758 = vld [vmem:[#allocation10 + $0xa8] sm:$0xff]
          %v1759 = vld [vmem:[#allocation10 + $0xb0] sm:$0xff]
          %v1760 = vld [vmem:[#allocation10 + $0xb8] sm:$0xff]
          %v1761 = vld [vmem:[#allocation10 + $0xc0] sm:$0xff]
          %v1762 = vld [vmem:[#allocation10 + $0xc8] sm:$0xff]
          %v1763 = vld [vmem:[#allocation10 + $0xd0] sm:$0xff]
          %v1764 = vld [vmem:[#allocation10 + $0xd8] sm:$0xff]
          %v1765 = vld [vmem:[#allocation10 + $0xe0] sm:$0xff]
          %v1766 = vld [vmem:[#allocation10 + $0xe8] sm:$0xff]
          %v1767 = vld [vmem:[#allocation10 + $0xf0] sm:$0xff]
          %v1768 = vld [vmem:[#allocation10 + $0xf8] sm:$0xff]
          %v1769 = vld [vmem:[#allocation10 + $0x100] sm:$0xff]
          %v1770 = vld [vmem:[#allocation10 + $0x108] sm:$0xff]
          %v1771 = vld [vmem:[#allocation10 + $0x110] sm:$0xff]
          %v1772 = vld [vmem:[#allocation10 + $0x118] sm:$0xff]
          %v1773 = vld [vmem:[#allocation10 + $0x120] sm:$0xff]
          %v1774 = vld [vmem:[#allocation10 + $0x128] sm:$0xff]
          %v1775 = vld [vmem:[#allocation10 + $0x130] sm:$0xff]
          %v1776 = vld [vmem:[#allocation10 + $0x138] sm:$0xff]
          %v1777 = vld [vmem:[#allocation10 + $0x140] sm:$0xff]
          %v1778 = vld [vmem:[#allocation10 + $0x148] sm:$0xff]
          %v1779 = vld [vmem:[#allocation10 + $0x150] sm:$0xff]
          %v1780 = vld [vmem:[#allocation10 + $0x158] sm:$0xff]
          %v1781 = vld [vmem:[#allocation10 + $0x160] sm:$0xff]
          %v1782 = vld [vmem:[#allocation10 + $0x168] sm:$0xff]
          %v1783 = vld [vmem:[#allocation10 + $0x170] sm:$0xff]
          %v1784 = vld [vmem:[#allocation10 + $0x178] sm:$0xff]
          %v1785 = vld [vmem:[#allocation10 + $0x180] sm:$0xff]
          %v1786 = vld [vmem:[#allocation10 + $0x188] sm:$0xff]
          %v1787 = vld [vmem:[#allocation10 + $0x190] sm:$0xff]
          %v1788 = vld [vmem:[#allocation10 + $0x198] sm:$0xff]
          %v1789 = vld [vmem:[#allocation10 + $0x1a0] sm:$0xff]
          %v1790 = vld [vmem:[#allocation10 + $0x1a8] sm:$0xff]
          %v1791 = vld [vmem:[#allocation10 + $0x1b0] sm:$0xff]
          %v1792 = vld [vmem:[#allocation10 + $0x1b8] sm:$0xff]
          %v1793 = vld [vmem:[#allocation10 + $0x1c0] sm:$0xff]
          %v1794 = vld [vmem:[#allocation10 + $0x1c8] sm:$0xff]
          %v1795 = vld [vmem:[#allocation10 + $0x1d0] sm:$0xff]
          %v1796 = vld [vmem:[#allocation10 + $0x1d8] sm:$0xff]
          %v1797 = vld [vmem:[#allocation10 + $0x1e0] sm:$0xff]
          %v1798 = vld [vmem:[#allocation10 + $0x1e8] sm:$0xff]
          %v1799 = vld [vmem:[#allocation10 + $0x1f0] sm:$0xff]
          %v1800 = vld [vmem:[#allocation10 + $0x1f8] sm:$0xff]
          %v1801 = vld [vmem:[%s419] sm:$0xff]
          %v1802 = vstv %s437
          %v1803 = vsub.s32 %v1801, %v1802
          %v1804 = vld [vmem:[#allocation4] sm:$0xff]
          %v1805 = vld [vmem:[#allocation5] sm:$0xff]
          %v1806 = vld [vmem:[#allocation2] sm:$0xff]
          %v1807 = vld [vmem:[#allocation2 + $0x8] sm:$0xff]
          %v1808 = vld [vmem:[#allocation2 + $0x10] sm:$0xff]
          %v1809 = vld [vmem:[#allocation2 + $0x18] sm:$0xff]
          %1810 = vmatprep.subr.mxu0 %v1738
          %1811 = vmatpush1.msra.mxu0 %v1737
          %1812 = vmatprep.subr.mxu0 %v1742
          %1813 = vmatpush1.msra.mxu0 %v1741
          %1814 = vmatprep.subr.mxu0 %v1746
          %1815 = vmatpush1.msra.mxu0 %v1745
          %1816 = vmatprep.subr.mxu0 %v1750
          %1817 = vmatpush1.msra.mxu0 %v1749
          %1818 = vmatprep.subr.mxu0 %v1754
          %1819 = vmatpush1.msra.mxu0 %v1753
          %1820 = vmatprep.subr.mxu0 %v1758
          %1821 = vmatpush1.msra.mxu0 %v1757
          %1822 = vmatprep.subr.mxu0 %v1762
          %1823 = vmatpush1.msra.mxu0 %v1761
          %1824 = vmatprep.subr.mxu0 %v1766
          %1825 = vmatpush1.msra.mxu0 %v1765
          %1826 = vmatprep.subr.mxu0 %v1770
          %1827 = vmatpush1.msra.mxu0 %v1769
          %1828 = vmatprep.subr.mxu0 %v1774
          %1829 = vmatpush1.msra.mxu0 %v1773
          %1830 = vmatprep.subr.mxu0 %v1778
          %1831 = vmatpush1.msra.mxu0 %v1777
          %1832 = vmatprep.subr.mxu0 %v1782
          %1833 = vmatpush1.msra.mxu0 %v1781
          %1834 = vmatprep.subr.mxu0 %v1786
          %1835 = vmatpush1.msra.mxu0 %v1785
          %1836 = vmatprep.subr.mxu0 %v1790
          %1837 = vmatpush1.msra.mxu0 %v1789
          %1838 = vmatprep.subr.mxu0 %v1794
          %1839 = vmatpush1.msra.mxu0 %v1793
          %1840 = vmatprep.subr.mxu0 %v1798
          %1841 = vmatpush1.msra.mxu0 %v1797
          %1842 = vmatprep.subr.mxu0 0.0
          %1843 = vmatpush1.msra.mxu0 0.0
          %1844 = vmatprep.subr.mxu0 0.0
          %1845 = vmatpush1.msra.mxu0 0.0
          %1846 = vmatprep.subr.mxu0 0.0
          %1847 = vmatpush1.msra.mxu0 0.0
          %1848 = vmatprep.subr.mxu0 0.0
          %1849 = vmatpush1.msra.mxu0 0.0
          %1850 = vmatprep.subr.mxu0 0.0
          %1851 = vmatpush1.msra.mxu0 0.0
          %1852 = vmatprep.subr.mxu0 0.0
          %1853 = vmatpush1.msra.mxu0 0.0
          %1854 = vmatprep.subr.mxu0 0.0
          %1855 = vmatpush1.msra.mxu0 0.0
          %1856 = vmatprep.subr.mxu0 0.0
          %1857 = vmatpush1.msra.mxu0 0.0
          %1858 = vmatprep.subr.mxu0 0.0
          %1859 = vmatpush1.msra.mxu0 0.0
          %1860 = vmatprep.subr.mxu0 0.0
          %1861 = vmatpush1.msra.mxu0 0.0
          %1862 = vmatprep.subr.mxu0 0.0
          %1863 = vmatpush1.msra.mxu0 0.0
          %1864 = vmatprep.subr.mxu0 0.0
          %1865 = vmatpush1.msra.mxu0 0.0
          %1866 = vmatprep.subr.mxu0 0.0
          %1867 = vmatpush1.msra.mxu0 0.0
          %1868 = vmatprep.subr.mxu0 0.0
          %1869 = vmatpush1.msra.mxu0 0.0
          %1870 = vmatprep.subr.mxu0 0.0
          %1871 = vmatpush1.msra.mxu0 0.0
          %1872 = vmatprep.subr.mxu0 0.0
          %1873 = vmatpush1.msra.mxu0 0.0
          %1874 = vmatprep.mubr.f32.mxu0 0.0
          %1875 = vmatmul.mubr.f32.gmra.mrb[0].mxu0 %v1804
          %v1876 = vpop.f32.mrb[0].mxu0
          %v1877 = vadd.f32 0.0, %v1876
          %v1878 = vpop.f32.mrb[0].mxu0
          %v1879 = vadd.f32 0.0, %v1878
          %1880 = vdwg.mxu0
          %1881 = vmatprep.subr.mxu0 %v1740
          %1882 = vmatpush1.msra.mxu0 %v1739
          %1883 = vmatprep.subr.mxu0 %v1744
          %1884 = vmatpush1.msra.mxu0 %v1743
          %1885 = vmatprep.subr.mxu0 %v1748
          %1886 = vmatpush1.msra.mxu0 %v1747
          %1887 = vmatprep.subr.mxu0 %v1752
          %1888 = vmatpush1.msra.mxu0 %v1751
          %1889 = vmatprep.subr.mxu0 %v1756
          %1890 = vmatpush1.msra.mxu0 %v1755
          %1891 = vmatprep.subr.mxu0 %v1760
          %1892 = vmatpush1.msra.mxu0 %v1759
          %1893 = vmatprep.subr.mxu0 %v1764
          %1894 = vmatpush1.msra.mxu0 %v1763
          %1895 = vmatprep.subr.mxu0 %v1768
          %1896 = vmatpush1.msra.mxu0 %v1767
          %1897 = vmatprep.subr.mxu0 %v1772
          %1898 = vmatpush1.msra.mxu0 %v1771
          %1899 = vmatprep.subr.mxu0 %v1776
          %1900 = vmatpush1.msra.mxu0 %v1775
          %1901 = vmatprep.subr.mxu0 %v1780
          %1902 = vmatpush1.msra.mxu0 %v1779
          %1903 = vmatprep.subr.mxu0 %v1784
          %1904 = vmatpush1.msra.mxu0 %v1783
          %1905 = vmatprep.subr.mxu0 %v1788
          %1906 = vmatpush1.msra.mxu0 %v1787
          %1907 = vmatprep.subr.mxu0 %v1792
          %1908 = vmatpush1.msra.mxu0 %v1791
          %1909 = vmatprep.subr.mxu0 %v1796
          %1910 = vmatpush1.msra.mxu0 %v1795
          %1911 = vmatprep.subr.mxu0 %v1800
          %1912 = vmatpush1.msra.mxu0 %v1799
          %1913 = vmatprep.subr.mxu0 0.0
          %1914 = vmatpush1.msra.mxu0 0.0
          %1915 = vmatprep.subr.mxu0 0.0
          %1916 = vmatpush1.msra.mxu0 0.0
          %1917 = vmatprep.subr.mxu0 0.0
          %1918 = vmatpush1.msra.mxu0 0.0
          %1919 = vmatprep.subr.mxu0 0.0
          %1920 = vmatpush1.msra.mxu0 0.0
          %1921 = vmatprep.subr.mxu0 0.0
          %1922 = vmatpush1.msra.mxu0 0.0
          %1923 = vmatprep.subr.mxu0 0.0
          %1924 = vmatpush1.msra.mxu0 0.0
          %1925 = vmatprep.subr.mxu0 0.0
          %1926 = vmatpush1.msra.mxu0 0.0
          %1927 = vmatprep.subr.mxu0 0.0
          %1928 = vmatpush1.msra.mxu0 0.0
          %1929 = vmatprep.subr.mxu0 0.0
          %1930 = vmatpush1.msra.mxu0 0.0
          %1931 = vmatprep.subr.mxu0 0.0
          %1932 = vmatpush1.msra.mxu0 0.0
          %1933 = vmatprep.subr.mxu0 0.0
          %1934 = vmatpush1.msra.mxu0 0.0
          %1935 = vmatprep.subr.mxu0 0.0
          %1936 = vmatpush1.msra.mxu0 0.0
          %1937 = vmatprep.subr.mxu0 0.0
          %1938 = vmatpush1.msra.mxu0 0.0
          %1939 = vmatprep.subr.mxu0 0.0
          %1940 = vmatpush1.msra.mxu0 0.0
          %1941 = vmatprep.subr.mxu0 0.0
          %1942 = vmatpush1.msra.mxu0 0.0
          %1943 = vmatprep.subr.mxu0 0.0
          %1944 = vmatpush1.msra.mxu0 0.0
          %1945 = vmatprep.mubr.f32.mxu0 0.0
          %1946 = vmatmul.mubr.f32.gmra.mrb[0].mxu0 %v1804
          %v1947 = vpop.f32.mrb[0].mxu0
          %v1948 = vadd.f32 0.0, %v1947
          %v1949 = vpop.f32.mrb[0].mxu0
          %v1950 = vadd.f32 0.0, %v1949
          %1951 = vdwg.mxu0
          %v1952 = vadd.f32 %v1806, %v1877
          %v1953 = vadd.f32 %v1807, %v1879
          %v1954 = vadd.f32 %v1808, %v1948
          %v1955 = vadd.f32 %v1809, %v1950
          %v1956 = vmul.f32 %v1952, 0.5
          %v1957 = vtanh.pop %v1956
          %v1958 = vmul.f32 %v1957, 0.5
          %v1959 = vadd.f32 %v1958, 0.5
          %v1960 = vmul.f32 %v1953, 0.5
          %v1961 = vtanh.pop %v1960
          %v1962 = vmul.f32 %v1961, 0.5
          %v1963 = vadd.f32 %v1962, 0.5
          %v1964 = vtanh.pop %v1954
          %v1965 = vmul.f32 %v1955, 0.5
          %v1966 = vtanh.pop %v1965
          %v1967 = vmul.f32 %v1966, 0.5
          %v1968 = vadd.f32 %v1967, 0.5
          %v1969 = vmul.f32 %v1963, %v1805
          %v1970 = vmul.f32 %v1959, %v1964
          %v1971 = vadd.f32 %v1969, %v1970
          %v1972 = vtanh.pop %v1971
          %v1973 = vmul.f32 %v1968, %v1972
          %vm1974 = vcmp.gt.s32.totalorder %v1803, 0
          %v1975 = vsel %vm1974, 1, 0
          %1976 = vset.pattern.permute.xlu0 0
          %1977 = vperm.xlu0 %1976, %v1975
          %v1978 = vpop.permute.xlu0 %1977
          %vm1979 = vcmp.eq.s32.totalorder %v1978, 1
          %v1980 = vsel %vm1979, %v1973, 0.0
          %1981 = vst [vmem:[#allocation3] sm:$0xff] %v1980
          %v1982 = vsel %vm1979, %v1973, %v1804
          %v1983 = vsel %vm1979, %v1971, %v1805
          %v1984 = vld [vmem:[%s838] sm:$0xff]
          %v1985 = vld [vmem:[%s838 + $0x8] sm:$0xff]
          %v1986 = vld [vmem:[%s838 + $0x10] sm:$0xff]
          %v1987 = vld [vmem:[%s838 + $0x18] sm:$0xff]
          %1988 = vmatprep.subr.mxu0 %v1738
          %1989 = vmatpush1.msra.mxu0 %v1737
          %1990 = vmatprep.subr.mxu0 %v1742
          %1991 = vmatpush1.msra.mxu0 %v1741
          %1992 = vmatprep.subr.mxu0 %v1746
          %1993 = vmatpush1.msra.mxu0 %v1745
          %1994 = vmatprep.subr.mxu0 %v1750
          %1995 = vmatpush1.msra.mxu0 %v1749
          %1996 = vmatprep.subr.mxu0 %v1754
          %1997 = vmatpush1.msra.mxu0 %v1753
          %1998 = vmatprep.subr.mxu0 %v1758
          %1999 = vmatpush1.msra.mxu0 %v1757
          %2000 = vmatprep.subr.mxu0 %v1762
          %2001 = vmatpush1.msra.mxu0 %v1761
          %2002 = vmatprep.subr.mxu0 %v1766
          %2003 = vmatpush1.msra.mxu0 %v1765
          %2004 = vmatprep.subr.mxu0 %v1770
          %2005 = vmatpush1.msra.mxu0 %v1769
          %2006 = vmatprep.subr.mxu0 %v1774
          %2007 = vmatpush1.msra.mxu0 %v1773
          %2008 = vmatprep.subr.mxu0 %v1778
          %2009 = vmatpush1.msra.mxu0 %v1777
          %2010 = vmatprep.subr.mxu0 %v1782
          %2011 = vmatpush1.msra.mxu0 %v1781
          %2012 = vmatprep.subr.mxu0 %v1786
          %2013 = vmatpush1.msra.mxu0 %v1785
          %2014 = vmatprep.subr.mxu0 %v1790
          %2015 = vmatpush1.msra.mxu0 %v1789
          %2016 = vmatprep.subr.mxu0 %v1794
          %2017 = vmatpush1.msra.mxu0 %v1793
          %2018 = vmatprep.subr.mxu0 %v1798
          %2019 = vmatpush1.msra.mxu0 %v1797
          %2020 = vmatprep.subr.mxu0 0.0
          %2021 = vmatpush1.msra.mxu0 0.0
          %2022 = vmatprep.subr.mxu0 0.0
          %2023 = vmatpush1.msra.mxu0 0.0
          %2024 = vmatprep.subr.mxu0 0.0
          %2025 = vmatpush1.msra.mxu0 0.0
          %2026 = vmatprep.subr.mxu0 0.0
          %2027 = vmatpush1.msra.mxu0 0.0
          %2028 = vmatprep.subr.mxu0 0.0
          %2029 = vmatpush1.msra.mxu0 0.0
          %2030 = vmatprep.subr.mxu0 0.0
          %2031 = vmatpush1.msra.mxu0 0.0
          %2032 = vmatprep.subr.mxu0 0.0
          %2033 = vmatpush1.msra.mxu0 0.0
          %2034 = vmatprep.subr.mxu0 0.0
          %2035 = vmatpush1.msra.mxu0 0.0
          %2036 = vmatprep.subr.mxu0 0.0
          %2037 = vmatpush1.msra.mxu0 0.0
          %2038 = vmatprep.subr.mxu0 0.0
          %2039 = vmatpush1.msra.mxu0 0.0
          %2040 = vmatprep.subr.mxu0 0.0
          %2041 = vmatpush1.msra.mxu0 0.0
          %2042 = vmatprep.subr.mxu0 0.0
          %2043 = vmatpush1.msra.mxu0 0.0
          %2044 = vmatprep.subr.mxu0 0.0
          %2045 = vmatpush1.msra.mxu0 0.0
          %2046 = vmatprep.subr.mxu0 0.0
          %2047 = vmatpush1.msra.mxu0 0.0
          %2048 = vmatprep.subr.mxu0 0.0
          %2049 = vmatpush1.msra.mxu0 0.0
          %2050 = vmatprep.subr.mxu0 0.0
          %2051 = vmatpush1.msra.mxu0 0.0
          %2052 = vmatprep.mubr.f32.mxu0 0.0
          %2053 = vmatmul.mubr.f32.gmra.mrb[0].mxu0 %v1982
          %v2054 = vpop.f32.mrb[0].mxu0
          %v2055 = vadd.f32 0.0, %v2054
          %v2056 = vpop.f32.mrb[0].mxu0
          %v2057 = vadd.f32 0.0, %v2056
          %2058 = vdwg.mxu0
          %2059 = vmatprep.subr.mxu0 %v1740
          %2060 = vmatpush1.msra.mxu0 %v1739
          %2061 = vmatprep.subr.mxu0 %v1744
          %2062 = vmatpush1.msra.mxu0 %v1743
          %2063 = vmatprep.subr.mxu0 %v1748
          %2064 = vmatpush1.msra.mxu0 %v1747
          %2065 = vmatprep.subr.mxu0 %v1752
          %2066 = vmatpush1.msra.mxu0 %v1751
          %2067 = vmatprep.subr.mxu0 %v1756
          %2068 = vmatpush1.msra.mxu0 %v1755
          %2069 = vmatprep.subr.mxu0 %v1760
          %2070 = vmatpush1.msra.mxu0 %v1759
          %2071 = vmatprep.subr.mxu0 %v1764
          %2072 = vmatpush1.msra.mxu0 %v1763
          %2073 = vmatprep.subr.mxu0 %v1768
          %2074 = vmatpush1.msra.mxu0 %v1767
          %2075 = vmatprep.subr.mxu0 %v1772
          %2076 = vmatpush1.msra.mxu0 %v1771
          %2077 = vmatprep.subr.mxu0 %v1776
          %2078 = vmatpush1.msra.mxu0 %v1775
          %2079 = vmatprep.subr.mxu0 %v1780
          %2080 = vmatpush1.msra.mxu0 %v1779
          %2081 = vmatprep.subr.mxu0 %v1784
          %2082 = vmatpush1.msra.mxu0 %v1783
          %2083 = vmatprep.subr.mxu0 %v1788
          %2084 = vmatpush1.msra.mxu0 %v1787
          %2085 = vmatprep.subr.mxu0 %v1792
          %2086 = vmatpush1.msra.mxu0 %v1791
          %2087 = vmatprep.subr.mxu0 %v1796
          %2088 = vmatpush1.msra.mxu0 %v1795
          %2089 = vmatprep.subr.mxu0 %v1800
          %2090 = vmatpush1.msra.mxu0 %v1799
          %2091 = vmatprep.subr.mxu0 0.0
          %2092 = vmatpush1.msra.mxu0 0.0
          %2093 = vmatprep.subr.mxu0 0.0
          %2094 = vmatpush1.msra.mxu0 0.0
          %2095 = vmatprep.subr.mxu0 0.0
          %2096 = vmatpush1.msra.mxu0 0.0
          %2097 = vmatprep.subr.mxu0 0.0
          %2098 = vmatpush1.msra.mxu0 0.0
          %2099 = vmatprep.subr.mxu0 0.0
          %2100 = vmatpush1.msra.mxu0 0.0
          %2101 = vmatprep.subr.mxu0 0.0
          %2102 = vmatpush1.msra.mxu0 0.0
          %2103 = vmatprep.subr.mxu0 0.0
          %2104 = vmatpush1.msra.mxu0 0.0
          %2105 = vmatprep.subr.mxu0 0.0
          %2106 = vmatpush1.msra.mxu0 0.0
          %2107 = vmatprep.subr.mxu0 0.0
          %2108 = vmatpush1.msra.mxu0 0.0
          %2109 = vmatprep.subr.mxu0 0.0
          %2110 = vmatpush1.msra.mxu0 0.0
          %2111 = vmatprep.subr.mxu0 0.0
          %2112 = vmatpush1.msra.mxu0 0.0
          %2113 = vmatprep.subr.mxu0 0.0
          %2114 = vmatpush1.msra.mxu0 0.0
          %2115 = vmatprep.subr.mxu0 0.0
          %2116 = vmatpush1.msra.mxu0 0.0
          %2117 = vmatprep.subr.mxu0 0.0
          %2118 = vmatpush1.msra.mxu0 0.0
          %2119 = vmatprep.subr.mxu0 0.0
          %2120 = vmatpush1.msra.mxu0 0.0
          %2121 = vmatprep.subr.mxu0 0.0
          %2122 = vmatpush1.msra.mxu0 0.0
          %2123 = vmatprep.mubr.f32.mxu0 0.0
          %2124 = vmatmul.mubr.f32.gmra.mrb[0].mxu0 %v1982
          %v2125 = vpop.f32.mrb[0].mxu0
          %v2126 = vadd.f32 0.0, %v2125
          %v2127 = vpop.f32.mrb[0].mxu0
          %v2128 = vadd.f32 0.0, %v2127
          %2129 = vdwg.mxu0
          %v2130 = vadd.f32 %v1984, %v2055
          %v2131 = vadd.f32 %v1985, %v2057
          %v2132 = vadd.f32 %v1986, %v2126
          %v2133 = vadd.f32 %v1987, %v2128
          %v2134 = vmul.f32 %v2130, 0.5
          %v2135 = vtanh.pop %v2134
          %v2136 = vmul.f32 %v2135, 0.5
          %v2137 = vadd.f32 %v2136, 0.5
          %v2138 = vmul.f32 %v2131, 0.5
          %v2139 = vtanh.pop %v2138
          %v2140 = vmul.f32 %v2139, 0.5
          %v2141 = vadd.f32 %v2140, 0.5
          %v2142 = vtanh.pop %v2132
          %v2143 = vmul.f32 %v2133, 0.5
          %v2144 = vtanh.pop %v2143
          %v2145 = vmul.f32 %v2144, 0.5
          %v2146 = vadd.f32 %v2145, 0.5
          %v2147 = vmul.f32 %v2141, %v1983
          %v2148 = vmul.f32 %v2137, %v2142
          %v2149 = vadd.f32 %v2147, %v2148
          %v2150 = vtanh.pop %v2149
          %v2151 = vmul.f32 %v2146, %v2150
          %vm2152 = vcmp.gt.s32.totalorder %v1803, 1
          %v2153 = vsel %vm2152, 1, 0
          %2154 = vset.pattern.permute.xlu0 0
          %2155 = vperm.xlu0 %2154, %v2153
          %v2156 = vpop.permute.xlu0 %2155
          %vm2157 = vcmp.eq.s32.totalorder %v2156, 1
          %v2158 = vsel %vm2157, %v2151, 0.0
          %s2159 = scalar_lea.vmem [#allocation3], 8
          %2160 = vst [vmem:[%s2159] sm:$0xff] %v2158
          %v2161 = vsel %vm2157, %v2151, %v1982
          %v2162 = vsel %vm2157, %v2149, %v1983
          %v2163 = vld [vmem:[%s987] sm:$0xff]
          %v2164 = vld [vmem:[%s987 + $0x8] sm:$0xff]
          %v2165 = vld [vmem:[%s987 + $0x10] sm:$0xff]
          %v2166 = vld [vmem:[%s987 + $0x18] sm:$0xff]
          %2167 = vmatprep.subr.mxu0 %v1738
          %2168 = vmatpush1.msra.mxu0 %v1737
          %2169 = vmatprep.subr.mxu0 %v1742
          %2170 = vmatpush1.msra.mxu0 %v1741
          %2171 = vmatprep.subr.mxu0 %v1746
          %2172 = vmatpush1.msra.mxu0 %v1745
          %2173 = vmatprep.subr.mxu0 %v1750
          %2174 = vmatpush1.msra.mxu0 %v1749
          %2175 = vmatprep.subr.mxu0 %v1754
          %2176 = vmatpush1.msra.mxu0 %v1753
          %2177 = vmatprep.subr.mxu0 %v1758
          %2178 = vmatpush1.msra.mxu0 %v1757
          %2179 = vmatprep.subr.mxu0 %v1762
          %2180 = vmatpush1.msra.mxu0 %v1761
          %2181 = vmatprep.subr.mxu0 %v1766
          %2182 = vmatpush1.msra.mxu0 %v1765
          %2183 = vmatprep.subr.mxu0 %v1770
          %2184 = vmatpush1.msra.mxu0 %v1769
          %2185 = vmatprep.subr.mxu0 %v1774
          %2186 = vmatpush1.msra.mxu0 %v1773
          %2187 = vmatprep.subr.mxu0 %v1778
          %2188 = vmatpush1.msra.mxu0 %v1777
          %2189 = vmatprep.subr.mxu0 %v1782
          %2190 = vmatpush1.msra.mxu0 %v1781
          %2191 = vmatprep.subr.mxu0 %v1786
          %2192 = vmatpush1.msra.mxu0 %v1785
          %2193 = vmatprep.subr.mxu0 %v1790
          %2194 = vmatpush1.msra.mxu0 %v1789
          %2195 = vmatprep.subr.mxu0 %v1794
          %2196 = vmatpush1.msra.mxu0 %v1793
          %2197 = vmatprep.subr.mxu0 %v1798
          %2198 = vmatpush1.msra.mxu0 %v1797
          %2199 = vmatprep.subr.mxu0 0.0
          %2200 = vmatpush1.msra.mxu0 0.0
          %2201 = vmatprep.subr.mxu0 0.0
          %2202 = vmatpush1.msra.mxu0 0.0
          %2203 = vmatprep.subr.mxu0 0.0
          %2204 = vmatpush1.msra.mxu0 0.0
          %2205 = vmatprep.subr.mxu0 0.0
          %2206 = vmatpush1.msra.mxu0 0.0
          %2207 = vmatprep.subr.mxu0 0.0
          %2208 = vmatpush1.msra.mxu0 0.0
          %2209 = vmatprep.subr.mxu0 0.0
          %2210 = vmatpush1.msra.mxu0 0.0
          %2211 = vmatprep.subr.mxu0 0.0
          %2212 = vmatpush1.msra.mxu0 0.0
          %2213 = vmatprep.subr.mxu0 0.0
          %2214 = vmatpush1.msra.mxu0 0.0
          %2215 = vmatprep.subr.mxu0 0.0
          %2216 = vmatpush1.msra.mxu0 0.0
          %2217 = vmatprep.subr.mxu0 0.0
          %2218 = vmatpush1.msra.mxu0 0.0
          %2219 = vmatprep.subr.mxu0 0.0
          %2220 = vmatpush1.msra.mxu0 0.0
          %2221 = vmatprep.subr.mxu0 0.0
          %2222 = vmatpush1.msra.mxu0 0.0
          %2223 = vmatprep.subr.mxu0 0.0
          %2224 = vmatpush1.msra.mxu0 0.0
          %2225 = vmatprep.subr.mxu0 0.0
          %2226 = vmatpush1.msra.mxu0 0.0
          %2227 = vmatprep.subr.mxu0 0.0
          %2228 = vmatpush1.msra.mxu0 0.0
          %2229 = vmatprep.subr.mxu0 0.0
          %2230 = vmatpush1.msra.mxu0 0.0
          %2231 = vmatprep.mubr.f32.mxu0 0.0
          %2232 = vmatmul.mubr.f32.gmra.mrb[0].mxu0 %v2161
          %v2233 = vpop.f32.mrb[0].mxu0
          %v2234 = vadd.f32 0.0, %v2233
          %v2235 = vpop.f32.mrb[0].mxu0
          %v2236 = vadd.f32 0.0, %v2235
          %2237 = vdwg.mxu0
          %2238 = vmatprep.subr.mxu0 %v1740
          %2239 = vmatpush1.msra.mxu0 %v1739
          %2240 = vmatprep.subr.mxu0 %v1744
          %2241 = vmatpush1.msra.mxu0 %v1743
          %2242 = vmatprep.subr.mxu0 %v1748
          %2243 = vmatpush1.msra.mxu0 %v1747
          %2244 = vmatprep.subr.mxu0 %v1752
          %2245 = vmatpush1.msra.mxu0 %v1751
          %2246 = vmatprep.subr.mxu0 %v1756
          %2247 = vmatpush1.msra.mxu0 %v1755
          %2248 = vmatprep.subr.mxu0 %v1760
          %2249 = vmatpush1.msra.mxu0 %v1759
          %2250 = vmatprep.subr.mxu0 %v1764
          %2251 = vmatpush1.msra.mxu0 %v1763
          %2252 = vmatprep.subr.mxu0 %v1768
          %2253 = vmatpush1.msra.mxu0 %v1767
          %2254 = vmatprep.subr.mxu0 %v1772
          %2255 = vmatpush1.msra.mxu0 %v1771
          %2256 = vmatprep.subr.mxu0 %v1776
          %2257 = vmatpush1.msra.mxu0 %v1775
          %2258 = vmatprep.subr.mxu0 %v1780
          %2259 = vmatpush1.msra.mxu0 %v1779
          %2260 = vmatprep.subr.mxu0 %v1784
          %2261 = vmatpush1.msra.mxu0 %v1783
          %2262 = vmatprep.subr.mxu0 %v1788
          %2263 = vmatpush1.msra.mxu0 %v1787
          %2264 = vmatprep.subr.mxu0 %v1792
          %2265 = vmatpush1.msra.mxu0 %v1791
          %2266 = vmatprep.subr.mxu0 %v1796
          %2267 = vmatpush1.msra.mxu0 %v1795
          %2268 = vmatprep.subr.mxu0 %v1800
          %2269 = vmatpush1.msra.mxu0 %v1799
          %2270 = vmatprep.subr.mxu0 0.0
          %2271 = vmatpush1.msra.mxu0 0.0
          %2272 = vmatprep.subr.mxu0 0.0
          %2273 = vmatpush1.msra.mxu0 0.0
          %2274 = vmatprep.subr.mxu0 0.0
          %2275 = vmatpush1.msra.mxu0 0.0
          %2276 = vmatprep.subr.mxu0 0.0
          %2277 = vmatpush1.msra.mxu0 0.0
          %2278 = vmatprep.subr.mxu0 0.0
          %2279 = vmatpush1.msra.mxu0 0.0
          %2280 = vmatprep.subr.mxu0 0.0
          %2281 = vmatpush1.msra.mxu0 0.0
          %2282 = vmatprep.subr.mxu0 0.0
          %2283 = vmatpush1.msra.mxu0 0.0
          %2284 = vmatprep.subr.mxu0 0.0
          %2285 = vmatpush1.msra.mxu0 0.0
          %2286 = vmatprep.subr.mxu0 0.0
          %2287 = vmatpush1.msra.mxu0 0.0
          %2288 = vmatprep.subr.mxu0 0.0
          %2289 = vmatpush1.msra.mxu0 0.0
          %2290 = vmatprep.subr.mxu0 0.0
          %2291 = vmatpush1.msra.mxu0 0.0
          %2292 = vmatprep.subr.mxu0 0.0
          %2293 = vmatpush1.msra.mxu0 0.0
          %2294 = vmatprep.subr.mxu0 0.0
          %2295 = vmatpush1.msra.mxu0 0.0
          %2296 = vmatprep.subr.mxu0 0.0
          %2297 = vmatpush1.msra.mxu0 0.0
          %2298 = vmatprep.subr.mxu0 0.0
          %2299 = vmatpush1.msra.mxu0 0.0
          %2300 = vmatprep.subr.mxu0 0.0
          %2301 = vmatpush1.msra.mxu0 0.0
          %2302 = vmatprep.mubr.f32.mxu0 0.0
          %2303 = vmatmul.mubr.f32.gmra.mrb[0].mxu0 %v2161
          %v2304 = vpop.f32.mrb[0].mxu0
          %v2305 = vadd.f32 0.0, %v2304
          %v2306 = vpop.f32.mrb[0].mxu0
          %v2307 = vadd.f32 0.0, %v2306
          %2308 = vdwg.mxu0
          %v2309 = vadd.f32 %v2163, %v2234
          %v2310 = vadd.f32 %v2164, %v2236
          %v2311 = vadd.f32 %v2165, %v2305
          %v2312 = vadd.f32 %v2166, %v2307
          %v2313 = vmul.f32 %v2309, 0.5
          %v2314 = vtanh.pop %v2313
          %v2315 = vmul.f32 %v2314, 0.5
          %v2316 = vadd.f32 %v2315, 0.5
          %v2317 = vmul.f32 %v2310, 0.5
          %v2318 = vtanh.pop %v2317
          %v2319 = vmul.f32 %v2318, 0.5
          %v2320 = vadd.f32 %v2319, 0.5
          %v2321 = vtanh.pop %v2311
          %v2322 = vmul.f32 %v2312, 0.5
          %v2323 = vtanh.pop %v2322
          %v2324 = vmul.f32 %v2323, 0.5
          %v2325 = vadd.f32 %v2324, 0.5
          %v2326 = vmul.f32 %v2320, %v2162
          %v2327 = vmul.f32 %v2316, %v2321
          %v2328 = vadd.f32 %v2326, %v2327
          %v2329 = vtanh.pop %v2328
          %v2330 = vmul.f32 %v2325, %v2329
          %vm2331 = vcmp.gt.s32.totalorder %v1803, 2
          %v2332 = vsel %vm2331, 1, 0
          %2333 = vset.pattern.permute.xlu0 0
          %2334 = vperm.xlu0 %2333, %v2332
          %v2335 = vpop.permute.xlu0 %2334
          %vm2336 = vcmp.eq.s32.totalorder %v2335, 1
          %v2337 = vsel %vm2336, %v2330, 0.0
          %s2338 = scalar_lea.vmem [#allocation3], 16
          %2339 = vst [vmem:[%s2338] sm:$0xff] %v2337
          %v2340 = vsel %vm2336, %v2330, %v2161
          %v2341 = vsel %vm2336, %v2328, %v2162
          %v2342 = vld [vmem:[%s1136] sm:$0xff]
          %v2343 = vld [vmem:[%s1136 + $0x8] sm:$0xff]
          %v2344 = vld [vmem:[%s1136 + $0x10] sm:$0xff]
          %v2345 = vld [vmem:[%s1136 + $0x18] sm:$0xff]
          %2346 = vmatprep.subr.mxu0 %v1738
          %2347 = vmatpush1.msra.mxu0 %v1737
          %2348 = vmatprep.subr.mxu0 %v1742
          %2349 = vmatpush1.msra.mxu0 %v1741
          %2350 = vmatprep.subr.mxu0 %v1746
          %2351 = vmatpush1.msra.mxu0 %v1745
          %2352 = vmatprep.subr.mxu0 %v1750
          %2353 = vmatpush1.msra.mxu0 %v1749
          %2354 = vmatprep.subr.mxu0 %v1754
          %2355 = vmatpush1.msra.mxu0 %v1753
          %2356 = vmatprep.subr.mxu0 %v1758
          %2357 = vmatpush1.msra.mxu0 %v1757
          %2358 = vmatprep.subr.mxu0 %v1762
          %2359 = vmatpush1.msra.mxu0 %v1761
          %2360 = vmatprep.subr.mxu0 %v1766
          %2361 = vmatpush1.msra.mxu0 %v1765
          %2362 = vmatprep.subr.mxu0 %v1770
          %2363 = vmatpush1.msra.mxu0 %v1769
          %2364 = vmatprep.subr.mxu0 %v1774
          %2365 = vmatpush1.msra.mxu0 %v1773
          %2366 = vmatprep.subr.mxu0 %v1778
          %2367 = vmatpush1.msra.mxu0 %v1777
          %2368 = vmatprep.subr.mxu0 %v1782
          %2369 = vmatpush1.msra.mxu0 %v1781
          %2370 = vmatprep.subr.mxu0 %v1786
          %2371 = vmatpush1.msra.mxu0 %v1785
          %2372 = vmatprep.subr.mxu0 %v1790
          %2373 = vmatpush1.msra.mxu0 %v1789
          %2374 = vmatprep.subr.mxu0 %v1794
          %2375 = vmatpush1.msra.mxu0 %v1793
          %2376 = vmatprep.subr.mxu0 %v1798
          %2377 = vmatpush1.msra.mxu0 %v1797
          %2378 = vmatprep.subr.mxu0 0.0
          %2379 = vmatpush1.msra.mxu0 0.0
          %2380 = vmatprep.subr.mxu0 0.0
          %2381 = vmatpush1.msra.mxu0 0.0
          %2382 = vmatprep.subr.mxu0 0.0
          %2383 = vmatpush1.msra.mxu0 0.0
          %2384 = vmatprep.subr.mxu0 0.0
          %2385 = vmatpush1.msra.mxu0 0.0
          %2386 = vmatprep.subr.mxu0 0.0
          %2387 = vmatpush1.msra.mxu0 0.0
          %2388 = vmatprep.subr.mxu0 0.0
          %2389 = vmatpush1.msra.mxu0 0.0
          %2390 = vmatprep.subr.mxu0 0.0
          %2391 = vmatpush1.msra.mxu0 0.0
          %2392 = vmatprep.subr.mxu0 0.0
          %2393 = vmatpush1.msra.mxu0 0.0
          %2394 = vmatprep.subr.mxu0 0.0
          %2395 = vmatpush1.msra.mxu0 0.0
          %2396 = vmatprep.subr.mxu0 0.0
          %2397 = vmatpush1.msra.mxu0 0.0
          %2398 = vmatprep.subr.mxu0 0.0
          %2399 = vmatpush1.msra.mxu0 0.0
          %2400 = vmatprep.subr.mxu0 0.0
          %2401 = vmatpush1.msra.mxu0 0.0
          %2402 = vmatprep.subr.mxu0 0.0
          %2403 = vmatpush1.msra.mxu0 0.0
          %2404 = vmatprep.subr.mxu0 0.0
          %2405 = vmatpush1.msra.mxu0 0.0
          %2406 = vmatprep.subr.mxu0 0.0
          %2407 = vmatpush1.msra.mxu0 0.0
          %2408 = vmatprep.subr.mxu0 0.0
          %2409 = vmatpush1.msra.mxu0 0.0
          %2410 = vmatprep.mubr.f32.mxu0 0.0
          %2411 = vmatmul.mubr.f32.gmra.mrb[0].mxu0 %v2340
          %v2412 = vpop.f32.mrb[0].mxu0
          %v2413 = vadd.f32 0.0, %v2412
          %v2414 = vpop.f32.mrb[0].mxu0
          %v2415 = vadd.f32 0.0, %v2414
          %2416 = vdwg.mxu0
          %2417 = vmatprep.subr.mxu0 %v1740
          %2418 = vmatpush1.msra.mxu0 %v1739
          %2419 = vmatprep.subr.mxu0 %v1744
          %2420 = vmatpush1.msra.mxu0 %v1743
          %2421 = vmatprep.subr.mxu0 %v1748
          %2422 = vmatpush1.msra.mxu0 %v1747
          %2423 = vmatprep.subr.mxu0 %v1752
          %2424 = vmatpush1.msra.mxu0 %v1751
          %2425 = vmatprep.subr.mxu0 %v1756
          %2426 = vmatpush1.msra.mxu0 %v1755
          %2427 = vmatprep.subr.mxu0 %v1760
          %2428 = vmatpush1.msra.mxu0 %v1759
          %2429 = vmatprep.subr.mxu0 %v1764
          %2430 = vmatpush1.msra.mxu0 %v1763
          %2431 = vmatprep.subr.mxu0 %v1768
          %2432 = vmatpush1.msra.mxu0 %v1767
          %2433 = vmatprep.subr.mxu0 %v1772
          %2434 = vmatpush1.msra.mxu0 %v1771
          %2435 = vmatprep.subr.mxu0 %v1776
          %2436 = vmatpush1.msra.mxu0 %v1775
          %2437 = vmatprep.subr.mxu0 %v1780
          %2438 = vmatpush1.msra.mxu0 %v1779
          %2439 = vmatprep.subr.mxu0 %v1784
          %2440 = vmatpush1.msra.mxu0 %v1783
          %2441 = vmatprep.subr.mxu0 %v1788
          %2442 = vmatpush1.msra.mxu0 %v1787
          %2443 = vmatprep.subr.mxu0 %v1792
          %2444 = vmatpush1.msra.mxu0 %v1791
          %2445 = vmatprep.subr.mxu0 %v1796
          %2446 = vmatpush1.msra.mxu0 %v1795
          %2447 = vmatprep.subr.mxu0 %v1800
          %2448 = vmatpush1.msra.mxu0 %v1799
          %2449 = vmatprep.subr.mxu0 0.0
          %2450 = vmatpush1.msra.mxu0 0.0
          %2451 = vmatprep.subr.mxu0 0.0
          %2452 = vmatpush1.msra.mxu0 0.0
          %2453 = vmatprep.subr.mxu0 0.0
          %2454 = vmatpush1.msra.mxu0 0.0
          %2455 = vmatprep.subr.mxu0 0.0
          %2456 = vmatpush1.msra.mxu0 0.0
          %2457 = vmatprep.subr.mxu0 0.0
          %2458 = vmatpush1.msra.mxu0 0.0
          %2459 = vmatprep.subr.mxu0 0.0
          %2460 = vmatpush1.msra.mxu0 0.0
          %2461 = vmatprep.subr.mxu0 0.0
          %2462 = vmatpush1.msra.mxu0 0.0
          %2463 = vmatprep.subr.mxu0 0.0
          %2464 = vmatpush1.msra.mxu0 0.0
          %2465 = vmatprep.subr.mxu0 0.0
          %2466 = vmatpush1.msra.mxu0 0.0
          %2467 = vmatprep.subr.mxu0 0.0
          %2468 = vmatpush1.msra.mxu0 0.0
          %2469 = vmatprep.subr.mxu0 0.0
          %2470 = vmatpush1.msra.mxu0 0.0
          %2471 = vmatprep.subr.mxu0 0.0
          %2472 = vmatpush1.msra.mxu0 0.0
          %2473 = vmatprep.subr.mxu0 0.0
          %2474 = vmatpush1.msra.mxu0 0.0
          %2475 = vmatprep.subr.mxu0 0.0
          %2476 = vmatpush1.msra.mxu0 0.0
          %2477 = vmatprep.subr.mxu0 0.0
          %2478 = vmatpush1.msra.mxu0 0.0
          %2479 = vmatprep.subr.mxu0 0.0
          %2480 = vmatpush1.msra.mxu0 0.0
          %2481 = vmatprep.mubr.f32.mxu0 0.0
          %2482 = vmatmul.mubr.f32.gmra.mrb[0].mxu0 %v2340
          %v2483 = vpop.f32.mrb[0].mxu0
          %v2484 = vadd.f32 0.0, %v2483
          %v2485 = vpop.f32.mrb[0].mxu0
          %v2486 = vadd.f32 0.0, %v2485
          %2487 = vdwg.mxu0
          %v2488 = vadd.f32 %v2342, %v2413
          %v2489 = vadd.f32 %v2343, %v2415
          %v2490 = vadd.f32 %v2344, %v2484
          %v2491 = vadd.f32 %v2345, %v2486
          %v2492 = vmul.f32 %v2488, 0.5
          %v2493 = vtanh.pop %v2492
          %v2494 = vmul.f32 %v2493, 0.5
          %v2495 = vadd.f32 %v2494, 0.5
          %v2496 = vmul.f32 %v2489, 0.5
          %v2497 = vtanh.pop %v2496
          %v2498 = vmul.f32 %v2497, 0.5
          %v2499 = vadd.f32 %v2498, 0.5
          %v2500 = vtanh.pop %v2490
          %v2501 = vmul.f32 %v2491, 0.5
          %v2502 = vtanh.pop %v2501
          %v2503 = vmul.f32 %v2502, 0.5
          %v2504 = vadd.f32 %v2503, 0.5
          %v2505 = vmul.f32 %v2499, %v2341
          %v2506 = vmul.f32 %v2495, %v2500
          %v2507 = vadd.f32 %v2505, %v2506
          %v2508 = vtanh.pop %v2507
          %v2509 = vmul.f32 %v2504, %v2508
          %vm2510 = vcmp.gt.s32.totalorder %v1803, 3
          %v2511 = vsel %vm2510, 1, 0
          %2512 = vset.pattern.permute.xlu0 0
          %2513 = vperm.xlu0 %2512, %v2511
          %v2514 = vpop.permute.xlu0 %2513
          %vm2515 = vcmp.eq.s32.totalorder %v2514, 1
          %v2516 = vsel %vm2515, %v2509, 0.0
          %s2517 = scalar_lea.vmem [#allocation3], 24
          %2518 = vst [vmem:[%s2517] sm:$0xff] %v2516
          %v2519 = vsel %vm2515, %v2509, %v2340
          %v2520 = vsel %vm2515, %v2507, %v2341
          %v2521 = vld [vmem:[%s1285] sm:$0xff]
          %v2522 = vld [vmem:[%s1285 + $0x8] sm:$0xff]
          %v2523 = vld [vmem:[%s1285 + $0x10] sm:$0xff]
          %v2524 = vld [vmem:[%s1285 + $0x18] sm:$0xff]
          %2525 = vmatprep.subr.mxu0 %v1738
          %2526 = vmatpush1.msra.mxu0 %v1737
          %2527 = vmatprep.subr.mxu0 %v1742
          %2528 = vmatpush1.msra.mxu0 %v1741
          %2529 = vmatprep.subr.mxu0 %v1746
          %2530 = vmatpush1.msra.mxu0 %v1745
          %2531 = vmatprep.subr.mxu0 %v1750
          %2532 = vmatpush1.msra.mxu0 %v1749
          %2533 = vmatprep.subr.mxu0 %v1754
          %2534 = vmatpush1.msra.mxu0 %v1753
          %2535 = vmatprep.subr.mxu0 %v1758
          %2536 = vmatpush1.msra.mxu0 %v1757
          %2537 = vmatprep.subr.mxu0 %v1762
          %2538 = vmatpush1.msra.mxu0 %v1761
          %2539 = vmatprep.subr.mxu0 %v1766
          %2540 = vmatpush1.msra.mxu0 %v1765
          %2541 = vmatprep.subr.mxu0 %v1770
          %2542 = vmatpush1.msra.mxu0 %v1769
          %2543 = vmatprep.subr.mxu0 %v1774
          %2544 = vmatpush1.msra.mxu0 %v1773
          %2545 = vmatprep.subr.mxu0 %v1778
          %2546 = vmatpush1.msra.mxu0 %v1777
          %2547 = vmatprep.subr.mxu0 %v1782
          %2548 = vmatpush1.msra.mxu0 %v1781
          %2549 = vmatprep.subr.mxu0 %v1786
          %2550 = vmatpush1.msra.mxu0 %v1785
          %2551 = vmatprep.subr.mxu0 %v1790
          %2552 = vmatpush1.msra.mxu0 %v1789
          %2553 = vmatprep.subr.mxu0 %v1794
          %2554 = vmatpush1.msra.mxu0 %v1793
          %2555 = vmatprep.subr.mxu0 %v1798
          %2556 = vmatpush1.msra.mxu0 %v1797
          %2557 = vmatprep.subr.mxu0 0.0
          %2558 = vmatpush1.msra.mxu0 0.0
          %2559 = vmatprep.subr.mxu0 0.0
          %2560 = vmatpush1.msra.mxu0 0.0
          %2561 = vmatprep.subr.mxu0 0.0
          %2562 = vmatpush1.msra.mxu0 0.0
          %2563 = vmatprep.subr.mxu0 0.0
          %2564 = vmatpush1.msra.mxu0 0.0
          %2565 = vmatprep.subr.mxu0 0.0
          %2566 = vmatpush1.msra.mxu0 0.0
          %2567 = vmatprep.subr.mxu0 0.0
          %2568 = vmatpush1.msra.mxu0 0.0
          %2569 = vmatprep.subr.mxu0 0.0
          %2570 = vmatpush1.msra.mxu0 0.0
          %2571 = vmatprep.subr.mxu0 0.0
          %2572 = vmatpush1.msra.mxu0 0.0
          %2573 = vmatprep.subr.mxu0 0.0
          %2574 = vmatpush1.msra.mxu0 0.0
          %2575 = vmatprep.subr.mxu0 0.0
          %2576 = vmatpush1.msra.mxu0 0.0
          %2577 = vmatprep.subr.mxu0 0.0
          %2578 = vmatpush1.msra.mxu0 0.0
          %2579 = vmatprep.subr.mxu0 0.0
          %2580 = vmatpush1.msra.mxu0 0.0
          %2581 = vmatprep.subr.mxu0 0.0
          %2582 = vmatpush1.msra.mxu0 0.0
          %2583 = vmatprep.subr.mxu0 0.0
          %2584 = vmatpush1.msra.mxu0 0.0
          %2585 = vmatprep.subr.mxu0 0.0
          %2586 = vmatpush1.msra.mxu0 0.0
          %2587 = vmatprep.subr.mxu0 0.0
          %2588 = vmatpush1.msra.mxu0 0.0
          %2589 = vmatprep.mubr.f32.mxu0 0.0
          %2590 = vmatmul.mubr.f32.gmra.mrb[0].mxu0 %v2519
          %v2591 = vpop.f32.mrb[0].mxu0
          %v2592 = vadd.f32 0.0, %v2591
          %v2593 = vpop.f32.mrb[0].mxu0
          %v2594 = vadd.f32 0.0, %v2593
          %2595 = vdwg.mxu0
          %2596 = vmatprep.subr.mxu0 %v1740
          %2597 = vmatpush1.msra.mxu0 %v1739
          %2598 = vmatprep.subr.mxu0 %v1744
          %2599 = vmatpush1.msra.mxu0 %v1743
          %2600 = vmatprep.subr.mxu0 %v1748
          %2601 = vmatpush1.msra.mxu0 %v1747
          %2602 = vmatprep.subr.mxu0 %v1752
          %2603 = vmatpush1.msra.mxu0 %v1751
          %2604 = vmatprep.subr.mxu0 %v1756
          %2605 = vmatpush1.msra.mxu0 %v1755
          %2606 = vmatprep.subr.mxu0 %v1760
          %2607 = vmatpush1.msra.mxu0 %v1759
          %2608 = vmatprep.subr.mxu0 %v1764
          %2609 = vmatpush1.msra.mxu0 %v1763
          %2610 = vmatprep.subr.mxu0 %v1768
          %2611 = vmatpush1.msra.mxu0 %v1767
          %2612 = vmatprep.subr.mxu0 %v1772
          %2613 = vmatpush1.msra.mxu0 %v1771
          %2614 = vmatprep.subr.mxu0 %v1776
          %2615 = vmatpush1.msra.mxu0 %v1775
          %2616 = vmatprep.subr.mxu0 %v1780
          %2617 = vmatpush1.msra.mxu0 %v1779
          %2618 = vmatprep.subr.mxu0 %v1784
          %2619 = vmatpush1.msra.mxu0 %v1783
          %2620 = vmatprep.subr.mxu0 %v1788
          %2621 = vmatpush1.msra.mxu0 %v1787
          %2622 = vmatprep.subr.mxu0 %v1792
          %2623 = vmatpush1.msra.mxu0 %v1791
          %2624 = vmatprep.subr.mxu0 %v1796
          %2625 = vmatpush1.msra.mxu0 %v1795
          %2626 = vmatprep.subr.mxu0 %v1800
          %2627 = vmatpush1.msra.mxu0 %v1799
          %2628 = vmatprep.subr.mxu0 0.0
          %2629 = vmatpush1.msra.mxu0 0.0
          %2630 = vmatprep.subr.mxu0 0.0
          %2631 = vmatpush1.msra.mxu0 0.0
          %2632 = vmatprep.subr.mxu0 0.0
          %2633 = vmatpush1.msra.mxu0 0.0
          %2634 = vmatprep.subr.mxu0 0.0
          %2635 = vmatpush1.msra.mxu0 0.0
          %2636 = vmatprep.subr.mxu0 0.0
          %2637 = vmatpush1.msra.mxu0 0.0
          %2638 = vmatprep.subr.mxu0 0.0
          %2639 = vmatpush1.msra.mxu0 0.0
          %2640 = vmatprep.subr.mxu0 0.0
          %2641 = vmatpush1.msra.mxu0 0.0
          %2642 = vmatprep.subr.mxu0 0.0
          %2643 = vmatpush1.msra.mxu0 0.0
          %2644 = vmatprep.subr.mxu0 0.0
          %2645 = vmatpush1.msra.mxu0 0.0
          %2646 = vmatprep.subr.mxu0 0.0
          %2647 = vmatpush1.msra.mxu0 0.0
          %2648 = vmatprep.subr.mxu0 0.0
          %2649 = vmatpush1.msra.mxu0 0.0
          %2650 = vmatprep.subr.mxu0 0.0
          %2651 = vmatpush1.msra.mxu0 0.0
          %2652 = vmatprep.subr.mxu0 0.0
          %2653 = vmatpush1.msra.mxu0 0.0
          %2654 = vmatprep.subr.mxu0 0.0
          %2655 = vmatpush1.msra.mxu0 0.0
          %2656 = vmatprep.subr.mxu0 0.0
          %2657 = vmatpush1.msra.mxu0 0.0
          %2658 = vmatprep.subr.mxu0 0.0
          %2659 = vmatpush1.msra.mxu0 0.0
          %2660 = vmatprep.mubr.f32.mxu0 0.0
          %2661 = vmatmul.mubr.f32.gmra.mrb[0].mxu0 %v2519
          %v2662 = vpop.f32.mrb[0].mxu0
          %v2663 = vadd.f32 0.0, %v2662
          %v2664 = vpop.f32.mrb[0].mxu0
          %v2665 = vadd.f32 0.0, %v2664
          %2666 = vdwg.mxu0
          %v2667 = vadd.f32 %v2521, %v2592
          %v2668 = vadd.f32 %v2522, %v2594
          %v2669 = vadd.f32 %v2523, %v2663
          %v2670 = vadd.f32 %v2524, %v2665
          %v2671 = vmul.f32 %v2667, 0.5
          %v2672 = vtanh.pop %v2671
          %v2673 = vmul.f32 %v2672, 0.5
          %v2674 = vadd.f32 %v2673, 0.5
          %v2675 = vmul.f32 %v2668, 0.5
          %v2676 = vtanh.pop %v2675
          %v2677 = vmul.f32 %v2676, 0.5
          %v2678 = vadd.f32 %v2677, 0.5
          %v2679 = vtanh.pop %v2669
          %v2680 = vmul.f32 %v2670, 0.5
          %v2681 = vtanh.pop %v2680
          %v2682 = vmul.f32 %v2681, 0.5
          %v2683 = vadd.f32 %v2682, 0.5
          %v2684 = vmul.f32 %v2678, %v2520
          %v2685 = vmul.f32 %v2674, %v2679
          %v2686 = vadd.f32 %v2684, %v2685
          %v2687 = vtanh.pop %v2686
          %v2688 = vmul.f32 %v2683, %v2687
          %vm2689 = vcmp.gt.s32.totalorder %v1803, 4
          %v2690 = vsel %vm2689, 1, 0
          %2691 = vset.pattern.permute.xlu0 0
          %2692 = vperm.xlu0 %2691, %v2690
          %v2693 = vpop.permute.xlu0 %2692
          %vm2694 = vcmp.eq.s32.totalorder %v2693, 1
          %v2695 = vsel %vm2694, %v2688, 0.0
          %s2696 = scalar_lea.vmem [#allocation3], 32
          %2697 = vst [vmem:[%s2696] sm:$0xff] %v2695
          %v2698 = vsel %vm2694, %v2688, %v2519
          %v2699 = vsel %vm2694, %v2686, %v2520
          %v2700 = vld [vmem:[%s1434] sm:$0xff]
          %v2701 = vld [vmem:[%s1434 + $0x8] sm:$0xff]
          %v2702 = vld [vmem:[%s1434 + $0x10] sm:$0xff]
          %v2703 = vld [vmem:[%s1434 + $0x18] sm:$0xff]
          %2704 = vmatprep.subr.mxu0 %v1738
          %2705 = vmatpush1.msra.mxu0 %v1737
          %2706 = vmatprep.subr.mxu0 %v1742
          %2707 = vmatpush1.msra.mxu0 %v1741
          %2708 = vmatprep.subr.mxu0 %v1746
          %2709 = vmatpush1.msra.mxu0 %v1745
          %2710 = vmatprep.subr.mxu0 %v1750
          %2711 = vmatpush1.msra.mxu0 %v1749
          %2712 = vmatprep.subr.mxu0 %v1754
          %2713 = vmatpush1.msra.mxu0 %v1753
          %2714 = vmatprep.subr.mxu0 %v1758
          %2715 = vmatpush1.msra.mxu0 %v1757
          %2716 = vmatprep.subr.mxu0 %v1762
          %2717 = vmatpush1.msra.mxu0 %v1761
          %2718 = vmatprep.subr.mxu0 %v1766
          %2719 = vmatpush1.msra.mxu0 %v1765
          %2720 = vmatprep.subr.mxu0 %v1770
          %2721 = vmatpush1.msra.mxu0 %v1769
          %2722 = vmatprep.subr.mxu0 %v1774
          %2723 = vmatpush1.msra.mxu0 %v1773
          %2724 = vmatprep.subr.mxu0 %v1778
          %2725 = vmatpush1.msra.mxu0 %v1777
          %2726 = vmatprep.subr.mxu0 %v1782
          %2727 = vmatpush1.msra.mxu0 %v1781
          %2728 = vmatprep.subr.mxu0 %v1786
          %2729 = vmatpush1.msra.mxu0 %v1785
          %2730 = vmatprep.subr.mxu0 %v1790
          %2731 = vmatpush1.msra.mxu0 %v1789
          %2732 = vmatprep.subr.mxu0 %v1794
          %2733 = vmatpush1.msra.mxu0 %v1793
          %2734 = vmatprep.subr.mxu0 %v1798
          %2735 = vmatpush1.msra.mxu0 %v1797
          %2736 = vmatprep.subr.mxu0 0.0
          %2737 = vmatpush1.msra.mxu0 0.0
          %2738 = vmatprep.subr.mxu0 0.0
          %2739 = vmatpush1.msra.mxu0 0.0
          %2740 = vmatprep.subr.mxu0 0.0
          %2741 = vmatpush1.msra.mxu0 0.0
          %2742 = vmatprep.subr.mxu0 0.0
          %2743 = vmatpush1.msra.mxu0 0.0
          %2744 = vmatprep.subr.mxu0 0.0
          %2745 = vmatpush1.msra.mxu0 0.0
          %2746 = vmatprep.subr.mxu0 0.0
          %2747 = vmatpush1.msra.mxu0 0.0
          %2748 = vmatprep.subr.mxu0 0.0
          %2749 = vmatpush1.msra.mxu0 0.0
          %2750 = vmatprep.subr.mxu0 0.0
          %2751 = vmatpush1.msra.mxu0 0.0
          %2752 = vmatprep.subr.mxu0 0.0
          %2753 = vmatpush1.msra.mxu0 0.0
          %2754 = vmatprep.subr.mxu0 0.0
          %2755 = vmatpush1.msra.mxu0 0.0
          %2756 = vmatprep.subr.mxu0 0.0
          %2757 = vmatpush1.msra.mxu0 0.0
          %2758 = vmatprep.subr.mxu0 0.0
          %2759 = vmatpush1.msra.mxu0 0.0
          %2760 = vmatprep.subr.mxu0 0.0
          %2761 = vmatpush1.msra.mxu0 0.0
          %2762 = vmatprep.subr.mxu0 0.0
          %2763 = vmatpush1.msra.mxu0 0.0
          %2764 = vmatprep.subr.mxu0 0.0
          %2765 = vmatpush1.msra.mxu0 0.0
          %2766 = vmatprep.subr.mxu0 0.0
          %2767 = vmatpush1.msra.mxu0 0.0
          %2768 = vmatprep.mubr.f32.mxu0 0.0
          %2769 = vmatmul.mubr.f32.gmra.mrb[0].mxu0 %v2698
          %v2770 = vpop.f32.mrb[0].mxu0
          %v2771 = vadd.f32 0.0, %v2770
          %v2772 = vpop.f32.mrb[0].mxu0
          %v2773 = vadd.f32 0.0, %v2772
          %2774 = vdwg.mxu0
          %2775 = vmatprep.subr.mxu0 %v1740
          %2776 = vmatpush1.msra.mxu0 %v1739
          %2777 = vmatprep.subr.mxu0 %v1744
          %2778 = vmatpush1.msra.mxu0 %v1743
          %2779 = vmatprep.subr.mxu0 %v1748
          %2780 = vmatpush1.msra.mxu0 %v1747
          %2781 = vmatprep.subr.mxu0 %v1752
          %2782 = vmatpush1.msra.mxu0 %v1751
          %2783 = vmatprep.subr.mxu0 %v1756
          %2784 = vmatpush1.msra.mxu0 %v1755
          %2785 = vmatprep.subr.mxu0 %v1760
          %2786 = vmatpush1.msra.mxu0 %v1759
          %2787 = vmatprep.subr.mxu0 %v1764
          %2788 = vmatpush1.msra.mxu0 %v1763
          %2789 = vmatprep.subr.mxu0 %v1768
          %2790 = vmatpush1.msra.mxu0 %v1767
          %2791 = vmatprep.subr.mxu0 %v1772
          %2792 = vmatpush1.msra.mxu0 %v1771
          %2793 = vmatprep.subr.mxu0 %v1776
          %2794 = vmatpush1.msra.mxu0 %v1775
          %2795 = vmatprep.subr.mxu0 %v1780
          %2796 = vmatpush1.msra.mxu0 %v1779
          %2797 = vmatprep.subr.mxu0 %v1784
          %2798 = vmatpush1.msra.mxu0 %v1783
          %2799 = vmatprep.subr.mxu0 %v1788
          %2800 = vmatpush1.msra.mxu0 %v1787
          %2801 = vmatprep.subr.mxu0 %v1792
          %2802 = vmatpush1.msra.mxu0 %v1791
          %2803 = vmatprep.subr.mxu0 %v1796
          %2804 = vmatpush1.msra.mxu0 %v1795
          %2805 = vmatprep.subr.mxu0 %v1800
          %2806 = vmatpush1.msra.mxu0 %v1799
          %2807 = vmatprep.subr.mxu0 0.0
          %2808 = vmatpush1.msra.mxu0 0.0
          %2809 = vmatprep.subr.mxu0 0.0
          %2810 = vmatpush1.msra.mxu0 0.0
          %2811 = vmatprep.subr.mxu0 0.0
          %2812 = vmatpush1.msra.mxu0 0.0
          %2813 = vmatprep.subr.mxu0 0.0
          %2814 = vmatpush1.msra.mxu0 0.0
          %2815 = vmatprep.subr.mxu0 0.0
          %2816 = vmatpush1.msra.mxu0 0.0
          %2817 = vmatprep.subr.mxu0 0.0
          %2818 = vmatpush1.msra.mxu0 0.0
          %2819 = vmatprep.subr.mxu0 0.0
          %2820 = vmatpush1.msra.mxu0 0.0
          %2821 = vmatprep.subr.mxu0 0.0
          %2822 = vmatpush1.msra.mxu0 0.0
          %2823 = vmatprep.subr.mxu0 0.0
          %2824 = vmatpush1.msra.mxu0 0.0
          %2825 = vmatprep.subr.mxu0 0.0
          %2826 = vmatpush1.msra.mxu0 0.0
          %2827 = vmatprep.subr.mxu0 0.0
          %2828 = vmatpush1.msra.mxu0 0.0
          %2829 = vmatprep.subr.mxu0 0.0
          %2830 = vmatpush1.msra.mxu0 0.0
          %2831 = vmatprep.subr.mxu0 0.0
          %2832 = vmatpush1.msra.mxu0 0.0
          %2833 = vmatprep.subr.mxu0 0.0
          %2834 = vmatpush1.msra.mxu0 0.0
          %2835 = vmatprep.subr.mxu0 0.0
          %2836 = vmatpush1.msra.mxu0 0.0
          %2837 = vmatprep.subr.mxu0 0.0
          %2838 = vmatpush1.msra.mxu0 0.0
          %2839 = vmatprep.mubr.f32.mxu0 0.0
          %2840 = vmatmul.mubr.f32.gmra.mrb[0].mxu0 %v2698
          %v2841 = vpop.f32.mrb[0].mxu0
          %v2842 = vadd.f32 0.0, %v2841
          %v2843 = vpop.f32.mrb[0].mxu0
          %v2844 = vadd.f32 0.0, %v2843
          %2845 = vdwg.mxu0
          %v2846 = vadd.f32 %v2700, %v2771
          %v2847 = vadd.f32 %v2701, %v2773
          %v2848 = vadd.f32 %v2702, %v2842
          %v2849 = vadd.f32 %v2703, %v2844
          %v2850 = vmul.f32 %v2846, 0.5
          %v2851 = vtanh.pop %v2850
          %v2852 = vmul.f32 %v2851, 0.5
          %v2853 = vadd.f32 %v2852, 0.5
          %v2854 = vmul.f32 %v2847, 0.5
          %v2855 = vtanh.pop %v2854
          %v2856 = vmul.f32 %v2855, 0.5
          %v2857 = vadd.f32 %v2856, 0.5
          %v2858 = vtanh.pop %v2848
          %v2859 = vmul.f32 %v2849, 0.5
          %v2860 = vtanh.pop %v2859
          %v2861 = vmul.f32 %v2860, 0.5
          %v2862 = vadd.f32 %v2861, 0.5
          %v2863 = vmul.f32 %v2857, %v2699
          %v2864 = vmul.f32 %v2853, %v2858
          %v2865 = vadd.f32 %v2863, %v2864
          %v2866 = vtanh.pop %v2865
          %v2867 = vmul.f32 %v2862, %v2866
          %vm2868 = vcmp.gt.s32.totalorder %v1803, 5
          %v2869 = vsel %vm2868, 1, 0
          %2870 = vset.pattern.permute.xlu0 0
          %2871 = vperm.xlu0 %2870, %v2869
          %v2872 = vpop.permute.xlu0 %2871
          %vm2873 = vcmp.eq.s32.totalorder %v2872, 1
          %v2874 = vsel %vm2873, %v2867, 0.0
          %s2875 = scalar_lea.vmem [#allocation3], 40
          %2876 = vst [vmem:[%s2875] sm:$0xff] %v2874
          %v2877 = vsel %vm2873, %v2867, %v2698
          %v2878 = vsel %vm2873, %v2865, %v2699
          %v2879 = vld [vmem:[%s1583] sm:$0xff]
          %v2880 = vld [vmem:[%s1583 + $0x8] sm:$0xff]
          %v2881 = vld [vmem:[%s1583 + $0x10] sm:$0xff]
          %v2882 = vld [vmem:[%s1583 + $0x18] sm:$0xff]
          %2883 = vmatprep.subr.mxu0 %v1738
          %2884 = vmatpush1.msra.mxu0 %v1737
          %2885 = vmatprep.subr.mxu0 %v1742
          %2886 = vmatpush1.msra.mxu0 %v1741
          %2887 = vmatprep.subr.mxu0 %v1746
          %2888 = vmatpush1.msra.mxu0 %v1745
          %2889 = vmatprep.subr.mxu0 %v1750
          %2890 = vmatpush1.msra.mxu0 %v1749
          %2891 = vmatprep.subr.mxu0 %v1754
          %2892 = vmatpush1.msra.mxu0 %v1753
          %2893 = vmatprep.subr.mxu0 %v1758
          %2894 = vmatpush1.msra.mxu0 %v1757
          %2895 = vmatprep.subr.mxu0 %v1762
          %2896 = vmatpush1.msra.mxu0 %v1761
          %2897 = vmatprep.subr.mxu0 %v1766
          %2898 = vmatpush1.msra.mxu0 %v1765
          %2899 = vmatprep.subr.mxu0 %v1770
          %2900 = vmatpush1.msra.mxu0 %v1769
          %2901 = vmatprep.subr.mxu0 %v1774
          %2902 = vmatpush1.msra.mxu0 %v1773
          %2903 = vmatprep.subr.mxu0 %v1778
          %2904 = vmatpush1.msra.mxu0 %v1777
          %2905 = vmatprep.subr.mxu0 %v1782
          %2906 = vmatpush1.msra.mxu0 %v1781
          %2907 = vmatprep.subr.mxu0 %v1786
          %2908 = vmatpush1.msra.mxu0 %v1785
          %2909 = vmatprep.subr.mxu0 %v1790
          %2910 = vmatpush1.msra.mxu0 %v1789
          %2911 = vmatprep.subr.mxu0 %v1794
          %2912 = vmatpush1.msra.mxu0 %v1793
          %2913 = vmatprep.subr.mxu0 %v1798
          %2914 = vmatpush1.msra.mxu0 %v1797
          %2915 = vmatprep.subr.mxu0 0.0
          %2916 = vmatpush1.msra.mxu0 0.0
          %2917 = vmatprep.subr.mxu0 0.0
          %2918 = vmatpush1.msra.mxu0 0.0
          %2919 = vmatprep.subr.mxu0 0.0
          %2920 = vmatpush1.msra.mxu0 0.0
          %2921 = vmatprep.subr.mxu0 0.0
          %2922 = vmatpush1.msra.mxu0 0.0
          %2923 = vmatprep.subr.mxu0 0.0
          %2924 = vmatpush1.msra.mxu0 0.0
          %2925 = vmatprep.subr.mxu0 0.0
          %2926 = vmatpush1.msra.mxu0 0.0
          %2927 = vmatprep.subr.mxu0 0.0
          %2928 = vmatpush1.msra.mxu0 0.0
          %2929 = vmatprep.subr.mxu0 0.0
          %2930 = vmatpush1.msra.mxu0 0.0
          %2931 = vmatprep.subr.mxu0 0.0
          %2932 = vmatpush1.msra.mxu0 0.0
          %2933 = vmatprep.subr.mxu0 0.0
          %2934 = vmatpush1.msra.mxu0 0.0
          %2935 = vmatprep.subr.mxu0 0.0
          %2936 = vmatpush1.msra.mxu0 0.0
          %2937 = vmatprep.subr.mxu0 0.0
          %2938 = vmatpush1.msra.mxu0 0.0
          %2939 = vmatprep.subr.mxu0 0.0
          %2940 = vmatpush1.msra.mxu0 0.0
          %2941 = vmatprep.subr.mxu0 0.0
          %2942 = vmatpush1.msra.mxu0 0.0
          %2943 = vmatprep.subr.mxu0 0.0
          %2944 = vmatpush1.msra.mxu0 0.0
          %2945 = vmatprep.subr.mxu0 0.0
          %2946 = vmatpush1.msra.mxu0 0.0
          %2947 = vmatprep.mubr.f32.mxu0 0.0
          %2948 = vmatmul.mubr.f32.gmra.mrb[0].mxu0 %v2877
          %v2949 = vpop.f32.mrb[0].mxu0
          %v2950 = vadd.f32 0.0, %v2949
          %v2951 = vpop.f32.mrb[0].mxu0
          %v2952 = vadd.f32 0.0, %v2951
          %2953 = vdwg.mxu0
          %2954 = vmatprep.subr.mxu0 %v1740
          %2955 = vmatpush1.msra.mxu0 %v1739
          %2956 = vmatprep.subr.mxu0 %v1744
          %2957 = vmatpush1.msra.mxu0 %v1743
          %2958 = vmatprep.subr.mxu0 %v1748
          %2959 = vmatpush1.msra.mxu0 %v1747
          %2960 = vmatprep.subr.mxu0 %v1752
          %2961 = vmatpush1.msra.mxu0 %v1751
          %2962 = vmatprep.subr.mxu0 %v1756
          %2963 = vmatpush1.msra.mxu0 %v1755
          %2964 = vmatprep.subr.mxu0 %v1760
          %2965 = vmatpush1.msra.mxu0 %v1759
          %2966 = vmatprep.subr.mxu0 %v1764
          %2967 = vmatpush1.msra.mxu0 %v1763
          %2968 = vmatprep.subr.mxu0 %v1768
          %2969 = vmatpush1.msra.mxu0 %v1767
          %2970 = vmatprep.subr.mxu0 %v1772
          %2971 = vmatpush1.msra.mxu0 %v1771
          %2972 = vmatprep.subr.mxu0 %v1776
          %2973 = vmatpush1.msra.mxu0 %v1775
          %2974 = vmatprep.subr.mxu0 %v1780
          %2975 = vmatpush1.msra.mxu0 %v1779
          %2976 = vmatprep.subr.mxu0 %v1784
          %2977 = vmatpush1.msra.mxu0 %v1783
          %2978 = vmatprep.subr.mxu0 %v1788
          %2979 = vmatpush1.msra.mxu0 %v1787
          %2980 = vmatprep.subr.mxu0 %v1792
          %2981 = vmatpush1.msra.mxu0 %v1791
          %2982 = vmatprep.subr.mxu0 %v1796
          %2983 = vmatpush1.msra.mxu0 %v1795
          %2984 = vmatprep.subr.mxu0 %v1800
          %2985 = vmatpush1.msra.mxu0 %v1799
          %2986 = vmatprep.subr.mxu0 0.0
          %2987 = vmatpush1.msra.mxu0 0.0
          %2988 = vmatprep.subr.mxu0 0.0
          %2989 = vmatpush1.msra.mxu0 0.0
          %2990 = vmatprep.subr.mxu0 0.0
          %2991 = vmatpush1.msra.mxu0 0.0
          %2992 = vmatprep.subr.mxu0 0.0
          %2993 = vmatpush1.msra.mxu0 0.0
          %2994 = vmatprep.subr.mxu0 0.0
          %2995 = vmatpush1.msra.mxu0 0.0
          %2996 = vmatprep.subr.mxu0 0.0
          %2997 = vmatpush1.msra.mxu0 0.0
          %2998 = vmatprep.subr.mxu0 0.0
          %2999 = vmatpush1.msra.mxu0 0.0
          %3000 = vmatprep.subr.mxu0 0.0
          %3001 = vmatpush1.msra.mxu0 0.0
          %3002 = vmatprep.subr.mxu0 0.0
          %3003 = vmatpush1.msra.mxu0 0.0
          %3004 = vmatprep.subr.mxu0 0.0
          %3005 = vmatpush1.msra.mxu0 0.0
          %3006 = vmatprep.subr.mxu0 0.0
          %3007 = vmatpush1.msra.mxu0 0.0
          %3008 = vmatprep.subr.mxu0 0.0
          %3009 = vmatpush1.msra.mxu0 0.0
          %3010 = vmatprep.subr.mxu0 0.0
          %3011 = vmatpush1.msra.mxu0 0.0
          %3012 = vmatprep.subr.mxu0 0.0
          %3013 = vmatpush1.msra.mxu0 0.0
          %3014 = vmatprep.subr.mxu0 0.0
          %3015 = vmatpush1.msra.mxu0 0.0
          %3016 = vmatprep.subr.mxu0 0.0
          %3017 = vmatpush1.msra.mxu0 0.0
          %3018 = vmatprep.mubr.f32.mxu0 0.0
          %3019 = vmatmul.mubr.f32.gmra.mrb[0].mxu0 %v2877
          %v3020 = vpop.f32.mrb[0].mxu0
          %v3021 = vadd.f32 0.0, %v3020
          %v3022 = vpop.f32.mrb[0].mxu0
          %v3023 = vadd.f32 0.0, %v3022
          %3024 = vdwg.mxu0
          %v3025 = vadd.f32 %v2879, %v2950
          %v3026 = vadd.f32 %v2880, %v2952
          %v3027 = vadd.f32 %v2881, %v3021
          %v3028 = vadd.f32 %v2882, %v3023
          %v3029 = vmul.f32 %v3025, 0.5
          %v3030 = vtanh.pop %v3029
          %v3031 = vmul.f32 %v3030, 0.5
          %v3032 = vadd.f32 %v3031, 0.5
          %v3033 = vmul.f32 %v3026, 0.5
          %v3034 = vtanh.pop %v3033
          %v3035 = vmul.f32 %v3034, 0.5
          %v3036 = vadd.f32 %v3035, 0.5
          %v3037 = vtanh.pop %v3027
          %v3038 = vmul.f32 %v3028, 0.5
          %v3039 = vtanh.pop %v3038
          %v3040 = vmul.f32 %v3039, 0.5
          %v3041 = vadd.f32 %v3040, 0.5
          %v3042 = vmul.f32 %v3036, %v2878
          %v3043 = vmul.f32 %v3032, %v3037
          %v3044 = vadd.f32 %v3042, %v3043
          %v3045 = vtanh.pop %v3044
          %v3046 = vmul.f32 %v3041, %v3045
          %vm3047 = vcmp.gt.s32.totalorder %v1803, 6
          %v3048 = vsel %vm3047, 1, 0
          %3049 = vset.pattern.permute.xlu0 0
          %3050 = vperm.xlu0 %3049, %v3048
          %v3051 = vpop.permute.xlu0 %3050
          %vm3052 = vcmp.eq.s32.totalorder %v3051, 1
          %v3053 = vsel %vm3052, %v3046, 0.0
          %s3054 = scalar_lea.vmem [#allocation3], 48
          %3055 = vst [vmem:[%s3054] sm:$0xff] %v3053
          %v3056 = vsel %vm3052, %v3046, %v2877
          %v3057 = vsel %vm3052, %v3044, %v2878
          %v3058 = vld [vmem:[%s1732] sm:$0xff]
          %v3059 = vld [vmem:[%s1732 + $0x8] sm:$0xff]
          %v3060 = vld [vmem:[%s1732 + $0x10] sm:$0xff]
          %v3061 = vld [vmem:[%s1732 + $0x18] sm:$0xff]
          %3062 = vmatprep.subr.mxu0 %v1738
          %3063 = vmatpush1.msra.mxu0 %v1737
          %3064 = vmatprep.subr.mxu0 %v1742
          %3065 = vmatpush1.msra.mxu0 %v1741
          %3066 = vmatprep.subr.mxu0 %v1746
          %3067 = vmatpush1.msra.mxu0 %v1745
          %3068 = vmatprep.subr.mxu0 %v1750
          %3069 = vmatpush1.msra.mxu0 %v1749
          %3070 = vmatprep.subr.mxu0 %v1754
          %3071 = vmatpush1.msra.mxu0 %v1753
          %3072 = vmatprep.subr.mxu0 %v1758
          %3073 = vmatpush1.msra.mxu0 %v1757
          %3074 = vmatprep.subr.mxu0 %v1762
          %3075 = vmatpush1.msra.mxu0 %v1761
          %3076 = vmatprep.subr.mxu0 %v1766
          %3077 = vmatpush1.msra.mxu0 %v1765
          %3078 = vmatprep.subr.mxu0 %v1770
          %3079 = vmatpush1.msra.mxu0 %v1769
          %3080 = vmatprep.subr.mxu0 %v1774
          %3081 = vmatpush1.msra.mxu0 %v1773
          %3082 = vmatprep.subr.mxu0 %v1778
          %3083 = vmatpush1.msra.mxu0 %v1777
          %3084 = vmatprep.subr.mxu0 %v1782
          %3085 = vmatpush1.msra.mxu0 %v1781
          %3086 = vmatprep.subr.mxu0 %v1786
          %3087 = vmatpush1.msra.mxu0 %v1785
          %3088 = vmatprep.subr.mxu0 %v1790
          %3089 = vmatpush1.msra.mxu0 %v1789
          %3090 = vmatprep.subr.mxu0 %v1794
          %3091 = vmatpush1.msra.mxu0 %v1793
          %3092 = vmatprep.subr.mxu0 %v1798
          %3093 = vmatpush1.msra.mxu0 %v1797
          %3094 = vmatprep.subr.mxu0 0.0
          %3095 = vmatpush1.msra.mxu0 0.0
          %3096 = vmatprep.subr.mxu0 0.0
          %3097 = vmatpush1.msra.mxu0 0.0
          %3098 = vmatprep.subr.mxu0 0.0
          %3099 = vmatpush1.msra.mxu0 0.0
          %3100 = vmatprep.subr.mxu0 0.0
          %3101 = vmatpush1.msra.mxu0 0.0
          %3102 = vmatprep.subr.mxu0 0.0
          %3103 = vmatpush1.msra.mxu0 0.0
          %3104 = vmatprep.subr.mxu0 0.0
          %3105 = vmatpush1.msra.mxu0 0.0
          %3106 = vmatprep.subr.mxu0 0.0
          %3107 = vmatpush1.msra.mxu0 0.0
          %3108 = vmatprep.subr.mxu0 0.0
          %3109 = vmatpush1.msra.mxu0 0.0
          %3110 = vmatprep.subr.mxu0 0.0
          %3111 = vmatpush1.msra.mxu0 0.0
          %3112 = vmatprep.subr.mxu0 0.0
          %3113 = vmatpush1.msra.mxu0 0.0
          %3114 = vmatprep.subr.mxu0 0.0
          %3115 = vmatpush1.msra.mxu0 0.0
          %3116 = vmatprep.subr.mxu0 0.0
          %3117 = vmatpush1.msra.mxu0 0.0
          %3118 = vmatprep.subr.mxu0 0.0
          %3119 = vmatpush1.msra.mxu0 0.0
          %3120 = vmatprep.subr.mxu0 0.0
          %3121 = vmatpush1.msra.mxu0 0.0
          %3122 = vmatprep.subr.mxu0 0.0
          %3123 = vmatpush1.msra.mxu0 0.0
          %3124 = vmatprep.subr.mxu0 0.0
          %3125 = vmatpush1.msra.mxu0 0.0
          %3126 = vmatprep.mubr.f32.mxu0 0.0
          %3127 = vmatmul.mubr.f32.gmra.mrb[0].mxu0 %v3056
          %v3128 = vpop.f32.mrb[0].mxu0
          %v3129 = vadd.f32 0.0, %v3128
          %v3130 = vpop.f32.mrb[0].mxu0
          %v3131 = vadd.f32 0.0, %v3130
          %3132 = vdwg.mxu0
          %3133 = vmatprep.subr.mxu0 %v1740
          %3134 = vmatpush1.msra.mxu0 %v1739
          %3135 = vmatprep.subr.mxu0 %v1744
          %3136 = vmatpush1.msra.mxu0 %v1743
          %3137 = vmatprep.subr.mxu0 %v1748
          %3138 = vmatpush1.msra.mxu0 %v1747
          %3139 = vmatprep.subr.mxu0 %v1752
          %3140 = vmatpush1.msra.mxu0 %v1751
          %3141 = vmatprep.subr.mxu0 %v1756
          %3142 = vmatpush1.msra.mxu0 %v1755
          %3143 = vmatprep.subr.mxu0 %v1760
          %3144 = vmatpush1.msra.mxu0 %v1759
          %3145 = vmatprep.subr.mxu0 %v1764
          %3146 = vmatpush1.msra.mxu0 %v1763
          %3147 = vmatprep.subr.mxu0 %v1768
          %3148 = vmatpush1.msra.mxu0 %v1767
          %3149 = vmatprep.subr.mxu0 %v1772
          %3150 = vmatpush1.msra.mxu0 %v1771
          %3151 = vmatprep.subr.mxu0 %v1776
          %3152 = vmatpush1.msra.mxu0 %v1775
          %3153 = vmatprep.subr.mxu0 %v1780
          %3154 = vmatpush1.msra.mxu0 %v1779
          %3155 = vmatprep.subr.mxu0 %v1784
          %3156 = vmatpush1.msra.mxu0 %v1783
          %3157 = vmatprep.subr.mxu0 %v1788
          %3158 = vmatpush1.msra.mxu0 %v1787
          %3159 = vmatprep.subr.mxu0 %v1792
          %3160 = vmatpush1.msra.mxu0 %v1791
          %3161 = vmatprep.subr.mxu0 %v1796
          %3162 = vmatpush1.msra.mxu0 %v1795
          %3163 = vmatprep.subr.mxu0 %v1800
          %3164 = vmatpush1.msra.mxu0 %v1799
          %3165 = vmatprep.subr.mxu0 0.0
          %3166 = vmatpush1.msra.mxu0 0.0
          %3167 = vmatprep.subr.mxu0 0.0
          %3168 = vmatpush1.msra.mxu0 0.0
          %3169 = vmatprep.subr.mxu0 0.0
          %3170 = vmatpush1.msra.mxu0 0.0
          %3171 = vmatprep.subr.mxu0 0.0
          %3172 = vmatpush1.msra.mxu0 0.0
          %3173 = vmatprep.subr.mxu0 0.0
          %3174 = vmatpush1.msra.mxu0 0.0
          %3175 = vmatprep.subr.mxu0 0.0
          %3176 = vmatpush1.msra.mxu0 0.0
          %3177 = vmatprep.subr.mxu0 0.0
          %3178 = vmatpush1.msra.mxu0 0.0
          %3179 = vmatprep.subr.mxu0 0.0
          %3180 = vmatpush1.msra.mxu0 0.0
          %3181 = vmatprep.subr.mxu0 0.0
          %3182 = vmatpush1.msra.mxu0 0.0
          %3183 = vmatprep.subr.mxu0 0.0
          %3184 = vmatpush1.msra.mxu0 0.0
          %3185 = vmatprep.subr.mxu0 0.0
          %3186 = vmatpush1.msra.mxu0 0.0
          %3187 = vmatprep.subr.mxu0 0.0
          %3188 = vmatpush1.msra.mxu0 0.0
          %3189 = vmatprep.subr.mxu0 0.0
          %3190 = vmatpush1.msra.mxu0 0.0
          %3191 = vmatprep.subr.mxu0 0.0
          %3192 = vmatpush1.msra.mxu0 0.0
          %3193 = vmatprep.subr.mxu0 0.0
          %3194 = vmatpush1.msra.mxu0 0.0
          %3195 = vmatprep.subr.mxu0 0.0
          %3196 = vmatpush1.msra.mxu0 0.0
          %3197 = vmatprep.mubr.f32.mxu0 0.0
          %3198 = vmatmul.mubr.f32.gmra.mrb[0].mxu0 %v3056
          %v3199 = vpop.f32.mrb[0].mxu0
          %v3200 = vadd.f32 0.0, %v3199
          %v3201 = vpop.f32.mrb[0].mxu0
          %v3202 = vadd.f32 0.0, %v3201
          %3203 = vdwg.mxu0
          %v3204 = vadd.f32 %v3058, %v3129
          %v3205 = vadd.f32 %v3059, %v3131
          %v3206 = vadd.f32 %v3060, %v3200
          %v3207 = vadd.f32 %v3061, %v3202
          %v3208 = vmul.f32 %v3204, 0.5
          %v3209 = vtanh.pop %v3208
          %v3210 = vmul.f32 %v3209, 0.5
          %v3211 = vadd.f32 %v3210, 0.5
          %v3212 = vmul.f32 %v3205, 0.5
          %v3213 = vtanh.pop %v3212
          %v3214 = vmul.f32 %v3213, 0.5
          %v3215 = vadd.f32 %v3214, 0.5
          %v3216 = vtanh.pop %v3206
          %v3217 = vmul.f32 %v3207, 0.5
          %v3218 = vtanh.pop %v3217
          %v3219 = vmul.f32 %v3218, 0.5
          %v3220 = vadd.f32 %v3219, 0.5
          %v3221 = vmul.f32 %v3215, %v3057
          %v3222 = vmul.f32 %v3211, %v3216
          %v3223 = vadd.f32 %v3221, %v3222
          %v3224 = vtanh.pop %v3223
          %v3225 = vmul.f32 %v3220, %v3224
          %vm3226 = vcmp.gt.s32.totalorder %v1803, 7
          %v3227 = vsel %vm3226, 1, 0
          %3228 = vset.pattern.permute.xlu0 0
          %3229 = vperm.xlu0 %3228, %v3227
          %v3230 = vpop.permute.xlu0 %3229
          %vm3231 = vcmp.eq.s32.totalorder %v3230, 1
          %v3232 = vsel %vm3231, %v3225, 0.0
          %s3233 = scalar_lea.vmem [#allocation3], 56
          %3234 = vst [vmem:[%s3233] sm:$0xff] %v3232
          %v3235 = vsel %vm3231, %v3225, %v3056
          %v3236 = vsel %vm3231, %v3223, %v3057
          %3237 = vst [vmem:[#allocation4] sm:$0xff] %v3235
          %3238 = vst [vmem:[#allocation5] sm:$0xff] %v3236
          %v3239 = vld [vmem:[#allocation3] sm:$0xff]
          %v3240 = vld [vmem:[#allocation3 + $0x8] sm:$0xff]
          %v3241 = vld [vmem:[#allocation3 + $0x10] sm:$0xff]
          %v3242 = vld [vmem:[#allocation3 + $0x18] sm:$0xff]
          %v3243 = vld [vmem:[#allocation3 + $0x20] sm:$0xff]
          %v3244 = vld [vmem:[#allocation3 + $0x28] sm:$0xff]
          %v3245 = vld [vmem:[#allocation3 + $0x30] sm:$0xff]
          %v3246 = vld [vmem:[#allocation3 + $0x38] sm:$0xff]
          %3247 = vst [vmem:[%s427] sm:$0xff] %v3239
          %3248 = vst [vmem:[%s427 + $0x8] sm:$0xff] %v3240
          %3249 = vst [vmem:[%s427 + $0x10] sm:$0xff] %v3241
          %3250 = vst [vmem:[%s427 + $0x18] sm:$0xff] %v3242
          %3251 = vst [vmem:[%s427 + $0x20] sm:$0xff] %v3243
          %3252 = vst [vmem:[%s427 + $0x28] sm:$0xff] %v3244
          %3253 = vst [vmem:[%s427 + $0x30] sm:$0xff] %v3245
          %3254 = vst [vmem:[%s427 + $0x38] sm:$0xff] %v3246
        $region68: #{encoder_lstm_oscar_pallas.1} parent=47 // pred_fallthru
          _
        %p3255 = scmp.eq.s32.totalorder %s30, 1
        // Predicated region
        $region69: #{encoder_lstm_oscar_pallas.1} parent=47 // pred_check
          %p3256 = pneg %p3255
        $region70: #{encoder_lstm_oscar_pallas.1} parent=47 // pred_check_branch
          %3258 = sbr.rel (%p3256) target = $region72
        $region71: #{encoder_lstm_oscar_pallas.1} parent=47 // pred_region
          %v3259 = vld [vmem:[#allocation5] sm:$0xff]
          %3260 = vst [vmem:[%s432] sm:$0xff] %v3259
          %v3261 = vld [vmem:[#allocation4] sm:$0xff]
          %v3262 = vld [vmem:[%s6] sm:$0xff]
          %v3263 = vld [vmem:[%s6 + $0x8] sm:$0xff]
          %v3264 = vld [vmem:[%s6 + $0x10] sm:$0xff]
          %v3265 = vld [vmem:[%s6 + $0x18] sm:$0xff]
          %v3266 = vld [vmem:[%s6 + $0x20] sm:$0xff]
          %v3267 = vld [vmem:[%s6 + $0x28] sm:$0xff]
          %v3268 = vld [vmem:[%s6 + $0x30] sm:$0xff]
          %v3269 = vld [vmem:[%s6 + $0x38] sm:$0xff]
          %v3270 = vld [vmem:[%s6 + $0x40] sm:$0xff]
          %v3271 = vld [vmem:[%s6 + $0x48] sm:$0xff]
          %v3272 = vld [vmem:[%s6 + $0x50] sm:$0xff]
          %v3273 = vld [vmem:[%s6 + $0x58] sm:$0xff]
          %v3274 = vld [vmem:[%s6 + $0x60] sm:$0xff]
          %v3275 = vld [vmem:[%s6 + $0x68] sm:$0xff]
          %v3276 = vld [vmem:[%s6 + $0x70] sm:$0xff]
          %v3277 = vld [vmem:[%s6 + $0x78] sm:$0xff]
          %v3278 = vld [vmem:[%s7] sm:$0x1]
          %v3280 = vlaneseq
          %v3281 = vshrl.u32 %v3280, 7
          %v3282 = vsub.s32 0, %v3281
          %v3283 = vrot.slane %v3278, %v3282
          %3285 = vmatprep.subr.mxu0 0.0
          %3286 = vmatpush1.msra.mxu0 %v3262
          %3287 = vmatprep.subr.mxu0 0.0
          %3288 = vmatpush1.msra.mxu0 %v3263
          %3289 = vmatprep.subr.mxu0 0.0
          %3290 = vmatpush1.msra.mxu0 %v3264
          %3291 = vmatprep.subr.mxu0 0.0
          %3292 = vmatpush1.msra.mxu0 %v3265
          %3293 = vmatprep.subr.mxu0 0.0
          %3294 = vmatpush1.msra.mxu0 %v3266
          %3295 = vmatprep.subr.mxu0 0.0
          %3296 = vmatpush1.msra.mxu0 %v3267
          %3297 = vmatprep.subr.mxu0 0.0
          %3298 = vmatpush1.msra.mxu0 %v3268
          %3299 = vmatprep.subr.mxu0 0.0
          %3300 = vmatpush1.msra.mxu0 %v3269
          %3301 = vmatprep.subr.mxu0 0.0
          %3302 = vmatpush1.msra.mxu0 %v3270
          %3303 = vmatprep.subr.mxu0 0.0
          %3304 = vmatpush1.msra.mxu0 %v3271
          %3305 = vmatprep.subr.mxu0 0.0
          %3306 = vmatpush1.msra.mxu0 %v3272
          %3307 = vmatprep.subr.mxu0 0.0
          %3308 = vmatpush1.msra.mxu0 %v3273
          %3309 = vmatprep.subr.mxu0 0.0
          %3310 = vmatpush1.msra.mxu0 %v3274
          %3311 = vmatprep.subr.mxu0 0.0
          %3312 = vmatpush1.msra.mxu0 %v3275
          %3313 = vmatprep.subr.mxu0 0.0
          %3314 = vmatpush1.msra.mxu0 %v3276
          %3315 = vmatprep.subr.mxu0 0.0
          %3316 = vmatpush1.msra.mxu0 %v3277
          %3317 = vmatprep.subr.mxu0 0.0
          %3318 = vmatpush1.msra.mxu0 0.0
          %3319 = vmatprep.subr.mxu0 0.0
          %3320 = vmatpush1.msra.mxu0 0.0
          %3321 = vmatprep.subr.mxu0 0.0
          %3322 = vmatpush1.msra.mxu0 0.0
          %3323 = vmatprep.subr.mxu0 0.0
          %3324 = vmatpush1.msra.mxu0 0.0
          %3325 = vmatprep.subr.mxu0 0.0
          %3326 = vmatpush1.msra.mxu0 0.0
          %3327 = vmatprep.subr.mxu0 0.0
          %3328 = vmatpush1.msra.mxu0 0.0
          %3329 = vmatprep.subr.mxu0 0.0
          %3330 = vmatpush1.msra.mxu0 0.0
          %3331 = vmatprep.subr.mxu0 0.0
          %3332 = vmatpush1.msra.mxu0 0.0
          %3333 = vmatprep.subr.mxu0 0.0
          %3334 = vmatpush1.msra.mxu0 0.0
          %3335 = vmatprep.subr.mxu0 0.0
          %3336 = vmatpush1.msra.mxu0 0.0
          %3337 = vmatprep.subr.mxu0 0.0
          %3338 = vmatpush1.msra.mxu0 0.0
          %3339 = vmatprep.subr.mxu0 0.0
          %3340 = vmatpush1.msra.mxu0 0.0
          %3341 = vmatprep.subr.mxu0 0.0
          %3342 = vmatpush1.msra.mxu0 0.0
          %3343 = vmatprep.subr.mxu0 0.0
          %3344 = vmatpush1.msra.mxu0 0.0
          %3345 = vmatprep.subr.mxu0 0.0
          %3346 = vmatpush1.msra.mxu0 0.0
          %3347 = vmatprep.subr.mxu0 0.0
          %3348 = vmatpush1.msra.mxu0 0.0
          %3349 = vmatprep.mubr.f32.mxu0 0.0
          %3350 = vmatmul.mubr.f32.gmra.mrb[0].mxu0 %v3261
          %v3351 = vpop.f32.mrb[0].mxu0
          %v3352 = vadd.f32 %v3283, %v3351
          %v3353 = vpop.f32.mrb[0].mxu0
          %3354 = vdwg.mxu0
          %v3355 = vtanh.pop %v3352
          %3356 = vst [vmem:[%s436] sm:$0xff] %v3355
        $region72: #{encoder_lstm_oscar_pallas.1} parent=47 // pred_fallthru
          _
        %s3357 = smul.u32 8, %s30
        %p3358 = scmp.lt.s32.totalorder %s3357, 15
        %s3359 = scalar_select %p3358, %s3357, 15
        %p3360 = scmp.lt.s32.totalorder %s29, 0
        %s3361 = scalar_select %p3360, %s29, 0
        %s3362 = sadd.s32 %s3361, %s3359
        %s3363 = smul.addr %s3362, 8
        %s3364 = scalar_lea.vmem %s8, %s3363
        %p3365 = scmp.lt.s32.totalorder %s29, 0
        %s3366 = scalar_select %p3365, %s29, 0
        %s3367 = smul.addr %s3366, 8
        %s3368 = scalar_lea.vmem %s9, %s3367
        %p3369 = scmp.lt.s32.totalorder %s29, 0
        %s3370 = scalar_select %p3369, %s29, 0
        %s3371 = smul.addr %s3370, 8
        %s3372 = scalar_lea.vmem %s10, %s3371
        // Predicated region
        $region73: #{encoder_lstm_oscar_pallas.1} parent=47 // pred_check
          %p3373 = pneg %p216
        $region74: #{encoder_lstm_oscar_pallas.1} parent=47 // pred_check_branch
          %3375 = sbr.rel (%p3373) target = $region76
        $region75: #{encoder_lstm_oscar_pallas.1} parent=47 // pred_region
          %s3376 = smul.u32 8, %s30
        $region76: #{encoder_lstm_oscar_pallas.1} parent=47 // pred_fallthru
          _
        // Predicated region
        $region77: #{encoder_lstm_oscar_pallas.1} parent=47 // pred_check
          %p3377 = pneg %p242
        $region78: #{encoder_lstm_oscar_pallas.1} parent=47 // pred_check_branch
          %3379 = sbr.rel (%p3377) target = $region80
        $region79: #{encoder_lstm_oscar_pallas.1} parent=47 // pred_region
          _
        $region80: #{encoder_lstm_oscar_pallas.1} parent=47 // pred_fallthru
          _
        // Predicated region
        $region81: #{encoder_lstm_oscar_pallas.1} parent=47 // pred_check
          %p3380 = pneg %p268
        $region82: #{encoder_lstm_oscar_pallas.1} parent=47 // pred_check_branch
          %3382 = sbr.rel (%p3380) target = $region84
        $region83: #{encoder_lstm_oscar_pallas.1} parent=47 // pred_region
          _
        $region84: #{encoder_lstm_oscar_pallas.1} parent=47 // pred_fallthru
          _
        // Predicated region
        $region85: #{encoder_lstm_oscar_pallas.1} parent=47 // pred_check
          %p3383 = pneg %p242
        $region86: #{encoder_lstm_oscar_pallas.1} parent=47 // pred_check_branch
          %3385 = sbr.rel (%p3383) target = $region88
        $region87: #{encoder_lstm_oscar_pallas.1} parent=47 // pred_region
          %p3386 = scmp.lt.s32.totalorder %s29, 0
          %s3387 = scalar_select %p3386, %s29, 0
          %s3388 = smul.addr %s3387, 8
          %s3389 = scalar_lea.vmem %s9, %s3388
        $region88: #{encoder_lstm_oscar_pallas.1} parent=47 // pred_fallthru
          _
        // Predicated region
        $region89: #{encoder_lstm_oscar_pallas.1} parent=47 // pred_check
          %p3390 = pneg %p268
        $region90: #{encoder_lstm_oscar_pallas.1} parent=47 // pred_check_branch
          %3392 = sbr.rel (%p3390) target = $region92
        $region91: #{encoder_lstm_oscar_pallas.1} parent=47 // pred_region
          %p3393 = scmp.lt.s32.totalorder %s29, 0
          %s3394 = scalar_select %p3393, %s29, 0
          %s3395 = smul.addr %s3394, 8
          %s3396 = scalar_lea.vmem %s10, %s3395
        $region92: #{encoder_lstm_oscar_pallas.1} parent=47 // pred_fallthru
          _
      $region48: #{encoder_lstm_oscar_pallas.1} parent=5 // pred_fallthru
        _
      %p3397 = scmp.le.s32.totalorder 2, %s20
      // Predicated region
      $region93: #{encoder_lstm_oscar_pallas.1} parent=5 // pred_check
        %p3398 = pneg %p3397
      $region94: #{encoder_lstm_oscar_pallas.1} parent=5 // pred_check_branch
        %3400 = sbr.rel (%p3398) target = $region96
      $region95: #{encoder_lstm_oscar_pallas.1} parent=5 // pred_region
        %s3401 = ssub.s32 %s20, 2
        // Predicated region
        $region97: #{encoder_lstm_oscar_pallas.1} parent=95 // pred_check
          %p3402 = pneg %p222
        $region98: #{encoder_lstm_oscar_pallas.1} parent=95 // pred_check_branch
          %3404 = sbr.rel (%p3402) target = $region100
        $region99: #{encoder_lstm_oscar_pallas.1} parent=95 // pred_region
          %s3405 = smul.u32 8, %s32
          %p3406 = scmp.lt.s32.totalorder %s3405, 15
          %s3407 = scalar_select %p3406, %s3405, 15
          %p3408 = scmp.lt.s32.totalorder %s31, 0
          %s3409 = scalar_select %p3408, %s31, 0
          %s3410 = sadd.s32 %s3409, %s3407
          %s3411 = smul.addr %s3410, 8
          %s3412 = scalar_lea.vmem %s8, %s3411
        $region100: #{encoder_lstm_oscar_pallas.1} parent=95 // pred_fallthru
          _
      $region96: #{encoder_lstm_oscar_pallas.1} parent=5 // pred_fallthru
        _
    $region6: #{encoder_lstm_oscar_pallas.1} parent=1 // loop_footer
      %s24 = sadd.s32 1, %s20
    $region7: #{encoder_lstm_oscar_pallas.1} parent=1 // loop_footer_branch
      %19 = sbr.rel target = $region3
    $region8: #{encoder_lstm_oscar_pallas.1} parent=1 // loop_exit
      _
    %3413 = vsyncpa [#allocation9], 1
    %s3414 = scalar_lea.sflag [#allocation9], 1
    %3415 = vsyncpa %s3414, 1
    %3416 = vsyncpa [#allocation11], 1

</llo_original>
